<compile_context>
chip_gen: v5e
topology: v5e:2x2
jax: 0.10.0
libtpu: 0.0.40
codegen_flags: <defaults>
</compile_context>

<pallas_src>
import math

import jax
import jax.numpy as jnp
from jax.experimental import pallas as pl
from jax.experimental.pallas import tpu as pltpu

_BN_EPS = 1e-5


# --------------------------------------------------------------------------------------
# Static architecture plan (Python ints only)
# --------------------------------------------------------------------------------------

def build_plan(in_ch, hidden, num_classes, length):
    assert length % 4 == 0, "toy plan assumes length divisible by 4"
    L_conv = (length + 2 * 7 - 15) // 2 + 1          # stem conv: K=15, s=2, p=7
    L_pool = (L_conv + 2 * 1 - 3) // 2 + 1           # maxpool : K=3,  s=2, p=1
    blocks = []
    L = L_pool
    for cin, cout, s in [(hidden, hidden, 1),
                         (hidden, hidden * 2, 2),
                         (hidden * 2, hidden * 4, 2),
                         (hidden * 4, hidden * 8, 2)]:
        for ci, st in [(cin, s), (cout, 1)]:
            if st != 1:
                assert L % 2 == 0, "stride-2 block needs an even input length"
            L_out = (L - 1) // st + 1
            blocks.append(dict(cin=ci, cout=cout, stride=st, L_in=L, L_out=L_out,
                               has_down=(st != 1 or ci != cout)))
            L = L_out
    return dict(in_ch=in_ch, hidden=hidden, num_classes=num_classes,
                L_in=length, L_conv=L_conv, L_pool=L_pool, L_final=L, blocks=blocks)


# --------------------------------------------------------------------------------------
# Parameters (conv init mirrors the PyTorch module; eval-mode BN folded into weights)
# --------------------------------------------------------------------------------------

def init_params(key, plan):
    keys = iter(jax.random.split(key, 4 * len(plan["blocks"]) + 8))
    in_ch, hidden, nc = plan["in_ch"], plan["hidden"], plan["num_classes"]

    def conv_w(K, cin, cout):
        # Mirrors the reference init: n = kernel_size[0]**2 * out_channels.
        n = K * K * cout
        return jax.random.normal(next(keys), (K, cin, cout), jnp.float32) * math.sqrt(2.0 / n)

    def bn_stats(cout):
        # gamma, beta, running_mean, running_var at module init.
        return (jnp.ones((cout,), jnp.float32), jnp.zeros((cout,), jnp.float32),
                jnp.zeros((cout,), jnp.float32), jnp.ones((cout,), jnp.float32))

    def fold_bn(w_kco, gamma, beta, mean, var):
        scale = gamma / jnp.sqrt(var + _BN_EPS)
        return w_kco * scale[None, None, :], (beta - mean * scale).reshape(1, -1)

    def conv_bn_flat(K, cin, cout):
        w, b = fold_bn(conv_w(K, cin, cout), *bn_stats(cout))
        return w.reshape(K * cin, cout).astype(jnp.bfloat16), b

    # ---- stem: Conv1d(K=15, s=2, p=7)+BN, packed for the space-to-depth input ----
    w_stem, b_stem = fold_bn(conv_w(15, in_ch, hidden), *bn_stats(hidden))
    taps = []
    for t in range(8):                               # s2d tap t covers input taps 2t, 2t+1
        even = w_stem[2 * t]
        odd = (w_stem[2 * t + 1] if 2 * t + 1 < 15
               else jnp.zeros((in_ch, hidden), jnp.float32))
        taps.append(jnp.concatenate([even, odd], axis=0))     # (2*in_ch, hidden)
    params = {"stem_w": jnp.concatenate(taps, axis=0).astype(jnp.bfloat16),  # (16*in_ch, H)
              "stem_b": b_stem}

    blocks = []
    for cfg in plan["blocks"]:
        cin, cout = cfg["cin"], cfg["cout"]
        bp = {}
        bp["w1"], bp["b1"] = conv_bn_flat(3, cin, cout)       # K=3, d=1, s=1, p=1
        bp["w2"], bp["b2"] = conv_bn_flat(3, cout, cout)      # K=3, d=2, s=stride, p=2
        bp["w3"], bp["b3"] = conv_bn_flat(3, cout, cout)      # K=3, d=4, s=1, p=4
        if cfg["has_down"]:
            bp["wd"], bp["bd"] = conv_bn_flat(1, cin, cout)   # 1x1, s=stride
        blocks.append(bp)
    params["blocks"] = blocks

    fin = plan["blocks"][-1]["cout"]
    bound = 1.0 / math.sqrt(fin)
    params["fc_w"] = jax.random.uniform(next(keys), (fin, nc), jnp.float32, -bound, bound)
    params["fc_b"] = jax.random.uniform(next(keys), (1, nc), jnp.float32, -bound, bound)
    return params


# --------------------------------------------------------------------------------------
# Fused kernel
# --------------------------------------------------------------------------------------

def _make_kernel(plan, N):
    blocks = plan["blocks"]
    in2 = 2 * plan["in_ch"]
    L_conv, L_pool = plan["L_conv"], plan["L_pool"]
    seg_s2d = (plan["L_in"] + 14) // 2
    seg_pool = L_conv + 2

    def kernel(*refs):
        it = iter(refs)
        x_ref = next(it)                               # (N*seg_s2d, 2*Cin) s2d stem input
        stem_w, stem_b = next(it), next(it)
        wrefs = []
        for cfg in blocks:
            r = {k: next(it) for k in ("w1", "b1", "w2", "b2", "w3", "b3")}
            if cfg["has_down"]:
                r["wd"], r["bd"] = next(it), next(it)
            wrefs.append(r)
        fc_w, fc_b = next(it), next(it)
        o_ref = next(it)
        pool_pad = next(it)
        pads = [(next(it), next(it), next(it)) for _ in blocks]
        feats = next(it)

        # One-time zero of the pad slabs (only the halo rows strictly need it; the whole
        # network is a single grid step so this is a tiny one-off cost, not per-step).
        pool_pad[...] = jnp.zeros_like(pool_pad)
        for p1, p2, p3 in pads:
            p1[...] = jnp.zeros_like(p1)
            p2[...] = jnp.zeros_like(p2)
            p3[...] = jnp.zeros_like(p3)

        def tap_dot(pad_ref, w_ref, b_ref, *, K, dil, stride, seg, L_out, cin):
            """Conv over the whole (all-batch) pad slab as K accumulating bf16 MXU dots.

            Valid output rows for batch n live at m = n*(seg//stride) + l, l in [0, L_out);
            rows in between are halo garbage that is never consumed.
            """
            M = (N - 1) * (seg // stride) + L_out
            acc = None
            for k in range(K):
                start = k * dil
                tap = (pad_ref[pl.ds(start, M), :] if stride == 1
                       else pad_ref[pl.ds(start, M, stride), :])
                d = jnp.dot(tap.astype(jnp.bfloat16),
                            w_ref[pl.ds(k * cin, cin), :],
                            preferred_element_type=jnp.float32)
                acc = d if acc is None else acc + d
            return acc + b_ref[...]

        # ---------------- stem: Conv1d(K=15, s=2, p=7) + BN + ReLU ----------------
        # space-to-depth input => 8 contiguous taps, no strided reads.
        M_stem = (N - 1) * seg_s2d + L_conv
        acc = None
        for t in range(8):
            d = jnp.dot(x_ref[pl.ds(t, M_stem), :].astype(jnp.bfloat16),
                        stem_w[pl.ds(t * in2, in2), :],
                        preferred_element_type=jnp.float32)
            acc = d if acc is None else acc + d
        y = jnp.maximum(acc + stem_b[...], 0.0)        # valid rows at n*seg_s2d + l

        # ---------------- MaxPool1d(K=3, s=2, p=1) ----------------
        # Zero padding is exact: y >= 0 post-ReLU and every window has a valid element.
        for n in range(N):
            pool_pad[pl.ds(n * seg_pool + 1, L_conv), :] = y[n * seg_s2d:n * seg_s2d + L_conv]
        half = seg_pool // 2
        M_pool = (N - 1) * half + L_pool
        pooled = jnp.maximum(
            jnp.maximum(pool_pad[pl.ds(0, M_pool, 2), :],
                        pool_pad[pl.ds(1, M_pool, 2), :]),
            pool_pad[pl.ds(2, M_pool, 2), :])
        cur = [pooled[n * half:n * half + L_pool] for n in range(N)]   # per-batch (L, C)

        # ---------------- residual blocks ----------------
        for cfg, r, (pad1, pad2, pad3) in zip(blocks, wrefs, pads):
            L_in, L_out = cfg["L_in"], cfg["L_out"]
            cin, cout, s = cfg["cin"], cfg["cout"], cfg["stride"]
            seg1, seg2, seg3 = L_in + 2, L_in + 4, L_out + 8

            # conv1: K=3, d=1, s=1, p=1  (+BN+ReLU)
            for n in range(N):
                pad1[pl.ds(n * seg1 + 1, L_in), :] = cur[n]
            y1 = jnp.maximum(tap_dot(pad1, r["w1"], r["b1"], K=3, dil=1, stride=1,
                                     seg=seg1, L_out=L_in, cin=cin), 0.0)

            # conv2: K=3, d=2, s=stride, p=2  (+BN+ReLU)
            for n in range(N):
                pad2[pl.ds(n * seg2 + 2, L_in), :] = y1[n * seg1:n * seg1 + L_in]
            y2 = jnp.maximum(tap_dot(pad2, r["w2"], r["b2"], K=3, dil=2, stride=s,
                                     seg=seg2, L_out=L_out, cin=cout), 0.0)

            # conv3: K=3, d=4, s=1, p=4  (+BN, no ReLU until after the residual add)
            m2 = seg2 // s
            for n in range(N):
                pad3[pl.ds(n * seg3 + 4, L_out), :] = y2[n * m2:n * m2 + L_out]
            y3 = tap_dot(pad3, r["w3"], r["b3"], K=3, dil=4, stride=1,
                         seg=seg3, L_out=L_out, cin=cout)

            # residual path
            if cfg["has_down"]:
                md = seg1 // s
                Md = (N - 1) * md + L_out
                xs = (pad1[pl.ds(1, Md), :] if s == 1
                      else pad1[pl.ds(1, Md, s), :])
                res_full = jnp.dot(xs.astype(jnp.bfloat16), r["wd"][...],
                                   preferred_element_type=jnp.float32) + r["bd"][...]
                res = [res_full[n * md:n * md + L_out] for n in range(N)]
            else:
                res = cur                                   # identity (shapes match)

            cur = [jnp.maximum(y3[n * seg3:n * seg3 + L_out] + res[n], 0.0)
                   for n in range(N)]

        # ---------------- head: AdaptiveAvgPool1d(1) + Linear ----------------
        for n in range(N):
            feats[pl.ds(n, 1), :] = jnp.mean(cur[n], axis=0, keepdims=True)
        logits = jnp.dot(feats[...], fc_w[...], preferred_element_type=jnp.float32) + fc_b[...]
        o_ref[...] = logits.astype(o_ref.dtype)

    return kernel


# --------------------------------------------------------------------------------------
# Wrapper: one pallas_call for the whole network
# --------------------------------------------------------------------------------------

def resnet_forward(plan, params, x_ncl):
    """x_ncl: (batch, channels, length) exactly like the PyTorch module."""
    N, Cin, L = x_ncl.shape
    assert Cin == plan["in_ch"] and L == plan["L_in"]
    nc = plan["num_classes"]

    # Wrapper-side layout plumbing: NCL -> NLC, zero-pad by 7 on each side, space-to-depth
    # (L+14, Cin) -> ((L+14)/2, 2*Cin) so the stride-2 stem becomes contiguous taps.
    x_nlc = jnp.transpose(x_ncl, (0, 2, 1)).astype(jnp.float32)
    x_pad = jnp.pad(x_nlc, ((0, 0), (7, 7), (0, 0)))
    seg_s2d = (L + 14) // 2
    x_s2d = x_pad.reshape(N * seg_s2d, 2 * Cin)

    args = [x_s2d, params["stem_w"], params["stem_b"]]
    for cfg, bp in zip(plan["blocks"], params["blocks"]):
        args += [bp["w1"], bp["b1"], bp["w2"], bp["b2"], bp["w3"], bp["b3"]]
        if cfg["has_down"]:
            args += [bp["wd"], bp["bd"]]
    args += [params["fc_w"], params["fc_b"]]

    in_specs = []
    for a in args:
        assert a.ndim == 2
        in_specs.append(pl.BlockSpec(a.shape, lambda i: (0, 0)))

    # VMEM pad-slab scratch: batch elements stacked back-to-back, each with its own halo.
    scratch = [pltpu.VMEM((N * (plan["L_conv"] + 2), plan["hidden"]), jnp.float32)]
    for cfg in plan["blocks"]:
        scratch.append(pltpu.VMEM((N * (cfg["L_in"] + 2), cfg["cin"]), jnp.float32))
        scratch.append(pltpu.VMEM((N * (cfg["L_in"] + 4), cfg["cout"]), jnp.float32))
        scratch.append(pltpu.VMEM((N * (cfg["L_out"] + 8), cfg["cout"]), jnp.float32))
    scratch.append(pltpu.VMEM((N, plan["blocks"][-1]["cout"]), jnp.float32))

    return pl.pallas_call(
        _make_kernel(plan, N),
        out_shape=jax.ShapeDtypeStruct((N, nc), jnp.float32),
        grid=(1,),
        in_specs=in_specs,
        out_specs=pl.BlockSpec((N, nc), lambda i: (0, 0)),
        scratch_shapes=scratch,
        compiler_params=pltpu.CompilerParams(
            dimension_semantics=("arbitrary",),
            vmem_limit_bytes=32 * 1024 * 1024),
    )(*args)


# --------------------------------------------------------------------------------------

if __name__ == "__main__":
    key = jax.random.PRNGKey(0)
    kx, kp = jax.random.split(key)

    # Small shapes consistent with the module's forward: (batch, channels, length)
    N, Cin, L = 2, 4, 64
    hidden, num_classes = 8, 5

    plan = build_plan(Cin, hidden, num_classes, L)
    params = init_params(kp, plan)

    x = jax.random.normal(kx, (N, Cin, L), jnp.float32)
    out = jax.block_until_ready(resnet_forward(plan, params, x))

    assert out.shape == (N, num_classes), out.shape
    assert bool(jnp.all(jnp.isfinite(out)))
    print("KERNEL_OK")
</pallas_src>

<mosaic_0001>
module attributes {stable_mosaic.version = 11 : i64} {
  func.func @kernel(%arg0: i32, %arg1: memref<78x8xf32, #tpu.memory_space<vmem>>, %arg2: memref<64x8xbf16, #tpu.memory_space<vmem>>, %arg3: memref<1x8xf32, #tpu.memory_space<vmem>>, %arg4: memref<24x8xbf16, #tpu.memory_space<vmem>>, %arg5: memref<1x8xf32, #tpu.memory_space<vmem>>, %arg6: memref<24x8xbf16, #tpu.memory_space<vmem>>, %arg7: memref<1x8xf32, #tpu.memory_space<vmem>>, %arg8: memref<24x8xbf16, #tpu.memory_space<vmem>>, %arg9: memref<1x8xf32, #tpu.memory_space<vmem>>, %arg10: memref<24x8xbf16, #tpu.memory_space<vmem>>, %arg11: memref<1x8xf32, #tpu.memory_space<vmem>>, %arg12: memref<24x8xbf16, #tpu.memory_space<vmem>>, %arg13: memref<1x8xf32, #tpu.memory_space<vmem>>, %arg14: memref<24x8xbf16, #tpu.memory_space<vmem>>, %arg15: memref<1x8xf32, #tpu.memory_space<vmem>>, %arg16: memref<24x16xbf16, #tpu.memory_space<vmem>>, %arg17: memref<1x16xf32, #tpu.memory_space<vmem>>, %arg18: memref<48x16xbf16, #tpu.memory_space<vmem>>, %arg19: memref<1x16xf32, #tpu.memory_space<vmem>>, %arg20: memref<48x16xbf16, #tpu.memory_space<vmem>>, %arg21: memref<1x16xf32, #tpu.memory_space<vmem>>, %arg22: memref<8x16xbf16, #tpu.memory_space<vmem>>, %arg23: memref<1x16xf32, #tpu.memory_space<vmem>>, %arg24: memref<48x16xbf16, #tpu.memory_space<vmem>>, %arg25: memref<1x16xf32, #tpu.memory_space<vmem>>, %arg26: memref<48x16xbf16, #tpu.memory_space<vmem>>, %arg27: memref<1x16xf32, #tpu.memory_space<vmem>>, %arg28: memref<48x16xbf16, #tpu.memory_space<vmem>>, %arg29: memref<1x16xf32, #tpu.memory_space<vmem>>, %arg30: memref<48x32xbf16, #tpu.memory_space<vmem>>, %arg31: memref<1x32xf32, #tpu.memory_space<vmem>>, %arg32: memref<96x32xbf16, #tpu.memory_space<vmem>>, %arg33: memref<1x32xf32, #tpu.memory_space<vmem>>, %arg34: memref<96x32xbf16, #tpu.memory_space<vmem>>, %arg35: memref<1x32xf32, #tpu.memory_space<vmem>>, %arg36: memref<16x32xbf16, #tpu.memory_space<vmem>>, %arg37: memref<1x32xf32, #tpu.memory_space<vmem>>, %arg38: memref<96x32xbf16, #tpu.memory_space<vmem>>, %arg39: memref<1x32xf32, #tpu.memory_space<vmem>>, %arg40: memref<96x32xbf16, #tpu.memory_space<vmem>>, %arg41: memref<1x32xf32, #tpu.memory_space<vmem>>, %arg42: memref<96x32xbf16, #tpu.memory_space<vmem>>, %arg43: memref<1x32xf32, #tpu.memory_space<vmem>>, %arg44: memref<96x64xbf16, #tpu.memory_space<vmem>>, %arg45: memref<1x64xf32, #tpu.memory_space<vmem>>, %arg46: memref<192x64xbf16, #tpu.memory_space<vmem>>, %arg47: memref<1x64xf32, #tpu.memory_space<vmem>>, %arg48: memref<192x64xbf16, #tpu.memory_space<vmem>>, %arg49: memref<1x64xf32, #tpu.memory_space<vmem>>, %arg50: memref<32x64xbf16, #tpu.memory_space<vmem>>, %arg51: memref<1x64xf32, #tpu.memory_space<vmem>>, %arg52: memref<192x64xbf16, #tpu.memory_space<vmem>>, %arg53: memref<1x64xf32, #tpu.memory_space<vmem>>, %arg54: memref<192x64xbf16, #tpu.memory_space<vmem>>, %arg55: memref<1x64xf32, #tpu.memory_space<vmem>>, %arg56: memref<192x64xbf16, #tpu.memory_space<vmem>>, %arg57: memref<1x64xf32, #tpu.memory_space<vmem>>, %arg58: memref<64x5xf32, #tpu.memory_space<vmem>>, %arg59: memref<1x5xf32, #tpu.memory_space<vmem>>, %arg60: memref<2x5xf32, #tpu.memory_space<vmem>>, %arg61: memref<68x8xf32, #tpu.memory_space<vmem>>, %arg62: memref<36x8xf32, #tpu.memory_space<vmem>>, %arg63: memref<40x8xf32, #tpu.memory_space<vmem>>, %arg64: memref<48x8xf32, #tpu.memory_space<vmem>>, %arg65: memref<36x8xf32, #tpu.memory_space<vmem>>, %arg66: memref<40x8xf32, #tpu.memory_space<vmem>>, %arg67: memref<48x8xf32, #tpu.memory_space<vmem>>, %arg68: memref<36x8xf32, #tpu.memory_space<vmem>>, %arg69: memref<40x16xf32, #tpu.memory_space<vmem>>, %arg70: memref<32x16xf32, #tpu.memory_space<vmem>>, %arg71: memref<20x16xf32, #tpu.memory_space<vmem>>, %arg72: memref<24x16xf32, #tpu.memory_space<vmem>>, %arg73: memref<32x16xf32, #tpu.memory_space<vmem>>, %arg74: memref<20x16xf32, #tpu.memory_space<vmem>>, %arg75: memref<24x32xf32, #tpu.memory_space<vmem>>, %arg76: memref<24x32xf32, #tpu.memory_space<vmem>>, %arg77: memref<12x32xf32, #tpu.memory_space<vmem>>, %arg78: memref<16x32xf32, #tpu.memory_space<vmem>>, %arg79: memref<24x32xf32, #tpu.memory_space<vmem>>, %arg80: memref<12x32xf32, #tpu.memory_space<vmem>>, %arg81: memref<16x64xf32, #tpu.memory_space<vmem>>, %arg82: memref<20x64xf32, #tpu.memory_space<vmem>>, %arg83: memref<8x64xf32, #tpu.memory_space<vmem>>, %arg84: memref<12x64xf32, #tpu.memory_space<vmem>>, %arg85: memref<20x64xf32, #tpu.memory_space<vmem>>, %arg86: memref<2x64xf32, #tpu.memory_space<vmem>>) attributes {dimension_semantics = [#tpu.dimension_semantics<arbitrary>], iteration_bounds = array<i64: 1>, scalar_prefetch = 0 : i64, scratch_operands = 26 : i64, tpu.core_type = #tpu.core_type<tc>, window_params = [{pipeline_mode = #tpu.pipeline_mode<synchronous>, transform_indices = @transform_0, window_bounds = array<i64: 78, 8>}, {pipeline_mode = #tpu.pipeline_mode<synchronous>, transform_indices = @transform_1, window_bounds = array<i64: 64, 8>}, {pipeline_mode = #tpu.pipeline_mode<synchronous>, transform_indices = @transform_2, window_bounds = array<i64: 1, 8>}, {pipeline_mode = #tpu.pipeline_mode<synchronous>, transform_indices = @transform_3, window_bounds = array<i64: 24, 8>}, {pipeline_mode = #tpu.pipeline_mode<synchronous>, transform_indices = @transform_4, window_bounds = array<i64: 1, 8>}, {pipeline_mode = #tpu.pipeline_mode<synchronous>, transform_indices = @transform_5, window_bounds = array<i64: 24, 8>}, {pipeline_mode = #tpu.pipeline_mode<synchronous>, transform_indices = @transform_6, window_bounds = array<i64: 1, 8>}, {pipeline_mode = #tpu.pipeline_mode<synchronous>, transform_indices = @transform_7, window_bounds = array<i64: 24, 8>}, {pipeline_mode = #tpu.pipeline_mode<synchronous>, transform_indices = @transform_8, window_bounds = array<i64: 1, 8>}, {pipeline_mode = #tpu.pipeline_mode<synchronous>, transform_indices = @transform_9, window_bounds = array<i64: 24, 8>}, {pipeline_mode = #tpu.pipeline_mode<synchronous>, transform_indices = @transform_10, window_bounds = array<i64: 1, 8>}, {pipeline_mode = #tpu.pipeline_mode<synchronous>, transform_indices = @transform_11, window_bounds = array<i64: 24, 8>}, {pipeline_mode = #tpu.pipeline_mode<synchronous>, transform_indices = @transform_12, window_bounds = array<i64: 1, 8>}, {pipeline_mode = #tpu.pipeline_mode<synchronous>, transform_indices = @transform_13, window_bounds = array<i64: 24, 8>}, {pipeline_mode = #tpu.pipeline_mode<synchronous>, transform_indices = @transform_14, window_bounds = array<i64: 1, 8>}, {pipeline_mode = #tpu.pipeline_mode<synchronous>, transform_indices = @transform_15, window_bounds = array<i64: 24, 16>}, {pipeline_mode = #tpu.pipeline_mode<synchronous>, transform_indices = @transform_16, window_bounds = array<i64: 1, 16>}, {pipeline_mode = #tpu.pipeline_mode<synchronous>, transform_indices = @transform_17, window_bounds = array<i64: 48, 16>}, {pipeline_mode = #tpu.pipeline_mode<synchronous>, transform_indices = @transform_18, window_bounds = array<i64: 1, 16>}, {pipeline_mode = #tpu.pipeline_mode<synchronous>, transform_indices = @transform_19, window_bounds = array<i64: 48, 16>}, {pipeline_mode = #tpu.pipeline_mode<synchronous>, transform_indices = @transform_20, window_bounds = array<i64: 1, 16>}, {pipeline_mode = #tpu.pipeline_mode<synchronous>, transform_indices = @transform_21, window_bounds = array<i64: 8, 16>}, {pipeline_mode = #tpu.pipeline_mode<synchronous>, transform_indices = @transform_22, window_bounds = array<i64: 1, 16>}, {pipeline_mode = #tpu.pipeline_mode<synchronous>, transform_indices = @transform_23, window_bounds = array<i64: 48, 16>}, {pipeline_mode = #tpu.pipeline_mode<synchronous>, transform_indices = @transform_24, window_bounds = array<i64: 1, 16>}, {pipeline_mode = #tpu.pipeline_mode<synchronous>, transform_indices = @transform_25, window_bounds = array<i64: 48, 16>}, {pipeline_mode = #tpu.pipeline_mode<synchronous>, transform_indices = @transform_26, window_bounds = array<i64: 1, 16>}, {pipeline_mode = #tpu.pipeline_mode<synchronous>, transform_indices = @transform_27, window_bounds = array<i64: 48, 16>}, {pipeline_mode = #tpu.pipeline_mode<synchronous>, transform_indices = @transform_28, window_bounds = array<i64: 1, 16>}, {pipeline_mode = #tpu.pipeline_mode<synchronous>, transform_indices = @transform_29, window_bounds = array<i64: 48, 32>}, {pipeline_mode = #tpu.pipeline_mode<synchronous>, transform_indices = @transform_30, window_bounds = array<i64: 1, 32>}, {pipeline_mode = #tpu.pipeline_mode<synchronous>, transform_indices = @transform_31, window_bounds = array<i64: 96, 32>}, {pipeline_mode = #tpu.pipeline_mode<synchronous>, transform_indices = @transform_32, window_bounds = array<i64: 1, 32>}, {pipeline_mode = #tpu.pipeline_mode<synchronous>, transform_indices = @transform_33, window_bounds = array<i64: 96, 32>}, {pipeline_mode = #tpu.pipeline_mode<synchronous>, transform_indices = @transform_34, window_bounds = array<i64: 1, 32>}, {pipeline_mode = #tpu.pipeline_mode<synchronous>, transform_indices = @transform_35, window_bounds = array<i64: 16, 32>}, {pipeline_mode = #tpu.pipeline_mode<synchronous>, transform_indices = @transform_36, window_bounds = array<i64: 1, 32>}, {pipeline_mode = #tpu.pipeline_mode<synchronous>, transform_indices = @transform_37, window_bounds = array<i64: 96, 32>}, {pipeline_mode = #tpu.pipeline_mode<synchronous>, transform_indices = @transform_38, window_bounds = array<i64: 1, 32>}, {pipeline_mode = #tpu.pipeline_mode<synchronous>, transform_indices = @transform_39, window_bounds = array<i64: 96, 32>}, {pipeline_mode = #tpu.pipeline_mode<synchronous>, transform_indices = @transform_40, window_bounds = array<i64: 1, 32>}, {pipeline_mode = #tpu.pipeline_mode<synchronous>, transform_indices = @transform_41, window_bounds = array<i64: 96, 32>}, {pipeline_mode = #tpu.pipeline_mode<synchronous>, transform_indices = @transform_42, window_bounds = array<i64: 1, 32>}, {pipeline_mode = #tpu.pipeline_mode<synchronous>, transform_indices = @transform_43, window_bounds = array<i64: 96, 64>}, {pipeline_mode = #tpu.pipeline_mode<synchronous>, transform_indices = @transform_44, window_bounds = array<i64: 1, 64>}, {pipeline_mode = #tpu.pipeline_mode<synchronous>, transform_indices = @transform_45, window_bounds = array<i64: 192, 64>}, {pipeline_mode = #tpu.pipeline_mode<synchronous>, transform_indices = @transform_46, window_bounds = array<i64: 1, 64>}, {pipeline_mode = #tpu.pipeline_mode<synchronous>, transform_indices = @transform_47, window_bounds = array<i64: 192, 64>}, {pipeline_mode = #tpu.pipeline_mode<synchronous>, transform_indices = @transform_48, window_bounds = array<i64: 1, 64>}, {pipeline_mode = #tpu.pipeline_mode<synchronous>, transform_indices = @transform_49, window_bounds = array<i64: 32, 64>}, {pipeline_mode = #tpu.pipeline_mode<synchronous>, transform_indices = @transform_50, window_bounds = array<i64: 1, 64>}, {pipeline_mode = #tpu.pipeline_mode<synchronous>, transform_indices = @transform_51, window_bounds = array<i64: 192, 64>}, {pipeline_mode = #tpu.pipeline_mode<synchronous>, transform_indices = @transform_52, window_bounds = array<i64: 1, 64>}, {pipeline_mode = #tpu.pipeline_mode<synchronous>, transform_indices = @transform_53, window_bounds = array<i64: 192, 64>}, {pipeline_mode = #tpu.pipeline_mode<synchronous>, transform_indices = @transform_54, window_bounds = array<i64: 1, 64>}, {pipeline_mode = #tpu.pipeline_mode<synchronous>, transform_indices = @transform_55, window_bounds = array<i64: 192, 64>}, {pipeline_mode = #tpu.pipeline_mode<synchronous>, transform_indices = @transform_56, window_bounds = array<i64: 1, 64>}, {pipeline_mode = #tpu.pipeline_mode<synchronous>, transform_indices = @transform_57, window_bounds = array<i64: 64, 5>}, {pipeline_mode = #tpu.pipeline_mode<synchronous>, transform_indices = @transform_58, window_bounds = array<i64: 1, 5>}, {pipeline_mode = #tpu.pipeline_mode<synchronous>, transform_indices = @transform_59, window_bounds = array<i64: 2, 5>}]} {
    %cst = arith.constant 0.000000e+00 : f32
    %0 = vector.broadcast %cst : f32 to vector<68x8xf32>
    %c0 = arith.constant 0 : index
    %c0_0 = arith.constant 0 : index
    %1 = vector.load %arg61[%c0, %c0_0] : memref<68x8xf32, #tpu.memory_space<vmem>>, vector<68x8xf32>
    tpu.vector_store %arg61[%c0, %c0_0], %0 {strides = array<i32>} : memref<68x8xf32, #tpu.memory_space<vmem>>, vector<68x8xf32>,
    %cst_1 = arith.constant 0.000000e+00 : f32
    %2 = vector.broadcast %cst_1 : f32 to vector<36x8xf32>
    %c0_2 = arith.constant 0 : index
    %c0_3 = arith.constant 0 : index
    %3 = vector.load %arg62[%c0_2, %c0_3] : memref<36x8xf32, #tpu.memory_space<vmem>>, vector<36x8xf32>
    tpu.vector_store %arg62[%c0_2, %c0_3], %2 {strides = array<i32>} : memref<36x8xf32, #tpu.memory_space<vmem>>, vector<36x8xf32>,
    %cst_4 = arith.constant 0.000000e+00 : f32
    %4 = vector.broadcast %cst_4 : f32 to vector<40x8xf32>
    %c0_5 = arith.constant 0 : index
    %c0_6 = arith.constant 0 : index
    %5 = vector.load %arg63[%c0_5, %c0_6] : memref<40x8xf32, #tpu.memory_space<vmem>>, vector<40x8xf32>
    tpu.vector_store %arg63[%c0_5, %c0_6], %4 {strides = array<i32>} : memref<40x8xf32, #tpu.memory_space<vmem>>, vector<40x8xf32>,
    %cst_7 = arith.constant 0.000000e+00 : f32
    %6 = vector.broadcast %cst_7 : f32 to vector<48x8xf32>
    %c0_8 = arith.constant 0 : index
    %c0_9 = arith.constant 0 : index
    %7 = vector.load %arg64[%c0_8, %c0_9] : memref<48x8xf32, #tpu.memory_space<vmem>>, vector<48x8xf32>
    tpu.vector_store %arg64[%c0_8, %c0_9], %6 {strides = array<i32>} : memref<48x8xf32, #tpu.memory_space<vmem>>, vector<48x8xf32>,
    %cst_10 = arith.constant 0.000000e+00 : f32
    %8 = vector.broadcast %cst_10 : f32 to vector<36x8xf32>
    %c0_11 = arith.constant 0 : index
    %c0_12 = arith.constant 0 : index
    %9 = vector.load %arg65[%c0_11, %c0_12] : memref<36x8xf32, #tpu.memory_space<vmem>>, vector<36x8xf32>
    tpu.vector_store %arg65[%c0_11, %c0_12], %8 {strides = array<i32>} : memref<36x8xf32, #tpu.memory_space<vmem>>, vector<36x8xf32>,
    %cst_13 = arith.constant 0.000000e+00 : f32
    %10 = vector.broadcast %cst_13 : f32 to vector<40x8xf32>
    %c0_14 = arith.constant 0 : index
    %c0_15 = arith.constant 0 : index
    %11 = vector.load %arg66[%c0_14, %c0_15] : memref<40x8xf32, #tpu.memory_space<vmem>>, vector<40x8xf32>
    tpu.vector_store %arg66[%c0_14, %c0_15], %10 {strides = array<i32>} : memref<40x8xf32, #tpu.memory_space<vmem>>, vector<40x8xf32>,
    %cst_16 = arith.constant 0.000000e+00 : f32
    %12 = vector.broadcast %cst_16 : f32 to vector<48x8xf32>
    %c0_17 = arith.constant 0 : index
    %c0_18 = arith.constant 0 : index
    %13 = vector.load %arg67[%c0_17, %c0_18] : memref<48x8xf32, #tpu.memory_space<vmem>>, vector<48x8xf32>
    tpu.vector_store %arg67[%c0_17, %c0_18], %12 {strides = array<i32>} : memref<48x8xf32, #tpu.memory_space<vmem>>, vector<48x8xf32>,
    %cst_19 = arith.constant 0.000000e+00 : f32
    %14 = vector.broadcast %cst_19 : f32 to vector<36x8xf32>
    %c0_20 = arith.constant 0 : index
    %c0_21 = arith.constant 0 : index
    %15 = vector.load %arg68[%c0_20, %c0_21] : memref<36x8xf32, #tpu.memory_space<vmem>>, vector<36x8xf32>
    tpu.vector_store %arg68[%c0_20, %c0_21], %14 {strides = array<i32>} : memref<36x8xf32, #tpu.memory_space<vmem>>, vector<36x8xf32>,
    %cst_22 = arith.constant 0.000000e+00 : f32
    %16 = vector.broadcast %cst_22 : f32 to vector<40x16xf32>
    %c0_23 = arith.constant 0 : index
    %c0_24 = arith.constant 0 : index
    %17 = vector.load %arg69[%c0_23, %c0_24] : memref<40x16xf32, #tpu.memory_space<vmem>>, vector<40x16xf32>
    tpu.vector_store %arg69[%c0_23, %c0_24], %16 {strides = array<i32>} : memref<40x16xf32, #tpu.memory_space<vmem>>, vector<40x16xf32>,
    %cst_25 = arith.constant 0.000000e+00 : f32
    %18 = vector.broadcast %cst_25 : f32 to vector<32x16xf32>
    %c0_26 = arith.constant 0 : index
    %c0_27 = arith.constant 0 : index
    %19 = vector.load %arg70[%c0_26, %c0_27] : memref<32x16xf32, #tpu.memory_space<vmem>>, vector<32x16xf32>
    tpu.vector_store %arg70[%c0_26, %c0_27], %18 {strides = array<i32>} : memref<32x16xf32, #tpu.memory_space<vmem>>, vector<32x16xf32>,
    %cst_28 = arith.constant 0.000000e+00 : f32
    %20 = vector.broadcast %cst_28 : f32 to vector<20x16xf32>
    %c0_29 = arith.constant 0 : index
    %c0_30 = arith.constant 0 : index
    %21 = vector.load %arg71[%c0_29, %c0_30] : memref<20x16xf32, #tpu.memory_space<vmem>>, vector<20x16xf32>
    tpu.vector_store %arg71[%c0_29, %c0_30], %20 {strides = array<i32>} : memref<20x16xf32, #tpu.memory_space<vmem>>, vector<20x16xf32>,
    %cst_31 = arith.constant 0.000000e+00 : f32
    %22 = vector.broadcast %cst_31 : f32 to vector<24x16xf32>
    %c0_32 = arith.constant 0 : index
    %c0_33 = arith.constant 0 : index
    %23 = vector.load %arg72[%c0_32, %c0_33] : memref<24x16xf32, #tpu.memory_space<vmem>>, vector<24x16xf32>
    tpu.vector_store %arg72[%c0_32, %c0_33], %22 {strides = array<i32>} : memref<24x16xf32, #tpu.memory_space<vmem>>, vector<24x16xf32>,
    %cst_34 = arith.constant 0.000000e+00 : f32
    %24 = vector.broadcast %cst_34 : f32 to vector<32x16xf32>
    %c0_35 = arith.constant 0 : index
    %c0_36 = arith.constant 0 : index
    %25 = vector.load %arg73[%c0_35, %c0_36] : memref<32x16xf32, #tpu.memory_space<vmem>>, vector<32x16xf32>
    tpu.vector_store %arg73[%c0_35, %c0_36], %24 {strides = array<i32>} : memref<32x16xf32, #tpu.memory_space<vmem>>, vector<32x16xf32>,
    %cst_37 = arith.constant 0.000000e+00 : f32
    %26 = vector.broadcast %cst_37 : f32 to vector<20x16xf32>
    %c0_38 = arith.constant 0 : index
    %c0_39 = arith.constant 0 : index
    %27 = vector.load %arg74[%c0_38, %c0_39] : memref<20x16xf32, #tpu.memory_space<vmem>>, vector<20x16xf32>
    tpu.vector_store %arg74[%c0_38, %c0_39], %26 {strides = array<i32>} : memref<20x16xf32, #tpu.memory_space<vmem>>, vector<20x16xf32>,
    %cst_40 = arith.constant 0.000000e+00 : f32
    %28 = vector.broadcast %cst_40 : f32 to vector<24x32xf32>
    %c0_41 = arith.constant 0 : index
    %c0_42 = arith.constant 0 : index
    %29 = vector.load %arg75[%c0_41, %c0_42] : memref<24x32xf32, #tpu.memory_space<vmem>>, vector<24x32xf32>
    tpu.vector_store %arg75[%c0_41, %c0_42], %28 {strides = array<i32>} : memref<24x32xf32, #tpu.memory_space<vmem>>, vector<24x32xf32>,
    %cst_43 = arith.constant 0.000000e+00 : f32
    %30 = vector.broadcast %cst_43 : f32 to vector<24x32xf32>
    %c0_44 = arith.constant 0 : index
    %c0_45 = arith.constant 0 : index
    %31 = vector.load %arg76[%c0_44, %c0_45] : memref<24x32xf32, #tpu.memory_space<vmem>>, vector<24x32xf32>
    tpu.vector_store %arg76[%c0_44, %c0_45], %30 {strides = array<i32>} : memref<24x32xf32, #tpu.memory_space<vmem>>, vector<24x32xf32>,
    %cst_46 = arith.constant 0.000000e+00 : f32
    %32 = vector.broadcast %cst_46 : f32 to vector<12x32xf32>
    %c0_47 = arith.constant 0 : index
    %c0_48 = arith.constant 0 : index
    %33 = vector.load %arg77[%c0_47, %c0_48] : memref<12x32xf32, #tpu.memory_space<vmem>>, vector<12x32xf32>
    tpu.vector_store %arg77[%c0_47, %c0_48], %32 {strides = array<i32>} : memref<12x32xf32, #tpu.memory_space<vmem>>, vector<12x32xf32>,
    %cst_49 = arith.constant 0.000000e+00 : f32
    %34 = vector.broadcast %cst_49 : f32 to vector<16x32xf32>
    %c0_50 = arith.constant 0 : index
    %c0_51 = arith.constant 0 : index
    %35 = vector.load %arg78[%c0_50, %c0_51] : memref<16x32xf32, #tpu.memory_space<vmem>>, vector<16x32xf32>
    tpu.vector_store %arg78[%c0_50, %c0_51], %34 {strides = array<i32>} : memref<16x32xf32, #tpu.memory_space<vmem>>, vector<16x32xf32>,
    %cst_52 = arith.constant 0.000000e+00 : f32
    %36 = vector.broadcast %cst_52 : f32 to vector<24x32xf32>
    %c0_53 = arith.constant 0 : index
    %c0_54 = arith.constant 0 : index
    %37 = vector.load %arg79[%c0_53, %c0_54] : memref<24x32xf32, #tpu.memory_space<vmem>>, vector<24x32xf32>
    tpu.vector_store %arg79[%c0_53, %c0_54], %36 {strides = array<i32>} : memref<24x32xf32, #tpu.memory_space<vmem>>, vector<24x32xf32>,
    %cst_55 = arith.constant 0.000000e+00 : f32
    %38 = vector.broadcast %cst_55 : f32 to vector<12x32xf32>
    %c0_56 = arith.constant 0 : index
    %c0_57 = arith.constant 0 : index
    %39 = vector.load %arg80[%c0_56, %c0_57] : memref<12x32xf32, #tpu.memory_space<vmem>>, vector<12x32xf32>
    tpu.vector_store %arg80[%c0_56, %c0_57], %38 {strides = array<i32>} : memref<12x32xf32, #tpu.memory_space<vmem>>, vector<12x32xf32>,
    %cst_58 = arith.constant 0.000000e+00 : f32
    %40 = vector.broadcast %cst_58 : f32 to vector<16x64xf32>
    %c0_59 = arith.constant 0 : index
    %c0_60 = arith.constant 0 : index
    %41 = vector.load %arg81[%c0_59, %c0_60] : memref<16x64xf32, #tpu.memory_space<vmem>>, vector<16x64xf32>
    tpu.vector_store %arg81[%c0_59, %c0_60], %40 {strides = array<i32>} : memref<16x64xf32, #tpu.memory_space<vmem>>, vector<16x64xf32>,
    %cst_61 = arith.constant 0.000000e+00 : f32
    %42 = vector.broadcast %cst_61 : f32 to vector<20x64xf32>
    %c0_62 = arith.constant 0 : index
    %c0_63 = arith.constant 0 : index
    %43 = vector.load %arg82[%c0_62, %c0_63] : memref<20x64xf32, #tpu.memory_space<vmem>>, vector<20x64xf32>
    tpu.vector_store %arg82[%c0_62, %c0_63], %42 {strides = array<i32>} : memref<20x64xf32, #tpu.memory_space<vmem>>, vector<20x64xf32>,
    %cst_64 = arith.constant 0.000000e+00 : f32
    %44 = vector.broadcast %cst_64 : f32 to vector<8x64xf32>
    %c0_65 = arith.constant 0 : index
    %c0_66 = arith.constant 0 : index
    %45 = vector.load %arg83[%c0_65, %c0_66] : memref<8x64xf32, #tpu.memory_space<vmem>>, vector<8x64xf32>
    tpu.vector_store %arg83[%c0_65, %c0_66], %44 {strides = array<i32>} : memref<8x64xf32, #tpu.memory_space<vmem>>, vector<8x64xf32>,
    %cst_67 = arith.constant 0.000000e+00 : f32
    %46 = vector.broadcast %cst_67 : f32 to vector<12x64xf32>
    %c0_68 = arith.constant 0 : index
    %c0_69 = arith.constant 0 : index
    %47 = vector.load %arg84[%c0_68, %c0_69] : memref<12x64xf32, #tpu.memory_space<vmem>>, vector<12x64xf32>
    tpu.vector_store %arg84[%c0_68, %c0_69], %46 {strides = array<i32>} : memref<12x64xf32, #tpu.memory_space<vmem>>, vector<12x64xf32>,
    %cst_70 = arith.constant 0.000000e+00 : f32
    %48 = vector.broadcast %cst_70 : f32 to vector<20x64xf32>
    %c0_71 = arith.constant 0 : index
    %c0_72 = arith.constant 0 : index
    %49 = vector.load %arg85[%c0_71, %c0_72] : memref<20x64xf32, #tpu.memory_space<vmem>>, vector<20x64xf32>
    tpu.vector_store %arg85[%c0_71, %c0_72], %48 {strides = array<i32>} : memref<20x64xf32, #tpu.memory_space<vmem>>, vector<20x64xf32>,
    %c0_73 = arith.constant 0 : index
    %c0_74 = arith.constant 0 : index
    %50 = vector.load %arg1[%c0_73, %c0_74] : memref<78x8xf32, #tpu.memory_space<vmem>>, vector<71x8xf32>
    %51 = arith.truncf %50 : vector<71x8xf32> to vector<71x8xbf16>
    %c0_75 = arith.constant 0 : index
    %c0_76 = arith.constant 0 : index
    %52 = vector.load %arg2[%c0_75, %c0_76] : memref<64x8xbf16, #tpu.memory_space<vmem>>, vector<8x8xbf16>
    %cst_77 = arith.constant dense<0.000000e+00> : vector<71x8xf32>
    %53 = tpu.matmul %51, %52, %cst_77 {dimension_numbers = #tpu.dot_dimension_numbers<[1], [0], [0], [1], [0, 0, 1, 1], [], []>} : vector<71x8xbf16>, vector<8x8xbf16>, vector<71x8xf32> -> vector<71x8xf32>
    %c1 = arith.constant 1 : index
    %c0_78 = arith.constant 0 : index
    %54 = vector.load %arg1[%c1, %c0_78] : memref<78x8xf32, #tpu.memory_space<vmem>>, vector<71x8xf32>
    %55 = arith.truncf %54 : vector<71x8xf32> to vector<71x8xbf16>
    %c8 = arith.constant 8 : index
    %c0_79 = arith.constant 0 : index
    %56 = vector.load %arg2[%c8, %c0_79] : memref<64x8xbf16, #tpu.memory_space<vmem>>, vector<8x8xbf16>
    %cst_80 = arith.constant dense<0.000000e+00> : vector<71x8xf32>
    %57 = tpu.matmul %55, %56, %cst_80 {dimension_numbers = #tpu.dot_dimension_numbers<[1], [0], [0], [1], [0, 0, 1, 1], [], []>} : vector<71x8xbf16>, vector<8x8xbf16>, vector<71x8xf32> -> vector<71x8xf32>
    %58 = arith.addf %53, %57 : vector<71x8xf32>
    %c2 = arith.constant 2 : index
    %c0_81 = arith.constant 0 : index
    %59 = vector.load %arg1[%c2, %c0_81] : memref<78x8xf32, #tpu.memory_space<vmem>>, vector<71x8xf32>
    %60 = arith.truncf %59 : vector<71x8xf32> to vector<71x8xbf16>
    %c16 = arith.constant 16 : index
    %c0_82 = arith.constant 0 : index
    %61 = vector.load %arg2[%c16, %c0_82] : memref<64x8xbf16, #tpu.memory_space<vmem>>, vector<8x8xbf16>
    %cst_83 = arith.constant dense<0.000000e+00> : vector<71x8xf32>
    %62 = tpu.matmul %60, %61, %cst_83 {dimension_numbers = #tpu.dot_dimension_numbers<[1], [0], [0], [1], [0, 0, 1, 1], [], []>} : vector<71x8xbf16>, vector<8x8xbf16>, vector<71x8xf32> -> vector<71x8xf32>
    %63 = arith.addf %58, %62 : vector<71x8xf32>
    %c3 = arith.constant 3 : index
    %c0_84 = arith.constant 0 : index
    %64 = vector.load %arg1[%c3, %c0_84] : memref<78x8xf32, #tpu.memory_space<vmem>>, vector<71x8xf32>
    %65 = arith.truncf %64 : vector<71x8xf32> to vector<71x8xbf16>
    %c24 = arith.constant 24 : index
    %c0_85 = arith.constant 0 : index
    %66 = vector.load %arg2[%c24, %c0_85] : memref<64x8xbf16, #tpu.memory_space<vmem>>, vector<8x8xbf16>
    %cst_86 = arith.constant dense<0.000000e+00> : vector<71x8xf32>
    %67 = tpu.matmul %65, %66, %cst_86 {dimension_numbers = #tpu.dot_dimension_numbers<[1], [0], [0], [1], [0, 0, 1, 1], [], []>} : vector<71x8xbf16>, vector<8x8xbf16>, vector<71x8xf32> -> vector<71x8xf32>
    %68 = arith.addf %63, %67 : vector<71x8xf32>
    %c4 = arith.constant 4 : index
    %c0_87 = arith.constant 0 : index
    %69 = vector.load %arg1[%c4, %c0_87] : memref<78x8xf32, #tpu.memory_space<vmem>>, vector<71x8xf32>
    %70 = arith.truncf %69 : vector<71x8xf32> to vector<71x8xbf16>
    %c32 = arith.constant 32 : index
    %c0_88 = arith.constant 0 : index
    %71 = vector.load %arg2[%c32, %c0_88] : memref<64x8xbf16, #tpu.memory_space<vmem>>, vector<8x8xbf16>
    %cst_89 = arith.constant dense<0.000000e+00> : vector<71x8xf32>
    %72 = tpu.matmul %70, %71, %cst_89 {dimension_numbers = #tpu.dot_dimension_numbers<[1], [0], [0], [1], [0, 0, 1, 1], [], []>} : vector<71x8xbf16>, vector<8x8xbf16>, vector<71x8xf32> -> vector<71x8xf32>
    %73 = arith.addf %68, %72 : vector<71x8xf32>
    %c5 = arith.constant 5 : index
    %c0_90 = arith.constant 0 : index
    %74 = vector.load %arg1[%c5, %c0_90] : memref<78x8xf32, #tpu.memory_space<vmem>>, vector<71x8xf32>
    %75 = arith.truncf %74 : vector<71x8xf32> to vector<71x8xbf16>
    %c40 = arith.constant 40 : index
    %c0_91 = arith.constant 0 : index
    %76 = vector.load %arg2[%c40, %c0_91] : memref<64x8xbf16, #tpu.memory_space<vmem>>, vector<8x8xbf16>
    %cst_92 = arith.constant dense<0.000000e+00> : vector<71x8xf32>
    %77 = tpu.matmul %75, %76, %cst_92 {dimension_numbers = #tpu.dot_dimension_numbers<[1], [0], [0], [1], [0, 0, 1, 1], [], []>} : vector<71x8xbf16>, vector<8x8xbf16>, vector<71x8xf32> -> vector<71x8xf32>
    %78 = arith.addf %73, %77 : vector<71x8xf32>
    %c6 = arith.constant 6 : index
    %c0_93 = arith.constant 0 : index
    %79 = vector.load %arg1[%c6, %c0_93] : memref<78x8xf32, #tpu.memory_space<vmem>>, vector<71x8xf32>
    %80 = arith.truncf %79 : vector<71x8xf32> to vector<71x8xbf16>
    %c48 = arith.constant 48 : index
    %c0_94 = arith.constant 0 : index
    %81 = vector.load %arg2[%c48, %c0_94] : memref<64x8xbf16, #tpu.memory_space<vmem>>, vector<8x8xbf16>
    %cst_95 = arith.constant dense<0.000000e+00> : vector<71x8xf32>
    %82 = tpu.matmul %80, %81, %cst_95 {dimension_numbers = #tpu.dot_dimension_numbers<[1], [0], [0], [1], [0, 0, 1, 1], [], []>} : vector<71x8xbf16>, vector<8x8xbf16>, vector<71x8xf32> -> vector<71x8xf32>
    %83 = arith.addf %78, %82 : vector<71x8xf32>
    %c7 = arith.constant 7 : index
    %c0_96 = arith.constant 0 : index
    %84 = vector.load %arg1[%c7, %c0_96] : memref<78x8xf32, #tpu.memory_space<vmem>>, vector<71x8xf32>
    %85 = arith.truncf %84 : vector<71x8xf32> to vector<71x8xbf16>
    %c56 = arith.constant 56 : index
    %c0_97 = arith.constant 0 : index
    %86 = vector.load %arg2[%c56, %c0_97] : memref<64x8xbf16, #tpu.memory_space<vmem>>, vector<8x8xbf16>
    %cst_98 = arith.constant dense<0.000000e+00> : vector<71x8xf32>
    %87 = tpu.matmul %85, %86, %cst_98 {dimension_numbers = #tpu.dot_dimension_numbers<[1], [0], [0], [1], [0, 0, 1, 1], [], []>} : vector<71x8xbf16>, vector<8x8xbf16>, vector<71x8xf32> -> vector<71x8xf32>
    %88 = arith.addf %83, %87 : vector<71x8xf32>
    %c0_99 = arith.constant 0 : index
    %c0_100 = arith.constant 0 : index
    %89 = vector.load %arg3[%c0_99, %c0_100] : memref<1x8xf32, #tpu.memory_space<vmem>>, vector<1x8xf32>
    %90 = vector.broadcast %89 : vector<1x8xf32> to vector<71x8xf32>
    %91 = arith.addf %88, %90 : vector<71x8xf32>
    %cst_101 = arith.constant 0.000000e+00 : f32
    %92 = vector.broadcast %cst_101 : f32 to vector<71x8xf32>
    %93 = arith.maximumf %91, %92 : vector<71x8xf32>
    %94 = vector.extract_strided_slice %93 {offsets = [0, 0], sizes = [32, 8], strides = [1, 1]} : vector<71x8xf32> to vector<32x8xf32>
    %c1_102 = arith.constant 1 : index
    %c0_103 = arith.constant 0 : index
    %95 = vector.load %arg61[%c1_102, %c0_103] : memref<68x8xf32, #tpu.memory_space<vmem>>, vector<32x8xf32>
    tpu.vector_store %arg61[%c1_102, %c0_103], %94 {strides = array<i32>} : memref<68x8xf32, #tpu.memory_space<vmem>>, vector<32x8xf32>,
    %96 = vector.extract_strided_slice %93 {offsets = [39, 0], sizes = [32, 8], strides = [1, 1]} : vector<71x8xf32> to vector<32x8xf32>
    %c35 = arith.constant 35 : index
    %c0_104 = arith.constant 0 : index
    %97 = vector.load %arg61[%c35, %c0_104] : memref<68x8xf32, #tpu.memory_space<vmem>>, vector<32x8xf32>
    tpu.vector_store %arg61[%c35, %c0_104], %96 {strides = array<i32>} : memref<68x8xf32, #tpu.memory_space<vmem>>, vector<32x8xf32>,
    %c0_105 = arith.constant 0 : index
    %c0_106 = arith.constant 0 : index
    %98 = tpu.strided_load %arg61[%c0_105, %c0_106] {strides = array<i32: 2, 1>} : memref<68x8xf32, #tpu.memory_space<vmem>>, vector<33x8xf32>
    %c1_107 = arith.constant 1 : index
    %c0_108 = arith.constant 0 : index
    %99 = tpu.strided_load %arg61[%c1_107, %c0_108] {strides = array<i32: 2, 1>} : memref<68x8xf32, #tpu.memory_space<vmem>>, vector<33x8xf32>
    %100 = arith.maximumf %98, %99 : vector<33x8xf32>
    %c2_109 = arith.constant 2 : index
    %c0_110 = arith.constant 0 : index
    %101 = tpu.strided_load %arg61[%c2_109, %c0_110] {strides = array<i32: 2, 1>} : memref<68x8xf32, #tpu.memory_space<vmem>>, vector<33x8xf32>
    %102 = arith.maximumf %100, %101 : vector<33x8xf32>
    %103 = vector.extract_strided_slice %102 {offsets = [0, 0], sizes = [16, 8], strides = [1, 1]} : vector<33x8xf32> to vector<16x8xf32>
    %104 = vector.extract_strided_slice %102 {offsets = [17, 0], sizes = [16, 8], strides = [1, 1]} : vector<33x8xf32> to vector<16x8xf32>
    %c1_111 = arith.constant 1 : index
    %c0_112 = arith.constant 0 : index
    %105 = vector.load %arg62[%c1_111, %c0_112] : memref<36x8xf32, #tpu.memory_space<vmem>>, vector<16x8xf32>
    tpu.vector_store %arg62[%c1_111, %c0_112], %103 {strides = array<i32>} : memref<36x8xf32, #tpu.memory_space<vmem>>, vector<16x8xf32>,
    %c19 = arith.constant 19 : index
    %c0_113 = arith.constant 0 : index
    %106 = vector.load %arg62[%c19, %c0_113] : memref<36x8xf32, #tpu.memory_space<vmem>>, vector<16x8xf32>
    tpu.vector_store %arg62[%c19, %c0_113], %104 {strides = array<i32>} : memref<36x8xf32, #tpu.memory_space<vmem>>, vector<16x8xf32>,
    %c0_114 = arith.constant 0 : index
    %c0_115 = arith.constant 0 : index
    %107 = vector.load %arg62[%c0_114, %c0_115] : memref<36x8xf32, #tpu.memory_space<vmem>>, vector<34x8xf32>
    %108 = arith.truncf %107 : vector<34x8xf32> to vector<34x8xbf16>
    %c0_116 = arith.constant 0 : index
    %c0_117 = arith.constant 0 : index
    %109 = vector.load %arg4[%c0_116, %c0_117] : memref<24x8xbf16, #tpu.memory_space<vmem>>, vector<8x8xbf16>
    %cst_118 = arith.constant dense<0.000000e+00> : vector<34x8xf32>
    %110 = tpu.matmul %108, %109, %cst_118 {dimension_numbers = #tpu.dot_dimension_numbers<[1], [0], [0], [1], [0, 0, 1, 1], [], []>} : vector<34x8xbf16>, vector<8x8xbf16>, vector<34x8xf32> -> vector<34x8xf32>
    %c1_119 = arith.constant 1 : index
    %c0_120 = arith.constant 0 : index
    %111 = vector.load %arg62[%c1_119, %c0_120] : memref<36x8xf32, #tpu.memory_space<vmem>>, vector<34x8xf32>
    %112 = arith.truncf %111 : vector<34x8xf32> to vector<34x8xbf16>
    %c8_121 = arith.constant 8 : index
    %c0_122 = arith.constant 0 : index
    %113 = vector.load %arg4[%c8_121, %c0_122] : memref<24x8xbf16, #tpu.memory_space<vmem>>, vector<8x8xbf16>
    %cst_123 = arith.constant dense<0.000000e+00> : vector<34x8xf32>
    %114 = tpu.matmul %112, %113, %cst_123 {dimension_numbers = #tpu.dot_dimension_numbers<[1], [0], [0], [1], [0, 0, 1, 1], [], []>} : vector<34x8xbf16>, vector<8x8xbf16>, vector<34x8xf32> -> vector<34x8xf32>
    %115 = arith.addf %110, %114 : vector<34x8xf32>
    %c2_124 = arith.constant 2 : index
    %c0_125 = arith.constant 0 : index
    %116 = vector.load %arg62[%c2_124, %c0_125] : memref<36x8xf32, #tpu.memory_space<vmem>>, vector<34x8xf32>
    %117 = arith.truncf %116 : vector<34x8xf32> to vector<34x8xbf16>
    %c16_126 = arith.constant 16 : index
    %c0_127 = arith.constant 0 : index
    %118 = vector.load %arg4[%c16_126, %c0_127] : memref<24x8xbf16, #tpu.memory_space<vmem>>, vector<8x8xbf16>
    %cst_128 = arith.constant dense<0.000000e+00> : vector<34x8xf32>
    %119 = tpu.matmul %117, %118, %cst_128 {dimension_numbers = #tpu.dot_dimension_numbers<[1], [0], [0], [1], [0, 0, 1, 1], [], []>} : vector<34x8xbf16>, vector<8x8xbf16>, vector<34x8xf32> -> vector<34x8xf32>
    %120 = arith.addf %115, %119 : vector<34x8xf32>
    %c0_129 = arith.constant 0 : index
    %c0_130 = arith.constant 0 : index
    %121 = vector.load %arg5[%c0_129, %c0_130] : memref<1x8xf32, #tpu.memory_space<vmem>>, vector<1x8xf32>
    %122 = vector.broadcast %121 : vector<1x8xf32> to vector<34x8xf32>
    %123 = arith.addf %120, %122 : vector<34x8xf32>
    %cst_131 = arith.constant 0.000000e+00 : f32
    %124 = vector.broadcast %cst_131 : f32 to vector<34x8xf32>
    %125 = arith.maximumf %123, %124 : vector<34x8xf32>
    %126 = vector.extract_strided_slice %125 {offsets = [0, 0], sizes = [16, 8], strides = [1, 1]} : vector<34x8xf32> to vector<16x8xf32>
    %c2_132 = arith.constant 2 : index
    %c0_133 = arith.constant 0 : index
    %127 = vector.load %arg63[%c2_132, %c0_133] : memref<40x8xf32, #tpu.memory_space<vmem>>, vector<16x8xf32>
    tpu.vector_store %arg63[%c2_132, %c0_133], %126 {strides = array<i32>} : memref<40x8xf32, #tpu.memory_space<vmem>>, vector<16x8xf32>,
    %128 = vector.extract_strided_slice %125 {offsets = [18, 0], sizes = [16, 8], strides = [1, 1]} : vector<34x8xf32> to vector<16x8xf32>
    %c22 = arith.constant 22 : index
    %c0_134 = arith.constant 0 : index
    %129 = vector.load %arg63[%c22, %c0_134] : memref<40x8xf32, #tpu.memory_space<vmem>>, vector<16x8xf32>
    tpu.vector_store %arg63[%c22, %c0_134], %128 {strides = array<i32>} : memref<40x8xf32, #tpu.memory_space<vmem>>, vector<16x8xf32>,
    %c0_135 = arith.constant 0 : index
    %c0_136 = arith.constant 0 : index
    %130 = vector.load %arg63[%c0_135, %c0_136] : memref<40x8xf32, #tpu.memory_space<vmem>>, vector<36x8xf32>
    %131 = arith.truncf %130 : vector<36x8xf32> to vector<36x8xbf16>
    %c0_137 = arith.constant 0 : index
    %c0_138 = arith.constant 0 : index
    %132 = vector.load %arg6[%c0_137, %c0_138] : memref<24x8xbf16, #tpu.memory_space<vmem>>, vector<8x8xbf16>
    %cst_139 = arith.constant dense<0.000000e+00> : vector<36x8xf32>
    %133 = tpu.matmul %131, %132, %cst_139 {dimension_numbers = #tpu.dot_dimension_numbers<[1], [0], [0], [1], [0, 0, 1, 1], [], []>} : vector<36x8xbf16>, vector<8x8xbf16>, vector<36x8xf32> -> vector<36x8xf32>
    %c2_140 = arith.constant 2 : index
    %c0_141 = arith.constant 0 : index
    %134 = vector.load %arg63[%c2_140, %c0_141] : memref<40x8xf32, #tpu.memory_space<vmem>>, vector<36x8xf32>
    %135 = arith.truncf %134 : vector<36x8xf32> to vector<36x8xbf16>
    %c8_142 = arith.constant 8 : index
    %c0_143 = arith.constant 0 : index
    %136 = vector.load %arg6[%c8_142, %c0_143] : memref<24x8xbf16, #tpu.memory_space<vmem>>, vector<8x8xbf16>
    %cst_144 = arith.constant dense<0.000000e+00> : vector<36x8xf32>
    %137 = tpu.matmul %135, %136, %cst_144 {dimension_numbers = #tpu.dot_dimension_numbers<[1], [0], [0], [1], [0, 0, 1, 1], [], []>} : vector<36x8xbf16>, vector<8x8xbf16>, vector<36x8xf32> -> vector<36x8xf32>
    %138 = arith.addf %133, %137 : vector<36x8xf32>
    %c4_145 = arith.constant 4 : index
    %c0_146 = arith.constant 0 : index
    %139 = vector.load %arg63[%c4_145, %c0_146] : memref<40x8xf32, #tpu.memory_space<vmem>>, vector<36x8xf32>
    %140 = arith.truncf %139 : vector<36x8xf32> to vector<36x8xbf16>
    %c16_147 = arith.constant 16 : index
    %c0_148 = arith.constant 0 : index
    %141 = vector.load %arg6[%c16_147, %c0_148] : memref<24x8xbf16, #tpu.memory_space<vmem>>, vector<8x8xbf16>
    %cst_149 = arith.constant dense<0.000000e+00> : vector<36x8xf32>
    %142 = tpu.matmul %140, %141, %cst_149 {dimension_numbers = #tpu.dot_dimension_numbers<[1], [0], [0], [1], [0, 0, 1, 1], [], []>} : vector<36x8xbf16>, vector<8x8xbf16>, vector<36x8xf32> -> vector<36x8xf32>
    %143 = arith.addf %138, %142 : vector<36x8xf32>
    %c0_150 = arith.constant 0 : index
    %c0_151 = arith.constant 0 : index
    %144 = vector.load %arg7[%c0_150, %c0_151] : memref<1x8xf32, #tpu.memory_space<vmem>>, vector<1x8xf32>
    %145 = vector.broadcast %144 : vector<1x8xf32> to vector<36x8xf32>
    %146 = arith.addf %143, %145 : vector<36x8xf32>
    %cst_152 = arith.constant 0.000000e+00 : f32
    %147 = vector.broadcast %cst_152 : f32 to vector<36x8xf32>
    %148 = arith.maximumf %146, %147 : vector<36x8xf32>
    %149 = vector.extract_strided_slice %148 {offsets = [0, 0], sizes = [16, 8], strides = [1, 1]} : vector<36x8xf32> to vector<16x8xf32>
    %c4_153 = arith.constant 4 : index
    %c0_154 = arith.constant 0 : index
    %150 = vector.load %arg64[%c4_153, %c0_154] : memref<48x8xf32, #tpu.memory_space<vmem>>, vector<16x8xf32>
    tpu.vector_store %arg64[%c4_153, %c0_154], %149 {strides = array<i32>} : memref<48x8xf32, #tpu.memory_space<vmem>>, vector<16x8xf32>,
    %151 = vector.extract_strided_slice %148 {offsets = [20, 0], sizes = [16, 8], strides = [1, 1]} : vector<36x8xf32> to vector<16x8xf32>
    %c28 = arith.constant 28 : index
    %c0_155 = arith.constant 0 : index
    %152 = vector.load %arg64[%c28, %c0_155] : memref<48x8xf32, #tpu.memory_space<vmem>>, vector<16x8xf32>
    tpu.vector_store %arg64[%c28, %c0_155], %151 {strides = array<i32>} : memref<48x8xf32, #tpu.memory_space<vmem>>, vector<16x8xf32>,
    %c0_156 = arith.constant 0 : index
    %c0_157 = arith.constant 0 : index
    %153 = vector.load %arg64[%c0_156, %c0_157] : memref<48x8xf32, #tpu.memory_space<vmem>>, vector<40x8xf32>
    %154 = arith.truncf %153 : vector<40x8xf32> to vector<40x8xbf16>
    %c0_158 = arith.constant 0 : index
    %c0_159 = arith.constant 0 : index
    %155 = vector.load %arg8[%c0_158, %c0_159] : memref<24x8xbf16, #tpu.memory_space<vmem>>, vector<8x8xbf16>
    %cst_160 = arith.constant dense<0.000000e+00> : vector<40x8xf32>
    %156 = tpu.matmul %154, %155, %cst_160 {dimension_numbers = #tpu.dot_dimension_numbers<[1], [0], [0], [1], [0, 0, 1, 1], [], []>} : vector<40x8xbf16>, vector<8x8xbf16>, vector<40x8xf32> -> vector<40x8xf32>
    %c4_161 = arith.constant 4 : index
    %c0_162 = arith.constant 0 : index
    %157 = vector.load %arg64[%c4_161, %c0_162] : memref<48x8xf32, #tpu.memory_space<vmem>>, vector<40x8xf32>
    %158 = arith.truncf %157 : vector<40x8xf32> to vector<40x8xbf16>
    %c8_163 = arith.constant 8 : index
    %c0_164 = arith.constant 0 : index
    %159 = vector.load %arg8[%c8_163, %c0_164] : memref<24x8xbf16, #tpu.memory_space<vmem>>, vector<8x8xbf16>
    %cst_165 = arith.constant dense<0.000000e+00> : vector<40x8xf32>
    %160 = tpu.matmul %158, %159, %cst_165 {dimension_numbers = #tpu.dot_dimension_numbers<[1], [0], [0], [1], [0, 0, 1, 1], [], []>} : vector<40x8xbf16>, vector<8x8xbf16>, vector<40x8xf32> -> vector<40x8xf32>
    %161 = arith.addf %156, %160 : vector<40x8xf32>
    %c8_166 = arith.constant 8 : index
    %c0_167 = arith.constant 0 : index
    %162 = vector.load %arg64[%c8_166, %c0_167] : memref<48x8xf32, #tpu.memory_space<vmem>>, vector<40x8xf32>
    %163 = arith.truncf %162 : vector<40x8xf32> to vector<40x8xbf16>
    %c16_168 = arith.constant 16 : index
    %c0_169 = arith.constant 0 : index
    %164 = vector.load %arg8[%c16_168, %c0_169] : memref<24x8xbf16, #tpu.memory_space<vmem>>, vector<8x8xbf16>
    %cst_170 = arith.constant dense<0.000000e+00> : vector<40x8xf32>
    %165 = tpu.matmul %163, %164, %cst_170 {dimension_numbers = #tpu.dot_dimension_numbers<[1], [0], [0], [1], [0, 0, 1, 1], [], []>} : vector<40x8xbf16>, vector<8x8xbf16>, vector<40x8xf32> -> vector<40x8xf32>
    %166 = arith.addf %161, %165 : vector<40x8xf32>
    %c0_171 = arith.constant 0 : index
    %c0_172 = arith.constant 0 : index
    %167 = vector.load %arg9[%c0_171, %c0_172] : memref<1x8xf32, #tpu.memory_space<vmem>>, vector<1x8xf32>
    %168 = vector.broadcast %167 : vector<1x8xf32> to vector<40x8xf32>
    %169 = arith.addf %166, %168 : vector<40x8xf32>
    %170 = vector.extract_strided_slice %169 {offsets = [0, 0], sizes = [16, 8], strides = [1, 1]} : vector<40x8xf32> to vector<16x8xf32>
    %171 = arith.addf %170, %103 : vector<16x8xf32>
    %cst_173 = arith.constant 0.000000e+00 : f32
    %172 = vector.broadcast %cst_173 : f32 to vector<16x8xf32>
    %173 = arith.maximumf %171, %172 : vector<16x8xf32>
    %174 = vector.extract_strided_slice %169 {offsets = [24, 0], sizes = [16, 8], strides = [1, 1]} : vector<40x8xf32> to vector<16x8xf32>
    %175 = arith.addf %174, %104 : vector<16x8xf32>
    %cst_174 = arith.constant 0.000000e+00 : f32
    %176 = vector.broadcast %cst_174 : f32 to vector<16x8xf32>
    %177 = arith.maximumf %175, %176 : vector<16x8xf32>
    %c1_175 = arith.constant 1 : index
    %c0_176 = arith.constant 0 : index
    %178 = vector.load %arg65[%c1_175, %c0_176] : memref<36x8xf32, #tpu.memory_space<vmem>>, vector<16x8xf32>
    tpu.vector_store %arg65[%c1_175, %c0_176], %173 {strides = array<i32>} : memref<36x8xf32, #tpu.memory_space<vmem>>, vector<16x8xf32>,
    %c19_177 = arith.constant 19 : index
    %c0_178 = arith.constant 0 : index
    %179 = vector.load %arg65[%c19_177, %c0_178] : memref<36x8xf32, #tpu.memory_space<vmem>>, vector<16x8xf32>
    tpu.vector_store %arg65[%c19_177, %c0_178], %177 {strides = array<i32>} : memref<36x8xf32, #tpu.memory_space<vmem>>, vector<16x8xf32>,
    %c0_179 = arith.constant 0 : index
    %c0_180 = arith.constant 0 : index
    %180 = vector.load %arg65[%c0_179, %c0_180] : memref<36x8xf32, #tpu.memory_space<vmem>>, vector<34x8xf32>
    %181 = arith.truncf %180 : vector<34x8xf32> to vector<34x8xbf16>
    %c0_181 = arith.constant 0 : index
    %c0_182 = arith.constant 0 : index
    %182 = vector.load %arg10[%c0_181, %c0_182] : memref<24x8xbf16, #tpu.memory_space<vmem>>, vector<8x8xbf16>
    %cst_183 = arith.constant dense<0.000000e+00> : vector<34x8xf32>
    %183 = tpu.matmul %181, %182, %cst_183 {dimension_numbers = #tpu.dot_dimension_numbers<[1], [0], [0], [1], [0, 0, 1, 1], [], []>} : vector<34x8xbf16>, vector<8x8xbf16>, vector<34x8xf32> -> vector<34x8xf32>
    %c1_184 = arith.constant 1 : index
    %c0_185 = arith.constant 0 : index
    %184 = vector.load %arg65[%c1_184, %c0_185] : memref<36x8xf32, #tpu.memory_space<vmem>>, vector<34x8xf32>
    %185 = arith.truncf %184 : vector<34x8xf32> to vector<34x8xbf16>
    %c8_186 = arith.constant 8 : index
    %c0_187 = arith.constant 0 : index
    %186 = vector.load %arg10[%c8_186, %c0_187] : memref<24x8xbf16, #tpu.memory_space<vmem>>, vector<8x8xbf16>
    %cst_188 = arith.constant dense<0.000000e+00> : vector<34x8xf32>
    %187 = tpu.matmul %185, %186, %cst_188 {dimension_numbers = #tpu.dot_dimension_numbers<[1], [0], [0], [1], [0, 0, 1, 1], [], []>} : vector<34x8xbf16>, vector<8x8xbf16>, vector<34x8xf32> -> vector<34x8xf32>
    %188 = arith.addf %183, %187 : vector<34x8xf32>
    %c2_189 = arith.constant 2 : index
    %c0_190 = arith.constant 0 : index
    %189 = vector.load %arg65[%c2_189, %c0_190] : memref<36x8xf32, #tpu.memory_space<vmem>>, vector<34x8xf32>
    %190 = arith.truncf %189 : vector<34x8xf32> to vector<34x8xbf16>
    %c16_191 = arith.constant 16 : index
    %c0_192 = arith.constant 0 : index
    %191 = vector.load %arg10[%c16_191, %c0_192] : memref<24x8xbf16, #tpu.memory_space<vmem>>, vector<8x8xbf16>
    %cst_193 = arith.constant dense<0.000000e+00> : vector<34x8xf32>
    %192 = tpu.matmul %190, %191, %cst_193 {dimension_numbers = #tpu.dot_dimension_numbers<[1], [0], [0], [1], [0, 0, 1, 1], [], []>} : vector<34x8xbf16>, vector<8x8xbf16>, vector<34x8xf32> -> vector<34x8xf32>
    %193 = arith.addf %188, %192 : vector<34x8xf32>
    %c0_194 = arith.constant 0 : index
    %c0_195 = arith.constant 0 : index
    %194 = vector.load %arg11[%c0_194, %c0_195] : memref<1x8xf32, #tpu.memory_space<vmem>>, vector<1x8xf32>
    %195 = vector.broadcast %194 : vector<1x8xf32> to vector<34x8xf32>
    %196 = arith.addf %193, %195 : vector<34x8xf32>
    %cst_196 = arith.constant 0.000000e+00 : f32
    %197 = vector.broadcast %cst_196 : f32 to vector<34x8xf32>
    %198 = arith.maximumf %196, %197 : vector<34x8xf32>
    %199 = vector.extract_strided_slice %198 {offsets = [0, 0], sizes = [16, 8], strides = [1, 1]} : vector<34x8xf32> to vector<16x8xf32>
    %c2_197 = arith.constant 2 : index
    %c0_198 = arith.constant 0 : index
    %200 = vector.load %arg66[%c2_197, %c0_198] : memref<40x8xf32, #tpu.memory_space<vmem>>, vector<16x8xf32>
    tpu.vector_store %arg66[%c2_197, %c0_198], %199 {strides = array<i32>} : memref<40x8xf32, #tpu.memory_space<vmem>>, vector<16x8xf32>,
    %201 = vector.extract_strided_slice %198 {offsets = [18, 0], sizes = [16, 8], strides = [1, 1]} : vector<34x8xf32> to vector<16x8xf32>
    %c22_199 = arith.constant 22 : index
    %c0_200 = arith.constant 0 : index
    %202 = vector.load %arg66[%c22_199, %c0_200] : memref<40x8xf32, #tpu.memory_space<vmem>>, vector<16x8xf32>
    tpu.vector_store %arg66[%c22_199, %c0_200], %201 {strides = array<i32>} : memref<40x8xf32, #tpu.memory_space<vmem>>, vector<16x8xf32>,
    %c0_201 = arith.constant 0 : index
    %c0_202 = arith.constant 0 : index
    %203 = vector.load %arg66[%c0_201, %c0_202] : memref<40x8xf32, #tpu.memory_space<vmem>>, vector<36x8xf32>
    %204 = arith.truncf %203 : vector<36x8xf32> to vector<36x8xbf16>
    %c0_203 = arith.constant 0 : index
    %c0_204 = arith.constant 0 : index
    %205 = vector.load %arg12[%c0_203, %c0_204] : memref<24x8xbf16, #tpu.memory_space<vmem>>, vector<8x8xbf16>
    %cst_205 = arith.constant dense<0.000000e+00> : vector<36x8xf32>
    %206 = tpu.matmul %204, %205, %cst_205 {dimension_numbers = #tpu.dot_dimension_numbers<[1], [0], [0], [1], [0, 0, 1, 1], [], []>} : vector<36x8xbf16>, vector<8x8xbf16>, vector<36x8xf32> -> vector<36x8xf32>
    %c2_206 = arith.constant 2 : index
    %c0_207 = arith.constant 0 : index
    %207 = vector.load %arg66[%c2_206, %c0_207] : memref<40x8xf32, #tpu.memory_space<vmem>>, vector<36x8xf32>
    %208 = arith.truncf %207 : vector<36x8xf32> to vector<36x8xbf16>
    %c8_208 = arith.constant 8 : index
    %c0_209 = arith.constant 0 : index
    %209 = vector.load %arg12[%c8_208, %c0_209] : memref<24x8xbf16, #tpu.memory_space<vmem>>, vector<8x8xbf16>
    %cst_210 = arith.constant dense<0.000000e+00> : vector<36x8xf32>
    %210 = tpu.matmul %208, %209, %cst_210 {dimension_numbers = #tpu.dot_dimension_numbers<[1], [0], [0], [1], [0, 0, 1, 1], [], []>} : vector<36x8xbf16>, vector<8x8xbf16>, vector<36x8xf32> -> vector<36x8xf32>
    %211 = arith.addf %206, %210 : vector<36x8xf32>
    %c4_211 = arith.constant 4 : index
    %c0_212 = arith.constant 0 : index
    %212 = vector.load %arg66[%c4_211, %c0_212] : memref<40x8xf32, #tpu.memory_space<vmem>>, vector<36x8xf32>
    %213 = arith.truncf %212 : vector<36x8xf32> to vector<36x8xbf16>
    %c16_213 = arith.constant 16 : index
    %c0_214 = arith.constant 0 : index
    %214 = vector.load %arg12[%c16_213, %c0_214] : memref<24x8xbf16, #tpu.memory_space<vmem>>, vector<8x8xbf16>
    %cst_215 = arith.constant dense<0.000000e+00> : vector<36x8xf32>
    %215 = tpu.matmul %213, %214, %cst_215 {dimension_numbers = #tpu.dot_dimension_numbers<[1], [0], [0], [1], [0, 0, 1, 1], [], []>} : vector<36x8xbf16>, vector<8x8xbf16>, vector<36x8xf32> -> vector<36x8xf32>
    %216 = arith.addf %211, %215 : vector<36x8xf32>
    %c0_216 = arith.constant 0 : index
    %c0_217 = arith.constant 0 : index
    %217 = vector.load %arg13[%c0_216, %c0_217] : memref<1x8xf32, #tpu.memory_space<vmem>>, vector<1x8xf32>
    %218 = vector.broadcast %217 : vector<1x8xf32> to vector<36x8xf32>
    %219 = arith.addf %216, %218 : vector<36x8xf32>
    %cst_218 = arith.constant 0.000000e+00 : f32
    %220 = vector.broadcast %cst_218 : f32 to vector<36x8xf32>
    %221 = arith.maximumf %219, %220 : vector<36x8xf32>
    %222 = vector.extract_strided_slice %221 {offsets = [0, 0], sizes = [16, 8], strides = [1, 1]} : vector<36x8xf32> to vector<16x8xf32>
    %c4_219 = arith.constant 4 : index
    %c0_220 = arith.constant 0 : index
    %223 = vector.load %arg67[%c4_219, %c0_220] : memref<48x8xf32, #tpu.memory_space<vmem>>, vector<16x8xf32>
    tpu.vector_store %arg67[%c4_219, %c0_220], %222 {strides = array<i32>} : memref<48x8xf32, #tpu.memory_space<vmem>>, vector<16x8xf32>,
    %224 = vector.extract_strided_slice %221 {offsets = [20, 0], sizes = [16, 8], strides = [1, 1]} : vector<36x8xf32> to vector<16x8xf32>
    %c28_221 = arith.constant 28 : index
    %c0_222 = arith.constant 0 : index
    %225 = vector.load %arg67[%c28_221, %c0_222] : memref<48x8xf32, #tpu.memory_space<vmem>>, vector<16x8xf32>
    tpu.vector_store %arg67[%c28_221, %c0_222], %224 {strides = array<i32>} : memref<48x8xf32, #tpu.memory_space<vmem>>, vector<16x8xf32>,
    %c0_223 = arith.constant 0 : index
    %c0_224 = arith.constant 0 : index
    %226 = vector.load %arg67[%c0_223, %c0_224] : memref<48x8xf32, #tpu.memory_space<vmem>>, vector<40x8xf32>
    %227 = arith.truncf %226 : vector<40x8xf32> to vector<40x8xbf16>
    %c0_225 = arith.constant 0 : index
    %c0_226 = arith.constant 0 : index
    %228 = vector.load %arg14[%c0_225, %c0_226] : memref<24x8xbf16, #tpu.memory_space<vmem>>, vector<8x8xbf16>
    %cst_227 = arith.constant dense<0.000000e+00> : vector<40x8xf32>
    %229 = tpu.matmul %227, %228, %cst_227 {dimension_numbers = #tpu.dot_dimension_numbers<[1], [0], [0], [1], [0, 0, 1, 1], [], []>} : vector<40x8xbf16>, vector<8x8xbf16>, vector<40x8xf32> -> vector<40x8xf32>
    %c4_228 = arith.constant 4 : index
    %c0_229 = arith.constant 0 : index
    %230 = vector.load %arg67[%c4_228, %c0_229] : memref<48x8xf32, #tpu.memory_space<vmem>>, vector<40x8xf32>
    %231 = arith.truncf %230 : vector<40x8xf32> to vector<40x8xbf16>
    %c8_230 = arith.constant 8 : index
    %c0_231 = arith.constant 0 : index
    %232 = vector.load %arg14[%c8_230, %c0_231] : memref<24x8xbf16, #tpu.memory_space<vmem>>, vector<8x8xbf16>
    %cst_232 = arith.constant dense<0.000000e+00> : vector<40x8xf32>
    %233 = tpu.matmul %231, %232, %cst_232 {dimension_numbers = #tpu.dot_dimension_numbers<[1], [0], [0], [1], [0, 0, 1, 1], [], []>} : vector<40x8xbf16>, vector<8x8xbf16>, vector<40x8xf32> -> vector<40x8xf32>
    %234 = arith.addf %229, %233 : vector<40x8xf32>
    %c8_233 = arith.constant 8 : index
    %c0_234 = arith.constant 0 : index
    %235 = vector.load %arg67[%c8_233, %c0_234] : memref<48x8xf32, #tpu.memory_space<vmem>>, vector<40x8xf32>
    %236 = arith.truncf %235 : vector<40x8xf32> to vector<40x8xbf16>
    %c16_235 = arith.constant 16 : index
    %c0_236 = arith.constant 0 : index
    %237 = vector.load %arg14[%c16_235, %c0_236] : memref<24x8xbf16, #tpu.memory_space<vmem>>, vector<8x8xbf16>
    %cst_237 = arith.constant dense<0.000000e+00> : vector<40x8xf32>
    %238 = tpu.matmul %236, %237, %cst_237 {dimension_numbers = #tpu.dot_dimension_numbers<[1], [0], [0], [1], [0, 0, 1, 1], [], []>} : vector<40x8xbf16>, vector<8x8xbf16>, vector<40x8xf32> -> vector<40x8xf32>
    %239 = arith.addf %234, %238 : vector<40x8xf32>
    %c0_238 = arith.constant 0 : index
    %c0_239 = arith.constant 0 : index
    %240 = vector.load %arg15[%c0_238, %c0_239] : memref<1x8xf32, #tpu.memory_space<vmem>>, vector<1x8xf32>
    %241 = vector.broadcast %240 : vector<1x8xf32> to vector<40x8xf32>
    %242 = arith.addf %239, %241 : vector<40x8xf32>
    %243 = vector.extract_strided_slice %242 {offsets = [0, 0], sizes = [16, 8], strides = [1, 1]} : vector<40x8xf32> to vector<16x8xf32>
    %244 = arith.addf %243, %173 : vector<16x8xf32>
    %cst_240 = arith.constant 0.000000e+00 : f32
    %245 = vector.broadcast %cst_240 : f32 to vector<16x8xf32>
    %246 = arith.maximumf %244, %245 : vector<16x8xf32>
    %247 = vector.extract_strided_slice %242 {offsets = [24, 0], sizes = [16, 8], strides = [1, 1]} : vector<40x8xf32> to vector<16x8xf32>
    %248 = arith.addf %247, %177 : vector<16x8xf32>
    %cst_241 = arith.constant 0.000000e+00 : f32
    %249 = vector.broadcast %cst_241 : f32 to vector<16x8xf32>
    %250 = arith.maximumf %248, %249 : vector<16x8xf32>
    %c1_242 = arith.constant 1 : index
    %c0_243 = arith.constant 0 : index
    %251 = vector.load %arg68[%c1_242, %c0_243] : memref<36x8xf32, #tpu.memory_space<vmem>>, vector<16x8xf32>
    tpu.vector_store %arg68[%c1_242, %c0_243], %246 {strides = array<i32>} : memref<36x8xf32, #tpu.memory_space<vmem>>, vector<16x8xf32>,
    %c19_244 = arith.constant 19 : index
    %c0_245 = arith.constant 0 : index
    %252 = vector.load %arg68[%c19_244, %c0_245] : memref<36x8xf32, #tpu.memory_space<vmem>>, vector<16x8xf32>
    tpu.vector_store %arg68[%c19_244, %c0_245], %250 {strides = array<i32>} : memref<36x8xf32, #tpu.memory_space<vmem>>, vector<16x8xf32>,
    %c0_246 = arith.constant 0 : index
    %c0_247 = arith.constant 0 : index
    %253 = vector.load %arg68[%c0_246, %c0_247] : memref<36x8xf32, #tpu.memory_space<vmem>>, vector<34x8xf32>
    %254 = arith.truncf %253 : vector<34x8xf32> to vector<34x8xbf16>
    %c0_248 = arith.constant 0 : index
    %c0_249 = arith.constant 0 : index
    %255 = vector.load %arg16[%c0_248, %c0_249] : memref<24x16xbf16, #tpu.memory_space<vmem>>, vector<8x16xbf16>
    %cst_250 = arith.constant dense<0.000000e+00> : vector<34x16xf32>
    %256 = tpu.matmul %254, %255, %cst_250 {dimension_numbers = #tpu.dot_dimension_numbers<[1], [0], [0], [1], [0, 0, 1, 1], [], []>} : vector<34x8xbf16>, vector<8x16xbf16>, vector<34x16xf32> -> vector<34x16xf32>
    %c1_251 = arith.constant 1 : index
    %c0_252 = arith.constant 0 : index
    %257 = vector.load %arg68[%c1_251, %c0_252] : memref<36x8xf32, #tpu.memory_space<vmem>>, vector<34x8xf32>
    %258 = arith.truncf %257 : vector<34x8xf32> to vector<34x8xbf16>
    %c8_253 = arith.constant 8 : index
    %c0_254 = arith.constant 0 : index
    %259 = vector.load %arg16[%c8_253, %c0_254] : memref<24x16xbf16, #tpu.memory_space<vmem>>, vector<8x16xbf16>
    %cst_255 = arith.constant dense<0.000000e+00> : vector<34x16xf32>
    %260 = tpu.matmul %258, %259, %cst_255 {dimension_numbers = #tpu.dot_dimension_numbers<[1], [0], [0], [1], [0, 0, 1, 1], [], []>} : vector<34x8xbf16>, vector<8x16xbf16>, vector<34x16xf32> -> vector<34x16xf32>
    %261 = arith.addf %256, %260 : vector<34x16xf32>
    %c2_256 = arith.constant 2 : index
    %c0_257 = arith.constant 0 : index
    %262 = vector.load %arg68[%c2_256, %c0_257] : memref<36x8xf32, #tpu.memory_space<vmem>>, vector<34x8xf32>
    %263 = arith.truncf %262 : vector<34x8xf32> to vector<34x8xbf16>
    %c16_258 = arith.constant 16 : index
    %c0_259 = arith.constant 0 : index
    %264 = vector.load %arg16[%c16_258, %c0_259] : memref<24x16xbf16, #tpu.memory_space<vmem>>, vector<8x16xbf16>
    %cst_260 = arith.constant dense<0.000000e+00> : vector<34x16xf32>
    %265 = tpu.matmul %263, %264, %cst_260 {dimension_numbers = #tpu.dot_dimension_numbers<[1], [0], [0], [1], [0, 0, 1, 1], [], []>} : vector<34x8xbf16>, vector<8x16xbf16>, vector<34x16xf32> -> vector<34x16xf32>
    %266 = arith.addf %261, %265 : vector<34x16xf32>
    %c0_261 = arith.constant 0 : index
    %c0_262 = arith.constant 0 : index
    %267 = vector.load %arg17[%c0_261, %c0_262] : memref<1x16xf32, #tpu.memory_space<vmem>>, vector<1x16xf32>
    %268 = vector.broadcast %267 : vector<1x16xf32> to vector<34x16xf32>
    %269 = arith.addf %266, %268 : vector<34x16xf32>
    %cst_263 = arith.constant 0.000000e+00 : f32
    %270 = vector.broadcast %cst_263 : f32 to vector<34x16xf32>
    %271 = arith.maximumf %269, %270 : vector<34x16xf32>
    %272 = vector.extract_strided_slice %271 {offsets = [0, 0], sizes = [16, 16], strides = [1, 1]} : vector<34x16xf32> to vector<16x16xf32>
    %c2_264 = arith.constant 2 : index
    %c0_265 = arith.constant 0 : index
    %273 = vector.load %arg69[%c2_264, %c0_265] : memref<40x16xf32, #tpu.memory_space<vmem>>, vector<16x16xf32>
    tpu.vector_store %arg69[%c2_264, %c0_265], %272 {strides = array<i32>} : memref<40x16xf32, #tpu.memory_space<vmem>>, vector<16x16xf32>,
    %274 = vector.extract_strided_slice %271 {offsets = [18, 0], sizes = [16, 16], strides = [1, 1]} : vector<34x16xf32> to vector<16x16xf32>
    %c22_266 = arith.constant 22 : index
    %c0_267 = arith.constant 0 : index
    %275 = vector.load %arg69[%c22_266, %c0_267] : memref<40x16xf32, #tpu.memory_space<vmem>>, vector<16x16xf32>
    tpu.vector_store %arg69[%c22_266, %c0_267], %274 {strides = array<i32>} : memref<40x16xf32, #tpu.memory_space<vmem>>, vector<16x16xf32>,
    %c0_268 = arith.constant 0 : index
    %c0_269 = arith.constant 0 : index
    %276 = tpu.strided_load %arg69[%c0_268, %c0_269] {strides = array<i32: 2, 1>} : memref<40x16xf32, #tpu.memory_space<vmem>>, vector<18x16xf32>
    %277 = arith.truncf %276 : vector<18x16xf32> to vector<18x16xbf16>
    %c0_270 = arith.constant 0 : index
    %c0_271 = arith.constant 0 : index
    %278 = vector.load %arg18[%c0_270, %c0_271] : memref<48x16xbf16, #tpu.memory_space<vmem>>, vector<16x16xbf16>
    %cst_272 = arith.constant dense<0.000000e+00> : vector<18x16xf32>
    %279 = tpu.matmul %277, %278, %cst_272 {dimension_numbers = #tpu.dot_dimension_numbers<[1], [0], [0], [1], [0, 0, 1, 1], [], []>} : vector<18x16xbf16>, vector<16x16xbf16>, vector<18x16xf32> -> vector<18x16xf32>
    %c2_273 = arith.constant 2 : index
    %c0_274 = arith.constant 0 : index
    %280 = tpu.strided_load %arg69[%c2_273, %c0_274] {strides = array<i32: 2, 1>} : memref<40x16xf32, #tpu.memory_space<vmem>>, vector<18x16xf32>
    %281 = arith.truncf %280 : vector<18x16xf32> to vector<18x16xbf16>
    %c16_275 = arith.constant 16 : index
    %c0_276 = arith.constant 0 : index
    %282 = vector.load %arg18[%c16_275, %c0_276] : memref<48x16xbf16, #tpu.memory_space<vmem>>, vector<16x16xbf16>
    %cst_277 = arith.constant dense<0.000000e+00> : vector<18x16xf32>
    %283 = tpu.matmul %281, %282, %cst_277 {dimension_numbers = #tpu.dot_dimension_numbers<[1], [0], [0], [1], [0, 0, 1, 1], [], []>} : vector<18x16xbf16>, vector<16x16xbf16>, vector<18x16xf32> -> vector<18x16xf32>
    %284 = arith.addf %279, %283 : vector<18x16xf32>
    %c4_278 = arith.constant 4 : index
    %c0_279 = arith.constant 0 : index
    %285 = tpu.strided_load %arg69[%c4_278, %c0_279] {strides = array<i32: 2, 1>} : memref<40x16xf32, #tpu.memory_space<vmem>>, vector<18x16xf32>
    %286 = arith.truncf %285 : vector<18x16xf32> to vector<18x16xbf16>
    %c32_280 = arith.constant 32 : index
    %c0_281 = arith.constant 0 : index
    %287 = vector.load %arg18[%c32_280, %c0_281] : memref<48x16xbf16, #tpu.memory_space<vmem>>, vector<16x16xbf16>
    %cst_282 = arith.constant dense<0.000000e+00> : vector<18x16xf32>
    %288 = tpu.matmul %286, %287, %cst_282 {dimension_numbers = #tpu.dot_dimension_numbers<[1], [0], [0], [1], [0, 0, 1, 1], [], []>} : vector<18x16xbf16>, vector<16x16xbf16>, vector<18x16xf32> -> vector<18x16xf32>
    %289 = arith.addf %284, %288 : vector<18x16xf32>
    %c0_283 = arith.constant 0 : index
    %c0_284 = arith.constant 0 : index
    %290 = vector.load %arg19[%c0_283, %c0_284] : memref<1x16xf32, #tpu.memory_space<vmem>>, vector<1x16xf32>
    %291 = vector.broadcast %290 : vector<1x16xf32> to vector<18x16xf32>
    %292 = arith.addf %289, %291 : vector<18x16xf32>
    %cst_285 = arith.constant 0.000000e+00 : f32
    %293 = vector.broadcast %cst_285 : f32 to vector<18x16xf32>
    %294 = arith.maximumf %292, %293 : vector<18x16xf32>
    %295 = vector.extract_strided_slice %294 {offsets = [0, 0], sizes = [8, 16], strides = [1, 1]} : vector<18x16xf32> to vector<8x16xf32>
    %c4_286 = arith.constant 4 : index
    %c0_287 = arith.constant 0 : index
    %296 = vector.load %arg70[%c4_286, %c0_287] : memref<32x16xf32, #tpu.memory_space<vmem>>, vector<8x16xf32>
    tpu.vector_store %arg70[%c4_286, %c0_287], %295 {strides = array<i32>} : memref<32x16xf32, #tpu.memory_space<vmem>>, vector<8x16xf32>,
    %297 = vector.extract_strided_slice %294 {offsets = [10, 0], sizes = [8, 16], strides = [1, 1]} : vector<18x16xf32> to vector<8x16xf32>
    %c20 = arith.constant 20 : index
    %c0_288 = arith.constant 0 : index
    %298 = vector.load %arg70[%c20, %c0_288] : memref<32x16xf32, #tpu.memory_space<vmem>>, vector<8x16xf32>
    tpu.vector_store %arg70[%c20, %c0_288], %297 {strides = array<i32>} : memref<32x16xf32, #tpu.memory_space<vmem>>, vector<8x16xf32>,
    %c0_289 = arith.constant 0 : index
    %c0_290 = arith.constant 0 : index
    %299 = vector.load %arg70[%c0_289, %c0_290] : memref<32x16xf32, #tpu.memory_space<vmem>>, vector<24x16xf32>
    %300 = arith.truncf %299 : vector<24x16xf32> to vector<24x16xbf16>
    %c0_291 = arith.constant 0 : index
    %c0_292 = arith.constant 0 : index
    %301 = vector.load %arg20[%c0_291, %c0_292] : memref<48x16xbf16, #tpu.memory_space<vmem>>, vector<16x16xbf16>
    %cst_293 = arith.constant dense<0.000000e+00> : vector<24x16xf32>
    %302 = tpu.matmul %300, %301, %cst_293 {dimension_numbers = #tpu.dot_dimension_numbers<[1], [0], [0], [1], [0, 0, 1, 1], [], []>} : vector<24x16xbf16>, vector<16x16xbf16>, vector<24x16xf32> -> vector<24x16xf32>
    %c4_294 = arith.constant 4 : index
    %c0_295 = arith.constant 0 : index
    %303 = vector.load %arg70[%c4_294, %c0_295] : memref<32x16xf32, #tpu.memory_space<vmem>>, vector<24x16xf32>
    %304 = arith.truncf %303 : vector<24x16xf32> to vector<24x16xbf16>
    %c16_296 = arith.constant 16 : index
    %c0_297 = arith.constant 0 : index
    %305 = vector.load %arg20[%c16_296, %c0_297] : memref<48x16xbf16, #tpu.memory_space<vmem>>, vector<16x16xbf16>
    %cst_298 = arith.constant dense<0.000000e+00> : vector<24x16xf32>
    %306 = tpu.matmul %304, %305, %cst_298 {dimension_numbers = #tpu.dot_dimension_numbers<[1], [0], [0], [1], [0, 0, 1, 1], [], []>} : vector<24x16xbf16>, vector<16x16xbf16>, vector<24x16xf32> -> vector<24x16xf32>
    %307 = arith.addf %302, %306 : vector<24x16xf32>
    %c8_299 = arith.constant 8 : index
    %c0_300 = arith.constant 0 : index
    %308 = vector.load %arg70[%c8_299, %c0_300] : memref<32x16xf32, #tpu.memory_space<vmem>>, vector<24x16xf32>
    %309 = arith.truncf %308 : vector<24x16xf32> to vector<24x16xbf16>
    %c32_301 = arith.constant 32 : index
    %c0_302 = arith.constant 0 : index
    %310 = vector.load %arg20[%c32_301, %c0_302] : memref<48x16xbf16, #tpu.memory_space<vmem>>, vector<16x16xbf16>
    %cst_303 = arith.constant dense<0.000000e+00> : vector<24x16xf32>
    %311 = tpu.matmul %309, %310, %cst_303 {dimension_numbers = #tpu.dot_dimension_numbers<[1], [0], [0], [1], [0, 0, 1, 1], [], []>} : vector<24x16xbf16>, vector<16x16xbf16>, vector<24x16xf32> -> vector<24x16xf32>
    %312 = arith.addf %307, %311 : vector<24x16xf32>
    %c0_304 = arith.constant 0 : index
    %c0_305 = arith.constant 0 : index
    %313 = vector.load %arg21[%c0_304, %c0_305] : memref<1x16xf32, #tpu.memory_space<vmem>>, vector<1x16xf32>
    %314 = vector.broadcast %313 : vector<1x16xf32> to vector<24x16xf32>
    %315 = arith.addf %312, %314 : vector<24x16xf32>
    %c1_306 = arith.constant 1 : index
    %c0_307 = arith.constant 0 : index
    %316 = tpu.strided_load %arg68[%c1_306, %c0_307] {strides = array<i32: 2, 1>} : memref<36x8xf32, #tpu.memory_space<vmem>>, vector<17x8xf32>
    %317 = arith.truncf %316 : vector<17x8xf32> to vector<17x8xbf16>
    %c0_308 = arith.constant 0 : index
    %c0_309 = arith.constant 0 : index
    %318 = vector.load %arg22[%c0_308, %c0_309] : memref<8x16xbf16, #tpu.memory_space<vmem>>, vector<8x16xbf16>
    %cst_310 = arith.constant dense<0.000000e+00> : vector<17x16xf32>
    %319 = tpu.matmul %317, %318, %cst_310 {dimension_numbers = #tpu.dot_dimension_numbers<[1], [0], [0], [1], [0, 0, 1, 1], [], []>} : vector<17x8xbf16>, vector<8x16xbf16>, vector<17x16xf32> -> vector<17x16xf32>
    %c0_311 = arith.constant 0 : index
    %c0_312 = arith.constant 0 : index
    %320 = vector.load %arg23[%c0_311, %c0_312] : memref<1x16xf32, #tpu.memory_space<vmem>>, vector<1x16xf32>
    %321 = vector.broadcast %320 : vector<1x16xf32> to vector<17x16xf32>
    %322 = arith.addf %319, %321 : vector<17x16xf32>
    %323 = vector.extract_strided_slice %322 {offsets = [0, 0], sizes = [8, 16], strides = [1, 1]} : vector<17x16xf32> to vector<8x16xf32>
    %324 = vector.extract_strided_slice %322 {offsets = [9, 0], sizes = [8, 16], strides = [1, 1]} : vector<17x16xf32> to vector<8x16xf32>
    %325 = vector.extract_strided_slice %315 {offsets = [0, 0], sizes = [8, 16], strides = [1, 1]} : vector<24x16xf32> to vector<8x16xf32>
    %326 = arith.addf %325, %323 : vector<8x16xf32>
    %cst_313 = arith.constant 0.000000e+00 : f32
    %327 = vector.broadcast %cst_313 : f32 to vector<8x16xf32>
    %328 = arith.maximumf %326, %327 : vector<8x16xf32>
    %329 = vector.extract_strided_slice %315 {offsets = [16, 0], sizes = [8, 16], strides = [1, 1]} : vector<24x16xf32> to vector<8x16xf32>
    %330 = arith.addf %329, %324 : vector<8x16xf32>
    %cst_314 = arith.constant 0.000000e+00 : f32
    %331 = vector.broadcast %cst_314 : f32 to vector<8x16xf32>
    %332 = arith.maximumf %330, %331 : vector<8x16xf32>
    %c1_315 = arith.constant 1 : index
    %c0_316 = arith.constant 0 : index
    %333 = vector.load %arg71[%c1_315, %c0_316] : memref<20x16xf32, #tpu.memory_space<vmem>>, vector<8x16xf32>
    tpu.vector_store %arg71[%c1_315, %c0_316], %328 {strides = array<i32>} : memref<20x16xf32, #tpu.memory_space<vmem>>, vector<8x16xf32>,
    %c11 = arith.constant 11 : index
    %c0_317 = arith.constant 0 : index
    %334 = vector.load %arg71[%c11, %c0_317] : memref<20x16xf32, #tpu.memory_space<vmem>>, vector<8x16xf32>
    tpu.vector_store %arg71[%c11, %c0_317], %332 {strides = array<i32>} : memref<20x16xf32, #tpu.memory_space<vmem>>, vector<8x16xf32>,
    %c0_318 = arith.constant 0 : index
    %c0_319 = arith.constant 0 : index
    %335 = vector.load %arg71[%c0_318, %c0_319] : memref<20x16xf32, #tpu.memory_space<vmem>>, vector<18x16xf32>
    %336 = arith.truncf %335 : vector<18x16xf32> to vector<18x16xbf16>
    %c0_320 = arith.constant 0 : index
    %c0_321 = arith.constant 0 : index
    %337 = vector.load %arg24[%c0_320, %c0_321] : memref<48x16xbf16, #tpu.memory_space<vmem>>, vector<16x16xbf16>
    %cst_322 = arith.constant dense<0.000000e+00> : vector<18x16xf32>
    %338 = tpu.matmul %336, %337, %cst_322 {dimension_numbers = #tpu.dot_dimension_numbers<[1], [0], [0], [1], [0, 0, 1, 1], [], []>} : vector<18x16xbf16>, vector<16x16xbf16>, vector<18x16xf32> -> vector<18x16xf32>
    %c1_323 = arith.constant 1 : index
    %c0_324 = arith.constant 0 : index
    %339 = vector.load %arg71[%c1_323, %c0_324] : memref<20x16xf32, #tpu.memory_space<vmem>>, vector<18x16xf32>
    %340 = arith.truncf %339 : vector<18x16xf32> to vector<18x16xbf16>
    %c16_325 = arith.constant 16 : index
    %c0_326 = arith.constant 0 : index
    %341 = vector.load %arg24[%c16_325, %c0_326] : memref<48x16xbf16, #tpu.memory_space<vmem>>, vector<16x16xbf16>
    %cst_327 = arith.constant dense<0.000000e+00> : vector<18x16xf32>
    %342 = tpu.matmul %340, %341, %cst_327 {dimension_numbers = #tpu.dot_dimension_numbers<[1], [0], [0], [1], [0, 0, 1, 1], [], []>} : vector<18x16xbf16>, vector<16x16xbf16>, vector<18x16xf32> -> vector<18x16xf32>
    %343 = arith.addf %338, %342 : vector<18x16xf32>
    %c2_328 = arith.constant 2 : index
    %c0_329 = arith.constant 0 : index
    %344 = vector.load %arg71[%c2_328, %c0_329] : memref<20x16xf32, #tpu.memory_space<vmem>>, vector<18x16xf32>
    %345 = arith.truncf %344 : vector<18x16xf32> to vector<18x16xbf16>
    %c32_330 = arith.constant 32 : index
    %c0_331 = arith.constant 0 : index
    %346 = vector.load %arg24[%c32_330, %c0_331] : memref<48x16xbf16, #tpu.memory_space<vmem>>, vector<16x16xbf16>
    %cst_332 = arith.constant dense<0.000000e+00> : vector<18x16xf32>
    %347 = tpu.matmul %345, %346, %cst_332 {dimension_numbers = #tpu.dot_dimension_numbers<[1], [0], [0], [1], [0, 0, 1, 1], [], []>} : vector<18x16xbf16>, vector<16x16xbf16>, vector<18x16xf32> -> vector<18x16xf32>
    %348 = arith.addf %343, %347 : vector<18x16xf32>
    %c0_333 = arith.constant 0 : index
    %c0_334 = arith.constant 0 : index
    %349 = vector.load %arg25[%c0_333, %c0_334] : memref<1x16xf32, #tpu.memory_space<vmem>>, vector<1x16xf32>
    %350 = vector.broadcast %349 : vector<1x16xf32> to vector<18x16xf32>
    %351 = arith.addf %348, %350 : vector<18x16xf32>
    %cst_335 = arith.constant 0.000000e+00 : f32
    %352 = vector.broadcast %cst_335 : f32 to vector<18x16xf32>
    %353 = arith.maximumf %351, %352 : vector<18x16xf32>
    %354 = vector.extract_strided_slice %353 {offsets = [0, 0], sizes = [8, 16], strides = [1, 1]} : vector<18x16xf32> to vector<8x16xf32>
    %c2_336 = arith.constant 2 : index
    %c0_337 = arith.constant 0 : index
    %355 = vector.load %arg72[%c2_336, %c0_337] : memref<24x16xf32, #tpu.memory_space<vmem>>, vector<8x16xf32>
    tpu.vector_store %arg72[%c2_336, %c0_337], %354 {strides = array<i32>} : memref<24x16xf32, #tpu.memory_space<vmem>>, vector<8x16xf32>,
    %356 = vector.extract_strided_slice %353 {offsets = [10, 0], sizes = [8, 16], strides = [1, 1]} : vector<18x16xf32> to vector<8x16xf32>
    %c14 = arith.constant 14 : index
    %c0_338 = arith.constant 0 : index
    %357 = vector.load %arg72[%c14, %c0_338] : memref<24x16xf32, #tpu.memory_space<vmem>>, vector<8x16xf32>
    tpu.vector_store %arg72[%c14, %c0_338], %356 {strides = array<i32>} : memref<24x16xf32, #tpu.memory_space<vmem>>, vector<8x16xf32>,
    %c0_339 = arith.constant 0 : index
    %c0_340 = arith.constant 0 : index
    %358 = vector.load %arg72[%c0_339, %c0_340] : memref<24x16xf32, #tpu.memory_space<vmem>>, vector<20x16xf32>
    %359 = arith.truncf %358 : vector<20x16xf32> to vector<20x16xbf16>
    %c0_341 = arith.constant 0 : index
    %c0_342 = arith.constant 0 : index
    %360 = vector.load %arg26[%c0_341, %c0_342] : memref<48x16xbf16, #tpu.memory_space<vmem>>, vector<16x16xbf16>
    %cst_343 = arith.constant dense<0.000000e+00> : vector<20x16xf32>
    %361 = tpu.matmul %359, %360, %cst_343 {dimension_numbers = #tpu.dot_dimension_numbers<[1], [0], [0], [1], [0, 0, 1, 1], [], []>} : vector<20x16xbf16>, vector<16x16xbf16>, vector<20x16xf32> -> vector<20x16xf32>
    %c2_344 = arith.constant 2 : index
    %c0_345 = arith.constant 0 : index
    %362 = vector.load %arg72[%c2_344, %c0_345] : memref<24x16xf32, #tpu.memory_space<vmem>>, vector<20x16xf32>
    %363 = arith.truncf %362 : vector<20x16xf32> to vector<20x16xbf16>
    %c16_346 = arith.constant 16 : index
    %c0_347 = arith.constant 0 : index
    %364 = vector.load %arg26[%c16_346, %c0_347] : memref<48x16xbf16, #tpu.memory_space<vmem>>, vector<16x16xbf16>
    %cst_348 = arith.constant dense<0.000000e+00> : vector<20x16xf32>
    %365 = tpu.matmul %363, %364, %cst_348 {dimension_numbers = #tpu.dot_dimension_numbers<[1], [0], [0], [1], [0, 0, 1, 1], [], []>} : vector<20x16xbf16>, vector<16x16xbf16>, vector<20x16xf32> -> vector<20x16xf32>
    %366 = arith.addf %361, %365 : vector<20x16xf32>
    %c4_349 = arith.constant 4 : index
    %c0_350 = arith.constant 0 : index
    %367 = vector.load %arg72[%c4_349, %c0_350] : memref<24x16xf32, #tpu.memory_space<vmem>>, vector<20x16xf32>
    %368 = arith.truncf %367 : vector<20x16xf32> to vector<20x16xbf16>
    %c32_351 = arith.constant 32 : index
    %c0_352 = arith.constant 0 : index
    %369 = vector.load %arg26[%c32_351, %c0_352] : memref<48x16xbf16, #tpu.memory_space<vmem>>, vector<16x16xbf16>
    %cst_353 = arith.constant dense<0.000000e+00> : vector<20x16xf32>
    %370 = tpu.matmul %368, %369, %cst_353 {dimension_numbers = #tpu.dot_dimension_numbers<[1], [0], [0], [1], [0, 0, 1, 1], [], []>} : vector<20x16xbf16>, vector<16x16xbf16>, vector<20x16xf32> -> vector<20x16xf32>
    %371 = arith.addf %366, %370 : vector<20x16xf32>
    %c0_354 = arith.constant 0 : index
    %c0_355 = arith.constant 0 : index
    %372 = vector.load %arg27[%c0_354, %c0_355] : memref<1x16xf32, #tpu.memory_space<vmem>>, vector<1x16xf32>
    %373 = vector.broadcast %372 : vector<1x16xf32> to vector<20x16xf32>
    %374 = arith.addf %371, %373 : vector<20x16xf32>
    %cst_356 = arith.constant 0.000000e+00 : f32
    %375 = vector.broadcast %cst_356 : f32 to vector<20x16xf32>
    %376 = arith.maximumf %374, %375 : vector<20x16xf32>
    %377 = vector.extract_strided_slice %376 {offsets = [0, 0], sizes = [8, 16], strides = [1, 1]} : vector<20x16xf32> to vector<8x16xf32>
    %c4_357 = arith.constant 4 : index
    %c0_358 = arith.constant 0 : index
    %378 = vector.load %arg73[%c4_357, %c0_358] : memref<32x16xf32, #tpu.memory_space<vmem>>, vector<8x16xf32>
    tpu.vector_store %arg73[%c4_357, %c0_358], %377 {strides = array<i32>} : memref<32x16xf32, #tpu.memory_space<vmem>>, vector<8x16xf32>,
    %379 = vector.extract_strided_slice %376 {offsets = [12, 0], sizes = [8, 16], strides = [1, 1]} : vector<20x16xf32> to vector<8x16xf32>
    %c20_359 = arith.constant 20 : index
    %c0_360 = arith.constant 0 : index
    %380 = vector.load %arg73[%c20_359, %c0_360] : memref<32x16xf32, #tpu.memory_space<vmem>>, vector<8x16xf32>
    tpu.vector_store %arg73[%c20_359, %c0_360], %379 {strides = array<i32>} : memref<32x16xf32, #tpu.memory_space<vmem>>, vector<8x16xf32>,
    %c0_361 = arith.constant 0 : index
    %c0_362 = arith.constant 0 : index
    %381 = vector.load %arg73[%c0_361, %c0_362] : memref<32x16xf32, #tpu.memory_space<vmem>>, vector<24x16xf32>
    %382 = arith.truncf %381 : vector<24x16xf32> to vector<24x16xbf16>
    %c0_363 = arith.constant 0 : index
    %c0_364 = arith.constant 0 : index
    %383 = vector.load %arg28[%c0_363, %c0_364] : memref<48x16xbf16, #tpu.memory_space<vmem>>, vector<16x16xbf16>
    %cst_365 = arith.constant dense<0.000000e+00> : vector<24x16xf32>
    %384 = tpu.matmul %382, %383, %cst_365 {dimension_numbers = #tpu.dot_dimension_numbers<[1], [0], [0], [1], [0, 0, 1, 1], [], []>} : vector<24x16xbf16>, vector<16x16xbf16>, vector<24x16xf32> -> vector<24x16xf32>
    %c4_366 = arith.constant 4 : index
    %c0_367 = arith.constant 0 : index
    %385 = vector.load %arg73[%c4_366, %c0_367] : memref<32x16xf32, #tpu.memory_space<vmem>>, vector<24x16xf32>
    %386 = arith.truncf %385 : vector<24x16xf32> to vector<24x16xbf16>
    %c16_368 = arith.constant 16 : index
    %c0_369 = arith.constant 0 : index
    %387 = vector.load %arg28[%c16_368, %c0_369] : memref<48x16xbf16, #tpu.memory_space<vmem>>, vector<16x16xbf16>
    %cst_370 = arith.constant dense<0.000000e+00> : vector<24x16xf32>
    %388 = tpu.matmul %386, %387, %cst_370 {dimension_numbers = #tpu.dot_dimension_numbers<[1], [0], [0], [1], [0, 0, 1, 1], [], []>} : vector<24x16xbf16>, vector<16x16xbf16>, vector<24x16xf32> -> vector<24x16xf32>
    %389 = arith.addf %384, %388 : vector<24x16xf32>
    %c8_371 = arith.constant 8 : index
    %c0_372 = arith.constant 0 : index
    %390 = vector.load %arg73[%c8_371, %c0_372] : memref<32x16xf32, #tpu.memory_space<vmem>>, vector<24x16xf32>
    %391 = arith.truncf %390 : vector<24x16xf32> to vector<24x16xbf16>
    %c32_373 = arith.constant 32 : index
    %c0_374 = arith.constant 0 : index
    %392 = vector.load %arg28[%c32_373, %c0_374] : memref<48x16xbf16, #tpu.memory_space<vmem>>, vector<16x16xbf16>
    %cst_375 = arith.constant dense<0.000000e+00> : vector<24x16xf32>
    %393 = tpu.matmul %391, %392, %cst_375 {dimension_numbers = #tpu.dot_dimension_numbers<[1], [0], [0], [1], [0, 0, 1, 1], [], []>} : vector<24x16xbf16>, vector<16x16xbf16>, vector<24x16xf32> -> vector<24x16xf32>
    %394 = arith.addf %389, %393 : vector<24x16xf32>
    %c0_376 = arith.constant 0 : index
    %c0_377 = arith.constant 0 : index
    %395 = vector.load %arg29[%c0_376, %c0_377] : memref<1x16xf32, #tpu.memory_space<vmem>>, vector<1x16xf32>
    %396 = vector.broadcast %395 : vector<1x16xf32> to vector<24x16xf32>
    %397 = arith.addf %394, %396 : vector<24x16xf32>
    %398 = vector.extract_strided_slice %397 {offsets = [0, 0], sizes = [8, 16], strides = [1, 1]} : vector<24x16xf32> to vector<8x16xf32>
    %399 = arith.addf %398, %328 : vector<8x16xf32>
    %cst_378 = arith.constant 0.000000e+00 : f32
    %400 = vector.broadcast %cst_378 : f32 to vector<8x16xf32>
    %401 = arith.maximumf %399, %400 : vector<8x16xf32>
    %402 = vector.extract_strided_slice %397 {offsets = [16, 0], sizes = [8, 16], strides = [1, 1]} : vector<24x16xf32> to vector<8x16xf32>
    %403 = arith.addf %402, %332 : vector<8x16xf32>
    %cst_379 = arith.constant 0.000000e+00 : f32
    %404 = vector.broadcast %cst_379 : f32 to vector<8x16xf32>
    %405 = arith.maximumf %403, %404 : vector<8x16xf32>
    %c1_380 = arith.constant 1 : index
    %c0_381 = arith.constant 0 : index
    %406 = vector.load %arg74[%c1_380, %c0_381] : memref<20x16xf32, #tpu.memory_space<vmem>>, vector<8x16xf32>
    tpu.vector_store %arg74[%c1_380, %c0_381], %401 {strides = array<i32>} : memref<20x16xf32, #tpu.memory_space<vmem>>, vector<8x16xf32>,
    %c11_382 = arith.constant 11 : index
    %c0_383 = arith.constant 0 : index
    %407 = vector.load %arg74[%c11_382, %c0_383] : memref<20x16xf32, #tpu.memory_space<vmem>>, vector<8x16xf32>
    tpu.vector_store %arg74[%c11_382, %c0_383], %405 {strides = array<i32>} : memref<20x16xf32, #tpu.memory_space<vmem>>, vector<8x16xf32>,
    %c0_384 = arith.constant 0 : index
    %c0_385 = arith.constant 0 : index
    %408 = vector.load %arg74[%c0_384, %c0_385] : memref<20x16xf32, #tpu.memory_space<vmem>>, vector<18x16xf32>
    %409 = arith.truncf %408 : vector<18x16xf32> to vector<18x16xbf16>
    %c0_386 = arith.constant 0 : index
    %c0_387 = arith.constant 0 : index
    %410 = vector.load %arg30[%c0_386, %c0_387] : memref<48x32xbf16, #tpu.memory_space<vmem>>, vector<16x32xbf16>
    %cst_388 = arith.constant dense<0.000000e+00> : vector<18x32xf32>
    %411 = tpu.matmul %409, %410, %cst_388 {dimension_numbers = #tpu.dot_dimension_numbers<[1], [0], [0], [1], [0, 0, 1, 1], [], []>} : vector<18x16xbf16>, vector<16x32xbf16>, vector<18x32xf32> -> vector<18x32xf32>
    %c1_389 = arith.constant 1 : index
    %c0_390 = arith.constant 0 : index
    %412 = vector.load %arg74[%c1_389, %c0_390] : memref<20x16xf32, #tpu.memory_space<vmem>>, vector<18x16xf32>
    %413 = arith.truncf %412 : vector<18x16xf32> to vector<18x16xbf16>
    %c16_391 = arith.constant 16 : index
    %c0_392 = arith.constant 0 : index
    %414 = vector.load %arg30[%c16_391, %c0_392] : memref<48x32xbf16, #tpu.memory_space<vmem>>, vector<16x32xbf16>
    %cst_393 = arith.constant dense<0.000000e+00> : vector<18x32xf32>
    %415 = tpu.matmul %413, %414, %cst_393 {dimension_numbers = #tpu.dot_dimension_numbers<[1], [0], [0], [1], [0, 0, 1, 1], [], []>} : vector<18x16xbf16>, vector<16x32xbf16>, vector<18x32xf32> -> vector<18x32xf32>
    %416 = arith.addf %411, %415 : vector<18x32xf32>
    %c2_394 = arith.constant 2 : index
    %c0_395 = arith.constant 0 : index
    %417 = vector.load %arg74[%c2_394, %c0_395] : memref<20x16xf32, #tpu.memory_space<vmem>>, vector<18x16xf32>
    %418 = arith.truncf %417 : vector<18x16xf32> to vector<18x16xbf16>
    %c32_396 = arith.constant 32 : index
    %c0_397 = arith.constant 0 : index
    %419 = vector.load %arg30[%c32_396, %c0_397] : memref<48x32xbf16, #tpu.memory_space<vmem>>, vector<16x32xbf16>
    %cst_398 = arith.constant dense<0.000000e+00> : vector<18x32xf32>
    %420 = tpu.matmul %418, %419, %cst_398 {dimension_numbers = #tpu.dot_dimension_numbers<[1], [0], [0], [1], [0, 0, 1, 1], [], []>} : vector<18x16xbf16>, vector<16x32xbf16>, vector<18x32xf32> -> vector<18x32xf32>
    %421 = arith.addf %416, %420 : vector<18x32xf32>
    %c0_399 = arith.constant 0 : index
    %c0_400 = arith.constant 0 : index
    %422 = vector.load %arg31[%c0_399, %c0_400] : memref<1x32xf32, #tpu.memory_space<vmem>>, vector<1x32xf32>
    %423 = vector.broadcast %422 : vector<1x32xf32> to vector<18x32xf32>
    %424 = arith.addf %421, %423 : vector<18x32xf32>
    %cst_401 = arith.constant 0.000000e+00 : f32
    %425 = vector.broadcast %cst_401 : f32 to vector<18x32xf32>
    %426 = arith.maximumf %424, %425 : vector<18x32xf32>
    %427 = vector.extract_strided_slice %426 {offsets = [0, 0], sizes = [8, 32], strides = [1, 1]} : vector<18x32xf32> to vector<8x32xf32>
    %c2_402 = arith.constant 2 : index
    %c0_403 = arith.constant 0 : index
    %428 = vector.load %arg75[%c2_402, %c0_403] : memref<24x32xf32, #tpu.memory_space<vmem>>, vector<8x32xf32>
    tpu.vector_store %arg75[%c2_402, %c0_403], %427 {strides = array<i32>} : memref<24x32xf32, #tpu.memory_space<vmem>>, vector<8x32xf32>,
    %429 = vector.extract_strided_slice %426 {offsets = [10, 0], sizes = [8, 32], strides = [1, 1]} : vector<18x32xf32> to vector<8x32xf32>
    %c14_404 = arith.constant 14 : index
    %c0_405 = arith.constant 0 : index
    %430 = vector.load %arg75[%c14_404, %c0_405] : memref<24x32xf32, #tpu.memory_space<vmem>>, vector<8x32xf32>
    tpu.vector_store %arg75[%c14_404, %c0_405], %429 {strides = array<i32>} : memref<24x32xf32, #tpu.memory_space<vmem>>, vector<8x32xf32>,
    %c0_406 = arith.constant 0 : index
    %c0_407 = arith.constant 0 : index
    %431 = tpu.strided_load %arg75[%c0_406, %c0_407] {strides = array<i32: 2, 1>} : memref<24x32xf32, #tpu.memory_space<vmem>>, vector<10x32xf32>
    %432 = arith.truncf %431 : vector<10x32xf32> to vector<10x32xbf16>
    %c0_408 = arith.constant 0 : index
    %c0_409 = arith.constant 0 : index
    %433 = vector.load %arg32[%c0_408, %c0_409] : memref<96x32xbf16, #tpu.memory_space<vmem>>, vector<32x32xbf16>
    %cst_410 = arith.constant dense<0.000000e+00> : vector<10x32xf32>
    %434 = tpu.matmul %432, %433, %cst_410 {dimension_numbers = #tpu.dot_dimension_numbers<[1], [0], [0], [1], [0, 0, 1, 1], [], []>} : vector<10x32xbf16>, vector<32x32xbf16>, vector<10x32xf32> -> vector<10x32xf32>
    %c2_411 = arith.constant 2 : index
    %c0_412 = arith.constant 0 : index
    %435 = tpu.strided_load %arg75[%c2_411, %c0_412] {strides = array<i32: 2, 1>} : memref<24x32xf32, #tpu.memory_space<vmem>>, vector<10x32xf32>
    %436 = arith.truncf %435 : vector<10x32xf32> to vector<10x32xbf16>
    %c32_413 = arith.constant 32 : index
    %c0_414 = arith.constant 0 : index
    %437 = vector.load %arg32[%c32_413, %c0_414] : memref<96x32xbf16, #tpu.memory_space<vmem>>, vector<32x32xbf16>
    %cst_415 = arith.constant dense<0.000000e+00> : vector<10x32xf32>
    %438 = tpu.matmul %436, %437, %cst_415 {dimension_numbers = #tpu.dot_dimension_numbers<[1], [0], [0], [1], [0, 0, 1, 1], [], []>} : vector<10x32xbf16>, vector<32x32xbf16>, vector<10x32xf32> -> vector<10x32xf32>
    %439 = arith.addf %434, %438 : vector<10x32xf32>
    %c4_416 = arith.constant 4 : index
    %c0_417 = arith.constant 0 : index
    %440 = tpu.strided_load %arg75[%c4_416, %c0_417] {strides = array<i32: 2, 1>} : memref<24x32xf32, #tpu.memory_space<vmem>>, vector<10x32xf32>
    %441 = arith.truncf %440 : vector<10x32xf32> to vector<10x32xbf16>
    %c64 = arith.constant 64 : index
    %c0_418 = arith.constant 0 : index
    %442 = vector.load %arg32[%c64, %c0_418] : memref<96x32xbf16, #tpu.memory_space<vmem>>, vector<32x32xbf16>
    %cst_419 = arith.constant dense<0.000000e+00> : vector<10x32xf32>
    %443 = tpu.matmul %441, %442, %cst_419 {dimension_numbers = #tpu.dot_dimension_numbers<[1], [0], [0], [1], [0, 0, 1, 1], [], []>} : vector<10x32xbf16>, vector<32x32xbf16>, vector<10x32xf32> -> vector<10x32xf32>
    %444 = arith.addf %439, %443 : vector<10x32xf32>
    %c0_420 = arith.constant 0 : index
    %c0_421 = arith.constant 0 : index
    %445 = vector.load %arg33[%c0_420, %c0_421] : memref<1x32xf32, #tpu.memory_space<vmem>>, vector<1x32xf32>
    %446 = vector.broadcast %445 : vector<1x32xf32> to vector<10x32xf32>
    %447 = arith.addf %444, %446 : vector<10x32xf32>
    %cst_422 = arith.constant 0.000000e+00 : f32
    %448 = vector.broadcast %cst_422 : f32 to vector<10x32xf32>
    %449 = arith.maximumf %447, %448 : vector<10x32xf32>
    %450 = vector.extract_strided_slice %449 {offsets = [0, 0], sizes = [4, 32], strides = [1, 1]} : vector<10x32xf32> to vector<4x32xf32>
    %c4_423 = arith.constant 4 : index
    %c0_424 = arith.constant 0 : index
    %451 = vector.load %arg76[%c4_423, %c0_424] : memref<24x32xf32, #tpu.memory_space<vmem>>, vector<4x32xf32>
    tpu.vector_store %arg76[%c4_423, %c0_424], %450 {strides = array<i32>} : memref<24x32xf32, #tpu.memory_space<vmem>>, vector<4x32xf32>,
    %452 = vector.extract_strided_slice %449 {offsets = [6, 0], sizes = [4, 32], strides = [1, 1]} : vector<10x32xf32> to vector<4x32xf32>
    %c16_425 = arith.constant 16 : index
    %c0_426 = arith.constant 0 : index
    %453 = vector.load %arg76[%c16_425, %c0_426] : memref<24x32xf32, #tpu.memory_space<vmem>>, vector<4x32xf32>
    tpu.vector_store %arg76[%c16_425, %c0_426], %452 {strides = array<i32>} : memref<24x32xf32, #tpu.memory_space<vmem>>, vector<4x32xf32>,
    %c0_427 = arith.constant 0 : index
    %c0_428 = arith.constant 0 : index
    %454 = vector.load %arg76[%c0_427, %c0_428] : memref<24x32xf32, #tpu.memory_space<vmem>>, vector<16x32xf32>
    %455 = arith.truncf %454 : vector<16x32xf32> to vector<16x32xbf16>
    %c0_429 = arith.constant 0 : index
    %c0_430 = arith.constant 0 : index
    %456 = vector.load %arg34[%c0_429, %c0_430] : memref<96x32xbf16, #tpu.memory_space<vmem>>, vector<32x32xbf16>
    %cst_431 = arith.constant dense<0.000000e+00> : vector<16x32xf32>
    %457 = tpu.matmul %455, %456, %cst_431 {dimension_numbers = #tpu.dot_dimension_numbers<[1], [0], [0], [1], [0, 0, 1, 1], [], []>} : vector<16x32xbf16>, vector<32x32xbf16>, vector<16x32xf32> -> vector<16x32xf32>
    %c4_432 = arith.constant 4 : index
    %c0_433 = arith.constant 0 : index
    %458 = vector.load %arg76[%c4_432, %c0_433] : memref<24x32xf32, #tpu.memory_space<vmem>>, vector<16x32xf32>
    %459 = arith.truncf %458 : vector<16x32xf32> to vector<16x32xbf16>
    %c32_434 = arith.constant 32 : index
    %c0_435 = arith.constant 0 : index
    %460 = vector.load %arg34[%c32_434, %c0_435] : memref<96x32xbf16, #tpu.memory_space<vmem>>, vector<32x32xbf16>
    %cst_436 = arith.constant dense<0.000000e+00> : vector<16x32xf32>
    %461 = tpu.matmul %459, %460, %cst_436 {dimension_numbers = #tpu.dot_dimension_numbers<[1], [0], [0], [1], [0, 0, 1, 1], [], []>} : vector<16x32xbf16>, vector<32x32xbf16>, vector<16x32xf32> -> vector<16x32xf32>
    %462 = arith.addf %457, %461 : vector<16x32xf32>
    %c8_437 = arith.constant 8 : index
    %c0_438 = arith.constant 0 : index
    %463 = vector.load %arg76[%c8_437, %c0_438] : memref<24x32xf32, #tpu.memory_space<vmem>>, vector<16x32xf32>
    %464 = arith.truncf %463 : vector<16x32xf32> to vector<16x32xbf16>
    %c64_439 = arith.constant 64 : index
    %c0_440 = arith.constant 0 : index
    %465 = vector.load %arg34[%c64_439, %c0_440] : memref<96x32xbf16, #tpu.memory_space<vmem>>, vector<32x32xbf16>
    %cst_441 = arith.constant dense<0.000000e+00> : vector<16x32xf32>
    %466 = tpu.matmul %464, %465, %cst_441 {dimension_numbers = #tpu.dot_dimension_numbers<[1], [0], [0], [1], [0, 0, 1, 1], [], []>} : vector<16x32xbf16>, vector<32x32xbf16>, vector<16x32xf32> -> vector<16x32xf32>
    %467 = arith.addf %462, %466 : vector<16x32xf32>
    %c0_442 = arith.constant 0 : index
    %c0_443 = arith.constant 0 : index
    %468 = vector.load %arg35[%c0_442, %c0_443] : memref<1x32xf32, #tpu.memory_space<vmem>>, vector<1x32xf32>
    %469 = vector.broadcast %468 : vector<1x32xf32> to vector<16x32xf32>
    %470 = arith.addf %467, %469 : vector<16x32xf32>
    %c1_444 = arith.constant 1 : index
    %c0_445 = arith.constant 0 : index
    %471 = tpu.strided_load %arg74[%c1_444, %c0_445] {strides = array<i32: 2, 1>} : memref<20x16xf32, #tpu.memory_space<vmem>>, vector<9x16xf32>
    %472 = arith.truncf %471 : vector<9x16xf32> to vector<9x16xbf16>
    %c0_446 = arith.constant 0 : index
    %c0_447 = arith.constant 0 : index
    %473 = vector.load %arg36[%c0_446, %c0_447] : memref<16x32xbf16, #tpu.memory_space<vmem>>, vector<16x32xbf16>
    %cst_448 = arith.constant dense<0.000000e+00> : vector<9x32xf32>
    %474 = tpu.matmul %472, %473, %cst_448 {dimension_numbers = #tpu.dot_dimension_numbers<[1], [0], [0], [1], [0, 0, 1, 1], [], []>} : vector<9x16xbf16>, vector<16x32xbf16>, vector<9x32xf32> -> vector<9x32xf32>
    %c0_449 = arith.constant 0 : index
    %c0_450 = arith.constant 0 : index
    %475 = vector.load %arg37[%c0_449, %c0_450] : memref<1x32xf32, #tpu.memory_space<vmem>>, vector<1x32xf32>
    %476 = vector.broadcast %475 : vector<1x32xf32> to vector<9x32xf32>
    %477 = arith.addf %474, %476 : vector<9x32xf32>
    %478 = vector.extract_strided_slice %477 {offsets = [0, 0], sizes = [4, 32], strides = [1, 1]} : vector<9x32xf32> to vector<4x32xf32>
    %479 = vector.extract_strided_slice %477 {offsets = [5, 0], sizes = [4, 32], strides = [1, 1]} : vector<9x32xf32> to vector<4x32xf32>
    %480 = vector.extract_strided_slice %470 {offsets = [0, 0], sizes = [4, 32], strides = [1, 1]} : vector<16x32xf32> to vector<4x32xf32>
    %481 = arith.addf %480, %478 : vector<4x32xf32>
    %cst_451 = arith.constant 0.000000e+00 : f32
    %482 = vector.broadcast %cst_451 : f32 to vector<4x32xf32>
    %483 = arith.maximumf %481, %482 : vector<4x32xf32>
    %484 = vector.extract_strided_slice %470 {offsets = [12, 0], sizes = [4, 32], strides = [1, 1]} : vector<16x32xf32> to vector<4x32xf32>
    %485 = arith.addf %484, %479 : vector<4x32xf32>
    %cst_452 = arith.constant 0.000000e+00 : f32
    %486 = vector.broadcast %cst_452 : f32 to vector<4x32xf32>
    %487 = arith.maximumf %485, %486 : vector<4x32xf32>
    %c1_453 = arith.constant 1 : index
    %c0_454 = arith.constant 0 : index
    %488 = vector.load %arg77[%c1_453, %c0_454] : memref<12x32xf32, #tpu.memory_space<vmem>>, vector<4x32xf32>
    tpu.vector_store %arg77[%c1_453, %c0_454], %483 {strides = array<i32>} : memref<12x32xf32, #tpu.memory_space<vmem>>, vector<4x32xf32>,
    %c7_455 = arith.constant 7 : index
    %c0_456 = arith.constant 0 : index
    %489 = vector.load %arg77[%c7_455, %c0_456] : memref<12x32xf32, #tpu.memory_space<vmem>>, vector<4x32xf32>
    tpu.vector_store %arg77[%c7_455, %c0_456], %487 {strides = array<i32>} : memref<12x32xf32, #tpu.memory_space<vmem>>, vector<4x32xf32>,
    %c0_457 = arith.constant 0 : index
    %c0_458 = arith.constant 0 : index
    %490 = vector.load %arg77[%c0_457, %c0_458] : memref<12x32xf32, #tpu.memory_space<vmem>>, vector<10x32xf32>
    %491 = arith.truncf %490 : vector<10x32xf32> to vector<10x32xbf16>
    %c0_459 = arith.constant 0 : index
    %c0_460 = arith.constant 0 : index
    %492 = vector.load %arg38[%c0_459, %c0_460] : memref<96x32xbf16, #tpu.memory_space<vmem>>, vector<32x32xbf16>
    %cst_461 = arith.constant dense<0.000000e+00> : vector<10x32xf32>
    %493 = tpu.matmul %491, %492, %cst_461 {dimension_numbers = #tpu.dot_dimension_numbers<[1], [0], [0], [1], [0, 0, 1, 1], [], []>} : vector<10x32xbf16>, vector<32x32xbf16>, vector<10x32xf32> -> vector<10x32xf32>
    %c1_462 = arith.constant 1 : index
    %c0_463 = arith.constant 0 : index
    %494 = vector.load %arg77[%c1_462, %c0_463] : memref<12x32xf32, #tpu.memory_space<vmem>>, vector<10x32xf32>
    %495 = arith.truncf %494 : vector<10x32xf32> to vector<10x32xbf16>
    %c32_464 = arith.constant 32 : index
    %c0_465 = arith.constant 0 : index
    %496 = vector.load %arg38[%c32_464, %c0_465] : memref<96x32xbf16, #tpu.memory_space<vmem>>, vector<32x32xbf16>
    %cst_466 = arith.constant dense<0.000000e+00> : vector<10x32xf32>
    %497 = tpu.matmul %495, %496, %cst_466 {dimension_numbers = #tpu.dot_dimension_numbers<[1], [0], [0], [1], [0, 0, 1, 1], [], []>} : vector<10x32xbf16>, vector<32x32xbf16>, vector<10x32xf32> -> vector<10x32xf32>
    %498 = arith.addf %493, %497 : vector<10x32xf32>
    %c2_467 = arith.constant 2 : index
    %c0_468 = arith.constant 0 : index
    %499 = vector.load %arg77[%c2_467, %c0_468] : memref<12x32xf32, #tpu.memory_space<vmem>>, vector<10x32xf32>
    %500 = arith.truncf %499 : vector<10x32xf32> to vector<10x32xbf16>
    %c64_469 = arith.constant 64 : index
    %c0_470 = arith.constant 0 : index
    %501 = vector.load %arg38[%c64_469, %c0_470] : memref<96x32xbf16, #tpu.memory_space<vmem>>, vector<32x32xbf16>
    %cst_471 = arith.constant dense<0.000000e+00> : vector<10x32xf32>
    %502 = tpu.matmul %500, %501, %cst_471 {dimension_numbers = #tpu.dot_dimension_numbers<[1], [0], [0], [1], [0, 0, 1, 1], [], []>} : vector<10x32xbf16>, vector<32x32xbf16>, vector<10x32xf32> -> vector<10x32xf32>
    %503 = arith.addf %498, %502 : vector<10x32xf32>
    %c0_472 = arith.constant 0 : index
    %c0_473 = arith.constant 0 : index
    %504 = vector.load %arg39[%c0_472, %c0_473] : memref<1x32xf32, #tpu.memory_space<vmem>>, vector<1x32xf32>
    %505 = vector.broadcast %504 : vector<1x32xf32> to vector<10x32xf32>
    %506 = arith.addf %503, %505 : vector<10x32xf32>
    %cst_474 = arith.constant 0.000000e+00 : f32
    %507 = vector.broadcast %cst_474 : f32 to vector<10x32xf32>
    %508 = arith.maximumf %506, %507 : vector<10x32xf32>
    %509 = vector.extract_strided_slice %508 {offsets = [0, 0], sizes = [4, 32], strides = [1, 1]} : vector<10x32xf32> to vector<4x32xf32>
    %c2_475 = arith.constant 2 : index
    %c0_476 = arith.constant 0 : index
    %510 = vector.load %arg78[%c2_475, %c0_476] : memref<16x32xf32, #tpu.memory_space<vmem>>, vector<4x32xf32>
    tpu.vector_store %arg78[%c2_475, %c0_476], %509 {strides = array<i32>} : memref<16x32xf32, #tpu.memory_space<vmem>>, vector<4x32xf32>,
    %511 = vector.extract_strided_slice %508 {offsets = [6, 0], sizes = [4, 32], strides = [1, 1]} : vector<10x32xf32> to vector<4x32xf32>
    %c10 = arith.constant 10 : index
    %c0_477 = arith.constant 0 : index
    %512 = vector.load %arg78[%c10, %c0_477] : memref<16x32xf32, #tpu.memory_space<vmem>>, vector<4x32xf32>
    tpu.vector_store %arg78[%c10, %c0_477], %511 {strides = array<i32>} : memref<16x32xf32, #tpu.memory_space<vmem>>, vector<4x32xf32>,
    %c0_478 = arith.constant 0 : index
    %c0_479 = arith.constant 0 : index
    %513 = vector.load %arg78[%c0_478, %c0_479] : memref<16x32xf32, #tpu.memory_space<vmem>>, vector<12x32xf32>
    %514 = arith.truncf %513 : vector<12x32xf32> to vector<12x32xbf16>
    %c0_480 = arith.constant 0 : index
    %c0_481 = arith.constant 0 : index
    %515 = vector.load %arg40[%c0_480, %c0_481] : memref<96x32xbf16, #tpu.memory_space<vmem>>, vector<32x32xbf16>
    %cst_482 = arith.constant dense<0.000000e+00> : vector<12x32xf32>
    %516 = tpu.matmul %514, %515, %cst_482 {dimension_numbers = #tpu.dot_dimension_numbers<[1], [0], [0], [1], [0, 0, 1, 1], [], []>} : vector<12x32xbf16>, vector<32x32xbf16>, vector<12x32xf32> -> vector<12x32xf32>
    %c2_483 = arith.constant 2 : index
    %c0_484 = arith.constant 0 : index
    %517 = vector.load %arg78[%c2_483, %c0_484] : memref<16x32xf32, #tpu.memory_space<vmem>>, vector<12x32xf32>
    %518 = arith.truncf %517 : vector<12x32xf32> to vector<12x32xbf16>
    %c32_485 = arith.constant 32 : index
    %c0_486 = arith.constant 0 : index
    %519 = vector.load %arg40[%c32_485, %c0_486] : memref<96x32xbf16, #tpu.memory_space<vmem>>, vector<32x32xbf16>
    %cst_487 = arith.constant dense<0.000000e+00> : vector<12x32xf32>
    %520 = tpu.matmul %518, %519, %cst_487 {dimension_numbers = #tpu.dot_dimension_numbers<[1], [0], [0], [1], [0, 0, 1, 1], [], []>} : vector<12x32xbf16>, vector<32x32xbf16>, vector<12x32xf32> -> vector<12x32xf32>
    %521 = arith.addf %516, %520 : vector<12x32xf32>
    %c4_488 = arith.constant 4 : index
    %c0_489 = arith.constant 0 : index
    %522 = vector.load %arg78[%c4_488, %c0_489] : memref<16x32xf32, #tpu.memory_space<vmem>>, vector<12x32xf32>
    %523 = arith.truncf %522 : vector<12x32xf32> to vector<12x32xbf16>
    %c64_490 = arith.constant 64 : index
    %c0_491 = arith.constant 0 : index
    %524 = vector.load %arg40[%c64_490, %c0_491] : memref<96x32xbf16, #tpu.memory_space<vmem>>, vector<32x32xbf16>
    %cst_492 = arith.constant dense<0.000000e+00> : vector<12x32xf32>
    %525 = tpu.matmul %523, %524, %cst_492 {dimension_numbers = #tpu.dot_dimension_numbers<[1], [0], [0], [1], [0, 0, 1, 1], [], []>} : vector<12x32xbf16>, vector<32x32xbf16>, vector<12x32xf32> -> vector<12x32xf32>
    %526 = arith.addf %521, %525 : vector<12x32xf32>
    %c0_493 = arith.constant 0 : index
    %c0_494 = arith.constant 0 : index
    %527 = vector.load %arg41[%c0_493, %c0_494] : memref<1x32xf32, #tpu.memory_space<vmem>>, vector<1x32xf32>
    %528 = vector.broadcast %527 : vector<1x32xf32> to vector<12x32xf32>
    %529 = arith.addf %526, %528 : vector<12x32xf32>
    %cst_495 = arith.constant 0.000000e+00 : f32
    %530 = vector.broadcast %cst_495 : f32 to vector<12x32xf32>
    %531 = arith.maximumf %529, %530 : vector<12x32xf32>
    %532 = vector.extract_strided_slice %531 {offsets = [0, 0], sizes = [4, 32], strides = [1, 1]} : vector<12x32xf32> to vector<4x32xf32>
    %c4_496 = arith.constant 4 : index
    %c0_497 = arith.constant 0 : index
    %533 = vector.load %arg79[%c4_496, %c0_497] : memref<24x32xf32, #tpu.memory_space<vmem>>, vector<4x32xf32>
    tpu.vector_store %arg79[%c4_496, %c0_497], %532 {strides = array<i32>} : memref<24x32xf32, #tpu.memory_space<vmem>>, vector<4x32xf32>,
    %534 = vector.extract_strided_slice %531 {offsets = [8, 0], sizes = [4, 32], strides = [1, 1]} : vector<12x32xf32> to vector<4x32xf32>
    %c16_498 = arith.constant 16 : index
    %c0_499 = arith.constant 0 : index
    %535 = vector.load %arg79[%c16_498, %c0_499] : memref<24x32xf32, #tpu.memory_space<vmem>>, vector<4x32xf32>
    tpu.vector_store %arg79[%c16_498, %c0_499], %534 {strides = array<i32>} : memref<24x32xf32, #tpu.memory_space<vmem>>, vector<4x32xf32>,
    %c0_500 = arith.constant 0 : index
    %c0_501 = arith.constant 0 : index
    %536 = vector.load %arg79[%c0_500, %c0_501] : memref<24x32xf32, #tpu.memory_space<vmem>>, vector<16x32xf32>
    %537 = arith.truncf %536 : vector<16x32xf32> to vector<16x32xbf16>
    %c0_502 = arith.constant 0 : index
    %c0_503 = arith.constant 0 : index
    %538 = vector.load %arg42[%c0_502, %c0_503] : memref<96x32xbf16, #tpu.memory_space<vmem>>, vector<32x32xbf16>
    %cst_504 = arith.constant dense<0.000000e+00> : vector<16x32xf32>
    %539 = tpu.matmul %537, %538, %cst_504 {dimension_numbers = #tpu.dot_dimension_numbers<[1], [0], [0], [1], [0, 0, 1, 1], [], []>} : vector<16x32xbf16>, vector<32x32xbf16>, vector<16x32xf32> -> vector<16x32xf32>
    %c4_505 = arith.constant 4 : index
    %c0_506 = arith.constant 0 : index
    %540 = vector.load %arg79[%c4_505, %c0_506] : memref<24x32xf32, #tpu.memory_space<vmem>>, vector<16x32xf32>
    %541 = arith.truncf %540 : vector<16x32xf32> to vector<16x32xbf16>
    %c32_507 = arith.constant 32 : index
    %c0_508 = arith.constant 0 : index
    %542 = vector.load %arg42[%c32_507, %c0_508] : memref<96x32xbf16, #tpu.memory_space<vmem>>, vector<32x32xbf16>
    %cst_509 = arith.constant dense<0.000000e+00> : vector<16x32xf32>
    %543 = tpu.matmul %541, %542, %cst_509 {dimension_numbers = #tpu.dot_dimension_numbers<[1], [0], [0], [1], [0, 0, 1, 1], [], []>} : vector<16x32xbf16>, vector<32x32xbf16>, vector<16x32xf32> -> vector<16x32xf32>
    %544 = arith.addf %539, %543 : vector<16x32xf32>
    %c8_510 = arith.constant 8 : index
    %c0_511 = arith.constant 0 : index
    %545 = vector.load %arg79[%c8_510, %c0_511] : memref<24x32xf32, #tpu.memory_space<vmem>>, vector<16x32xf32>
    %546 = arith.truncf %545 : vector<16x32xf32> to vector<16x32xbf16>
    %c64_512 = arith.constant 64 : index
    %c0_513 = arith.constant 0 : index
    %547 = vector.load %arg42[%c64_512, %c0_513] : memref<96x32xbf16, #tpu.memory_space<vmem>>, vector<32x32xbf16>
    %cst_514 = arith.constant dense<0.000000e+00> : vector<16x32xf32>
    %548 = tpu.matmul %546, %547, %cst_514 {dimension_numbers = #tpu.dot_dimension_numbers<[1], [0], [0], [1], [0, 0, 1, 1], [], []>} : vector<16x32xbf16>, vector<32x32xbf16>, vector<16x32xf32> -> vector<16x32xf32>
    %549 = arith.addf %544, %548 : vector<16x32xf32>
    %c0_515 = arith.constant 0 : index
    %c0_516 = arith.constant 0 : index
    %550 = vector.load %arg43[%c0_515, %c0_516] : memref<1x32xf32, #tpu.memory_space<vmem>>, vector<1x32xf32>
    %551 = vector.broadcast %550 : vector<1x32xf32> to vector<16x32xf32>
    %552 = arith.addf %549, %551 : vector<16x32xf32>
    %553 = vector.extract_strided_slice %552 {offsets = [0, 0], sizes = [4, 32], strides = [1, 1]} : vector<16x32xf32> to vector<4x32xf32>
    %554 = arith.addf %553, %483 : vector<4x32xf32>
    %cst_517 = arith.constant 0.000000e+00 : f32
    %555 = vector.broadcast %cst_517 : f32 to vector<4x32xf32>
    %556 = arith.maximumf %554, %555 : vector<4x32xf32>
    %557 = vector.extract_strided_slice %552 {offsets = [12, 0], sizes = [4, 32], strides = [1, 1]} : vector<16x32xf32> to vector<4x32xf32>
    %558 = arith.addf %557, %487 : vector<4x32xf32>
    %cst_518 = arith.constant 0.000000e+00 : f32
    %559 = vector.broadcast %cst_518 : f32 to vector<4x32xf32>
    %560 = arith.maximumf %558, %559 : vector<4x32xf32>
    %c1_519 = arith.constant 1 : index
    %c0_520 = arith.constant 0 : index
    %561 = vector.load %arg80[%c1_519, %c0_520] : memref<12x32xf32, #tpu.memory_space<vmem>>, vector<4x32xf32>
    tpu.vector_store %arg80[%c1_519, %c0_520], %556 {strides = array<i32>} : memref<12x32xf32, #tpu.memory_space<vmem>>, vector<4x32xf32>,
    %c7_521 = arith.constant 7 : index
    %c0_522 = arith.constant 0 : index
    %562 = vector.load %arg80[%c7_521, %c0_522] : memref<12x32xf32, #tpu.memory_space<vmem>>, vector<4x32xf32>
    tpu.vector_store %arg80[%c7_521, %c0_522], %560 {strides = array<i32>} : memref<12x32xf32, #tpu.memory_space<vmem>>, vector<4x32xf32>,
    %c0_523 = arith.constant 0 : index
    %c0_524 = arith.constant 0 : index
    %563 = vector.load %arg80[%c0_523, %c0_524] : memref<12x32xf32, #tpu.memory_space<vmem>>, vector<10x32xf32>
    %564 = arith.truncf %563 : vector<10x32xf32> to vector<10x32xbf16>
    %c0_525 = arith.constant 0 : index
    %c0_526 = arith.constant 0 : index
    %565 = vector.load %arg44[%c0_525, %c0_526] : memref<96x64xbf16, #tpu.memory_space<vmem>>, vector<32x64xbf16>
    %cst_527 = arith.constant dense<0.000000e+00> : vector<10x64xf32>
    %566 = tpu.matmul %564, %565, %cst_527 {dimension_numbers = #tpu.dot_dimension_numbers<[1], [0], [0], [1], [0, 0, 1, 1], [], []>} : vector<10x32xbf16>, vector<32x64xbf16>, vector<10x64xf32> -> vector<10x64xf32>
    %c1_528 = arith.constant 1 : index
    %c0_529 = arith.constant 0 : index
    %567 = vector.load %arg80[%c1_528, %c0_529] : memref<12x32xf32, #tpu.memory_space<vmem>>, vector<10x32xf32>
    %568 = arith.truncf %567 : vector<10x32xf32> to vector<10x32xbf16>
    %c32_530 = arith.constant 32 : index
    %c0_531 = arith.constant 0 : index
    %569 = vector.load %arg44[%c32_530, %c0_531] : memref<96x64xbf16, #tpu.memory_space<vmem>>, vector<32x64xbf16>
    %cst_532 = arith.constant dense<0.000000e+00> : vector<10x64xf32>
    %570 = tpu.matmul %568, %569, %cst_532 {dimension_numbers = #tpu.dot_dimension_numbers<[1], [0], [0], [1], [0, 0, 1, 1], [], []>} : vector<10x32xbf16>, vector<32x64xbf16>, vector<10x64xf32> -> vector<10x64xf32>
    %571 = arith.addf %566, %570 : vector<10x64xf32>
    %c2_533 = arith.constant 2 : index
    %c0_534 = arith.constant 0 : index
    %572 = vector.load %arg80[%c2_533, %c0_534] : memref<12x32xf32, #tpu.memory_space<vmem>>, vector<10x32xf32>
    %573 = arith.truncf %572 : vector<10x32xf32> to vector<10x32xbf16>
    %c64_535 = arith.constant 64 : index
    %c0_536 = arith.constant 0 : index
    %574 = vector.load %arg44[%c64_535, %c0_536] : memref<96x64xbf16, #tpu.memory_space<vmem>>, vector<32x64xbf16>
    %cst_537 = arith.constant dense<0.000000e+00> : vector<10x64xf32>
    %575 = tpu.matmul %573, %574, %cst_537 {dimension_numbers = #tpu.dot_dimension_numbers<[1], [0], [0], [1], [0, 0, 1, 1], [], []>} : vector<10x32xbf16>, vector<32x64xbf16>, vector<10x64xf32> -> vector<10x64xf32>
    %576 = arith.addf %571, %575 : vector<10x64xf32>
    %c0_538 = arith.constant 0 : index
    %c0_539 = arith.constant 0 : index
    %577 = vector.load %arg45[%c0_538, %c0_539] : memref<1x64xf32, #tpu.memory_space<vmem>>, vector<1x64xf32>
    %578 = vector.broadcast %577 : vector<1x64xf32> to vector<10x64xf32>
    %579 = arith.addf %576, %578 : vector<10x64xf32>
    %cst_540 = arith.constant 0.000000e+00 : f32
    %580 = vector.broadcast %cst_540 : f32 to vector<10x64xf32>
    %581 = arith.maximumf %579, %580 : vector<10x64xf32>
    %582 = vector.extract_strided_slice %581 {offsets = [0, 0], sizes = [4, 64], strides = [1, 1]} : vector<10x64xf32> to vector<4x64xf32>
    %c2_541 = arith.constant 2 : index
    %c0_542 = arith.constant 0 : index
    %583 = vector.load %arg81[%c2_541, %c0_542] : memref<16x64xf32, #tpu.memory_space<vmem>>, vector<4x64xf32>
    tpu.vector_store %arg81[%c2_541, %c0_542], %582 {strides = array<i32>} : memref<16x64xf32, #tpu.memory_space<vmem>>, vector<4x64xf32>,
    %584 = vector.extract_strided_slice %581 {offsets = [6, 0], sizes = [4, 64], strides = [1, 1]} : vector<10x64xf32> to vector<4x64xf32>
    %c10_543 = arith.constant 10 : index
    %c0_544 = arith.constant 0 : index
    %585 = vector.load %arg81[%c10_543, %c0_544] : memref<16x64xf32, #tpu.memory_space<vmem>>, vector<4x64xf32>
    tpu.vector_store %arg81[%c10_543, %c0_544], %584 {strides = array<i32>} : memref<16x64xf32, #tpu.memory_space<vmem>>, vector<4x64xf32>,
    %c0_545 = arith.constant 0 : index
    %c0_546 = arith.constant 0 : index
    %586 = tpu.strided_load %arg81[%c0_545, %c0_546] {strides = array<i32: 2, 1>} : memref<16x64xf32, #tpu.memory_space<vmem>>, vector<6x64xf32>
    %587 = arith.truncf %586 : vector<6x64xf32> to vector<6x64xbf16>
    %c0_547 = arith.constant 0 : index
    %c0_548 = arith.constant 0 : index
    %588 = vector.load %arg46[%c0_547, %c0_548] : memref<192x64xbf16, #tpu.memory_space<vmem>>, vector<64x64xbf16>
    %cst_549 = arith.constant dense<0.000000e+00> : vector<6x64xf32>
    %589 = tpu.matmul %587, %588, %cst_549 {dimension_numbers = #tpu.dot_dimension_numbers<[1], [0], [0], [1], [0, 0, 1, 1], [], []>} : vector<6x64xbf16>, vector<64x64xbf16>, vector<6x64xf32> -> vector<6x64xf32>
    %c2_550 = arith.constant 2 : index
    %c0_551 = arith.constant 0 : index
    %590 = tpu.strided_load %arg81[%c2_550, %c0_551] {strides = array<i32: 2, 1>} : memref<16x64xf32, #tpu.memory_space<vmem>>, vector<6x64xf32>
    %591 = arith.truncf %590 : vector<6x64xf32> to vector<6x64xbf16>
    %c64_552 = arith.constant 64 : index
    %c0_553 = arith.constant 0 : index
    %592 = vector.load %arg46[%c64_552, %c0_553] : memref<192x64xbf16, #tpu.memory_space<vmem>>, vector<64x64xbf16>
    %cst_554 = arith.constant dense<0.000000e+00> : vector<6x64xf32>
    %593 = tpu.matmul %591, %592, %cst_554 {dimension_numbers = #tpu.dot_dimension_numbers<[1], [0], [0], [1], [0, 0, 1, 1], [], []>} : vector<6x64xbf16>, vector<64x64xbf16>, vector<6x64xf32> -> vector<6x64xf32>
    %594 = arith.addf %589, %593 : vector<6x64xf32>
    %c4_555 = arith.constant 4 : index
    %c0_556 = arith.constant 0 : index
    %595 = tpu.strided_load %arg81[%c4_555, %c0_556] {strides = array<i32: 2, 1>} : memref<16x64xf32, #tpu.memory_space<vmem>>, vector<6x64xf32>
    %596 = arith.truncf %595 : vector<6x64xf32> to vector<6x64xbf16>
    %c128 = arith.constant 128 : index
    %c0_557 = arith.constant 0 : index
    %597 = vector.load %arg46[%c128, %c0_557] : memref<192x64xbf16, #tpu.memory_space<vmem>>, vector<64x64xbf16>
    %cst_558 = arith.constant dense<0.000000e+00> : vector<6x64xf32>
    %598 = tpu.matmul %596, %597, %cst_558 {dimension_numbers = #tpu.dot_dimension_numbers<[1], [0], [0], [1], [0, 0, 1, 1], [], []>} : vector<6x64xbf16>, vector<64x64xbf16>, vector<6x64xf32> -> vector<6x64xf32>
    %599 = arith.addf %594, %598 : vector<6x64xf32>
    %c0_559 = arith.constant 0 : index
    %c0_560 = arith.constant 0 : index
    %600 = vector.load %arg47[%c0_559, %c0_560] : memref<1x64xf32, #tpu.memory_space<vmem>>, vector<1x64xf32>
    %601 = vector.broadcast %600 : vector<1x64xf32> to vector<6x64xf32>
    %602 = arith.addf %599, %601 : vector<6x64xf32>
    %cst_561 = arith.constant 0.000000e+00 : f32
    %603 = vector.broadcast %cst_561 : f32 to vector<6x64xf32>
    %604 = arith.maximumf %602, %603 : vector<6x64xf32>
    %605 = vector.extract_strided_slice %604 {offsets = [0, 0], sizes = [2, 64], strides = [1, 1]} : vector<6x64xf32> to vector<2x64xf32>
    %c4_562 = arith.constant 4 : index
    %c0_563 = arith.constant 0 : index
    %606 = vector.load %arg82[%c4_562, %c0_563] : memref<20x64xf32, #tpu.memory_space<vmem>>, vector<2x64xf32>
    tpu.vector_store %arg82[%c4_562, %c0_563], %605 {strides = array<i32>} : memref<20x64xf32, #tpu.memory_space<vmem>>, vector<2x64xf32>,
    %607 = vector.extract_strided_slice %604 {offsets = [4, 0], sizes = [2, 64], strides = [1, 1]} : vector<6x64xf32> to vector<2x64xf32>
    %c14_564 = arith.constant 14 : index
    %c0_565 = arith.constant 0 : index
    %608 = vector.load %arg82[%c14_564, %c0_565] : memref<20x64xf32, #tpu.memory_space<vmem>>, vector<2x64xf32>
    tpu.vector_store %arg82[%c14_564, %c0_565], %607 {strides = array<i32>} : memref<20x64xf32, #tpu.memory_space<vmem>>, vector<2x64xf32>,
    %c0_566 = arith.constant 0 : index
    %c0_567 = arith.constant 0 : index
    %609 = vector.load %arg82[%c0_566, %c0_567] : memref<20x64xf32, #tpu.memory_space<vmem>>, vector<12x64xf32>
    %610 = arith.truncf %609 : vector<12x64xf32> to vector<12x64xbf16>
    %c0_568 = arith.constant 0 : index
    %c0_569 = arith.constant 0 : index
    %611 = vector.load %arg48[%c0_568, %c0_569] : memref<192x64xbf16, #tpu.memory_space<vmem>>, vector<64x64xbf16>
    %cst_570 = arith.constant dense<0.000000e+00> : vector<12x64xf32>
    %612 = tpu.matmul %610, %611, %cst_570 {dimension_numbers = #tpu.dot_dimension_numbers<[1], [0], [0], [1], [0, 0, 1, 1], [], []>} : vector<12x64xbf16>, vector<64x64xbf16>, vector<12x64xf32> -> vector<12x64xf32>
    %c4_571 = arith.constant 4 : index
    %c0_572 = arith.constant 0 : index
    %613 = vector.load %arg82[%c4_571, %c0_572] : memref<20x64xf32, #tpu.memory_space<vmem>>, vector<12x64xf32>
    %614 = arith.truncf %613 : vector<12x64xf32> to vector<12x64xbf16>
    %c64_573 = arith.constant 64 : index
    %c0_574 = arith.constant 0 : index
    %615 = vector.load %arg48[%c64_573, %c0_574] : memref<192x64xbf16, #tpu.memory_space<vmem>>, vector<64x64xbf16>
    %cst_575 = arith.constant dense<0.000000e+00> : vector<12x64xf32>
    %616 = tpu.matmul %614, %615, %cst_575 {dimension_numbers = #tpu.dot_dimension_numbers<[1], [0], [0], [1], [0, 0, 1, 1], [], []>} : vector<12x64xbf16>, vector<64x64xbf16>, vector<12x64xf32> -> vector<12x64xf32>
    %617 = arith.addf %612, %616 : vector<12x64xf32>
    %c8_576 = arith.constant 8 : index
    %c0_577 = arith.constant 0 : index
    %618 = vector.load %arg82[%c8_576, %c0_577] : memref<20x64xf32, #tpu.memory_space<vmem>>, vector<12x64xf32>
    %619 = arith.truncf %618 : vector<12x64xf32> to vector<12x64xbf16>
    %c128_578 = arith.constant 128 : index
    %c0_579 = arith.constant 0 : index
    %620 = vector.load %arg48[%c128_578, %c0_579] : memref<192x64xbf16, #tpu.memory_space<vmem>>, vector<64x64xbf16>
    %cst_580 = arith.constant dense<0.000000e+00> : vector<12x64xf32>
    %621 = tpu.matmul %619, %620, %cst_580 {dimension_numbers = #tpu.dot_dimension_numbers<[1], [0], [0], [1], [0, 0, 1, 1], [], []>} : vector<12x64xbf16>, vector<64x64xbf16>, vector<12x64xf32> -> vector<12x64xf32>
    %622 = arith.addf %617, %621 : vector<12x64xf32>
    %c0_581 = arith.constant 0 : index
    %c0_582 = arith.constant 0 : index
    %623 = vector.load %arg49[%c0_581, %c0_582] : memref<1x64xf32, #tpu.memory_space<vmem>>, vector<1x64xf32>
    %624 = vector.broadcast %623 : vector<1x64xf32> to vector<12x64xf32>
    %625 = arith.addf %622, %624 : vector<12x64xf32>
    %c1_583 = arith.constant 1 : index
    %c0_584 = arith.constant 0 : index
    %626 = tpu.strided_load %arg80[%c1_583, %c0_584] {strides = array<i32: 2, 1>} : memref<12x32xf32, #tpu.memory_space<vmem>>, vector<5x32xf32>
    %627 = arith.truncf %626 : vector<5x32xf32> to vector<5x32xbf16>
    %c0_585 = arith.constant 0 : index
    %c0_586 = arith.constant 0 : index
    %628 = vector.load %arg50[%c0_585, %c0_586] : memref<32x64xbf16, #tpu.memory_space<vmem>>, vector<32x64xbf16>
    %cst_587 = arith.constant dense<0.000000e+00> : vector<5x64xf32>
    %629 = tpu.matmul %627, %628, %cst_587 {dimension_numbers = #tpu.dot_dimension_numbers<[1], [0], [0], [1], [0, 0, 1, 1], [], []>} : vector<5x32xbf16>, vector<32x64xbf16>, vector<5x64xf32> -> vector<5x64xf32>
    %c0_588 = arith.constant 0 : index
    %c0_589 = arith.constant 0 : index
    %630 = vector.load %arg51[%c0_588, %c0_589] : memref<1x64xf32, #tpu.memory_space<vmem>>, vector<1x64xf32>
    %631 = vector.broadcast %630 : vector<1x64xf32> to vector<5x64xf32>
    %632 = arith.addf %629, %631 : vector<5x64xf32>
    %633 = vector.extract_strided_slice %632 {offsets = [0, 0], sizes = [2, 64], strides = [1, 1]} : vector<5x64xf32> to vector<2x64xf32>
    %634 = vector.extract_strided_slice %632 {offsets = [3, 0], sizes = [2, 64], strides = [1, 1]} : vector<5x64xf32> to vector<2x64xf32>
    %635 = vector.extract_strided_slice %625 {offsets = [0, 0], sizes = [2, 64], strides = [1, 1]} : vector<12x64xf32> to vector<2x64xf32>
    %636 = arith.addf %635, %633 : vector<2x64xf32>
    %cst_590 = arith.constant 0.000000e+00 : f32
    %637 = vector.broadcast %cst_590 : f32 to vector<2x64xf32>
    %638 = arith.maximumf %636, %637 : vector<2x64xf32>
    %639 = vector.extract_strided_slice %625 {offsets = [10, 0], sizes = [2, 64], strides = [1, 1]} : vector<12x64xf32> to vector<2x64xf32>
    %640 = arith.addf %639, %634 : vector<2x64xf32>
    %cst_591 = arith.constant 0.000000e+00 : f32
    %641 = vector.broadcast %cst_591 : f32 to vector<2x64xf32>
    %642 = arith.maximumf %640, %641 : vector<2x64xf32>
    %c1_592 = arith.constant 1 : index
    %c0_593 = arith.constant 0 : index
    %643 = vector.load %arg83[%c1_592, %c0_593] : memref<8x64xf32, #tpu.memory_space<vmem>>, vector<2x64xf32>
    tpu.vector_store %arg83[%c1_592, %c0_593], %638 {strides = array<i32>} : memref<8x64xf32, #tpu.memory_space<vmem>>, vector<2x64xf32>,
    %c5_594 = arith.constant 5 : index
    %c0_595 = arith.constant 0 : index
    %644 = vector.load %arg83[%c5_594, %c0_595] : memref<8x64xf32, #tpu.memory_space<vmem>>, vector<2x64xf32>
    tpu.vector_store %arg83[%c5_594, %c0_595], %642 {strides = array<i32>} : memref<8x64xf32, #tpu.memory_space<vmem>>, vector<2x64xf32>,
    %c0_596 = arith.constant 0 : index
    %c0_597 = arith.constant 0 : index
    %645 = vector.load %arg83[%c0_596, %c0_597] : memref<8x64xf32, #tpu.memory_space<vmem>>, vector<6x64xf32>
    %646 = arith.truncf %645 : vector<6x64xf32> to vector<6x64xbf16>
    %c0_598 = arith.constant 0 : index
    %c0_599 = arith.constant 0 : index
    %647 = vector.load %arg52[%c0_598, %c0_599] : memref<192x64xbf16, #tpu.memory_space<vmem>>, vector<64x64xbf16>
    %cst_600 = arith.constant dense<0.000000e+00> : vector<6x64xf32>
    %648 = tpu.matmul %646, %647, %cst_600 {dimension_numbers = #tpu.dot_dimension_numbers<[1], [0], [0], [1], [0, 0, 1, 1], [], []>} : vector<6x64xbf16>, vector<64x64xbf16>, vector<6x64xf32> -> vector<6x64xf32>
    %c1_601 = arith.constant 1 : index
    %c0_602 = arith.constant 0 : index
    %649 = vector.load %arg83[%c1_601, %c0_602] : memref<8x64xf32, #tpu.memory_space<vmem>>, vector<6x64xf32>
    %650 = arith.truncf %649 : vector<6x64xf32> to vector<6x64xbf16>
    %c64_603 = arith.constant 64 : index
    %c0_604 = arith.constant 0 : index
    %651 = vector.load %arg52[%c64_603, %c0_604] : memref<192x64xbf16, #tpu.memory_space<vmem>>, vector<64x64xbf16>
    %cst_605 = arith.constant dense<0.000000e+00> : vector<6x64xf32>
    %652 = tpu.matmul %650, %651, %cst_605 {dimension_numbers = #tpu.dot_dimension_numbers<[1], [0], [0], [1], [0, 0, 1, 1], [], []>} : vector<6x64xbf16>, vector<64x64xbf16>, vector<6x64xf32> -> vector<6x64xf32>
    %653 = arith.addf %648, %652 : vector<6x64xf32>
    %c2_606 = arith.constant 2 : index
    %c0_607 = arith.constant 0 : index
    %654 = vector.load %arg83[%c2_606, %c0_607] : memref<8x64xf32, #tpu.memory_space<vmem>>, vector<6x64xf32>
    %655 = arith.truncf %654 : vector<6x64xf32> to vector<6x64xbf16>
    %c128_608 = arith.constant 128 : index
    %c0_609 = arith.constant 0 : index
    %656 = vector.load %arg52[%c128_608, %c0_609] : memref<192x64xbf16, #tpu.memory_space<vmem>>, vector<64x64xbf16>
    %cst_610 = arith.constant dense<0.000000e+00> : vector<6x64xf32>
    %657 = tpu.matmul %655, %656, %cst_610 {dimension_numbers = #tpu.dot_dimension_numbers<[1], [0], [0], [1], [0, 0, 1, 1], [], []>} : vector<6x64xbf16>, vector<64x64xbf16>, vector<6x64xf32> -> vector<6x64xf32>
    %658 = arith.addf %653, %657 : vector<6x64xf32>
    %c0_611 = arith.constant 0 : index
    %c0_612 = arith.constant 0 : index
    %659 = vector.load %arg53[%c0_611, %c0_612] : memref<1x64xf32, #tpu.memory_space<vmem>>, vector<1x64xf32>
    %660 = vector.broadcast %659 : vector<1x64xf32> to vector<6x64xf32>
    %661 = arith.addf %658, %660 : vector<6x64xf32>
    %cst_613 = arith.constant 0.000000e+00 : f32
    %662 = vector.broadcast %cst_613 : f32 to vector<6x64xf32>
    %663 = arith.maximumf %661, %662 : vector<6x64xf32>
    %664 = vector.extract_strided_slice %663 {offsets = [0, 0], sizes = [2, 64], strides = [1, 1]} : vector<6x64xf32> to vector<2x64xf32>
    %c2_614 = arith.constant 2 : index
    %c0_615 = arith.constant 0 : index
    %665 = vector.load %arg84[%c2_614, %c0_615] : memref<12x64xf32, #tpu.memory_space<vmem>>, vector<2x64xf32>
    tpu.vector_store %arg84[%c2_614, %c0_615], %664 {strides = array<i32>} : memref<12x64xf32, #tpu.memory_space<vmem>>, vector<2x64xf32>,
    %666 = vector.extract_strided_slice %663 {offsets = [4, 0], sizes = [2, 64], strides = [1, 1]} : vector<6x64xf32> to vector<2x64xf32>
    %c8_616 = arith.constant 8 : index
    %c0_617 = arith.constant 0 : index
    %667 = vector.load %arg84[%c8_616, %c0_617] : memref<12x64xf32, #tpu.memory_space<vmem>>, vector<2x64xf32>
    tpu.vector_store %arg84[%c8_616, %c0_617], %666 {strides = array<i32>} : memref<12x64xf32, #tpu.memory_space<vmem>>, vector<2x64xf32>,
    %c0_618 = arith.constant 0 : index
    %c0_619 = arith.constant 0 : index
    %668 = vector.load %arg84[%c0_618, %c0_619] : memref<12x64xf32, #tpu.memory_space<vmem>>, vector<8x64xf32>
    %669 = arith.truncf %668 : vector<8x64xf32> to vector<8x64xbf16>
    %c0_620 = arith.constant 0 : index
    %c0_621 = arith.constant 0 : index
    %670 = vector.load %arg54[%c0_620, %c0_621] : memref<192x64xbf16, #tpu.memory_space<vmem>>, vector<64x64xbf16>
    %cst_622 = arith.constant dense<0.000000e+00> : vector<8x64xf32>
    %671 = tpu.matmul %669, %670, %cst_622 {dimension_numbers = #tpu.dot_dimension_numbers<[1], [0], [0], [1], [0, 0, 1, 1], [], []>} : vector<8x64xbf16>, vector<64x64xbf16>, vector<8x64xf32> -> vector<8x64xf32>
    %c2_623 = arith.constant 2 : index
    %c0_624 = arith.constant 0 : index
    %672 = vector.load %arg84[%c2_623, %c0_624] : memref<12x64xf32, #tpu.memory_space<vmem>>, vector<8x64xf32>
    %673 = arith.truncf %672 : vector<8x64xf32> to vector<8x64xbf16>
    %c64_625 = arith.constant 64 : index
    %c0_626 = arith.constant 0 : index
    %674 = vector.load %arg54[%c64_625, %c0_626] : memref<192x64xbf16, #tpu.memory_space<vmem>>, vector<64x64xbf16>
    %cst_627 = arith.constant dense<0.000000e+00> : vector<8x64xf32>
    %675 = tpu.matmul %673, %674, %cst_627 {dimension_numbers = #tpu.dot_dimension_numbers<[1], [0], [0], [1], [0, 0, 1, 1], [], []>} : vector<8x64xbf16>, vector<64x64xbf16>, vector<8x64xf32> -> vector<8x64xf32>
    %676 = arith.addf %671, %675 : vector<8x64xf32>
    %c4_628 = arith.constant 4 : index
    %c0_629 = arith.constant 0 : index
    %677 = vector.load %arg84[%c4_628, %c0_629] : memref<12x64xf32, #tpu.memory_space<vmem>>, vector<8x64xf32>
    %678 = arith.truncf %677 : vector<8x64xf32> to vector<8x64xbf16>
    %c128_630 = arith.constant 128 : index
    %c0_631 = arith.constant 0 : index
    %679 = vector.load %arg54[%c128_630, %c0_631] : memref<192x64xbf16, #tpu.memory_space<vmem>>, vector<64x64xbf16>
    %cst_632 = arith.constant dense<0.000000e+00> : vector<8x64xf32>
    %680 = tpu.matmul %678, %679, %cst_632 {dimension_numbers = #tpu.dot_dimension_numbers<[1], [0], [0], [1], [0, 0, 1, 1], [], []>} : vector<8x64xbf16>, vector<64x64xbf16>, vector<8x64xf32> -> vector<8x64xf32>
    %681 = arith.addf %676, %680 : vector<8x64xf32>
    %c0_633 = arith.constant 0 : index
    %c0_634 = arith.constant 0 : index
    %682 = vector.load %arg55[%c0_633, %c0_634] : memref<1x64xf32, #tpu.memory_space<vmem>>, vector<1x64xf32>
    %683 = vector.broadcast %682 : vector<1x64xf32> to vector<8x64xf32>
    %684 = arith.addf %681, %683 : vector<8x64xf32>
    %cst_635 = arith.constant 0.000000e+00 : f32
    %685 = vector.broadcast %cst_635 : f32 to vector<8x64xf32>
    %686 = arith.maximumf %684, %685 : vector<8x64xf32>
    %687 = vector.extract_strided_slice %686 {offsets = [0, 0], sizes = [2, 64], strides = [1, 1]} : vector<8x64xf32> to vector<2x64xf32>
    %c4_636 = arith.constant 4 : index
    %c0_637 = arith.constant 0 : index
    %688 = vector.load %arg85[%c4_636, %c0_637] : memref<20x64xf32, #tpu.memory_space<vmem>>, vector<2x64xf32>
    tpu.vector_store %arg85[%c4_636, %c0_637], %687 {strides = array<i32>} : memref<20x64xf32, #tpu.memory_space<vmem>>, vector<2x64xf32>,
    %689 = vector.extract_strided_slice %686 {offsets = [6, 0], sizes = [2, 64], strides = [1, 1]} : vector<8x64xf32> to vector<2x64xf32>
    %c14_638 = arith.constant 14 : index
    %c0_639 = arith.constant 0 : index
    %690 = vector.load %arg85[%c14_638, %c0_639] : memref<20x64xf32, #tpu.memory_space<vmem>>, vector<2x64xf32>
    tpu.vector_store %arg85[%c14_638, %c0_639], %689 {strides = array<i32>} : memref<20x64xf32, #tpu.memory_space<vmem>>, vector<2x64xf32>,
    %c0_640 = arith.constant 0 : index
    %c0_641 = arith.constant 0 : index
    %691 = vector.load %arg85[%c0_640, %c0_641] : memref<20x64xf32, #tpu.memory_space<vmem>>, vector<12x64xf32>
    %692 = arith.truncf %691 : vector<12x64xf32> to vector<12x64xbf16>
    %c0_642 = arith.constant 0 : index
    %c0_643 = arith.constant 0 : index
    %693 = vector.load %arg56[%c0_642, %c0_643] : memref<192x64xbf16, #tpu.memory_space<vmem>>, vector<64x64xbf16>
    %cst_644 = arith.constant dense<0.000000e+00> : vector<12x64xf32>
    %694 = tpu.matmul %692, %693, %cst_644 {dimension_numbers = #tpu.dot_dimension_numbers<[1], [0], [0], [1], [0, 0, 1, 1], [], []>} : vector<12x64xbf16>, vector<64x64xbf16>, vector<12x64xf32> -> vector<12x64xf32>
    %c4_645 = arith.constant 4 : index
    %c0_646 = arith.constant 0 : index
    %695 = vector.load %arg85[%c4_645, %c0_646] : memref<20x64xf32, #tpu.memory_space<vmem>>, vector<12x64xf32>
    %696 = arith.truncf %695 : vector<12x64xf32> to vector<12x64xbf16>
    %c64_647 = arith.constant 64 : index
    %c0_648 = arith.constant 0 : index
    %697 = vector.load %arg56[%c64_647, %c0_648] : memref<192x64xbf16, #tpu.memory_space<vmem>>, vector<64x64xbf16>
    %cst_649 = arith.constant dense<0.000000e+00> : vector<12x64xf32>
    %698 = tpu.matmul %696, %697, %cst_649 {dimension_numbers = #tpu.dot_dimension_numbers<[1], [0], [0], [1], [0, 0, 1, 1], [], []>} : vector<12x64xbf16>, vector<64x64xbf16>, vector<12x64xf32> -> vector<12x64xf32>
    %699 = arith.addf %694, %698 : vector<12x64xf32>
    %c8_650 = arith.constant 8 : index
    %c0_651 = arith.constant 0 : index
    %700 = vector.load %arg85[%c8_650, %c0_651] : memref<20x64xf32, #tpu.memory_space<vmem>>, vector<12x64xf32>
    %701 = arith.truncf %700 : vector<12x64xf32> to vector<12x64xbf16>
    %c128_652 = arith.constant 128 : index
    %c0_653 = arith.constant 0 : index
    %702 = vector.load %arg56[%c128_652, %c0_653] : memref<192x64xbf16, #tpu.memory_space<vmem>>, vector<64x64xbf16>
    %cst_654 = arith.constant dense<0.000000e+00> : vector<12x64xf32>
    %703 = tpu.matmul %701, %702, %cst_654 {dimension_numbers = #tpu.dot_dimension_numbers<[1], [0], [0], [1], [0, 0, 1, 1], [], []>} : vector<12x64xbf16>, vector<64x64xbf16>, vector<12x64xf32> -> vector<12x64xf32>
    %704 = arith.addf %699, %703 : vector<12x64xf32>
    %c0_655 = arith.constant 0 : index
    %c0_656 = arith.constant 0 : index
    %705 = vector.load %arg57[%c0_655, %c0_656] : memref<1x64xf32, #tpu.memory_space<vmem>>, vector<1x64xf32>
    %706 = vector.broadcast %705 : vector<1x64xf32> to vector<12x64xf32>
    %707 = arith.addf %704, %706 : vector<12x64xf32>
    %708 = vector.extract_strided_slice %707 {offsets = [0, 0], sizes = [2, 64], strides = [1, 1]} : vector<12x64xf32> to vector<2x64xf32>
    %709 = arith.addf %708, %638 : vector<2x64xf32>
    %cst_657 = arith.constant 0.000000e+00 : f32
    %710 = vector.broadcast %cst_657 : f32 to vector<2x64xf32>
    %711 = arith.maximumf %709, %710 : vector<2x64xf32>
    %712 = vector.extract_strided_slice %707 {offsets = [10, 0], sizes = [2, 64], strides = [1, 1]} : vector<12x64xf32> to vector<2x64xf32>
    %713 = arith.addf %712, %642 : vector<2x64xf32>
    %cst_658 = arith.constant 0.000000e+00 : f32
    %714 = vector.broadcast %cst_658 : f32 to vector<2x64xf32>
    %715 = arith.maximumf %713, %714 : vector<2x64xf32>
    %cst_659 = arith.constant dense<0.000000e+00> : vector<64xf32>
    %716 = vector.multi_reduction <add>, %711, %cst_659 [0] : vector<2x64xf32> to vector<64xf32>
    %717 = vector.shape_cast %716 : vector<64xf32> to vector<1x64xf32>
    %cst_660 = arith.constant 2.000000e+00 : f32
    %718 = vector.broadcast %cst_660 : f32 to vector<1x64xf32>
    %719 = arith.divf %717, %718 : vector<1x64xf32>
    %c0_661 = arith.constant 0 : index
    %c0_662 = arith.constant 0 : index
    %720 = vector.load %arg86[%c0_661, %c0_662] : memref<2x64xf32, #tpu.memory_space<vmem>>, vector<1x64xf32>
    tpu.vector_store %arg86[%c0_661, %c0_662], %719 {strides = array<i32>} : memref<2x64xf32, #tpu.memory_space<vmem>>, vector<1x64xf32>,
    %cst_663 = arith.constant dense<0.000000e+00> : vector<64xf32>
    %721 = vector.multi_reduction <add>, %715, %cst_663 [0] : vector<2x64xf32> to vector<64xf32>
    %722 = vector.shape_cast %721 : vector<64xf32> to vector<1x64xf32>
    %cst_664 = arith.constant 2.000000e+00 : f32
    %723 = vector.broadcast %cst_664 : f32 to vector<1x64xf32>
    %724 = arith.divf %722, %723 : vector<1x64xf32>
    %c1_665 = arith.constant 1 : index
    %c0_666 = arith.constant 0 : index
    %725 = vector.load %arg86[%c1_665, %c0_666] : memref<2x64xf32, #tpu.memory_space<vmem>>, vector<1x64xf32>
    tpu.vector_store %arg86[%c1_665, %c0_666], %724 {strides = array<i32>} : memref<2x64xf32, #tpu.memory_space<vmem>>, vector<1x64xf32>,
    %c0_667 = arith.constant 0 : index
    %c0_668 = arith.constant 0 : index
    %726 = vector.load %arg86[%c0_667, %c0_668] : memref<2x64xf32, #tpu.memory_space<vmem>>, vector<2x64xf32>
    %c0_669 = arith.constant 0 : index
    %c0_670 = arith.constant 0 : index
    %727 = vector.load %arg58[%c0_669, %c0_670] : memref<64x5xf32, #tpu.memory_space<vmem>>, vector<64x5xf32>
    %cst_671 = arith.constant dense<0.000000e+00> : vector<2x5xf32>
    %728 = tpu.matmul %726, %727, %cst_671 {dimension_numbers = #tpu.dot_dimension_numbers<[1], [0], [0], [1], [0, 0, 1, 1], [], []>} : vector<2x64xf32>, vector<64x5xf32>, vector<2x5xf32> -> vector<2x5xf32>
    %c0_672 = arith.constant 0 : index
    %c0_673 = arith.constant 0 : index
    %729 = vector.load %arg59[%c0_672, %c0_673] : memref<1x5xf32, #tpu.memory_space<vmem>>, vector<1x5xf32>
    %730 = vector.broadcast %729 : vector<1x5xf32> to vector<2x5xf32>
    %731 = arith.addf %728, %730 : vector<2x5xf32>
    %c0_674 = arith.constant 0 : index
    %c0_675 = arith.constant 0 : index
    %732 = vector.load %arg60[%c0_674, %c0_675] : memref<2x5xf32, #tpu.memory_space<vmem>>, vector<2x5xf32>
    tpu.vector_store %arg60[%c0_674, %c0_675], %731 {strides = array<i32>} : memref<2x5xf32, #tpu.memory_space<vmem>>, vector<2x5xf32>,
    return
  }
  func.func @transform_0(%arg0: i32) -> (i32, i32) {
    %c0_i32 = arith.constant 0 : i32
    %c0_i32_0 = arith.constant 0 : i32
    %c0_i32_1 = arith.constant 0 : i32
    return %c0_i32, %c0_i32_0 : i32, i32
  }
  func.func @transform_1(%arg0: i32) -> (i32, i32) {
    %c0_i32 = arith.constant 0 : i32
    %c0_i32_0 = arith.constant 0 : i32
    %c0_i32_1 = arith.constant 0 : i32
    return %c0_i32, %c0_i32_0 : i32, i32
  }
  func.func @transform_2(%arg0: i32) -> (i32, i32) {
    %c0_i32 = arith.constant 0 : i32
    %c0_i32_0 = arith.constant 0 : i32
    %c0_i32_1 = arith.constant 0 : i32
    return %c0_i32, %c0_i32_0 : i32, i32
  }
  func.func @transform_3(%arg0: i32) -> (i32, i32) {
    %c0_i32 = arith.constant 0 : i32
    %c0_i32_0 = arith.constant 0 : i32
    %c0_i32_1 = arith.constant 0 : i32
    return %c0_i32, %c0_i32_0 : i32, i32
  }
  func.func @transform_4(%arg0: i32) -> (i32, i32) {
    %c0_i32 = arith.constant 0 : i32
    %c0_i32_0 = arith.constant 0 : i32
    %c0_i32_1 = arith.constant 0 : i32
    return %c0_i32, %c0_i32_0 : i32, i32
  }
  func.func @transform_5(%arg0: i32) -> (i32, i32) {
    %c0_i32 = arith.constant 0 : i32
    %c0_i32_0 = arith.constant 0 : i32
    %c0_i32_1 = arith.constant 0 : i32
    return %c0_i32, %c0_i32_0 : i32, i32
  }
  func.func @transform_6(%arg0: i32) -> (i32, i32) {
    %c0_i32 = arith.constant 0 : i32
    %c0_i32_0 = arith.constant 0 : i32
    %c0_i32_1 = arith.constant 0 : i32
    return %c0_i32, %c0_i32_0 : i32, i32
  }
  func.func @transform_7(%arg0: i32) -> (i32, i32) {
    %c0_i32 = arith.constant 0 : i32
    %c0_i32_0 = arith.constant 0 : i32
    %c0_i32_1 = arith.constant 0 : i32
    return %c0_i32, %c0_i32_0 : i32, i32
  }
  func.func @transform_8(%arg0: i32) -> (i32, i32) {
    %c0_i32 = arith.constant 0 : i32
    %c0_i32_0 = arith.constant 0 : i32
    %c0_i32_1 = arith.constant 0 : i32
    return %c0_i32, %c0_i32_0 : i32, i32
  }
  func.func @transform_9(%arg0: i32) -> (i32, i32) {
    %c0_i32 = arith.constant 0 : i32
    %c0_i32_0 = arith.constant 0 : i32
    %c0_i32_1 = arith.constant 0 : i32
    return %c0_i32, %c0_i32_0 : i32, i32
  }
  func.func @transform_10(%arg0: i32) -> (i32, i32) {
    %c0_i32 = arith.constant 0 : i32
    %c0_i32_0 = arith.constant 0 : i32
    %c0_i32_1 = arith.constant 0 : i32
    return %c0_i32, %c0_i32_0 : i32, i32
  }
  func.func @transform_11(%arg0: i32) -> (i32, i32) {
    %c0_i32 = arith.constant 0 : i32
    %c0_i32_0 = arith.constant 0 : i32
    %c0_i32_1 = arith.constant 0 : i32
    return %c0_i32, %c0_i32_0 : i32, i32
  }
  func.func @transform_12(%arg0: i32) -> (i32, i32) {
    %c0_i32 = arith.constant 0 : i32
    %c0_i32_0 = arith.constant 0 : i32
    %c0_i32_1 = arith.constant 0 : i32
    return %c0_i32, %c0_i32_0 : i32, i32
  }
  func.func @transform_13(%arg0: i32) -> (i32, i32) {
    %c0_i32 = arith.constant 0 : i32
    %c0_i32_0 = arith.constant 0 : i32
    %c0_i32_1 = arith.constant 0 : i32
    return %c0_i32, %c0_i32_0 : i32, i32
  }
  func.func @transform_14(%arg0: i32) -> (i32, i32) {
    %c0_i32 = arith.constant 0 : i32
    %c0_i32_0 = arith.constant 0 : i32
    %c0_i32_1 = arith.constant 0 : i32
    return %c0_i32, %c0_i32_0 : i32, i32
  }
  func.func @transform_15(%arg0: i32) -> (i32, i32) {
    %c0_i32 = arith.constant 0 : i32
    %c0_i32_0 = arith.constant 0 : i32
    %c0_i32_1 = arith.constant 0 : i32
    return %c0_i32, %c0_i32_0 : i32, i32
  }
  func.func @transform_16(%arg0: i32) -> (i32, i32) {
    %c0_i32 = arith.constant 0 : i32
    %c0_i32_0 = arith.constant 0 : i32
    %c0_i32_1 = arith.constant 0 : i32
    return %c0_i32, %c0_i32_0 : i32, i32
  }
  func.func @transform_17(%arg0: i32) -> (i32, i32) {
    %c0_i32 = arith.constant 0 : i32
    %c0_i32_0 = arith.constant 0 : i32
    %c0_i32_1 = arith.constant 0 : i32
    return %c0_i32, %c0_i32_0 : i32, i32
  }
  func.func @transform_18(%arg0: i32) -> (i32, i32) {
    %c0_i32 = arith.constant 0 : i32
    %c0_i32_0 = arith.constant 0 : i32
    %c0_i32_1 = arith.constant 0 : i32
    return %c0_i32, %c0_i32_0 : i32, i32
  }
  func.func @transform_19(%arg0: i32) -> (i32, i32) {
    %c0_i32 = arith.constant 0 : i32
    %c0_i32_0 = arith.constant 0 : i32
    %c0_i32_1 = arith.constant 0 : i32
    return %c0_i32, %c0_i32_0 : i32, i32
  }
  func.func @transform_20(%arg0: i32) -> (i32, i32) {
    %c0_i32 = arith.constant 0 : i32
    %c0_i32_0 = arith.constant 0 : i32
    %c0_i32_1 = arith.constant 0 : i32
    return %c0_i32, %c0_i32_0 : i32, i32
  }
  func.func @transform_21(%arg0: i32) -> (i32, i32) {
    %c0_i32 = arith.constant 0 : i32
    %c0_i32_0 = arith.constant 0 : i32
    %c0_i32_1 = arith.constant 0 : i32
    return %c0_i32, %c0_i32_0 : i32, i32
  }
  func.func @transform_22(%arg0: i32) -> (i32, i32) {
    %c0_i32 = arith.constant 0 : i32
    %c0_i32_0 = arith.constant 0 : i32
    %c0_i32_1 = arith.constant 0 : i32
    return %c0_i32, %c0_i32_0 : i32, i32
  }
  func.func @transform_23(%arg0: i32) -> (i32, i32) {
    %c0_i32 = arith.constant 0 : i32
    %c0_i32_0 = arith.constant 0 : i32
    %c0_i32_1 = arith.constant 0 : i32
    return %c0_i32, %c0_i32_0 : i32, i32
  }
  func.func @transform_24(%arg0: i32) -> (i32, i32) {
    %c0_i32 = arith.constant 0 : i32
    %c0_i32_0 = arith.constant 0 : i32
    %c0_i32_1 = arith.constant 0 : i32
    return %c0_i32, %c0_i32_0 : i32, i32
  }
  func.func @transform_25(%arg0: i32) -> (i32, i32) {
    %c0_i32 = arith.constant 0 : i32
    %c0_i32_0 = arith.constant 0 : i32
    %c0_i32_1 = arith.constant 0 : i32
    return %c0_i32, %c0_i32_0 : i32, i32
  }
  func.func @transform_26(%arg0: i32) -> (i32, i32) {
    %c0_i32 = arith.constant 0 : i32
    %c0_i32_0 = arith.constant 0 : i32
    %c0_i32_1 = arith.constant 0 : i32
    return %c0_i32, %c0_i32_0 : i32, i32
  }
  func.func @transform_27(%arg0: i32) -> (i32, i32) {
    %c0_i32 = arith.constant 0 : i32
    %c0_i32_0 = arith.constant 0 : i32
    %c0_i32_1 = arith.constant 0 : i32
    return %c0_i32, %c0_i32_0 : i32, i32
  }
  func.func @transform_28(%arg0: i32) -> (i32, i32) {
    %c0_i32 = arith.constant 0 : i32
    %c0_i32_0 = arith.constant 0 : i32
    %c0_i32_1 = arith.constant 0 : i32
    return %c0_i32, %c0_i32_0 : i32, i32
  }
  func.func @transform_29(%arg0: i32) -> (i32, i32) {
    %c0_i32 = arith.constant 0 : i32
    %c0_i32_0 = arith.constant 0 : i32
    %c0_i32_1 = arith.constant 0 : i32
    return %c0_i32, %c0_i32_0 : i32, i32
  }
  func.func @transform_30(%arg0: i32) -> (i32, i32) {
    %c0_i32 = arith.constant 0 : i32
    %c0_i32_0 = arith.constant 0 : i32
    %c0_i32_1 = arith.constant 0 : i32
    return %c0_i32, %c0_i32_0 : i32, i32
  }
  func.func @transform_31(%arg0: i32) -> (i32, i32) {
    %c0_i32 = arith.constant 0 : i32
    %c0_i32_0 = arith.constant 0 : i32
    %c0_i32_1 = arith.constant 0 : i32
    return %c0_i32, %c0_i32_0 : i32, i32
  }
  func.func @transform_32(%arg0: i32) -> (i32, i32) {
    %c0_i32 = arith.constant 0 : i32
    %c0_i32_0 = arith.constant 0 : i32
    %c0_i32_1 = arith.constant 0 : i32
    return %c0_i32, %c0_i32_0 : i32, i32
  }
  func.func @transform_33(%arg0: i32) -> (i32, i32) {
    %c0_i32 = arith.constant 0 : i32
    %c0_i32_0 = arith.constant 0 : i32
    %c0_i32_1 = arith.constant 0 : i32
    return %c0_i32, %c0_i32_0 : i32, i32
  }
  func.func @transform_34(%arg0: i32) -> (i32, i32) {
    %c0_i32 = arith.constant 0 : i32
    %c0_i32_0 = arith.constant 0 : i32
    %c0_i32_1 = arith.constant 0 : i32
    return %c0_i32, %c0_i32_0 : i32, i32
  }
  func.func @transform_35(%arg0: i32) -> (i32, i32) {
    %c0_i32 = arith.constant 0 : i32
    %c0_i32_0 = arith.constant 0 : i32
    %c0_i32_1 = arith.constant 0 : i32
    return %c0_i32, %c0_i32_0 : i32, i32
  }
  func.func @transform_36(%arg0: i32) -> (i32, i32) {
    %c0_i32 = arith.constant 0 : i32
    %c0_i32_0 = arith.constant 0 : i32
    %c0_i32_1 = arith.constant 0 : i32
    return %c0_i32, %c0_i32_0 : i32, i32
  }
  func.func @transform_37(%arg0: i32) -> (i32, i32) {
    %c0_i32 = arith.constant 0 : i32
    %c0_i32_0 = arith.constant 0 : i32
    %c0_i32_1 = arith.constant 0 : i32
    return %c0_i32, %c0_i32_0 : i32, i32
  }
  func.func @transform_38(%arg0: i32) -> (i32, i32) {
    %c0_i32 = arith.constant 0 : i32
    %c0_i32_0 = arith.constant 0 : i32
    %c0_i32_1 = arith.constant 0 : i32
    return %c0_i32, %c0_i32_0 : i32, i32
  }
  func.func @transform_39(%arg0: i32) -> (i32, i32) {
    %c0_i32 = arith.constant 0 : i32
    %c0_i32_0 = arith.constant 0 : i32
    %c0_i32_1 = arith.constant 0 : i32
    return %c0_i32, %c0_i32_0 : i32, i32
  }
  func.func @transform_40(%arg0: i32) -> (i32, i32) {
    %c0_i32 = arith.constant 0 : i32
    %c0_i32_0 = arith.constant 0 : i32
    %c0_i32_1 = arith.constant 0 : i32
    return %c0_i32, %c0_i32_0 : i32, i32
  }
  func.func @transform_41(%arg0: i32) -> (i32, i32) {
    %c0_i32 = arith.constant 0 : i32
    %c0_i32_0 = arith.constant 0 : i32
    %c0_i32_1 = arith.constant 0 : i32
    return %c0_i32, %c0_i32_0 : i32, i32
  }
  func.func @transform_42(%arg0: i32) -> (i32, i32) {
    %c0_i32 = arith.constant 0 : i32
    %c0_i32_0 = arith.constant 0 : i32
    %c0_i32_1 = arith.constant 0 : i32
    return %c0_i32, %c0_i32_0 : i32, i32
  }
  func.func @transform_43(%arg0: i32) -> (i32, i32) {
    %c0_i32 = arith.constant 0 : i32
    %c0_i32_0 = arith.constant 0 : i32
    %c0_i32_1 = arith.constant 0 : i32
    return %c0_i32, %c0_i32_0 : i32, i32
  }
  func.func @transform_44(%arg0: i32) -> (i32, i32) {
    %c0_i32 = arith.constant 0 : i32
    %c0_i32_0 = arith.constant 0 : i32
    %c0_i32_1 = arith.constant 0 : i32
    return %c0_i32, %c0_i32_0 : i32, i32
  }
  func.func @transform_45(%arg0: i32) -> (i32, i32) {
    %c0_i32 = arith.constant 0 : i32
    %c0_i32_0 = arith.constant 0 : i32
    %c0_i32_1 = arith.constant 0 : i32
    return %c0_i32, %c0_i32_0 : i32, i32
  }
  func.func @transform_46(%arg0: i32) -> (i32, i32) {
    %c0_i32 = arith.constant 0 : i32
    %c0_i32_0 = arith.constant 0 : i32
    %c0_i32_1 = arith.constant 0 : i32
    return %c0_i32, %c0_i32_0 : i32, i32
  }
  func.func @transform_47(%arg0: i32) -> (i32, i32) {
    %c0_i32 = arith.constant 0 : i32
    %c0_i32_0 = arith.constant 0 : i32
    %c0_i32_1 = arith.constant 0 : i32
    return %c0_i32, %c0_i32_0 : i32, i32
  }
  func.func @transform_48(%arg0: i32) -> (i32, i32) {
    %c0_i32 = arith.constant 0 : i32
    %c0_i32_0 = arith.constant 0 : i32
    %c0_i32_1 = arith.constant 0 : i32
    return %c0_i32, %c0_i32_0 : i32, i32
  }
  func.func @transform_49(%arg0: i32) -> (i32, i32) {
    %c0_i32 = arith.constant 0 : i32
    %c0_i32_0 = arith.constant 0 : i32
    %c0_i32_1 = arith.constant 0 : i32
    return %c0_i32, %c0_i32_0 : i32, i32
  }
  func.func @transform_50(%arg0: i32) -> (i32, i32) {
    %c0_i32 = arith.constant 0 : i32
    %c0_i32_0 = arith.constant 0 : i32
    %c0_i32_1 = arith.constant 0 : i32
    return %c0_i32, %c0_i32_0 : i32, i32
  }
  func.func @transform_51(%arg0: i32) -> (i32, i32) {
    %c0_i32 = arith.constant 0 : i32
    %c0_i32_0 = arith.constant 0 : i32
    %c0_i32_1 = arith.constant 0 : i32
    return %c0_i32, %c0_i32_0 : i32, i32
  }
  func.func @transform_52(%arg0: i32) -> (i32, i32) {
    %c0_i32 = arith.constant 0 : i32
    %c0_i32_0 = arith.constant 0 : i32
    %c0_i32_1 = arith.constant 0 : i32
    return %c0_i32, %c0_i32_0 : i32, i32
  }
  func.func @transform_53(%arg0: i32) -> (i32, i32) {
    %c0_i32 = arith.constant 0 : i32
    %c0_i32_0 = arith.constant 0 : i32
    %c0_i32_1 = arith.constant 0 : i32
    return %c0_i32, %c0_i32_0 : i32, i32
  }
  func.func @transform_54(%arg0: i32) -> (i32, i32) {
    %c0_i32 = arith.constant 0 : i32
    %c0_i32_0 = arith.constant 0 : i32
    %c0_i32_1 = arith.constant 0 : i32
    return %c0_i32, %c0_i32_0 : i32, i32
  }
  func.func @transform_55(%arg0: i32) -> (i32, i32) {
    %c0_i32 = arith.constant 0 : i32
    %c0_i32_0 = arith.constant 0 : i32
    %c0_i32_1 = arith.constant 0 : i32
    return %c0_i32, %c0_i32_0 : i32, i32
  }
  func.func @transform_56(%arg0: i32) -> (i32, i32) {
    %c0_i32 = arith.constant 0 : i32
    %c0_i32_0 = arith.constant 0 : i32
    %c0_i32_1 = arith.constant 0 : i32
    return %c0_i32, %c0_i32_0 : i32, i32
  }
  func.func @transform_57(%arg0: i32) -> (i32, i32) {
    %c0_i32 = arith.constant 0 : i32
    %c0_i32_0 = arith.constant 0 : i32
    %c0_i32_1 = arith.constant 0 : i32
    return %c0_i32, %c0_i32_0 : i32, i32
  }
  func.func @transform_58(%arg0: i32) -> (i32, i32) {
    %c0_i32 = arith.constant 0 : i32
    %c0_i32_0 = arith.constant 0 : i32
    %c0_i32_1 = arith.constant 0 : i32
    return %c0_i32, %c0_i32_0 : i32, i32
  }
  func.func @transform_59(%arg0: i32) -> (i32, i32) {
    %c0_i32 = arith.constant 0 : i32
    %c0_i32_0 = arith.constant 0 : i32
    %c0_i32_1 = arith.constant 0 : i32
    return %c0_i32, %c0_i32_0 : i32, i32
  }
}

</mosaic_0001>

<llo_original>
// kernel: tpu_custom_call.1
$region0: #{tpu_custom_call.1}
  #allocation0 [shape = 'u32[]', space=smem, size = 0x4, offset = 0x4, fixed_abs, tag = 'smem constant byte address 0x4 - core index']
  #allocation1 [shape = 'u32[72,128]{1,0:T(1,128)}', space=vmem, size = 0x9000, scoped, tag = 'internal scratch']
  #allocation2 [shape = 'f32[68,8]{1,0:T(8,128)}', space=vmem, size = 0x9000, scoped, tag = 'scratch operand']
  #allocation3 [shape = 'f32[36,8]{1,0:T(8,128)}', space=vmem, size = 0x5000, scoped, tag = 'scratch operand']
  #allocation4 [shape = 'f32[40,8]{1,0:T(8,128)}', space=vmem, size = 0x5000, scoped, tag = 'scratch operand']
  #allocation5 [shape = 'f32[48,8]{1,0:T(8,128)}', space=vmem, size = 0x6000, scoped, tag = 'scratch operand']
  #allocation6 [shape = 'f32[36,8]{1,0:T(8,128)}', space=vmem, size = 0x5000, scoped, tag = 'scratch operand']
  #allocation7 [shape = 'f32[40,8]{1,0:T(8,128)}', space=vmem, size = 0x5000, scoped, tag = 'scratch operand']
  #allocation8 [shape = 'f32[48,8]{1,0:T(8,128)}', space=vmem, size = 0x6000, scoped, tag = 'scratch operand']
  #allocation9 [shape = 'f32[36,8]{1,0:T(8,128)}', space=vmem, size = 0x5000, scoped, tag = 'scratch operand']
  #allocation10 [shape = 'f32[40,16]{1,0:T(8,128)}', space=vmem, size = 0x5000, scoped, tag = 'scratch operand']
  #allocation11 [shape = 'f32[32,16]{1,0:T(8,128)}', space=vmem, size = 0x4000, scoped, tag = 'scratch operand']
  #allocation12 [shape = 'f32[20,16]{1,0:T(8,128)}', space=vmem, size = 0x3000, scoped, tag = 'scratch operand']
  #allocation13 [shape = 'f32[24,16]{1,0:T(8,128)}', space=vmem, size = 0x3000, scoped, tag = 'scratch operand']
  #allocation14 [shape = 'f32[32,16]{1,0:T(8,128)}', space=vmem, size = 0x4000, scoped, tag = 'scratch operand']
  #allocation15 [shape = 'f32[20,16]{1,0:T(8,128)}', space=vmem, size = 0x3000, scoped, tag = 'scratch operand']
  #allocation16 [shape = 'f32[24,32]{1,0:T(8,128)}', space=vmem, size = 0x3000, scoped, tag = 'scratch operand']
  #allocation17 [shape = 'f32[24,32]{1,0:T(8,128)}', space=vmem, size = 0x3000, scoped, tag = 'scratch operand']
  #allocation18 [shape = 'f32[12,32]{1,0:T(8,128)}', space=vmem, size = 0x2000, scoped, tag = 'scratch operand']
  #allocation19 [shape = 'f32[16,32]{1,0:T(8,128)}', space=vmem, size = 0x2000, scoped, tag = 'scratch operand']
  #allocation20 [shape = 'f32[24,32]{1,0:T(8,128)}', space=vmem, size = 0x3000, scoped, tag = 'scratch operand']
  #allocation21 [shape = 'f32[12,32]{1,0:T(8,128)}', space=vmem, size = 0x2000, scoped, tag = 'scratch operand']
  #allocation22 [shape = 'f32[16,64]{1,0:T(8,128)}', space=vmem, size = 0x2000, scoped, tag = 'scratch operand']
  #allocation23 [shape = 'f32[20,64]{1,0:T(8,128)}', space=vmem, size = 0x3000, scoped, tag = 'scratch operand']
  #allocation24 [shape = 'f32[8,64]{1,0:T(8,128)}', space=vmem, size = 0x1000, scoped, tag = 'scratch operand']
  #allocation25 [shape = 'f32[12,64]{1,0:T(8,128)}', space=vmem, size = 0x2000, scoped, tag = 'scratch operand']
  #allocation26 [shape = 'f32[20,64]{1,0:T(8,128)}', space=vmem, size = 0x3000, scoped, tag = 'scratch operand']
  #allocation27 [shape = 'f32[2,64]{1,0:T(2,128)}', space=vmem, size = 0x400, scoped, tag = 'scratch operand']
  %s0 = inlined_call_operand.smem [shape: u32[60], index: -1, kind: input, shape index: {}]
  %s1 = sld [smem:[%s0]]
  %s2 = scalar_lea.smem %s0, 1
  %s3 = sld [smem:[%s2]]
  %s4 = scalar_lea.smem %s0, 2
  %s5 = sld [smem:[%s4]]
  %s6 = scalar_lea.smem %s0, 3
  %s7 = sld [smem:[%s6]]
  %s8 = scalar_lea.smem %s0, 4
  %s9 = sld [smem:[%s8]]
  %s10 = scalar_lea.smem %s0, 5
  %s11 = sld [smem:[%s10]]
  %s12 = scalar_lea.smem %s0, 6
  %s13 = sld [smem:[%s12]]
  %s14 = scalar_lea.smem %s0, 7
  %s15 = sld [smem:[%s14]]
  %s16 = scalar_lea.smem %s0, 8
  %s17 = sld [smem:[%s16]]
  %s18 = scalar_lea.smem %s0, 9
  %s19 = sld [smem:[%s18]]
  %s20 = scalar_lea.smem %s0, 10
  %s21 = sld [smem:[%s20]]
  %s22 = scalar_lea.smem %s0, 11
  %s23 = sld [smem:[%s22]]
  %s24 = scalar_lea.smem %s0, 12
  %s25 = sld [smem:[%s24]]
  %s26 = scalar_lea.smem %s0, 13
  %s27 = sld [smem:[%s26]]
  %s28 = scalar_lea.smem %s0, 14
  %s29 = sld [smem:[%s28]]
  %s30 = scalar_lea.smem %s0, 15
  %s31 = sld [smem:[%s30]]
  %s32 = scalar_lea.smem %s0, 16
  %s33 = sld [smem:[%s32]]
  %s34 = scalar_lea.smem %s0, 17
  %s35 = sld [smem:[%s34]]
  %s36 = scalar_lea.smem %s0, 18
  %s37 = sld [smem:[%s36]]
  %s38 = scalar_lea.smem %s0, 19
  %s39 = sld [smem:[%s38]]
  %s40 = scalar_lea.smem %s0, 20
  %s41 = sld [smem:[%s40]]
  %s42 = scalar_lea.smem %s0, 21
  %s43 = sld [smem:[%s42]]
  %s44 = scalar_lea.smem %s0, 22
  %s45 = sld [smem:[%s44]]
  %s46 = scalar_lea.smem %s0, 23
  %s47 = sld [smem:[%s46]]
  %s48 = scalar_lea.smem %s0, 24
  %s49 = sld [smem:[%s48]]
  %s50 = scalar_lea.smem %s0, 25
  %s51 = sld [smem:[%s50]]
  %s52 = scalar_lea.smem %s0, 26
  %s53 = sld [smem:[%s52]]
  %s54 = scalar_lea.smem %s0, 27
  %s55 = sld [smem:[%s54]]
  %s56 = scalar_lea.smem %s0, 28
  %s57 = sld [smem:[%s56]]
  %s58 = scalar_lea.smem %s0, 29
  %s59 = sld [smem:[%s58]]
  %s60 = scalar_lea.smem %s0, 30
  %s61 = sld [smem:[%s60]]
  %s62 = scalar_lea.smem %s0, 31
  %s63 = sld [smem:[%s62]]
  %s64 = scalar_lea.smem %s0, 32
  %s65 = sld [smem:[%s64]]
  %s66 = scalar_lea.smem %s0, 33
  %s67 = sld [smem:[%s66]]
  %s68 = scalar_lea.smem %s0, 34
  %s69 = sld [smem:[%s68]]
  %s70 = scalar_lea.smem %s0, 35
  %s71 = sld [smem:[%s70]]
  %s72 = scalar_lea.smem %s0, 36
  %s73 = sld [smem:[%s72]]
  %s74 = scalar_lea.smem %s0, 37
  %s75 = sld [smem:[%s74]]
  %s76 = scalar_lea.smem %s0, 38
  %s77 = sld [smem:[%s76]]
  %s78 = scalar_lea.smem %s0, 39
  %s79 = sld [smem:[%s78]]
  %s80 = scalar_lea.smem %s0, 40
  %s81 = sld [smem:[%s80]]
  %s82 = scalar_lea.smem %s0, 41
  %s83 = sld [smem:[%s82]]
  %s84 = scalar_lea.smem %s0, 42
  %s85 = sld [smem:[%s84]]
  %s86 = scalar_lea.smem %s0, 43
  %s87 = sld [smem:[%s86]]
  %s88 = scalar_lea.smem %s0, 44
  %s89 = sld [smem:[%s88]]
  %s90 = scalar_lea.smem %s0, 45
  %s91 = sld [smem:[%s90]]
  %s92 = scalar_lea.smem %s0, 46
  %s93 = sld [smem:[%s92]]
  %s94 = scalar_lea.smem %s0, 47
  %s95 = sld [smem:[%s94]]
  %s96 = scalar_lea.smem %s0, 48
  %s97 = sld [smem:[%s96]]
  %s98 = scalar_lea.smem %s0, 49
  %s99 = sld [smem:[%s98]]
  %s100 = scalar_lea.smem %s0, 50
  %s101 = sld [smem:[%s100]]
  %s102 = scalar_lea.smem %s0, 51
  %s103 = sld [smem:[%s102]]
  %s104 = scalar_lea.smem %s0, 52
  %s105 = sld [smem:[%s104]]
  %s106 = scalar_lea.smem %s0, 53
  %s107 = sld [smem:[%s106]]
  %s108 = scalar_lea.smem %s0, 54
  %s109 = sld [smem:[%s108]]
  %s110 = scalar_lea.smem %s0, 55
  %s111 = sld [smem:[%s110]]
  %s112 = scalar_lea.smem %s0, 56
  %s113 = sld [smem:[%s112]]
  %s114 = scalar_lea.smem %s0, 57
  %s115 = sld [smem:[%s114]]
  %s116 = scalar_lea.smem %s0, 58
  %s117 = sld [smem:[%s116]]
  %s118 = scalar_lea.smem %s0, 59
  %s119 = sld [smem:[%s118]]
  %s120 = sld [smem:[#allocation0]]
  $region246: #{tpu_custom_call.1} parent=0
    _
  %s122 = ssub.s32 1, %s120
  %s123 = scalar_select 0, %s122, %s120
  $region1: #{tpu_custom_call.1} parent=0
    #allocation28 [shape = 'u8[1024]{0}', space=vmem, size = 0x400, scoped, tag = 'output window, operand 0, single buffered']
    #allocation29 [shape = 's32[1]{0}', space=sflag, size = 0x4, scoped, tag = 'scoped memory for tpu_custom_call.1']
    %124 = vsyncpa [#allocation29], 0
    // Predicated region
    $region2: #{tpu_custom_call.1} parent=1 // pred_check
      _
    $region3: #{tpu_custom_call.1} parent=1 // pred_check_branch
      %126 = sbr.rel (0) target = $region5
    $region4: #{tpu_custom_call.1} parent=1 // pred_region
      _
    $region5: #{tpu_custom_call.1} parent=1 // pred_fallthru
      _
    // Predicated region
    $region6: #{tpu_custom_call.1} parent=1 // pred_check
      _
    $region7: #{tpu_custom_call.1} parent=1 // pred_check_branch
      %128 = sbr.rel (0) target = $region9
    $region8: #{tpu_custom_call.1} parent=1 // pred_region
      _
    $region9: #{tpu_custom_call.1} parent=1 // pred_fallthru
      _
    // Predicated region
    $region10: #{tpu_custom_call.1} parent=1 // pred_check
      _
    $region11: #{tpu_custom_call.1} parent=1 // pred_check_branch
      %130 = sbr.rel (0) target = $region13
    $region12: #{tpu_custom_call.1} parent=1 // pred_region
      _
    $region13: #{tpu_custom_call.1} parent=1 // pred_fallthru
      _
    // Predicated region
    $region14: #{tpu_custom_call.1} parent=1 // pred_check
      _
    $region15: #{tpu_custom_call.1} parent=1 // pred_check_branch
      %132 = sbr.rel (0) target = $region17
    $region16: #{tpu_custom_call.1} parent=1 // pred_region
      _
    $region17: #{tpu_custom_call.1} parent=1 // pred_fallthru
      _
    // Predicated region
    $region18: #{tpu_custom_call.1} parent=1 // pred_check
      _
    $region19: #{tpu_custom_call.1} parent=1 // pred_check_branch
      %134 = sbr.rel (0) target = $region21
    $region20: #{tpu_custom_call.1} parent=1 // pred_region
      _
    $region21: #{tpu_custom_call.1} parent=1 // pred_fallthru
      _
    // Predicated region
    $region22: #{tpu_custom_call.1} parent=1 // pred_check
      _
    $region23: #{tpu_custom_call.1} parent=1 // pred_check_branch
      %136 = sbr.rel (0) target = $region25
    $region24: #{tpu_custom_call.1} parent=1 // pred_region
      _
    $region25: #{tpu_custom_call.1} parent=1 // pred_fallthru
      _
    // Predicated region
    $region26: #{tpu_custom_call.1} parent=1 // pred_check
      _
    $region27: #{tpu_custom_call.1} parent=1 // pred_check_branch
      %138 = sbr.rel (0) target = $region29
    $region28: #{tpu_custom_call.1} parent=1 // pred_region
      _
    $region29: #{tpu_custom_call.1} parent=1 // pred_fallthru
      _
    // Predicated region
    $region30: #{tpu_custom_call.1} parent=1 // pred_check
      _
    $region31: #{tpu_custom_call.1} parent=1 // pred_check_branch
      %140 = sbr.rel (0) target = $region33
    $region32: #{tpu_custom_call.1} parent=1 // pred_region
      _
    $region33: #{tpu_custom_call.1} parent=1 // pred_fallthru
      _
    // Predicated region
    $region34: #{tpu_custom_call.1} parent=1 // pred_check
      _
    $region35: #{tpu_custom_call.1} parent=1 // pred_check_branch
      %142 = sbr.rel (0) target = $region37
    $region36: #{tpu_custom_call.1} parent=1 // pred_region
      _
    $region37: #{tpu_custom_call.1} parent=1 // pred_fallthru
      _
    // Predicated region
    $region38: #{tpu_custom_call.1} parent=1 // pred_check
      _
    $region39: #{tpu_custom_call.1} parent=1 // pred_check_branch
      %144 = sbr.rel (0) target = $region41
    $region40: #{tpu_custom_call.1} parent=1 // pred_region
      _
    $region41: #{tpu_custom_call.1} parent=1 // pred_fallthru
      _
    // Predicated region
    $region42: #{tpu_custom_call.1} parent=1 // pred_check
      _
    $region43: #{tpu_custom_call.1} parent=1 // pred_check_branch
      %146 = sbr.rel (0) target = $region45
    $region44: #{tpu_custom_call.1} parent=1 // pred_region
      _
    $region45: #{tpu_custom_call.1} parent=1 // pred_fallthru
      _
    // Predicated region
    $region46: #{tpu_custom_call.1} parent=1 // pred_check
      _
    $region47: #{tpu_custom_call.1} parent=1 // pred_check_branch
      %148 = sbr.rel (0) target = $region49
    $region48: #{tpu_custom_call.1} parent=1 // pred_region
      _
    $region49: #{tpu_custom_call.1} parent=1 // pred_fallthru
      _
    // Predicated region
    $region50: #{tpu_custom_call.1} parent=1 // pred_check
      _
    $region51: #{tpu_custom_call.1} parent=1 // pred_check_branch
      %150 = sbr.rel (0) target = $region53
    $region52: #{tpu_custom_call.1} parent=1 // pred_region
      _
    $region53: #{tpu_custom_call.1} parent=1 // pred_fallthru
      _
    // Predicated region
    $region54: #{tpu_custom_call.1} parent=1 // pred_check
      _
    $region55: #{tpu_custom_call.1} parent=1 // pred_check_branch
      %152 = sbr.rel (0) target = $region57
    $region56: #{tpu_custom_call.1} parent=1 // pred_region
      _
    $region57: #{tpu_custom_call.1} parent=1 // pred_fallthru
      _
    // Predicated region
    $region58: #{tpu_custom_call.1} parent=1 // pred_check
      _
    $region59: #{tpu_custom_call.1} parent=1 // pred_check_branch
      %154 = sbr.rel (0) target = $region61
    $region60: #{tpu_custom_call.1} parent=1 // pred_region
      _
    $region61: #{tpu_custom_call.1} parent=1 // pred_fallthru
      _
    // Predicated region
    $region62: #{tpu_custom_call.1} parent=1 // pred_check
      _
    $region63: #{tpu_custom_call.1} parent=1 // pred_check_branch
      %156 = sbr.rel (0) target = $region65
    $region64: #{tpu_custom_call.1} parent=1 // pred_region
      _
    $region65: #{tpu_custom_call.1} parent=1 // pred_fallthru
      _
    // Predicated region
    $region66: #{tpu_custom_call.1} parent=1 // pred_check
      _
    $region67: #{tpu_custom_call.1} parent=1 // pred_check_branch
      %158 = sbr.rel (0) target = $region69
    $region68: #{tpu_custom_call.1} parent=1 // pred_region
      _
    $region69: #{tpu_custom_call.1} parent=1 // pred_fallthru
      _
    // Predicated region
    $region70: #{tpu_custom_call.1} parent=1 // pred_check
      _
    $region71: #{tpu_custom_call.1} parent=1 // pred_check_branch
      %160 = sbr.rel (0) target = $region73
    $region72: #{tpu_custom_call.1} parent=1 // pred_region
      _
    $region73: #{tpu_custom_call.1} parent=1 // pred_fallthru
      _
    // Predicated region
    $region74: #{tpu_custom_call.1} parent=1 // pred_check
      _
    $region75: #{tpu_custom_call.1} parent=1 // pred_check_branch
      %162 = sbr.rel (0) target = $region77
    $region76: #{tpu_custom_call.1} parent=1 // pred_region
      _
    $region77: #{tpu_custom_call.1} parent=1 // pred_fallthru
      _
    // Predicated region
    $region78: #{tpu_custom_call.1} parent=1 // pred_check
      _
    $region79: #{tpu_custom_call.1} parent=1 // pred_check_branch
      %164 = sbr.rel (0) target = $region81
    $region80: #{tpu_custom_call.1} parent=1 // pred_region
      _
    $region81: #{tpu_custom_call.1} parent=1 // pred_fallthru
      _
    // Predicated region
    $region82: #{tpu_custom_call.1} parent=1 // pred_check
      _
    $region83: #{tpu_custom_call.1} parent=1 // pred_check_branch
      %166 = sbr.rel (0) target = $region85
    $region84: #{tpu_custom_call.1} parent=1 // pred_region
      _
    $region85: #{tpu_custom_call.1} parent=1 // pred_fallthru
      _
    // Predicated region
    $region86: #{tpu_custom_call.1} parent=1 // pred_check
      _
    $region87: #{tpu_custom_call.1} parent=1 // pred_check_branch
      %168 = sbr.rel (0) target = $region89
    $region88: #{tpu_custom_call.1} parent=1 // pred_region
      _
    $region89: #{tpu_custom_call.1} parent=1 // pred_fallthru
      _
    // Predicated region
    $region90: #{tpu_custom_call.1} parent=1 // pred_check
      _
    $region91: #{tpu_custom_call.1} parent=1 // pred_check_branch
      %170 = sbr.rel (0) target = $region93
    $region92: #{tpu_custom_call.1} parent=1 // pred_region
      _
    $region93: #{tpu_custom_call.1} parent=1 // pred_fallthru
      _
    // Predicated region
    $region94: #{tpu_custom_call.1} parent=1 // pred_check
      _
    $region95: #{tpu_custom_call.1} parent=1 // pred_check_branch
      %172 = sbr.rel (0) target = $region97
    $region96: #{tpu_custom_call.1} parent=1 // pred_region
      _
    $region97: #{tpu_custom_call.1} parent=1 // pred_fallthru
      _
    // Predicated region
    $region98: #{tpu_custom_call.1} parent=1 // pred_check
      _
    $region99: #{tpu_custom_call.1} parent=1 // pred_check_branch
      %174 = sbr.rel (0) target = $region101
    $region100: #{tpu_custom_call.1} parent=1 // pred_region
      _
    $region101: #{tpu_custom_call.1} parent=1 // pred_fallthru
      _
    // Predicated region
    $region102: #{tpu_custom_call.1} parent=1 // pred_check
      _
    $region103: #{tpu_custom_call.1} parent=1 // pred_check_branch
      %176 = sbr.rel (0) target = $region105
    $region104: #{tpu_custom_call.1} parent=1 // pred_region
      _
    $region105: #{tpu_custom_call.1} parent=1 // pred_fallthru
      _
    // Predicated region
    $region106: #{tpu_custom_call.1} parent=1 // pred_check
      _
    $region107: #{tpu_custom_call.1} parent=1 // pred_check_branch
      %178 = sbr.rel (0) target = $region109
    $region108: #{tpu_custom_call.1} parent=1 // pred_region
      _
    $region109: #{tpu_custom_call.1} parent=1 // pred_fallthru
      _
    // Predicated region
    $region110: #{tpu_custom_call.1} parent=1 // pred_check
      _
    $region111: #{tpu_custom_call.1} parent=1 // pred_check_branch
      %180 = sbr.rel (0) target = $region113
    $region112: #{tpu_custom_call.1} parent=1 // pred_region
      _
    $region113: #{tpu_custom_call.1} parent=1 // pred_fallthru
      _
    // Predicated region
    $region114: #{tpu_custom_call.1} parent=1 // pred_check
      _
    $region115: #{tpu_custom_call.1} parent=1 // pred_check_branch
      %182 = sbr.rel (0) target = $region117
    $region116: #{tpu_custom_call.1} parent=1 // pred_region
      _
    $region117: #{tpu_custom_call.1} parent=1 // pred_fallthru
      _
    // Predicated region
    $region118: #{tpu_custom_call.1} parent=1 // pred_check
      _
    $region119: #{tpu_custom_call.1} parent=1 // pred_check_branch
      %184 = sbr.rel (0) target = $region121
    $region120: #{tpu_custom_call.1} parent=1 // pred_region
      _
    $region121: #{tpu_custom_call.1} parent=1 // pred_fallthru
      _
    // Predicated region
    $region122: #{tpu_custom_call.1} parent=1 // pred_check
      _
    $region123: #{tpu_custom_call.1} parent=1 // pred_check_branch
      %186 = sbr.rel (0) target = $region125
    $region124: #{tpu_custom_call.1} parent=1 // pred_region
      _
    $region125: #{tpu_custom_call.1} parent=1 // pred_fallthru
      _
    // Predicated region
    $region126: #{tpu_custom_call.1} parent=1 // pred_check
      _
    $region127: #{tpu_custom_call.1} parent=1 // pred_check_branch
      %188 = sbr.rel (0) target = $region129
    $region128: #{tpu_custom_call.1} parent=1 // pred_region
      _
    $region129: #{tpu_custom_call.1} parent=1 // pred_fallthru
      _
    // Predicated region
    $region130: #{tpu_custom_call.1} parent=1 // pred_check
      _
    $region131: #{tpu_custom_call.1} parent=1 // pred_check_branch
      %190 = sbr.rel (0) target = $region133
    $region132: #{tpu_custom_call.1} parent=1 // pred_region
      _
    $region133: #{tpu_custom_call.1} parent=1 // pred_fallthru
      _
    // Predicated region
    $region134: #{tpu_custom_call.1} parent=1 // pred_check
      _
    $region135: #{tpu_custom_call.1} parent=1 // pred_check_branch
      %192 = sbr.rel (0) target = $region137
    $region136: #{tpu_custom_call.1} parent=1 // pred_region
      _
    $region137: #{tpu_custom_call.1} parent=1 // pred_fallthru
      _
    // Predicated region
    $region138: #{tpu_custom_call.1} parent=1 // pred_check
      _
    $region139: #{tpu_custom_call.1} parent=1 // pred_check_branch
      %194 = sbr.rel (0) target = $region141
    $region140: #{tpu_custom_call.1} parent=1 // pred_region
      _
    $region141: #{tpu_custom_call.1} parent=1 // pred_fallthru
      _
    // Predicated region
    $region142: #{tpu_custom_call.1} parent=1 // pred_check
      _
    $region143: #{tpu_custom_call.1} parent=1 // pred_check_branch
      %196 = sbr.rel (0) target = $region145
    $region144: #{tpu_custom_call.1} parent=1 // pred_region
      _
    $region145: #{tpu_custom_call.1} parent=1 // pred_fallthru
      _
    // Predicated region
    $region146: #{tpu_custom_call.1} parent=1 // pred_check
      _
    $region147: #{tpu_custom_call.1} parent=1 // pred_check_branch
      %198 = sbr.rel (0) target = $region149
    $region148: #{tpu_custom_call.1} parent=1 // pred_region
      _
    $region149: #{tpu_custom_call.1} parent=1 // pred_fallthru
      _
    // Predicated region
    $region150: #{tpu_custom_call.1} parent=1 // pred_check
      _
    $region151: #{tpu_custom_call.1} parent=1 // pred_check_branch
      %200 = sbr.rel (0) target = $region153
    $region152: #{tpu_custom_call.1} parent=1 // pred_region
      _
    $region153: #{tpu_custom_call.1} parent=1 // pred_fallthru
      _
    // Predicated region
    $region154: #{tpu_custom_call.1} parent=1 // pred_check
      _
    $region155: #{tpu_custom_call.1} parent=1 // pred_check_branch
      %202 = sbr.rel (0) target = $region157
    $region156: #{tpu_custom_call.1} parent=1 // pred_region
      _
    $region157: #{tpu_custom_call.1} parent=1 // pred_fallthru
      _
    // Predicated region
    $region158: #{tpu_custom_call.1} parent=1 // pred_check
      _
    $region159: #{tpu_custom_call.1} parent=1 // pred_check_branch
      %204 = sbr.rel (0) target = $region161
    $region160: #{tpu_custom_call.1} parent=1 // pred_region
      _
    $region161: #{tpu_custom_call.1} parent=1 // pred_fallthru
      _
    // Predicated region
    $region162: #{tpu_custom_call.1} parent=1 // pred_check
      _
    $region163: #{tpu_custom_call.1} parent=1 // pred_check_branch
      %206 = sbr.rel (0) target = $region165
    $region164: #{tpu_custom_call.1} parent=1 // pred_region
      _
    $region165: #{tpu_custom_call.1} parent=1 // pred_fallthru
      _
    // Predicated region
    $region166: #{tpu_custom_call.1} parent=1 // pred_check
      _
    $region167: #{tpu_custom_call.1} parent=1 // pred_check_branch
      %208 = sbr.rel (0) target = $region169
    $region168: #{tpu_custom_call.1} parent=1 // pred_region
      _
    $region169: #{tpu_custom_call.1} parent=1 // pred_fallthru
      _
    // Predicated region
    $region170: #{tpu_custom_call.1} parent=1 // pred_check
      _
    $region171: #{tpu_custom_call.1} parent=1 // pred_check_branch
      %210 = sbr.rel (0) target = $region173
    $region172: #{tpu_custom_call.1} parent=1 // pred_region
      _
    $region173: #{tpu_custom_call.1} parent=1 // pred_fallthru
      _
    // Predicated region
    $region174: #{tpu_custom_call.1} parent=1 // pred_check
      _
    $region175: #{tpu_custom_call.1} parent=1 // pred_check_branch
      %212 = sbr.rel (0) target = $region177
    $region176: #{tpu_custom_call.1} parent=1 // pred_region
      _
    $region177: #{tpu_custom_call.1} parent=1 // pred_fallthru
      _
    // Predicated region
    $region178: #{tpu_custom_call.1} parent=1 // pred_check
      _
    $region179: #{tpu_custom_call.1} parent=1 // pred_check_branch
      %214 = sbr.rel (0) target = $region181
    $region180: #{tpu_custom_call.1} parent=1 // pred_region
      _
    $region181: #{tpu_custom_call.1} parent=1 // pred_fallthru
      _
    // Predicated region
    $region182: #{tpu_custom_call.1} parent=1 // pred_check
      _
    $region183: #{tpu_custom_call.1} parent=1 // pred_check_branch
      %216 = sbr.rel (0) target = $region185
    $region184: #{tpu_custom_call.1} parent=1 // pred_region
      _
    $region185: #{tpu_custom_call.1} parent=1 // pred_fallthru
      _
    // Predicated region
    $region186: #{tpu_custom_call.1} parent=1 // pred_check
      _
    $region187: #{tpu_custom_call.1} parent=1 // pred_check_branch
      %218 = sbr.rel (0) target = $region189
    $region188: #{tpu_custom_call.1} parent=1 // pred_region
      _
    $region189: #{tpu_custom_call.1} parent=1 // pred_fallthru
      _
    // Predicated region
    $region190: #{tpu_custom_call.1} parent=1 // pred_check
      _
    $region191: #{tpu_custom_call.1} parent=1 // pred_check_branch
      %220 = sbr.rel (0) target = $region193
    $region192: #{tpu_custom_call.1} parent=1 // pred_region
      _
    $region193: #{tpu_custom_call.1} parent=1 // pred_fallthru
      _
    // Predicated region
    $region194: #{tpu_custom_call.1} parent=1 // pred_check
      _
    $region195: #{tpu_custom_call.1} parent=1 // pred_check_branch
      %222 = sbr.rel (0) target = $region197
    $region196: #{tpu_custom_call.1} parent=1 // pred_region
      _
    $region197: #{tpu_custom_call.1} parent=1 // pred_fallthru
      _
    // Predicated region
    $region198: #{tpu_custom_call.1} parent=1 // pred_check
      _
    $region199: #{tpu_custom_call.1} parent=1 // pred_check_branch
      %224 = sbr.rel (0) target = $region201
    $region200: #{tpu_custom_call.1} parent=1 // pred_region
      _
    $region201: #{tpu_custom_call.1} parent=1 // pred_fallthru
      _
    // Predicated region
    $region202: #{tpu_custom_call.1} parent=1 // pred_check
      _
    $region203: #{tpu_custom_call.1} parent=1 // pred_check_branch
      %226 = sbr.rel (0) target = $region205
    $region204: #{tpu_custom_call.1} parent=1 // pred_region
      _
    $region205: #{tpu_custom_call.1} parent=1 // pred_fallthru
      _
    // Predicated region
    $region206: #{tpu_custom_call.1} parent=1 // pred_check
      _
    $region207: #{tpu_custom_call.1} parent=1 // pred_check_branch
      %228 = sbr.rel (0) target = $region209
    $region208: #{tpu_custom_call.1} parent=1 // pred_region
      _
    $region209: #{tpu_custom_call.1} parent=1 // pred_fallthru
      _
    // Predicated region
    $region210: #{tpu_custom_call.1} parent=1 // pred_check
      _
    $region211: #{tpu_custom_call.1} parent=1 // pred_check_branch
      %230 = sbr.rel (0) target = $region213
    $region212: #{tpu_custom_call.1} parent=1 // pred_region
      _
    $region213: #{tpu_custom_call.1} parent=1 // pred_fallthru
      _
    // Predicated region
    $region214: #{tpu_custom_call.1} parent=1 // pred_check
      _
    $region215: #{tpu_custom_call.1} parent=1 // pred_check_branch
      %232 = sbr.rel (0) target = $region217
    $region216: #{tpu_custom_call.1} parent=1 // pred_region
      _
    $region217: #{tpu_custom_call.1} parent=1 // pred_fallthru
      _
    // Predicated region
    $region218: #{tpu_custom_call.1} parent=1 // pred_check
      _
    $region219: #{tpu_custom_call.1} parent=1 // pred_check_branch
      %234 = sbr.rel (0) target = $region221
    $region220: #{tpu_custom_call.1} parent=1 // pred_region
      _
    $region221: #{tpu_custom_call.1} parent=1 // pred_fallthru
      _
    // Predicated region
    $region222: #{tpu_custom_call.1} parent=1 // pred_check
      _
    $region223: #{tpu_custom_call.1} parent=1 // pred_check_branch
      %236 = sbr.rel (0) target = $region225
    $region224: #{tpu_custom_call.1} parent=1 // pred_region
      _
    $region225: #{tpu_custom_call.1} parent=1 // pred_fallthru
      _
    // Predicated region
    $region226: #{tpu_custom_call.1} parent=1 // pred_check
      _
    $region227: #{tpu_custom_call.1} parent=1 // pred_check_branch
      %238 = sbr.rel (0) target = $region229
    $region228: #{tpu_custom_call.1} parent=1 // pred_region
      _
    $region229: #{tpu_custom_call.1} parent=1 // pred_fallthru
      _
    // Predicated region
    $region230: #{tpu_custom_call.1} parent=1 // pred_check
      _
    $region231: #{tpu_custom_call.1} parent=1 // pred_check_branch
      %240 = sbr.rel (0) target = $region233
    $region232: #{tpu_custom_call.1} parent=1 // pred_region
      _
    $region233: #{tpu_custom_call.1} parent=1 // pred_fallthru
      _
    // Predicated region
    $region234: #{tpu_custom_call.1} parent=1 // pred_check
      _
    $region235: #{tpu_custom_call.1} parent=1 // pred_check_branch
      %242 = sbr.rel (0) target = $region237
    $region236: #{tpu_custom_call.1} parent=1 // pred_region
      _
    $region237: #{tpu_custom_call.1} parent=1 // pred_fallthru
      _
    %vm244 = vcmask 64512
    %245 = vst.msk [vmem:[#allocation2] sm:$0xff] %vm244, 0.0
    %246 = vst.msk [vmem:[#allocation2 + $0x8] sm:$0xff] %vm244, 0.0
    %247 = vst.msk [vmem:[#allocation2 + $0x10] sm:$0xff] %vm244, 0.0
    %248 = vst.msk [vmem:[#allocation2 + $0x18] sm:$0xff] %vm244, 0.0
    %249 = vst.msk [vmem:[#allocation2 + $0x20] sm:$0xff] %vm244, 0.0
    %250 = vst.msk [vmem:[#allocation2 + $0x28] sm:$0xff] %vm244, 0.0
    %251 = vst.msk [vmem:[#allocation2 + $0x30] sm:$0xff] %vm244, 0.0
    %252 = vst.msk [vmem:[#allocation2 + $0x38] sm:$0xff] %vm244, 0.0
    %vm253 = vcmask 60416
    %254 = vst.msk [vmem:[#allocation2 + $0x40] sm:$0xf] %vm253, 0.0
    %255 = vst.msk [vmem:[#allocation3] sm:$0xff] %vm244, 0.0
    %256 = vst.msk [vmem:[#allocation3 + $0x8] sm:$0xff] %vm244, 0.0
    %257 = vst.msk [vmem:[#allocation3 + $0x10] sm:$0xff] %vm244, 0.0
    %258 = vst.msk [vmem:[#allocation3 + $0x18] sm:$0xff] %vm244, 0.0
    %259 = vst.msk [vmem:[#allocation3 + $0x20] sm:$0xf] %vm253, 0.0
    %260 = vst.msk [vmem:[#allocation4] sm:$0xff] %vm244, 0.0
    %261 = vst.msk [vmem:[#allocation4 + $0x8] sm:$0xff] %vm244, 0.0
    %262 = vst.msk [vmem:[#allocation4 + $0x10] sm:$0xff] %vm244, 0.0
    %263 = vst.msk [vmem:[#allocation4 + $0x18] sm:$0xff] %vm244, 0.0
    %264 = vst.msk [vmem:[#allocation4 + $0x20] sm:$0xff] %vm244, 0.0
    %265 = vst.msk [vmem:[#allocation5] sm:$0xff] %vm244, 0.0
    %266 = vst.msk [vmem:[#allocation5 + $0x8] sm:$0xff] %vm244, 0.0
    %267 = vst.msk [vmem:[#allocation5 + $0x10] sm:$0xff] %vm244, 0.0
    %268 = vst.msk [vmem:[#allocation5 + $0x18] sm:$0xff] %vm244, 0.0
    %269 = vst.msk [vmem:[#allocation5 + $0x20] sm:$0xff] %vm244, 0.0
    %270 = vst.msk [vmem:[#allocation5 + $0x28] sm:$0xff] %vm244, 0.0
    %271 = vst.msk [vmem:[#allocation6] sm:$0xff] %vm244, 0.0
    %272 = vst.msk [vmem:[#allocation6 + $0x8] sm:$0xff] %vm244, 0.0
    %273 = vst.msk [vmem:[#allocation6 + $0x10] sm:$0xff] %vm244, 0.0
    %274 = vst.msk [vmem:[#allocation6 + $0x18] sm:$0xff] %vm244, 0.0
    %275 = vst.msk [vmem:[#allocation6 + $0x20] sm:$0xf] %vm253, 0.0
    %276 = vst.msk [vmem:[#allocation7] sm:$0xff] %vm244, 0.0
    %277 = vst.msk [vmem:[#allocation7 + $0x8] sm:$0xff] %vm244, 0.0
    %278 = vst.msk [vmem:[#allocation7 + $0x10] sm:$0xff] %vm244, 0.0
    %279 = vst.msk [vmem:[#allocation7 + $0x18] sm:$0xff] %vm244, 0.0
    %280 = vst.msk [vmem:[#allocation7 + $0x20] sm:$0xff] %vm244, 0.0
    %281 = vst.msk [vmem:[#allocation8] sm:$0xff] %vm244, 0.0
    %282 = vst.msk [vmem:[#allocation8 + $0x8] sm:$0xff] %vm244, 0.0
    %283 = vst.msk [vmem:[#allocation8 + $0x10] sm:$0xff] %vm244, 0.0
    %284 = vst.msk [vmem:[#allocation8 + $0x18] sm:$0xff] %vm244, 0.0
    %285 = vst.msk [vmem:[#allocation8 + $0x20] sm:$0xff] %vm244, 0.0
    %286 = vst.msk [vmem:[#allocation8 + $0x28] sm:$0xff] %vm244, 0.0
    %287 = vst.msk [vmem:[#allocation9] sm:$0xff] %vm244, 0.0
    %288 = vst.msk [vmem:[#allocation9 + $0x8] sm:$0xff] %vm244, 0.0
    %289 = vst.msk [vmem:[#allocation9 + $0x10] sm:$0xff] %vm244, 0.0
    %290 = vst.msk [vmem:[#allocation9 + $0x18] sm:$0xff] %vm244, 0.0
    %291 = vst.msk [vmem:[#allocation9 + $0x20] sm:$0xf] %vm253, 0.0
    %vm292 = vcmask 130048
    %293 = vst.msk [vmem:[#allocation10] sm:$0xff] %vm292, 0.0
    %294 = vst.msk [vmem:[#allocation10 + $0x8] sm:$0xff] %vm292, 0.0
    %295 = vst.msk [vmem:[#allocation10 + $0x10] sm:$0xff] %vm292, 0.0
    %296 = vst.msk [vmem:[#allocation10 + $0x18] sm:$0xff] %vm292, 0.0
    %297 = vst.msk [vmem:[#allocation10 + $0x20] sm:$0xff] %vm292, 0.0
    %298 = vst.msk [vmem:[#allocation11] sm:$0xff] %vm292, 0.0
    %299 = vst.msk [vmem:[#allocation11 + $0x8] sm:$0xff] %vm292, 0.0
    %300 = vst.msk [vmem:[#allocation11 + $0x10] sm:$0xff] %vm292, 0.0
    %301 = vst.msk [vmem:[#allocation11 + $0x18] sm:$0xff] %vm292, 0.0
    %302 = vst.msk [vmem:[#allocation12] sm:$0xff] %vm292, 0.0
    %303 = vst.msk [vmem:[#allocation12 + $0x8] sm:$0xff] %vm292, 0.0
    %vm304 = vcmask 125952
    %305 = vst.msk [vmem:[#allocation12 + $0x10] sm:$0xf] %vm304, 0.0
    %306 = vst.msk [vmem:[#allocation13] sm:$0xff] %vm292, 0.0
    %307 = vst.msk [vmem:[#allocation13 + $0x8] sm:$0xff] %vm292, 0.0
    %308 = vst.msk [vmem:[#allocation13 + $0x10] sm:$0xff] %vm292, 0.0
    %309 = vst.msk [vmem:[#allocation14] sm:$0xff] %vm292, 0.0
    %310 = vst.msk [vmem:[#allocation14 + $0x8] sm:$0xff] %vm292, 0.0
    %311 = vst.msk [vmem:[#allocation14 + $0x10] sm:$0xff] %vm292, 0.0
    %312 = vst.msk [vmem:[#allocation14 + $0x18] sm:$0xff] %vm292, 0.0
    %313 = vst.msk [vmem:[#allocation15] sm:$0xff] %vm292, 0.0
    %314 = vst.msk [vmem:[#allocation15 + $0x8] sm:$0xff] %vm292, 0.0
    %315 = vst.msk [vmem:[#allocation15 + $0x10] sm:$0xf] %vm304, 0.0
    %vm316 = vcmask 261120
    %317 = vst.msk [vmem:[#allocation16] sm:$0xff] %vm316, 0.0
    %318 = vst.msk [vmem:[#allocation16 + $0x8] sm:$0xff] %vm316, 0.0
    %319 = vst.msk [vmem:[#allocation16 + $0x10] sm:$0xff] %vm316, 0.0
    %320 = vst.msk [vmem:[#allocation17] sm:$0xff] %vm316, 0.0
    %321 = vst.msk [vmem:[#allocation17 + $0x8] sm:$0xff] %vm316, 0.0
    %322 = vst.msk [vmem:[#allocation17 + $0x10] sm:$0xff] %vm316, 0.0
    %323 = vst.msk [vmem:[#allocation18] sm:$0xff] %vm316, 0.0
    %vm324 = vcmask 257024
    %325 = vst.msk [vmem:[#allocation18 + $0x8] sm:$0xf] %vm324, 0.0
    %326 = vst.msk [vmem:[#allocation19] sm:$0xff] %vm316, 0.0
    %327 = vst.msk [vmem:[#allocation19 + $0x8] sm:$0xff] %vm316, 0.0
    %328 = vst.msk [vmem:[#allocation20] sm:$0xff] %vm316, 0.0
    %329 = vst.msk [vmem:[#allocation20 + $0x8] sm:$0xff] %vm316, 0.0
    %330 = vst.msk [vmem:[#allocation20 + $0x10] sm:$0xff] %vm316, 0.0
    %331 = vst.msk [vmem:[#allocation21] sm:$0xff] %vm316, 0.0
    %332 = vst.msk [vmem:[#allocation21 + $0x8] sm:$0xf] %vm324, 0.0
    %vm333 = vcmask 523264
    %334 = vst.msk [vmem:[#allocation22] sm:$0xff] %vm333, 0.0
    %335 = vst.msk [vmem:[#allocation22 + $0x8] sm:$0xff] %vm333, 0.0
    %336 = vst.msk [vmem:[#allocation23] sm:$0xff] %vm333, 0.0
    %337 = vst.msk [vmem:[#allocation23 + $0x8] sm:$0xff] %vm333, 0.0
    %vm338 = vcmask 519168
    %339 = vst.msk [vmem:[#allocation23 + $0x10] sm:$0xf] %vm338, 0.0
    %340 = vst.msk [vmem:[#allocation24] sm:$0xff] %vm333, 0.0
    %341 = vst.msk [vmem:[#allocation25] sm:$0xff] %vm333, 0.0
    %342 = vst.msk [vmem:[#allocation25 + $0x8] sm:$0xf] %vm338, 0.0
    %343 = vst.msk [vmem:[#allocation26] sm:$0xff] %vm333, 0.0
    %344 = vst.msk [vmem:[#allocation26 + $0x8] sm:$0xff] %vm333, 0.0
    %345 = vst.msk [vmem:[#allocation26 + $0x10] sm:$0xf] %vm338, 0.0
    %v346 = vld [vmem:[%s1] sm:$0xff]
    %v347 = vld [vmem:[%s1 + $0x8] sm:$0xff]
    %v348 = vld [vmem:[%s1 + $0x10] sm:$0xff]
    %v349 = vld [vmem:[%s1 + $0x18] sm:$0xff]
    %v350 = vld [vmem:[%s1 + $0x20] sm:$0xff]
    %v351 = vld [vmem:[%s1 + $0x28] sm:$0xff]
    %v352 = vld [vmem:[%s1 + $0x30] sm:$0xff]
    %v353 = vld [vmem:[%s1 + $0x38] sm:$0xff]
    %v354 = vld [vmem:[%s1 + $0x40] sm:$0x7f]
    %v355 = vpack.c.bf16 %v347, %v346
    %v356 = vpack.c.bf16 %v349, %v348
    %v357 = vpack.c.bf16 %v351, %v350
    %v358 = vpack.c.bf16 %v353, %v352
    %v359 = vpack.c.bf16 %v354, %v354
    %v360 = vld [vmem:[%s3] sm:$0xf]
    %v361 = vld [vmem:[%s1 + $0x1] sm:$0xff]
    %v362 = vld [vmem:[%s1 + $0x9] sm:$0xff]
    %v363 = vld [vmem:[%s1 + $0x11] sm:$0xff]
    %v364 = vld [vmem:[%s1 + $0x19] sm:$0xff]
    %v365 = vld [vmem:[%s1 + $0x21] sm:$0xff]
    %v366 = vld [vmem:[%s1 + $0x29] sm:$0xff]
    %v367 = vld [vmem:[%s1 + $0x31] sm:$0xff]
    %v368 = vld [vmem:[%s1 + $0x39] sm:$0xff]
    %v369 = vld [vmem:[%s1 + $0x41] sm:$0x7f]
    %v370 = vpack.c.bf16 %v362, %v361
    %v371 = vpack.c.bf16 %v364, %v363
    %v372 = vpack.c.bf16 %v366, %v365
    %v373 = vpack.c.bf16 %v368, %v367
    %v374 = vpack.c.bf16 %v369, %v369
    %v375 = vld [vmem:[%s3 + $0x4] sm:$0xf]
    %v377 = vsel %vm244, %v370, 0
    %v380 = vsel %vm244, %v371, 0
    %v383 = vsel %vm244, %v372, 0
    %v386 = vsel %vm244, %v373, 0
    %v389 = vsel %vm244, %v374, 0
    %vm391 = vcmask 1043456
    %v393 = vsel %vm391, %v375, 0
    %395 = vmatpush.bf16.msra.mxu0 0
    %396 = vmatpush.bf16.msra.mxu0 0
    %397 = vmatpush.bf16.msra.mxu0 0
    %398 = vmatpush.bf16.msra.mxu0 0
    %399 = vmatpush.bf16.msra.mxu0 0
    %400 = vmatpush.bf16.msra.mxu0 0
    %401 = vmatpush.bf16.msra.mxu0 0
    %402 = vmatpush.bf16.msra.mxu0 %v393
    %403 = vmatmul.bf16.gmra.mxu0 %v377
    %v404 = vpop.f32.mrf.mxu0
    %v405 = vadd.f32 0.0, %v404
    %v406 = vpop.f32.mrf.mxu0
    %v407 = vadd.f32 0.0, %v406
    %408 = vmatmul.bf16.gmra.mxu0 %v380
    %v409 = vpop.f32.mrf.mxu0
    %v410 = vadd.f32 0.0, %v409
    %v411 = vpop.f32.mrf.mxu0
    %v412 = vadd.f32 0.0, %v411
    %413 = vmatmul.bf16.gmra.mxu0 %v383
    %v414 = vpop.f32.mrf.mxu0
    %v415 = vadd.f32 0.0, %v414
    %v416 = vpop.f32.mrf.mxu0
    %v417 = vadd.f32 0.0, %v416
    %418 = vmatmul.bf16.gmra.mxu0 %v386
    %v419 = vpop.f32.mrf.mxu0
    %v420 = vadd.f32 0.0, %v419
    %v421 = vpop.f32.mrf.mxu0
    %v422 = vadd.f32 0.0, %v421
    %423 = vmatmul.bf16.gmra.mxu0 %v389
    %v424 = vpop.f32.mrf.mxu0
    %v425 = vadd.f32 0.0, %v424
    %v426 = vpop.f32.mrf.mxu0
    %427 = vdwg.mxu0
    %v429 = vsel %vm244, %v355, 0
    %v432 = vsel %vm244, %v356, 0
    %v435 = vsel %vm244, %v357, 0
    %v438 = vsel %vm244, %v358, 0
    %v441 = vsel %vm244, %v359, 0
    %v444 = vsel %vm391, %v360, 0
    %446 = vmatpush.bf16.msra.mxu0 0
    %447 = vmatpush.bf16.msra.mxu0 0
    %448 = vmatpush.bf16.msra.mxu0 0
    %449 = vmatpush.bf16.msra.mxu0 0
    %450 = vmatpush.bf16.msra.mxu0 0
    %451 = vmatpush.bf16.msra.mxu0 0
    %452 = vmatpush.bf16.msra.mxu0 0
    %453 = vmatpush.bf16.msra.mxu0 %v444
    %454 = vmatmul.bf16.gmra.mxu0 %v429
    %v455 = vpop.f32.mrf.mxu0
    %v456 = vadd.f32 %v405, %v455
    %v457 = vpop.f32.mrf.mxu0
    %v458 = vadd.f32 %v407, %v457
    %459 = vmatmul.bf16.gmra.mxu0 %v432
    %v460 = vpop.f32.mrf.mxu0
    %v461 = vadd.f32 %v410, %v460
    %v462 = vpop.f32.mrf.mxu0
    %v463 = vadd.f32 %v412, %v462
    %464 = vmatmul.bf16.gmra.mxu0 %v435
    %v465 = vpop.f32.mrf.mxu0
    %v466 = vadd.f32 %v415, %v465
    %v467 = vpop.f32.mrf.mxu0
    %v468 = vadd.f32 %v417, %v467
    %469 = vmatmul.bf16.gmra.mxu0 %v438
    %v470 = vpop.f32.mrf.mxu0
    %v471 = vadd.f32 %v420, %v470
    %v472 = vpop.f32.mrf.mxu0
    %v473 = vadd.f32 %v422, %v472
    %474 = vmatmul.bf16.gmra.mxu0 %v441
    %v475 = vpop.f32.mrf.mxu0
    %v476 = vadd.f32 %v425, %v475
    %v477 = vpop.f32.mrf.mxu0
    %478 = vdwg.mxu0
    %v479 = vld [vmem:[%s1 + $0x2] sm:$0xff]
    %v480 = vld [vmem:[%s1 + $0xa] sm:$0xff]
    %v481 = vld [vmem:[%s1 + $0x12] sm:$0xff]
    %v482 = vld [vmem:[%s1 + $0x1a] sm:$0xff]
    %v483 = vld [vmem:[%s1 + $0x22] sm:$0xff]
    %v484 = vld [vmem:[%s1 + $0x2a] sm:$0xff]
    %v485 = vld [vmem:[%s1 + $0x32] sm:$0xff]
    %v486 = vld [vmem:[%s1 + $0x3a] sm:$0xff]
    %v487 = vld [vmem:[%s1 + $0x42] sm:$0x7f]
    %v488 = vpack.c.bf16 %v480, %v479
    %v489 = vpack.c.bf16 %v482, %v481
    %v490 = vpack.c.bf16 %v484, %v483
    %v491 = vpack.c.bf16 %v486, %v485
    %v492 = vpack.c.bf16 %v487, %v487
    %v493 = vld [vmem:[%s3 + $0x8] sm:$0xf]
    %v495 = vsel %vm244, %v488, 0
    %v498 = vsel %vm244, %v489, 0
    %v501 = vsel %vm244, %v490, 0
    %v504 = vsel %vm244, %v491, 0
    %v507 = vsel %vm244, %v492, 0
    %v510 = vsel %vm391, %v493, 0
    %512 = vmatpush.bf16.msra.mxu0 0
    %513 = vmatpush.bf16.msra.mxu0 0
    %514 = vmatpush.bf16.msra.mxu0 0
    %515 = vmatpush.bf16.msra.mxu0 0
    %516 = vmatpush.bf16.msra.mxu0 0
    %517 = vmatpush.bf16.msra.mxu0 0
    %518 = vmatpush.bf16.msra.mxu0 0
    %519 = vmatpush.bf16.msra.mxu0 %v510
    %520 = vmatmul.bf16.gmra.mxu0 %v495
    %v521 = vpop.f32.mrf.mxu0
    %v522 = vadd.f32 0.0, %v521
    %v523 = vpop.f32.mrf.mxu0
    %v524 = vadd.f32 0.0, %v523
    %525 = vmatmul.bf16.gmra.mxu0 %v498
    %v526 = vpop.f32.mrf.mxu0
    %v527 = vadd.f32 0.0, %v526
    %v528 = vpop.f32.mrf.mxu0
    %v529 = vadd.f32 0.0, %v528
    %530 = vmatmul.bf16.gmra.mxu0 %v501
    %v531 = vpop.f32.mrf.mxu0
    %v532 = vadd.f32 0.0, %v531
    %v533 = vpop.f32.mrf.mxu0
    %v534 = vadd.f32 0.0, %v533
    %535 = vmatmul.bf16.gmra.mxu0 %v504
    %v536 = vpop.f32.mrf.mxu0
    %v537 = vadd.f32 0.0, %v536
    %v538 = vpop.f32.mrf.mxu0
    %v539 = vadd.f32 0.0, %v538
    %540 = vmatmul.bf16.gmra.mxu0 %v507
    %v541 = vpop.f32.mrf.mxu0
    %v542 = vadd.f32 0.0, %v541
    %v543 = vpop.f32.mrf.mxu0
    %544 = vdwg.mxu0
    %v545 = vadd.f32 %v456, %v522
    %v546 = vadd.f32 %v458, %v524
    %v547 = vadd.f32 %v461, %v527
    %v548 = vadd.f32 %v463, %v529
    %v549 = vadd.f32 %v466, %v532
    %v550 = vadd.f32 %v468, %v534
    %v551 = vadd.f32 %v471, %v537
    %v552 = vadd.f32 %v473, %v539
    %v553 = vadd.f32 %v476, %v542
    %v554 = vld [vmem:[%s1 + $0x3] sm:$0xff]
    %v555 = vld [vmem:[%s1 + $0xb] sm:$0xff]
    %v556 = vld [vmem:[%s1 + $0x13] sm:$0xff]
    %v557 = vld [vmem:[%s1 + $0x1b] sm:$0xff]
    %v558 = vld [vmem:[%s1 + $0x23] sm:$0xff]
    %v559 = vld [vmem:[%s1 + $0x2b] sm:$0xff]
    %v560 = vld [vmem:[%s1 + $0x33] sm:$0xff]
    %v561 = vld [vmem:[%s1 + $0x3b] sm:$0xff]
    %v562 = vld [vmem:[%s1 + $0x43] sm:$0x7f]
    %v563 = vpack.c.bf16 %v555, %v554
    %v564 = vpack.c.bf16 %v557, %v556
    %v565 = vpack.c.bf16 %v559, %v558
    %v566 = vpack.c.bf16 %v561, %v560
    %v567 = vpack.c.bf16 %v562, %v562
    %v568 = vld [vmem:[%s3 + $0xc] sm:$0xf]
    %v570 = vsel %vm244, %v563, 0
    %v573 = vsel %vm244, %v564, 0
    %v576 = vsel %vm244, %v565, 0
    %v579 = vsel %vm244, %v566, 0
    %v582 = vsel %vm244, %v567, 0
    %v585 = vsel %vm391, %v568, 0
    %587 = vmatpush.bf16.msra.mxu0 0
    %588 = vmatpush.bf16.msra.mxu0 0
    %589 = vmatpush.bf16.msra.mxu0 0
    %590 = vmatpush.bf16.msra.mxu0 0
    %591 = vmatpush.bf16.msra.mxu0 0
    %592 = vmatpush.bf16.msra.mxu0 0
    %593 = vmatpush.bf16.msra.mxu0 0
    %594 = vmatpush.bf16.msra.mxu0 %v585
    %595 = vmatmul.bf16.gmra.mxu0 %v570
    %v596 = vpop.f32.mrf.mxu0
    %v597 = vadd.f32 0.0, %v596
    %v598 = vpop.f32.mrf.mxu0
    %v599 = vadd.f32 0.0, %v598
    %600 = vmatmul.bf16.gmra.mxu0 %v573
    %v601 = vpop.f32.mrf.mxu0
    %v602 = vadd.f32 0.0, %v601
    %v603 = vpop.f32.mrf.mxu0
    %v604 = vadd.f32 0.0, %v603
    %605 = vmatmul.bf16.gmra.mxu0 %v576
    %v606 = vpop.f32.mrf.mxu0
    %v607 = vadd.f32 0.0, %v606
    %v608 = vpop.f32.mrf.mxu0
    %v609 = vadd.f32 0.0, %v608
    %610 = vmatmul.bf16.gmra.mxu0 %v579
    %v611 = vpop.f32.mrf.mxu0
    %v612 = vadd.f32 0.0, %v611
    %v613 = vpop.f32.mrf.mxu0
    %v614 = vadd.f32 0.0, %v613
    %615 = vmatmul.bf16.gmra.mxu0 %v582
    %v616 = vpop.f32.mrf.mxu0
    %v617 = vadd.f32 0.0, %v616
    %v618 = vpop.f32.mrf.mxu0
    %619 = vdwg.mxu0
    %v620 = vadd.f32 %v545, %v597
    %v621 = vadd.f32 %v546, %v599
    %v622 = vadd.f32 %v547, %v602
    %v623 = vadd.f32 %v548, %v604
    %v624 = vadd.f32 %v549, %v607
    %v625 = vadd.f32 %v550, %v609
    %v626 = vadd.f32 %v551, %v612
    %v627 = vadd.f32 %v552, %v614
    %v628 = vadd.f32 %v553, %v617
    %v629 = vld [vmem:[%s1 + $0x4] sm:$0xff]
    %v630 = vld [vmem:[%s1 + $0xc] sm:$0xff]
    %v631 = vld [vmem:[%s1 + $0x14] sm:$0xff]
    %v632 = vld [vmem:[%s1 + $0x1c] sm:$0xff]
    %v633 = vld [vmem:[%s1 + $0x24] sm:$0xff]
    %v634 = vld [vmem:[%s1 + $0x2c] sm:$0xff]
    %v635 = vld [vmem:[%s1 + $0x34] sm:$0xff]
    %v636 = vld [vmem:[%s1 + $0x3c] sm:$0xff]
    %v637 = vld [vmem:[%s1 + $0x44] sm:$0x7f]
    %v638 = vpack.c.bf16 %v630, %v629
    %v639 = vpack.c.bf16 %v632, %v631
    %v640 = vpack.c.bf16 %v634, %v633
    %v641 = vpack.c.bf16 %v636, %v635
    %v642 = vpack.c.bf16 %v637, %v637
    %v643 = vld [vmem:[%s3 + $0x10] sm:$0xf]
    %v645 = vsel %vm244, %v638, 0
    %v648 = vsel %vm244, %v639, 0
    %v651 = vsel %vm244, %v640, 0
    %v654 = vsel %vm244, %v641, 0
    %v657 = vsel %vm244, %v642, 0
    %v660 = vsel %vm391, %v643, 0
    %662 = vmatpush.bf16.msra.mxu0 0
    %663 = vmatpush.bf16.msra.mxu0 0
    %664 = vmatpush.bf16.msra.mxu0 0
    %665 = vmatpush.bf16.msra.mxu0 0
    %666 = vmatpush.bf16.msra.mxu0 0
    %667 = vmatpush.bf16.msra.mxu0 0
    %668 = vmatpush.bf16.msra.mxu0 0
    %669 = vmatpush.bf16.msra.mxu0 %v660
    %670 = vmatmul.bf16.gmra.mxu0 %v645
    %v671 = vpop.f32.mrf.mxu0
    %v672 = vadd.f32 0.0, %v671
    %v673 = vpop.f32.mrf.mxu0
    %v674 = vadd.f32 0.0, %v673
    %675 = vmatmul.bf16.gmra.mxu0 %v648
    %v676 = vpop.f32.mrf.mxu0
    %v677 = vadd.f32 0.0, %v676
    %v678 = vpop.f32.mrf.mxu0
    %v679 = vadd.f32 0.0, %v678
    %680 = vmatmul.bf16.gmra.mxu0 %v651
    %v681 = vpop.f32.mrf.mxu0
    %v682 = vadd.f32 0.0, %v681
    %v683 = vpop.f32.mrf.mxu0
    %v684 = vadd.f32 0.0, %v683
    %685 = vmatmul.bf16.gmra.mxu0 %v654
    %v686 = vpop.f32.mrf.mxu0
    %v687 = vadd.f32 0.0, %v686
    %v688 = vpop.f32.mrf.mxu0
    %v689 = vadd.f32 0.0, %v688
    %690 = vmatmul.bf16.gmra.mxu0 %v657
    %v691 = vpop.f32.mrf.mxu0
    %v692 = vadd.f32 0.0, %v691
    %v693 = vpop.f32.mrf.mxu0
    %694 = vdwg.mxu0
    %v695 = vadd.f32 %v620, %v672
    %v696 = vadd.f32 %v621, %v674
    %v697 = vadd.f32 %v622, %v677
    %v698 = vadd.f32 %v623, %v679
    %v699 = vadd.f32 %v624, %v682
    %v700 = vadd.f32 %v625, %v684
    %v701 = vadd.f32 %v626, %v687
    %v702 = vadd.f32 %v627, %v689
    %v703 = vadd.f32 %v628, %v692
    %v704 = vld [vmem:[%s1 + $0x5] sm:$0xff]
    %v705 = vld [vmem:[%s1 + $0xd] sm:$0xff]
    %v706 = vld [vmem:[%s1 + $0x15] sm:$0xff]
    %v707 = vld [vmem:[%s1 + $0x1d] sm:$0xff]
    %v708 = vld [vmem:[%s1 + $0x25] sm:$0xff]
    %v709 = vld [vmem:[%s1 + $0x2d] sm:$0xff]
    %v710 = vld [vmem:[%s1 + $0x35] sm:$0xff]
    %v711 = vld [vmem:[%s1 + $0x3d] sm:$0xff]
    %v712 = vld [vmem:[%s1 + $0x45] sm:$0x7f]
    %v713 = vpack.c.bf16 %v705, %v704
    %v714 = vpack.c.bf16 %v707, %v706
    %v715 = vpack.c.bf16 %v709, %v708
    %v716 = vpack.c.bf16 %v711, %v710
    %v717 = vpack.c.bf16 %v712, %v712
    %v718 = vld [vmem:[%s3 + $0x14] sm:$0xf]
    %v720 = vsel %vm244, %v713, 0
    %v723 = vsel %vm244, %v714, 0
    %v726 = vsel %vm244, %v715, 0
    %v729 = vsel %vm244, %v716, 0
    %v732 = vsel %vm244, %v717, 0
    %v735 = vsel %vm391, %v718, 0
    %737 = vmatpush.bf16.msra.mxu0 0
    %738 = vmatpush.bf16.msra.mxu0 0
    %739 = vmatpush.bf16.msra.mxu0 0
    %740 = vmatpush.bf16.msra.mxu0 0
    %741 = vmatpush.bf16.msra.mxu0 0
    %742 = vmatpush.bf16.msra.mxu0 0
    %743 = vmatpush.bf16.msra.mxu0 0
    %744 = vmatpush.bf16.msra.mxu0 %v735
    %745 = vmatmul.bf16.gmra.mxu0 %v720
    %v746 = vpop.f32.mrf.mxu0
    %v747 = vadd.f32 0.0, %v746
    %v748 = vpop.f32.mrf.mxu0
    %v749 = vadd.f32 0.0, %v748
    %750 = vmatmul.bf16.gmra.mxu0 %v723
    %v751 = vpop.f32.mrf.mxu0
    %v752 = vadd.f32 0.0, %v751
    %v753 = vpop.f32.mrf.mxu0
    %v754 = vadd.f32 0.0, %v753
    %755 = vmatmul.bf16.gmra.mxu0 %v726
    %v756 = vpop.f32.mrf.mxu0
    %v757 = vadd.f32 0.0, %v756
    %v758 = vpop.f32.mrf.mxu0
    %v759 = vadd.f32 0.0, %v758
    %760 = vmatmul.bf16.gmra.mxu0 %v729
    %v761 = vpop.f32.mrf.mxu0
    %v762 = vadd.f32 0.0, %v761
    %v763 = vpop.f32.mrf.mxu0
    %v764 = vadd.f32 0.0, %v763
    %765 = vmatmul.bf16.gmra.mxu0 %v732
    %v766 = vpop.f32.mrf.mxu0
    %v767 = vadd.f32 0.0, %v766
    %v768 = vpop.f32.mrf.mxu0
    %769 = vdwg.mxu0
    %v770 = vadd.f32 %v695, %v747
    %v771 = vadd.f32 %v696, %v749
    %v772 = vadd.f32 %v697, %v752
    %v773 = vadd.f32 %v698, %v754
    %v774 = vadd.f32 %v699, %v757
    %v775 = vadd.f32 %v700, %v759
    %v776 = vadd.f32 %v701, %v762
    %v777 = vadd.f32 %v702, %v764
    %v778 = vadd.f32 %v703, %v767
    %v779 = vld [vmem:[%s1 + $0x6] sm:$0xff]
    %v780 = vld [vmem:[%s1 + $0xe] sm:$0xff]
    %v781 = vld [vmem:[%s1 + $0x16] sm:$0xff]
    %v782 = vld [vmem:[%s1 + $0x1e] sm:$0xff]
    %v783 = vld [vmem:[%s1 + $0x26] sm:$0xff]
    %v784 = vld [vmem:[%s1 + $0x2e] sm:$0xff]
    %v785 = vld [vmem:[%s1 + $0x36] sm:$0xff]
    %v786 = vld [vmem:[%s1 + $0x3e] sm:$0xff]
    %v787 = vld [vmem:[%s1 + $0x46] sm:$0x7f]
    %v788 = vpack.c.bf16 %v780, %v779
    %v789 = vpack.c.bf16 %v782, %v781
    %v790 = vpack.c.bf16 %v784, %v783
    %v791 = vpack.c.bf16 %v786, %v785
    %v792 = vpack.c.bf16 %v787, %v787
    %v793 = vld [vmem:[%s3 + $0x18] sm:$0xf]
    %v795 = vsel %vm244, %v788, 0
    %v798 = vsel %vm244, %v789, 0
    %v801 = vsel %vm244, %v790, 0
    %v804 = vsel %vm244, %v791, 0
    %v807 = vsel %vm244, %v792, 0
    %v810 = vsel %vm391, %v793, 0
    %812 = vmatpush.bf16.msra.mxu0 0
    %813 = vmatpush.bf16.msra.mxu0 0
    %814 = vmatpush.bf16.msra.mxu0 0
    %815 = vmatpush.bf16.msra.mxu0 0
    %816 = vmatpush.bf16.msra.mxu0 0
    %817 = vmatpush.bf16.msra.mxu0 0
    %818 = vmatpush.bf16.msra.mxu0 0
    %819 = vmatpush.bf16.msra.mxu0 %v810
    %820 = vmatmul.bf16.gmra.mxu0 %v795
    %v821 = vpop.f32.mrf.mxu0
    %v822 = vadd.f32 0.0, %v821
    %v823 = vpop.f32.mrf.mxu0
    %v824 = vadd.f32 0.0, %v823
    %825 = vmatmul.bf16.gmra.mxu0 %v798
    %v826 = vpop.f32.mrf.mxu0
    %v827 = vadd.f32 0.0, %v826
    %v828 = vpop.f32.mrf.mxu0
    %v829 = vadd.f32 0.0, %v828
    %830 = vmatmul.bf16.gmra.mxu0 %v801
    %v831 = vpop.f32.mrf.mxu0
    %v832 = vadd.f32 0.0, %v831
    %v833 = vpop.f32.mrf.mxu0
    %v834 = vadd.f32 0.0, %v833
    %835 = vmatmul.bf16.gmra.mxu0 %v804
    %v836 = vpop.f32.mrf.mxu0
    %v837 = vadd.f32 0.0, %v836
    %v838 = vpop.f32.mrf.mxu0
    %v839 = vadd.f32 0.0, %v838
    %840 = vmatmul.bf16.gmra.mxu0 %v807
    %v841 = vpop.f32.mrf.mxu0
    %v842 = vadd.f32 0.0, %v841
    %v843 = vpop.f32.mrf.mxu0
    %844 = vdwg.mxu0
    %v845 = vadd.f32 %v770, %v822
    %v846 = vadd.f32 %v771, %v824
    %v847 = vadd.f32 %v772, %v827
    %v848 = vadd.f32 %v773, %v829
    %v849 = vadd.f32 %v774, %v832
    %v850 = vadd.f32 %v775, %v834
    %v851 = vadd.f32 %v776, %v837
    %v852 = vadd.f32 %v777, %v839
    %v853 = vadd.f32 %v778, %v842
    %v854 = vld [vmem:[%s1 + $0x7] sm:$0xff]
    %v855 = vld [vmem:[%s1 + $0xf] sm:$0xff]
    %v856 = vld [vmem:[%s1 + $0x17] sm:$0xff]
    %v857 = vld [vmem:[%s1 + $0x1f] sm:$0xff]
    %v858 = vld [vmem:[%s1 + $0x27] sm:$0xff]
    %v859 = vld [vmem:[%s1 + $0x2f] sm:$0xff]
    %v860 = vld [vmem:[%s1 + $0x37] sm:$0xff]
    %v861 = vld [vmem:[%s1 + $0x3f] sm:$0xff]
    %v862 = vld [vmem:[%s1 + $0x47] sm:$0x7f]
    %v863 = vpack.c.bf16 %v855, %v854
    %v864 = vpack.c.bf16 %v857, %v856
    %v865 = vpack.c.bf16 %v859, %v858
    %v866 = vpack.c.bf16 %v861, %v860
    %v867 = vpack.c.bf16 %v862, %v862
    %v868 = vld [vmem:[%s3 + $0x1c] sm:$0xf]
    %v870 = vsel %vm244, %v863, 0
    %v873 = vsel %vm244, %v864, 0
    %v876 = vsel %vm244, %v865, 0
    %v879 = vsel %vm244, %v866, 0
    %v882 = vsel %vm244, %v867, 0
    %v885 = vsel %vm391, %v868, 0
    %887 = vmatpush.bf16.msra.mxu0 0
    %888 = vmatpush.bf16.msra.mxu0 0
    %889 = vmatpush.bf16.msra.mxu0 0
    %890 = vmatpush.bf16.msra.mxu0 0
    %891 = vmatpush.bf16.msra.mxu0 0
    %892 = vmatpush.bf16.msra.mxu0 0
    %893 = vmatpush.bf16.msra.mxu0 0
    %894 = vmatpush.bf16.msra.mxu0 %v885
    %895 = vmatmul.bf16.gmra.mxu0 %v870
    %v896 = vpop.f32.mrf.mxu0
    %v897 = vadd.f32 0.0, %v896
    %v898 = vpop.f32.mrf.mxu0
    %v899 = vadd.f32 0.0, %v898
    %900 = vmatmul.bf16.gmra.mxu0 %v873
    %v901 = vpop.f32.mrf.mxu0
    %v902 = vadd.f32 0.0, %v901
    %v903 = vpop.f32.mrf.mxu0
    %v904 = vadd.f32 0.0, %v903
    %905 = vmatmul.bf16.gmra.mxu0 %v876
    %v906 = vpop.f32.mrf.mxu0
    %v907 = vadd.f32 0.0, %v906
    %v908 = vpop.f32.mrf.mxu0
    %v909 = vadd.f32 0.0, %v908
    %910 = vmatmul.bf16.gmra.mxu0 %v879
    %v911 = vpop.f32.mrf.mxu0
    %v912 = vadd.f32 0.0, %v911
    %v913 = vpop.f32.mrf.mxu0
    %v914 = vadd.f32 0.0, %v913
    %915 = vmatmul.bf16.gmra.mxu0 %v882
    %v916 = vpop.f32.mrf.mxu0
    %v917 = vadd.f32 0.0, %v916
    %v918 = vpop.f32.mrf.mxu0
    %919 = vdwg.mxu0
    %v920 = vadd.f32 %v845, %v897
    %v921 = vadd.f32 %v846, %v899
    %v922 = vadd.f32 %v847, %v902
    %v923 = vadd.f32 %v848, %v904
    %v924 = vadd.f32 %v849, %v907
    %v925 = vadd.f32 %v850, %v909
    %v926 = vadd.f32 %v851, %v912
    %v927 = vadd.f32 %v852, %v914
    %v928 = vadd.f32 %v853, %v917
    %v929 = vld [vmem:[%s5] sm:$0x1]
    %v931 = vperm.slane %v929, 0
    %v933 = vadd.f32 %v920, %v931
    %v934 = vadd.f32 %v921, %v931
    %v935 = vadd.f32 %v922, %v931
    %v936 = vadd.f32 %v923, %v931
    %v937 = vadd.f32 %v924, %v931
    %v938 = vadd.f32 %v925, %v931
    %v939 = vadd.f32 %v926, %v931
    %v940 = vadd.f32 %v927, %v931
    %v941 = vadd.f32 %v928, %v931
    %v942 = vmax.f32 %v933, 0.0
    %v943 = vmax.f32 %v934, 0.0
    %v944 = vmax.f32 %v935, 0.0
    %v945 = vmax.f32 %v936, 0.0
    %v946 = vmax.f32 %v937, 0.0
    %v947 = vmax.f32 %v938, 0.0
    %v948 = vmax.f32 %v939, 0.0
    %v949 = vmax.f32 %v940, 0.0
    %v950 = vmax.f32 %v941, 0.0
    %951 = vst.msk [vmem:[#allocation2 + $0x1] sm:$0xff] %vm244, %v942
    %952 = vst.msk [vmem:[#allocation2 + $0x9] sm:$0xff] %vm244, %v943
    %953 = vst.msk [vmem:[#allocation2 + $0x11] sm:$0xff] %vm244, %v944
    %954 = vst.msk [vmem:[#allocation2 + $0x19] sm:$0xff] %vm244, %v945
    %vm955 = vcmask 64519
    %956 = vst.msk [vmem:[#allocation2 + $0x1c] sm:$0x80] %vm955, %v946
    %957 = vst.msk [vmem:[#allocation2 + $0x24] sm:$0xff] %vm244, %v947
    %958 = vst.msk [vmem:[#allocation2 + $0x2c] sm:$0xff] %vm244, %v948
    %959 = vst.msk [vmem:[#allocation2 + $0x34] sm:$0xff] %vm244, %v949
    %vm960 = vcmask 63488
    %961 = vst.msk [vmem:[#allocation2 + $0x3c] sm:$0x7f] %vm960, %v950
    %v962 = vld [vmem:[#allocation2] ss:$2 sm:$0xff]
    %s963 = scalar_lea.vmem [#allocation2], 16
    %v964 = vld [vmem:[%s963] ss:$2 sm:$0xff]
    %s965 = scalar_lea.vmem [#allocation2], 32
    %v966 = vld [vmem:[%s965] ss:$2 sm:$0xff]
    %s967 = scalar_lea.vmem [#allocation2], 48
    %v968 = vld [vmem:[%s967] ss:$2 sm:$0xff]
    %s969 = scalar_lea.vmem [#allocation2], 64
    %v970 = vld [vmem:[%s969] ss:$2 sm:$0x1]
    %s971 = scalar_lea.vmem [#allocation2], 1
    %v972 = vld [vmem:[%s971] ss:$2 sm:$0xff]
    %s973 = scalar_lea.vmem [#allocation2], 17
    %v974 = vld [vmem:[%s973] ss:$2 sm:$0xff]
    %s975 = scalar_lea.vmem [#allocation2], 33
    %v976 = vld [vmem:[%s975] ss:$2 sm:$0xff]
    %s977 = scalar_lea.vmem [#allocation2], 49
    %v978 = vld [vmem:[%s977] ss:$2 sm:$0xff]
    %s979 = scalar_lea.vmem [#allocation2], 65
    %v980 = vld [vmem:[%s979] ss:$2 sm:$0x1]
    %v981 = vmax.f32 %v962, %v972
    %v982 = vmax.f32 %v964, %v974
    %v983 = vmax.f32 %v966, %v976
    %v984 = vmax.f32 %v968, %v978
    %v985 = vmax.f32 %v970, %v980
    %s986 = scalar_lea.vmem [#allocation2], 2
    %v987 = vld [vmem:[%s986] ss:$2 sm:$0xff]
    %s988 = scalar_lea.vmem [#allocation2], 18
    %v989 = vld [vmem:[%s988] ss:$2 sm:$0xff]
    %s990 = scalar_lea.vmem [#allocation2], 34
    %v991 = vld [vmem:[%s990] ss:$2 sm:$0xff]
    %s992 = scalar_lea.vmem [#allocation2], 50
    %v993 = vld [vmem:[%s992] ss:$2 sm:$0xff]
    %s994 = scalar_lea.vmem [#allocation2], 66
    %v995 = vld [vmem:[%s994] ss:$2 sm:$0x1]
    %v996 = vmax.f32 %v981, %v987
    %v997 = vmax.f32 %v982, %v989
    %v998 = vmax.f32 %v983, %v991
    %v999 = vmax.f32 %v984, %v993
    %v1000 = vmax.f32 %v985, %v995
    %1001 = vst.msk [vmem:[#allocation3 + $0x1] sm:$0xff] %vm244, %v996
    %1002 = vst.msk [vmem:[#allocation3 + $0x9] sm:$0xff] %vm244, %v997
    %vm1003 = vcmask 64513
    %1004 = vst.msk [vmem:[#allocation3 + $0x12] sm:$0xfe] %vm1003, %v998
    %1005 = vst.msk [vmem:[#allocation3 + $0x1a] sm:$0xff] %vm244, %v999
    %vm1006 = vcmask 57344
    %1007 = vst.msk [vmem:[#allocation3 + $0x22] sm:$0x1] %vm1006, %v1000
    %v1008 = vld [vmem:[#allocation3] sm:$0xff]
    %v1009 = vld [vmem:[#allocation3 + $0x8] sm:$0xff]
    %v1010 = vld [vmem:[#allocation3 + $0x10] sm:$0xff]
    %v1011 = vld [vmem:[#allocation3 + $0x18] sm:$0xff]
    %v1012 = vld [vmem:[#allocation3 + $0x20] sm:$0x3]
    %v1013 = vpack.c.bf16 %v1009, %v1008
    %v1014 = vpack.c.bf16 %v1011, %v1010
    %v1015 = vpack.c.bf16 %v1012, %v1012
    %v1016 = vld [vmem:[%s7] sm:$0xf]
    %v1017 = vld [vmem:[#allocation3 + $0x1] sm:$0xff]
    %v1018 = vld [vmem:[#allocation3 + $0x9] sm:$0xff]
    %v1019 = vld [vmem:[#allocation3 + $0x11] sm:$0xff]
    %v1020 = vld [vmem:[#allocation3 + $0x19] sm:$0xff]
    %v1021 = vld [vmem:[#allocation3 + $0x21] sm:$0x3]
    %v1022 = vpack.c.bf16 %v1018, %v1017
    %v1023 = vpack.c.bf16 %v1020, %v1019
    %v1024 = vpack.c.bf16 %v1021, %v1021
    %v1025 = vld [vmem:[%s7 + $0x4] sm:$0xf]
    %v1027 = vsel %vm244, %v1022, 0
    %v1030 = vsel %vm244, %v1023, 0
    %v1033 = vsel %vm244, %v1024, 0
    %v1036 = vsel %vm391, %v1025, 0
    %1038 = vmatpush.bf16.msra.mxu0 0
    %1039 = vmatpush.bf16.msra.mxu0 0
    %1040 = vmatpush.bf16.msra.mxu0 0
    %1041 = vmatpush.bf16.msra.mxu0 0
    %1042 = vmatpush.bf16.msra.mxu0 0
    %1043 = vmatpush.bf16.msra.mxu0 0
    %1044 = vmatpush.bf16.msra.mxu0 0
    %1045 = vmatpush.bf16.msra.mxu0 %v1036
    %1046 = vmatmul.bf16.gmra.mxu0 %v1027
    %v1047 = vpop.f32.mrf.mxu0
    %v1048 = vadd.f32 0.0, %v1047
    %v1049 = vpop.f32.mrf.mxu0
    %v1050 = vadd.f32 0.0, %v1049
    %1051 = vmatmul.bf16.gmra.mxu0 %v1030
    %v1052 = vpop.f32.mrf.mxu0
    %v1053 = vadd.f32 0.0, %v1052
    %v1054 = vpop.f32.mrf.mxu0
    %v1055 = vadd.f32 0.0, %v1054
    %1056 = vmatmul.bf16.gmra.mxu0 %v1033
    %v1057 = vpop.f32.mrf.mxu0
    %v1058 = vadd.f32 0.0, %v1057
    %v1059 = vpop.f32.mrf.mxu0
    %1060 = vdwg.mxu0
    %v1062 = vsel %vm244, %v1013, 0
    %v1065 = vsel %vm244, %v1014, 0
    %v1068 = vsel %vm244, %v1015, 0
    %v1071 = vsel %vm391, %v1016, 0
    %1073 = vmatpush.bf16.msra.mxu0 0
    %1074 = vmatpush.bf16.msra.mxu0 0
    %1075 = vmatpush.bf16.msra.mxu0 0
    %1076 = vmatpush.bf16.msra.mxu0 0
    %1077 = vmatpush.bf16.msra.mxu0 0
    %1078 = vmatpush.bf16.msra.mxu0 0
    %1079 = vmatpush.bf16.msra.mxu0 0
    %1080 = vmatpush.bf16.msra.mxu0 %v1071
    %1081 = vmatmul.bf16.gmra.mxu0 %v1062
    %v1082 = vpop.f32.mrf.mxu0
    %v1083 = vadd.f32 %v1048, %v1082
    %v1084 = vpop.f32.mrf.mxu0
    %v1085 = vadd.f32 %v1050, %v1084
    %1086 = vmatmul.bf16.gmra.mxu0 %v1065
    %v1087 = vpop.f32.mrf.mxu0
    %v1088 = vadd.f32 %v1053, %v1087
    %v1089 = vpop.f32.mrf.mxu0
    %v1090 = vadd.f32 %v1055, %v1089
    %1091 = vmatmul.bf16.gmra.mxu0 %v1068
    %v1092 = vpop.f32.mrf.mxu0
    %v1093 = vadd.f32 %v1058, %v1092
    %v1094 = vpop.f32.mrf.mxu0
    %1095 = vdwg.mxu0
    %v1096 = vld [vmem:[#allocation3 + $0x2] sm:$0xff]
    %v1097 = vld [vmem:[#allocation3 + $0xa] sm:$0xff]
    %v1098 = vld [vmem:[#allocation3 + $0x12] sm:$0xff]
    %v1099 = vld [vmem:[#allocation3 + $0x1a] sm:$0xff]
    %v1100 = vld [vmem:[#allocation3 + $0x22] sm:$0x3]
    %v1101 = vpack.c.bf16 %v1097, %v1096
    %v1102 = vpack.c.bf16 %v1099, %v1098
    %v1103 = vpack.c.bf16 %v1100, %v1100
    %v1104 = vld [vmem:[%s7 + $0x8] sm:$0xf]
    %v1106 = vsel %vm244, %v1101, 0
    %v1109 = vsel %vm244, %v1102, 0
    %v1112 = vsel %vm244, %v1103, 0
    %v1115 = vsel %vm391, %v1104, 0
    %1117 = vmatpush.bf16.msra.mxu0 0
    %1118 = vmatpush.bf16.msra.mxu0 0
    %1119 = vmatpush.bf16.msra.mxu0 0
    %1120 = vmatpush.bf16.msra.mxu0 0
    %1121 = vmatpush.bf16.msra.mxu0 0
    %1122 = vmatpush.bf16.msra.mxu0 0
    %1123 = vmatpush.bf16.msra.mxu0 0
    %1124 = vmatpush.bf16.msra.mxu0 %v1115
    %1125 = vmatmul.bf16.gmra.mxu0 %v1106
    %v1126 = vpop.f32.mrf.mxu0
    %v1127 = vadd.f32 0.0, %v1126
    %v1128 = vpop.f32.mrf.mxu0
    %v1129 = vadd.f32 0.0, %v1128
    %1130 = vmatmul.bf16.gmra.mxu0 %v1109
    %v1131 = vpop.f32.mrf.mxu0
    %v1132 = vadd.f32 0.0, %v1131
    %v1133 = vpop.f32.mrf.mxu0
    %v1134 = vadd.f32 0.0, %v1133
    %1135 = vmatmul.bf16.gmra.mxu0 %v1112
    %v1136 = vpop.f32.mrf.mxu0
    %v1137 = vadd.f32 0.0, %v1136
    %v1138 = vpop.f32.mrf.mxu0
    %1139 = vdwg.mxu0
    %v1140 = vadd.f32 %v1083, %v1127
    %v1141 = vadd.f32 %v1085, %v1129
    %v1142 = vadd.f32 %v1088, %v1132
    %v1143 = vadd.f32 %v1090, %v1134
    %v1144 = vadd.f32 %v1093, %v1137
    %v1145 = vld [vmem:[%s9] sm:$0x1]
    %v1147 = vperm.slane %v1145, 0
    %v1149 = vadd.f32 %v1140, %v1147
    %v1150 = vadd.f32 %v1141, %v1147
    %v1151 = vadd.f32 %v1142, %v1147
    %v1152 = vadd.f32 %v1143, %v1147
    %v1153 = vadd.f32 %v1144, %v1147
    %v1154 = vmax.f32 %v1149, 0.0
    %v1155 = vmax.f32 %v1150, 0.0
    %v1156 = vmax.f32 %v1151, 0.0
    %v1157 = vmax.f32 %v1152, 0.0
    %v1158 = vmax.f32 %v1153, 0.0
    %1159 = vst.msk [vmem:[#allocation4 + $0x2] sm:$0xff] %vm244, %v1154
    %1160 = vst.msk [vmem:[#allocation4 + $0xa] sm:$0xff] %vm244, %v1155
    %vm1161 = vcmask 64514
    %1162 = vst.msk [vmem:[#allocation4 + $0x14] sm:$0xfc] %vm1161, %v1156
    %1163 = vst.msk [vmem:[#allocation4 + $0x1c] sm:$0xff] %vm244, %v1157
    %vm1164 = vcmask 58368
    %1165 = vst.msk [vmem:[#allocation4 + $0x24] sm:$0x3] %vm1164, %v1158
    %v1166 = vld [vmem:[#allocation4] sm:$0xff]
    %v1167 = vld [vmem:[#allocation4 + $0x8] sm:$0xff]
    %v1168 = vld [vmem:[#allocation4 + $0x10] sm:$0xff]
    %v1169 = vld [vmem:[#allocation4 + $0x18] sm:$0xff]
    %v1170 = vld [vmem:[#allocation4 + $0x20] sm:$0xf]
    %v1171 = vpack.c.bf16 %v1167, %v1166
    %v1172 = vpack.c.bf16 %v1169, %v1168
    %v1173 = vpack.c.bf16 %v1170, %v1170
    %v1174 = vld [vmem:[%s11] sm:$0xf]
    %v1175 = vld [vmem:[#allocation4 + $0x2] sm:$0xff]
    %v1176 = vld [vmem:[#allocation4 + $0xa] sm:$0xff]
    %v1177 = vld [vmem:[#allocation4 + $0x12] sm:$0xff]
    %v1178 = vld [vmem:[#allocation4 + $0x1a] sm:$0xff]
    %v1179 = vld [vmem:[#allocation4 + $0x22] sm:$0xf]
    %v1180 = vpack.c.bf16 %v1176, %v1175
    %v1181 = vpack.c.bf16 %v1178, %v1177
    %v1182 = vpack.c.bf16 %v1179, %v1179
    %v1183 = vld [vmem:[%s11 + $0x4] sm:$0xf]
    %v1185 = vsel %vm244, %v1180, 0
    %v1188 = vsel %vm244, %v1181, 0
    %v1191 = vsel %vm244, %v1182, 0
    %v1194 = vsel %vm391, %v1183, 0
    %1196 = vmatpush.bf16.msra.mxu0 0
    %1197 = vmatpush.bf16.msra.mxu0 0
    %1198 = vmatpush.bf16.msra.mxu0 0
    %1199 = vmatpush.bf16.msra.mxu0 0
    %1200 = vmatpush.bf16.msra.mxu0 0
    %1201 = vmatpush.bf16.msra.mxu0 0
    %1202 = vmatpush.bf16.msra.mxu0 0
    %1203 = vmatpush.bf16.msra.mxu0 %v1194
    %1204 = vmatmul.bf16.gmra.mxu0 %v1185
    %v1205 = vpop.f32.mrf.mxu0
    %v1206 = vadd.f32 0.0, %v1205
    %v1207 = vpop.f32.mrf.mxu0
    %v1208 = vadd.f32 0.0, %v1207
    %1209 = vmatmul.bf16.gmra.mxu0 %v1188
    %v1210 = vpop.f32.mrf.mxu0
    %v1211 = vadd.f32 0.0, %v1210
    %v1212 = vpop.f32.mrf.mxu0
    %v1213 = vadd.f32 0.0, %v1212
    %1214 = vmatmul.bf16.gmra.mxu0 %v1191
    %v1215 = vpop.f32.mrf.mxu0
    %v1216 = vadd.f32 0.0, %v1215
    %v1217 = vpop.f32.mrf.mxu0
    %1218 = vdwg.mxu0
    %v1220 = vsel %vm244, %v1171, 0
    %v1223 = vsel %vm244, %v1172, 0
    %v1226 = vsel %vm244, %v1173, 0
    %v1229 = vsel %vm391, %v1174, 0
    %1231 = vmatpush.bf16.msra.mxu0 0
    %1232 = vmatpush.bf16.msra.mxu0 0
    %1233 = vmatpush.bf16.msra.mxu0 0
    %1234 = vmatpush.bf16.msra.mxu0 0
    %1235 = vmatpush.bf16.msra.mxu0 0
    %1236 = vmatpush.bf16.msra.mxu0 0
    %1237 = vmatpush.bf16.msra.mxu0 0
    %1238 = vmatpush.bf16.msra.mxu0 %v1229
    %1239 = vmatmul.bf16.gmra.mxu0 %v1220
    %v1240 = vpop.f32.mrf.mxu0
    %v1241 = vadd.f32 %v1206, %v1240
    %v1242 = vpop.f32.mrf.mxu0
    %v1243 = vadd.f32 %v1208, %v1242
    %1244 = vmatmul.bf16.gmra.mxu0 %v1223
    %v1245 = vpop.f32.mrf.mxu0
    %v1246 = vadd.f32 %v1211, %v1245
    %v1247 = vpop.f32.mrf.mxu0
    %v1248 = vadd.f32 %v1213, %v1247
    %1249 = vmatmul.bf16.gmra.mxu0 %v1226
    %v1250 = vpop.f32.mrf.mxu0
    %v1251 = vadd.f32 %v1216, %v1250
    %v1252 = vpop.f32.mrf.mxu0
    %1253 = vdwg.mxu0
    %v1254 = vld [vmem:[#allocation4 + $0x4] sm:$0xff]
    %v1255 = vld [vmem:[#allocation4 + $0xc] sm:$0xff]
    %v1256 = vld [vmem:[#allocation4 + $0x14] sm:$0xff]
    %v1257 = vld [vmem:[#allocation4 + $0x1c] sm:$0xff]
    %v1258 = vld [vmem:[#allocation4 + $0x24] sm:$0xf]
    %v1259 = vpack.c.bf16 %v1255, %v1254
    %v1260 = vpack.c.bf16 %v1257, %v1256
    %v1261 = vpack.c.bf16 %v1258, %v1258
    %v1262 = vld [vmem:[%s11 + $0x8] sm:$0xf]
    %v1264 = vsel %vm244, %v1259, 0
    %v1267 = vsel %vm244, %v1260, 0
    %v1270 = vsel %vm244, %v1261, 0
    %v1273 = vsel %vm391, %v1262, 0
    %1275 = vmatpush.bf16.msra.mxu0 0
    %1276 = vmatpush.bf16.msra.mxu0 0
    %1277 = vmatpush.bf16.msra.mxu0 0
    %1278 = vmatpush.bf16.msra.mxu0 0
    %1279 = vmatpush.bf16.msra.mxu0 0
    %1280 = vmatpush.bf16.msra.mxu0 0
    %1281 = vmatpush.bf16.msra.mxu0 0
    %1282 = vmatpush.bf16.msra.mxu0 %v1273
    %1283 = vmatmul.bf16.gmra.mxu0 %v1264
    %v1284 = vpop.f32.mrf.mxu0
    %v1285 = vadd.f32 0.0, %v1284
    %v1286 = vpop.f32.mrf.mxu0
    %v1287 = vadd.f32 0.0, %v1286
    %1288 = vmatmul.bf16.gmra.mxu0 %v1267
    %v1289 = vpop.f32.mrf.mxu0
    %v1290 = vadd.f32 0.0, %v1289
    %v1291 = vpop.f32.mrf.mxu0
    %v1292 = vadd.f32 0.0, %v1291
    %1293 = vmatmul.bf16.gmra.mxu0 %v1270
    %v1294 = vpop.f32.mrf.mxu0
    %v1295 = vadd.f32 0.0, %v1294
    %v1296 = vpop.f32.mrf.mxu0
    %1297 = vdwg.mxu0
    %v1298 = vadd.f32 %v1241, %v1285
    %v1299 = vadd.f32 %v1243, %v1287
    %v1300 = vadd.f32 %v1246, %v1290
    %v1301 = vadd.f32 %v1248, %v1292
    %v1302 = vadd.f32 %v1251, %v1295
    %v1303 = vld [vmem:[%s13] sm:$0x1]
    %v1305 = vperm.slane %v1303, 0
    %v1307 = vadd.f32 %v1298, %v1305
    %v1308 = vadd.f32 %v1299, %v1305
    %v1309 = vadd.f32 %v1300, %v1305
    %v1310 = vadd.f32 %v1301, %v1305
    %v1311 = vadd.f32 %v1302, %v1305
    %v1312 = vmax.f32 %v1307, 0.0
    %v1313 = vmax.f32 %v1308, 0.0
    %v1314 = vmax.f32 %v1309, 0.0
    %v1315 = vmax.f32 %v1310, 0.0
    %v1316 = vmax.f32 %v1311, 0.0
    %1317 = vst.msk [vmem:[#allocation5 + $0x4] sm:$0xff] %vm244, %v1312
    %1318 = vst.msk [vmem:[#allocation5 + $0xc] sm:$0xff] %vm244, %v1313
    %vm1319 = vcmask 64516
    %1320 = vst.msk [vmem:[#allocation5 + $0x18] sm:$0xf0] %vm1319, %v1314
    %1321 = vst.msk [vmem:[#allocation5 + $0x20] sm:$0xff] %vm244, %v1315
    %1322 = vst.msk [vmem:[#allocation5 + $0x28] sm:$0xf] %vm253, %v1316
    %v1323 = vld [vmem:[#allocation5] sm:$0xff]
    %v1324 = vld [vmem:[#allocation5 + $0x8] sm:$0xff]
    %v1325 = vld [vmem:[#allocation5 + $0x10] sm:$0xff]
    %v1326 = vld [vmem:[#allocation5 + $0x18] sm:$0xff]
    %v1327 = vld [vmem:[#allocation5 + $0x20] sm:$0xff]
    %v1328 = vpack.c.bf16 %v1324, %v1323
    %v1329 = vpack.c.bf16 %v1326, %v1325
    %v1330 = vpack.c.bf16 %v1327, %v1327
    %v1331 = vld [vmem:[%s15] sm:$0xf]
    %v1332 = vld [vmem:[#allocation5 + $0x4] sm:$0xff]
    %v1333 = vld [vmem:[#allocation5 + $0xc] sm:$0xff]
    %v1334 = vld [vmem:[#allocation5 + $0x14] sm:$0xff]
    %v1335 = vld [vmem:[#allocation5 + $0x1c] sm:$0xff]
    %v1336 = vld [vmem:[#allocation5 + $0x24] sm:$0xff]
    %v1337 = vpack.c.bf16 %v1333, %v1332
    %v1338 = vpack.c.bf16 %v1335, %v1334
    %v1339 = vpack.c.bf16 %v1336, %v1336
    %v1340 = vld [vmem:[%s15 + $0x4] sm:$0xf]
    %v1342 = vsel %vm244, %v1337, 0
    %v1345 = vsel %vm244, %v1338, 0
    %v1348 = vsel %vm244, %v1339, 0
    %v1351 = vsel %vm391, %v1340, 0
    %1353 = vmatpush.bf16.msra.mxu0 0
    %1354 = vmatpush.bf16.msra.mxu0 0
    %1355 = vmatpush.bf16.msra.mxu0 0
    %1356 = vmatpush.bf16.msra.mxu0 0
    %1357 = vmatpush.bf16.msra.mxu0 0
    %1358 = vmatpush.bf16.msra.mxu0 0
    %1359 = vmatpush.bf16.msra.mxu0 0
    %1360 = vmatpush.bf16.msra.mxu0 %v1351
    %1361 = vmatmul.bf16.gmra.mxu0 %v1342
    %v1362 = vpop.f32.mrf.mxu0
    %v1363 = vadd.f32 0.0, %v1362
    %v1364 = vpop.f32.mrf.mxu0
    %v1365 = vadd.f32 0.0, %v1364
    %1366 = vmatmul.bf16.gmra.mxu0 %v1345
    %v1367 = vpop.f32.mrf.mxu0
    %v1368 = vpop.f32.mrf.mxu0
    %v1369 = vadd.f32 0.0, %v1368
    %1370 = vmatmul.bf16.gmra.mxu0 %v1348
    %v1371 = vpop.f32.mrf.mxu0
    %v1372 = vadd.f32 0.0, %v1371
    %v1373 = vpop.f32.mrf.mxu0
    %1374 = vdwg.mxu0
    %v1376 = vsel %vm244, %v1328, 0
    %v1379 = vsel %vm244, %v1329, 0
    %v1382 = vsel %vm244, %v1330, 0
    %v1385 = vsel %vm391, %v1331, 0
    %1387 = vmatpush.bf16.msra.mxu0 0
    %1388 = vmatpush.bf16.msra.mxu0 0
    %1389 = vmatpush.bf16.msra.mxu0 0
    %1390 = vmatpush.bf16.msra.mxu0 0
    %1391 = vmatpush.bf16.msra.mxu0 0
    %1392 = vmatpush.bf16.msra.mxu0 0
    %1393 = vmatpush.bf16.msra.mxu0 0
    %1394 = vmatpush.bf16.msra.mxu0 %v1385
    %1395 = vmatmul.bf16.gmra.mxu0 %v1376
    %v1396 = vpop.f32.mrf.mxu0
    %v1397 = vadd.f32 %v1363, %v1396
    %v1398 = vpop.f32.mrf.mxu0
    %v1399 = vadd.f32 %v1365, %v1398
    %1400 = vmatmul.bf16.gmra.mxu0 %v1379
    %v1401 = vpop.f32.mrf.mxu0
    %v1402 = vpop.f32.mrf.mxu0
    %v1403 = vadd.f32 %v1369, %v1402
    %1404 = vmatmul.bf16.gmra.mxu0 %v1382
    %v1405 = vpop.f32.mrf.mxu0
    %v1406 = vadd.f32 %v1372, %v1405
    %v1407 = vpop.f32.mrf.mxu0
    %1408 = vdwg.mxu0
    %v1409 = vld [vmem:[#allocation5 + $0x8] sm:$0xff]
    %v1410 = vld [vmem:[#allocation5 + $0x10] sm:$0xff]
    %v1411 = vld [vmem:[#allocation5 + $0x18] sm:$0xff]
    %v1412 = vld [vmem:[#allocation5 + $0x20] sm:$0xff]
    %v1413 = vld [vmem:[#allocation5 + $0x28] sm:$0xff]
    %v1414 = vpack.c.bf16 %v1410, %v1409
    %v1415 = vpack.c.bf16 %v1412, %v1411
    %v1416 = vpack.c.bf16 %v1413, %v1413
    %v1417 = vld [vmem:[%s15 + $0x8] sm:$0xf]
    %v1419 = vsel %vm244, %v1414, 0
    %v1422 = vsel %vm244, %v1415, 0
    %v1425 = vsel %vm244, %v1416, 0
    %v1428 = vsel %vm391, %v1417, 0
    %1430 = vmatpush.bf16.msra.mxu0 0
    %1431 = vmatpush.bf16.msra.mxu0 0
    %1432 = vmatpush.bf16.msra.mxu0 0
    %1433 = vmatpush.bf16.msra.mxu0 0
    %1434 = vmatpush.bf16.msra.mxu0 0
    %1435 = vmatpush.bf16.msra.mxu0 0
    %1436 = vmatpush.bf16.msra.mxu0 0
    %1437 = vmatpush.bf16.msra.mxu0 %v1428
    %1438 = vmatmul.bf16.gmra.mxu0 %v1419
    %v1439 = vpop.f32.mrf.mxu0
    %v1440 = vadd.f32 0.0, %v1439
    %v1441 = vpop.f32.mrf.mxu0
    %v1442 = vadd.f32 0.0, %v1441
    %1443 = vmatmul.bf16.gmra.mxu0 %v1422
    %v1444 = vpop.f32.mrf.mxu0
    %v1445 = vpop.f32.mrf.mxu0
    %v1446 = vadd.f32 0.0, %v1445
    %1447 = vmatmul.bf16.gmra.mxu0 %v1425
    %v1448 = vpop.f32.mrf.mxu0
    %v1449 = vadd.f32 0.0, %v1448
    %v1450 = vpop.f32.mrf.mxu0
    %1451 = vdwg.mxu0
    %v1452 = vadd.f32 %v1397, %v1440
    %v1453 = vadd.f32 %v1399, %v1442
    %v1454 = vadd.f32 %v1403, %v1446
    %v1455 = vadd.f32 %v1406, %v1449
    %v1456 = vld [vmem:[%s17] sm:$0x1]
    %v1458 = vperm.slane %v1456, 0
    %v1460 = vadd.f32 %v1452, %v1458
    %v1461 = vadd.f32 %v1453, %v1458
    %v1462 = vadd.f32 %v1454, %v1458
    %v1463 = vadd.f32 %v1455, %v1458
    %v1464 = vadd.f32 %v1460, %v996
    %v1465 = vadd.f32 %v1461, %v997
    %v1466 = vmax.f32 %v1464, 0.0
    %v1467 = vmax.f32 %v1465, 0.0
    %vm1471 = vcmask 1046528
    %v1472 = vrot.slane %v998, 1
    %v1473 = vrot.slane %v999, 1
    %v1474 = vsel %vm1471, %v1472, %v1473
    %v1475 = vrot.slane %v1000, 1
    %v1476 = vsel %vm1471, %v1473, %v1475
    %v1479 = vadd.f32 %v1462, %v1474
    %v1480 = vadd.f32 %v1463, %v1476
    %v1481 = vmax.f32 %v1479, 0.0
    %v1482 = vmax.f32 %v1480, 0.0
    %1483 = vst.msk [vmem:[#allocation6 + $0x1] sm:$0xff] %vm244, %v1466
    %1484 = vst.msk [vmem:[#allocation6 + $0x9] sm:$0xff] %vm244, %v1467
    %1485 = vst.msk [vmem:[#allocation6 + $0x13] sm:$0xff] %vm244, %v1481
    %1486 = vst.msk [vmem:[#allocation6 + $0x1b] sm:$0xff] %vm244, %v1482
    %v1487 = vld [vmem:[#allocation6] sm:$0xff]
    %v1488 = vld [vmem:[#allocation6 + $0x8] sm:$0xff]
    %v1489 = vld [vmem:[#allocation6 + $0x10] sm:$0xff]
    %v1490 = vld [vmem:[#allocation6 + $0x18] sm:$0xff]
    %v1491 = vld [vmem:[#allocation6 + $0x20] sm:$0x3]
    %v1492 = vpack.c.bf16 %v1488, %v1487
    %v1493 = vpack.c.bf16 %v1490, %v1489
    %v1494 = vpack.c.bf16 %v1491, %v1491
    %v1495 = vld [vmem:[%s19] sm:$0xf]
    %v1496 = vld [vmem:[#allocation6 + $0x1] sm:$0xff]
    %v1497 = vld [vmem:[#allocation6 + $0x9] sm:$0xff]
    %v1498 = vld [vmem:[#allocation6 + $0x11] sm:$0xff]
    %v1499 = vld [vmem:[#allocation6 + $0x19] sm:$0xff]
    %v1500 = vld [vmem:[#allocation6 + $0x21] sm:$0x3]
    %v1501 = vpack.c.bf16 %v1497, %v1496
    %v1502 = vpack.c.bf16 %v1499, %v1498
    %v1503 = vpack.c.bf16 %v1500, %v1500
    %v1504 = vld [vmem:[%s19 + $0x4] sm:$0xf]
    %v1506 = vsel %vm244, %v1501, 0
    %v1509 = vsel %vm244, %v1502, 0
    %v1512 = vsel %vm244, %v1503, 0
    %v1515 = vsel %vm391, %v1504, 0
    %1517 = vmatpush.bf16.msra.mxu0 0
    %1518 = vmatpush.bf16.msra.mxu0 0
    %1519 = vmatpush.bf16.msra.mxu0 0
    %1520 = vmatpush.bf16.msra.mxu0 0
    %1521 = vmatpush.bf16.msra.mxu0 0
    %1522 = vmatpush.bf16.msra.mxu0 0
    %1523 = vmatpush.bf16.msra.mxu0 0
    %1524 = vmatpush.bf16.msra.mxu0 %v1515
    %1525 = vmatmul.bf16.gmra.mxu0 %v1506
    %v1526 = vpop.f32.mrf.mxu0
    %v1527 = vadd.f32 0.0, %v1526
    %v1528 = vpop.f32.mrf.mxu0
    %v1529 = vadd.f32 0.0, %v1528
    %1530 = vmatmul.bf16.gmra.mxu0 %v1509
    %v1531 = vpop.f32.mrf.mxu0
    %v1532 = vadd.f32 0.0, %v1531
    %v1533 = vpop.f32.mrf.mxu0
    %v1534 = vadd.f32 0.0, %v1533
    %1535 = vmatmul.bf16.gmra.mxu0 %v1512
    %v1536 = vpop.f32.mrf.mxu0
    %v1537 = vadd.f32 0.0, %v1536
    %v1538 = vpop.f32.mrf.mxu0
    %1539 = vdwg.mxu0
    %v1541 = vsel %vm244, %v1492, 0
    %v1544 = vsel %vm244, %v1493, 0
    %v1547 = vsel %vm244, %v1494, 0
    %v1550 = vsel %vm391, %v1495, 0
    %1552 = vmatpush.bf16.msra.mxu0 0
    %1553 = vmatpush.bf16.msra.mxu0 0
    %1554 = vmatpush.bf16.msra.mxu0 0
    %1555 = vmatpush.bf16.msra.mxu0 0
    %1556 = vmatpush.bf16.msra.mxu0 0
    %1557 = vmatpush.bf16.msra.mxu0 0
    %1558 = vmatpush.bf16.msra.mxu0 0
    %1559 = vmatpush.bf16.msra.mxu0 %v1550
    %1560 = vmatmul.bf16.gmra.mxu0 %v1541
    %v1561 = vpop.f32.mrf.mxu0
    %v1562 = vadd.f32 %v1527, %v1561
    %v1563 = vpop.f32.mrf.mxu0
    %v1564 = vadd.f32 %v1529, %v1563
    %1565 = vmatmul.bf16.gmra.mxu0 %v1544
    %v1566 = vpop.f32.mrf.mxu0
    %v1567 = vadd.f32 %v1532, %v1566
    %v1568 = vpop.f32.mrf.mxu0
    %v1569 = vadd.f32 %v1534, %v1568
    %1570 = vmatmul.bf16.gmra.mxu0 %v1547
    %v1571 = vpop.f32.mrf.mxu0
    %v1572 = vadd.f32 %v1537, %v1571
    %v1573 = vpop.f32.mrf.mxu0
    %1574 = vdwg.mxu0
    %v1575 = vld [vmem:[#allocation6 + $0x2] sm:$0xff]
    %v1576 = vld [vmem:[#allocation6 + $0xa] sm:$0xff]
    %v1577 = vld [vmem:[#allocation6 + $0x12] sm:$0xff]
    %v1578 = vld [vmem:[#allocation6 + $0x1a] sm:$0xff]
    %v1579 = vld [vmem:[#allocation6 + $0x22] sm:$0x3]
    %v1580 = vpack.c.bf16 %v1576, %v1575
    %v1581 = vpack.c.bf16 %v1578, %v1577
    %v1582 = vpack.c.bf16 %v1579, %v1579
    %v1583 = vld [vmem:[%s19 + $0x8] sm:$0xf]
    %v1585 = vsel %vm244, %v1580, 0
    %v1588 = vsel %vm244, %v1581, 0
    %v1591 = vsel %vm244, %v1582, 0
    %v1594 = vsel %vm391, %v1583, 0
    %1596 = vmatpush.bf16.msra.mxu0 0
    %1597 = vmatpush.bf16.msra.mxu0 0
    %1598 = vmatpush.bf16.msra.mxu0 0
    %1599 = vmatpush.bf16.msra.mxu0 0
    %1600 = vmatpush.bf16.msra.mxu0 0
    %1601 = vmatpush.bf16.msra.mxu0 0
    %1602 = vmatpush.bf16.msra.mxu0 0
    %1603 = vmatpush.bf16.msra.mxu0 %v1594
    %1604 = vmatmul.bf16.gmra.mxu0 %v1585
    %v1605 = vpop.f32.mrf.mxu0
    %v1606 = vadd.f32 0.0, %v1605
    %v1607 = vpop.f32.mrf.mxu0
    %v1608 = vadd.f32 0.0, %v1607
    %1609 = vmatmul.bf16.gmra.mxu0 %v1588
    %v1610 = vpop.f32.mrf.mxu0
    %v1611 = vadd.f32 0.0, %v1610
    %v1612 = vpop.f32.mrf.mxu0
    %v1613 = vadd.f32 0.0, %v1612
    %1614 = vmatmul.bf16.gmra.mxu0 %v1591
    %v1615 = vpop.f32.mrf.mxu0
    %v1616 = vadd.f32 0.0, %v1615
    %v1617 = vpop.f32.mrf.mxu0
    %1618 = vdwg.mxu0
    %v1619 = vadd.f32 %v1562, %v1606
    %v1620 = vadd.f32 %v1564, %v1608
    %v1621 = vadd.f32 %v1567, %v1611
    %v1622 = vadd.f32 %v1569, %v1613
    %v1623 = vadd.f32 %v1572, %v1616
    %v1624 = vld [vmem:[%s21] sm:$0x1]
    %v1626 = vperm.slane %v1624, 0
    %v1628 = vadd.f32 %v1619, %v1626
    %v1629 = vadd.f32 %v1620, %v1626
    %v1630 = vadd.f32 %v1621, %v1626
    %v1631 = vadd.f32 %v1622, %v1626
    %v1632 = vadd.f32 %v1623, %v1626
    %v1633 = vmax.f32 %v1628, 0.0
    %v1634 = vmax.f32 %v1629, 0.0
    %v1635 = vmax.f32 %v1630, 0.0
    %v1636 = vmax.f32 %v1631, 0.0
    %v1637 = vmax.f32 %v1632, 0.0
    %1638 = vst.msk [vmem:[#allocation7 + $0x2] sm:$0xff] %vm244, %v1633
    %1639 = vst.msk [vmem:[#allocation7 + $0xa] sm:$0xff] %vm244, %v1634
    %1640 = vst.msk [vmem:[#allocation7 + $0x14] sm:$0xfc] %vm1161, %v1635
    %1641 = vst.msk [vmem:[#allocation7 + $0x1c] sm:$0xff] %vm244, %v1636
    %1642 = vst.msk [vmem:[#allocation7 + $0x24] sm:$0x3] %vm1164, %v1637
    %v1643 = vld [vmem:[#allocation7] sm:$0xff]
    %v1644 = vld [vmem:[#allocation7 + $0x8] sm:$0xff]
    %v1645 = vld [vmem:[#allocation7 + $0x10] sm:$0xff]
    %v1646 = vld [vmem:[#allocation7 + $0x18] sm:$0xff]
    %v1647 = vld [vmem:[#allocation7 + $0x20] sm:$0xf]
    %v1648 = vpack.c.bf16 %v1644, %v1643
    %v1649 = vpack.c.bf16 %v1646, %v1645
    %v1650 = vpack.c.bf16 %v1647, %v1647
    %v1651 = vld [vmem:[%s23] sm:$0xf]
    %v1652 = vld [vmem:[#allocation7 + $0x2] sm:$0xff]
    %v1653 = vld [vmem:[#allocation7 + $0xa] sm:$0xff]
    %v1654 = vld [vmem:[#allocation7 + $0x12] sm:$0xff]
    %v1655 = vld [vmem:[#allocation7 + $0x1a] sm:$0xff]
    %v1656 = vld [vmem:[#allocation7 + $0x22] sm:$0xf]
    %v1657 = vpack.c.bf16 %v1653, %v1652
    %v1658 = vpack.c.bf16 %v1655, %v1654
    %v1659 = vpack.c.bf16 %v1656, %v1656
    %v1660 = vld [vmem:[%s23 + $0x4] sm:$0xf]
    %v1662 = vsel %vm244, %v1657, 0
    %v1665 = vsel %vm244, %v1658, 0
    %v1668 = vsel %vm244, %v1659, 0
    %v1671 = vsel %vm391, %v1660, 0
    %1673 = vmatpush.bf16.msra.mxu0 0
    %1674 = vmatpush.bf16.msra.mxu0 0
    %1675 = vmatpush.bf16.msra.mxu0 0
    %1676 = vmatpush.bf16.msra.mxu0 0
    %1677 = vmatpush.bf16.msra.mxu0 0
    %1678 = vmatpush.bf16.msra.mxu0 0
    %1679 = vmatpush.bf16.msra.mxu0 0
    %1680 = vmatpush.bf16.msra.mxu0 %v1671
    %1681 = vmatmul.bf16.gmra.mxu0 %v1662
    %v1682 = vpop.f32.mrf.mxu0
    %v1683 = vadd.f32 0.0, %v1682
    %v1684 = vpop.f32.mrf.mxu0
    %v1685 = vadd.f32 0.0, %v1684
    %1686 = vmatmul.bf16.gmra.mxu0 %v1665
    %v1687 = vpop.f32.mrf.mxu0
    %v1688 = vadd.f32 0.0, %v1687
    %v1689 = vpop.f32.mrf.mxu0
    %v1690 = vadd.f32 0.0, %v1689
    %1691 = vmatmul.bf16.gmra.mxu0 %v1668
    %v1692 = vpop.f32.mrf.mxu0
    %v1693 = vadd.f32 0.0, %v1692
    %v1694 = vpop.f32.mrf.mxu0
    %1695 = vdwg.mxu0
    %v1697 = vsel %vm244, %v1648, 0
    %v1700 = vsel %vm244, %v1649, 0
    %v1703 = vsel %vm244, %v1650, 0
    %v1706 = vsel %vm391, %v1651, 0
    %1708 = vmatpush.bf16.msra.mxu0 0
    %1709 = vmatpush.bf16.msra.mxu0 0
    %1710 = vmatpush.bf16.msra.mxu0 0
    %1711 = vmatpush.bf16.msra.mxu0 0
    %1712 = vmatpush.bf16.msra.mxu0 0
    %1713 = vmatpush.bf16.msra.mxu0 0
    %1714 = vmatpush.bf16.msra.mxu0 0
    %1715 = vmatpush.bf16.msra.mxu0 %v1706
    %1716 = vmatmul.bf16.gmra.mxu0 %v1697
    %v1717 = vpop.f32.mrf.mxu0
    %v1718 = vadd.f32 %v1683, %v1717
    %v1719 = vpop.f32.mrf.mxu0
    %v1720 = vadd.f32 %v1685, %v1719
    %1721 = vmatmul.bf16.gmra.mxu0 %v1700
    %v1722 = vpop.f32.mrf.mxu0
    %v1723 = vadd.f32 %v1688, %v1722
    %v1724 = vpop.f32.mrf.mxu0
    %v1725 = vadd.f32 %v1690, %v1724
    %1726 = vmatmul.bf16.gmra.mxu0 %v1703
    %v1727 = vpop.f32.mrf.mxu0
    %v1728 = vadd.f32 %v1693, %v1727
    %v1729 = vpop.f32.mrf.mxu0
    %1730 = vdwg.mxu0
    %v1731 = vld [vmem:[#allocation7 + $0x4] sm:$0xff]
    %v1732 = vld [vmem:[#allocation7 + $0xc] sm:$0xff]
    %v1733 = vld [vmem:[#allocation7 + $0x14] sm:$0xff]
    %v1734 = vld [vmem:[#allocation7 + $0x1c] sm:$0xff]
    %v1735 = vld [vmem:[#allocation7 + $0x24] sm:$0xf]
    %v1736 = vpack.c.bf16 %v1732, %v1731
    %v1737 = vpack.c.bf16 %v1734, %v1733
    %v1738 = vpack.c.bf16 %v1735, %v1735
    %v1739 = vld [vmem:[%s23 + $0x8] sm:$0xf]
    %v1741 = vsel %vm244, %v1736, 0
    %v1744 = vsel %vm244, %v1737, 0
    %v1747 = vsel %vm244, %v1738, 0
    %v1750 = vsel %vm391, %v1739, 0
    %1752 = vmatpush.bf16.msra.mxu0 0
    %1753 = vmatpush.bf16.msra.mxu0 0
    %1754 = vmatpush.bf16.msra.mxu0 0
    %1755 = vmatpush.bf16.msra.mxu0 0
    %1756 = vmatpush.bf16.msra.mxu0 0
    %1757 = vmatpush.bf16.msra.mxu0 0
    %1758 = vmatpush.bf16.msra.mxu0 0
    %1759 = vmatpush.bf16.msra.mxu0 %v1750
    %1760 = vmatmul.bf16.gmra.mxu0 %v1741
    %v1761 = vpop.f32.mrf.mxu0
    %v1762 = vadd.f32 0.0, %v1761
    %v1763 = vpop.f32.mrf.mxu0
    %v1764 = vadd.f32 0.0, %v1763
    %1765 = vmatmul.bf16.gmra.mxu0 %v1744
    %v1766 = vpop.f32.mrf.mxu0
    %v1767 = vadd.f32 0.0, %v1766
    %v1768 = vpop.f32.mrf.mxu0
    %v1769 = vadd.f32 0.0, %v1768
    %1770 = vmatmul.bf16.gmra.mxu0 %v1747
    %v1771 = vpop.f32.mrf.mxu0
    %v1772 = vadd.f32 0.0, %v1771
    %v1773 = vpop.f32.mrf.mxu0
    %1774 = vdwg.mxu0
    %v1775 = vadd.f32 %v1718, %v1762
    %v1776 = vadd.f32 %v1720, %v1764
    %v1777 = vadd.f32 %v1723, %v1767
    %v1778 = vadd.f32 %v1725, %v1769
    %v1779 = vadd.f32 %v1728, %v1772
    %v1780 = vld [vmem:[%s25] sm:$0x1]
    %v1782 = vperm.slane %v1780, 0
    %v1784 = vadd.f32 %v1775, %v1782
    %v1785 = vadd.f32 %v1776, %v1782
    %v1786 = vadd.f32 %v1777, %v1782
    %v1787 = vadd.f32 %v1778, %v1782
    %v1788 = vadd.f32 %v1779, %v1782
    %v1789 = vmax.f32 %v1784, 0.0
    %v1790 = vmax.f32 %v1785, 0.0
    %v1791 = vmax.f32 %v1786, 0.0
    %v1792 = vmax.f32 %v1787, 0.0
    %v1793 = vmax.f32 %v1788, 0.0
    %1794 = vst.msk [vmem:[#allocation8 + $0x4] sm:$0xff] %vm244, %v1789
    %1795 = vst.msk [vmem:[#allocation8 + $0xc] sm:$0xff] %vm244, %v1790
    %1796 = vst.msk [vmem:[#allocation8 + $0x18] sm:$0xf0] %vm1319, %v1791
    %1797 = vst.msk [vmem:[#allocation8 + $0x20] sm:$0xff] %vm244, %v1792
    %1798 = vst.msk [vmem:[#allocation8 + $0x28] sm:$0xf] %vm253, %v1793
    %v1799 = vld [vmem:[#allocation8] sm:$0xff]
    %v1800 = vld [vmem:[#allocation8 + $0x8] sm:$0xff]
    %v1801 = vld [vmem:[#allocation8 + $0x10] sm:$0xff]
    %v1802 = vld [vmem:[#allocation8 + $0x18] sm:$0xff]
    %v1803 = vld [vmem:[#allocation8 + $0x20] sm:$0xff]
    %v1804 = vpack.c.bf16 %v1800, %v1799
    %v1805 = vpack.c.bf16 %v1802, %v1801
    %v1806 = vpack.c.bf16 %v1803, %v1803
    %v1807 = vld [vmem:[%s27] sm:$0xf]
    %v1808 = vld [vmem:[#allocation8 + $0x4] sm:$0xff]
    %v1809 = vld [vmem:[#allocation8 + $0xc] sm:$0xff]
    %v1810 = vld [vmem:[#allocation8 + $0x14] sm:$0xff]
    %v1811 = vld [vmem:[#allocation8 + $0x1c] sm:$0xff]
    %v1812 = vld [vmem:[#allocation8 + $0x24] sm:$0xff]
    %v1813 = vpack.c.bf16 %v1809, %v1808
    %v1814 = vpack.c.bf16 %v1811, %v1810
    %v1815 = vpack.c.bf16 %v1812, %v1812
    %v1816 = vld [vmem:[%s27 + $0x4] sm:$0xf]
    %v1818 = vsel %vm244, %v1813, 0
    %v1821 = vsel %vm244, %v1814, 0
    %v1824 = vsel %vm244, %v1815, 0
    %v1827 = vsel %vm391, %v1816, 0
    %1829 = vmatpush.bf16.msra.mxu0 0
    %1830 = vmatpush.bf16.msra.mxu0 0
    %1831 = vmatpush.bf16.msra.mxu0 0
    %1832 = vmatpush.bf16.msra.mxu0 0
    %1833 = vmatpush.bf16.msra.mxu0 0
    %1834 = vmatpush.bf16.msra.mxu0 0
    %1835 = vmatpush.bf16.msra.mxu0 0
    %1836 = vmatpush.bf16.msra.mxu0 %v1827
    %1837 = vmatmul.bf16.gmra.mxu0 %v1818
    %v1838 = vpop.f32.mrf.mxu0
    %v1839 = vadd.f32 0.0, %v1838
    %v1840 = vpop.f32.mrf.mxu0
    %v1841 = vadd.f32 0.0, %v1840
    %1842 = vmatmul.bf16.gmra.mxu0 %v1821
    %v1843 = vpop.f32.mrf.mxu0
    %v1844 = vpop.f32.mrf.mxu0
    %v1845 = vadd.f32 0.0, %v1844
    %1846 = vmatmul.bf16.gmra.mxu0 %v1824
    %v1847 = vpop.f32.mrf.mxu0
    %v1848 = vadd.f32 0.0, %v1847
    %v1849 = vpop.f32.mrf.mxu0
    %1850 = vdwg.mxu0
    %v1852 = vsel %vm244, %v1804, 0
    %v1855 = vsel %vm244, %v1805, 0
    %v1858 = vsel %vm244, %v1806, 0
    %v1861 = vsel %vm391, %v1807, 0
    %1863 = vmatpush.bf16.msra.mxu0 0
    %1864 = vmatpush.bf16.msra.mxu0 0
    %1865 = vmatpush.bf16.msra.mxu0 0
    %1866 = vmatpush.bf16.msra.mxu0 0
    %1867 = vmatpush.bf16.msra.mxu0 0
    %1868 = vmatpush.bf16.msra.mxu0 0
    %1869 = vmatpush.bf16.msra.mxu0 0
    %1870 = vmatpush.bf16.msra.mxu0 %v1861
    %1871 = vmatmul.bf16.gmra.mxu0 %v1852
    %v1872 = vpop.f32.mrf.mxu0
    %v1873 = vadd.f32 %v1839, %v1872
    %v1874 = vpop.f32.mrf.mxu0
    %v1875 = vadd.f32 %v1841, %v1874
    %1876 = vmatmul.bf16.gmra.mxu0 %v1855
    %v1877 = vpop.f32.mrf.mxu0
    %v1878 = vpop.f32.mrf.mxu0
    %v1879 = vadd.f32 %v1845, %v1878
    %1880 = vmatmul.bf16.gmra.mxu0 %v1858
    %v1881 = vpop.f32.mrf.mxu0
    %v1882 = vadd.f32 %v1848, %v1881
    %v1883 = vpop.f32.mrf.mxu0
    %1884 = vdwg.mxu0
    %v1885 = vld [vmem:[#allocation8 + $0x8] sm:$0xff]
    %v1886 = vld [vmem:[#allocation8 + $0x10] sm:$0xff]
    %v1887 = vld [vmem:[#allocation8 + $0x18] sm:$0xff]
    %v1888 = vld [vmem:[#allocation8 + $0x20] sm:$0xff]
    %v1889 = vld [vmem:[#allocation8 + $0x28] sm:$0xff]
    %v1890 = vpack.c.bf16 %v1886, %v1885
    %v1891 = vpack.c.bf16 %v1888, %v1887
    %v1892 = vpack.c.bf16 %v1889, %v1889
    %v1893 = vld [vmem:[%s27 + $0x8] sm:$0xf]
    %v1895 = vsel %vm244, %v1890, 0
    %v1898 = vsel %vm244, %v1891, 0
    %v1901 = vsel %vm244, %v1892, 0
    %v1904 = vsel %vm391, %v1893, 0
    %1906 = vmatpush.bf16.msra.mxu0 0
    %1907 = vmatpush.bf16.msra.mxu0 0
    %1908 = vmatpush.bf16.msra.mxu0 0
    %1909 = vmatpush.bf16.msra.mxu0 0
    %1910 = vmatpush.bf16.msra.mxu0 0
    %1911 = vmatpush.bf16.msra.mxu0 0
    %1912 = vmatpush.bf16.msra.mxu0 0
    %1913 = vmatpush.bf16.msra.mxu0 %v1904
    %1914 = vmatmul.bf16.gmra.mxu0 %v1895
    %v1915 = vpop.f32.mrf.mxu0
    %v1916 = vadd.f32 0.0, %v1915
    %v1917 = vpop.f32.mrf.mxu0
    %v1918 = vadd.f32 0.0, %v1917
    %1919 = vmatmul.bf16.gmra.mxu0 %v1898
    %v1920 = vpop.f32.mrf.mxu0
    %v1921 = vpop.f32.mrf.mxu0
    %v1922 = vadd.f32 0.0, %v1921
    %1923 = vmatmul.bf16.gmra.mxu0 %v1901
    %v1924 = vpop.f32.mrf.mxu0
    %v1925 = vadd.f32 0.0, %v1924
    %v1926 = vpop.f32.mrf.mxu0
    %1927 = vdwg.mxu0
    %v1928 = vadd.f32 %v1873, %v1916
    %v1929 = vadd.f32 %v1875, %v1918
    %v1930 = vadd.f32 %v1879, %v1922
    %v1931 = vadd.f32 %v1882, %v1925
    %v1932 = vld [vmem:[%s29] sm:$0x1]
    %v1934 = vperm.slane %v1932, 0
    %v1936 = vadd.f32 %v1928, %v1934
    %v1937 = vadd.f32 %v1929, %v1934
    %v1938 = vadd.f32 %v1930, %v1934
    %v1939 = vadd.f32 %v1931, %v1934
    %v1940 = vadd.f32 %v1936, %v1466
    %v1941 = vadd.f32 %v1937, %v1467
    %v1942 = vmax.f32 %v1940, 0.0
    %v1943 = vmax.f32 %v1941, 0.0
    %v1944 = vadd.f32 %v1938, %v1481
    %v1945 = vadd.f32 %v1939, %v1482
    %v1946 = vmax.f32 %v1944, 0.0
    %v1947 = vmax.f32 %v1945, 0.0
    %1948 = vst.msk [vmem:[#allocation9 + $0x1] sm:$0xff] %vm244, %v1942
    %1949 = vst.msk [vmem:[#allocation9 + $0x9] sm:$0xff] %vm244, %v1943
    %1950 = vst.msk [vmem:[#allocation9 + $0x13] sm:$0xff] %vm244, %v1946
    %1951 = vst.msk [vmem:[#allocation9 + $0x1b] sm:$0xff] %vm244, %v1947
    %v1952 = vld [vmem:[#allocation9] sm:$0xff]
    %v1953 = vld [vmem:[#allocation9 + $0x8] sm:$0xff]
    %v1954 = vld [vmem:[#allocation9 + $0x10] sm:$0xff]
    %v1955 = vld [vmem:[#allocation9 + $0x18] sm:$0xff]
    %v1956 = vld [vmem:[#allocation9 + $0x20] sm:$0x3]
    %v1957 = vpack.c.bf16 %v1953, %v1952
    %v1958 = vpack.c.bf16 %v1955, %v1954
    %v1959 = vpack.c.bf16 %v1956, %v1956
    %v1960 = vld [vmem:[%s31] sm:$0xf]
    %v1961 = vld [vmem:[#allocation9 + $0x1] sm:$0xff]
    %v1962 = vld [vmem:[#allocation9 + $0x9] sm:$0xff]
    %v1963 = vld [vmem:[#allocation9 + $0x11] sm:$0xff]
    %v1964 = vld [vmem:[#allocation9 + $0x19] sm:$0xff]
    %v1965 = vld [vmem:[#allocation9 + $0x21] sm:$0x3]
    %v1966 = vpack.c.bf16 %v1962, %v1961
    %v1967 = vpack.c.bf16 %v1964, %v1963
    %v1968 = vpack.c.bf16 %v1965, %v1965
    %v1969 = vld [vmem:[%s31 + $0x4] sm:$0xf]
    %v1971 = vsel %vm244, %v1966, 0
    %v1974 = vsel %vm244, %v1967, 0
    %v1977 = vsel %vm244, %v1968, 0
    %v1980 = vsel %vm391, %v1969, 0
    %1982 = vmatpush.bf16.msra.mxu0 0
    %1983 = vmatpush.bf16.msra.mxu0 0
    %1984 = vmatpush.bf16.msra.mxu0 0
    %1985 = vmatpush.bf16.msra.mxu0 0
    %1986 = vmatpush.bf16.msra.mxu0 0
    %1987 = vmatpush.bf16.msra.mxu0 0
    %1988 = vmatpush.bf16.msra.mxu0 0
    %1989 = vmatpush.bf16.msra.mxu0 %v1980
    %1990 = vmatmul.bf16.gmra.mxu0 %v1971
    %v1991 = vpop.f32.mrf.mxu0
    %v1992 = vadd.f32 0.0, %v1991
    %v1993 = vpop.f32.mrf.mxu0
    %v1994 = vadd.f32 0.0, %v1993
    %1995 = vmatmul.bf16.gmra.mxu0 %v1974
    %v1996 = vpop.f32.mrf.mxu0
    %v1997 = vadd.f32 0.0, %v1996
    %v1998 = vpop.f32.mrf.mxu0
    %v1999 = vadd.f32 0.0, %v1998
    %2000 = vmatmul.bf16.gmra.mxu0 %v1977
    %v2001 = vpop.f32.mrf.mxu0
    %v2002 = vadd.f32 0.0, %v2001
    %v2003 = vpop.f32.mrf.mxu0
    %2004 = vdwg.mxu0
    %v2006 = vsel %vm244, %v1957, 0
    %v2009 = vsel %vm244, %v1958, 0
    %v2012 = vsel %vm244, %v1959, 0
    %v2015 = vsel %vm391, %v1960, 0
    %2017 = vmatpush.bf16.msra.mxu0 0
    %2018 = vmatpush.bf16.msra.mxu0 0
    %2019 = vmatpush.bf16.msra.mxu0 0
    %2020 = vmatpush.bf16.msra.mxu0 0
    %2021 = vmatpush.bf16.msra.mxu0 0
    %2022 = vmatpush.bf16.msra.mxu0 0
    %2023 = vmatpush.bf16.msra.mxu0 0
    %2024 = vmatpush.bf16.msra.mxu0 %v2015
    %2025 = vmatmul.bf16.gmra.mxu0 %v2006
    %v2026 = vpop.f32.mrf.mxu0
    %v2027 = vadd.f32 %v1992, %v2026
    %v2028 = vpop.f32.mrf.mxu0
    %v2029 = vadd.f32 %v1994, %v2028
    %2030 = vmatmul.bf16.gmra.mxu0 %v2009
    %v2031 = vpop.f32.mrf.mxu0
    %v2032 = vadd.f32 %v1997, %v2031
    %v2033 = vpop.f32.mrf.mxu0
    %v2034 = vadd.f32 %v1999, %v2033
    %2035 = vmatmul.bf16.gmra.mxu0 %v2012
    %v2036 = vpop.f32.mrf.mxu0
    %v2037 = vadd.f32 %v2002, %v2036
    %v2038 = vpop.f32.mrf.mxu0
    %2039 = vdwg.mxu0
    %v2040 = vld [vmem:[#allocation9 + $0x2] sm:$0xff]
    %v2041 = vld [vmem:[#allocation9 + $0xa] sm:$0xff]
    %v2042 = vld [vmem:[#allocation9 + $0x12] sm:$0xff]
    %v2043 = vld [vmem:[#allocation9 + $0x1a] sm:$0xff]
    %v2044 = vld [vmem:[#allocation9 + $0x22] sm:$0x3]
    %v2045 = vpack.c.bf16 %v2041, %v2040
    %v2046 = vpack.c.bf16 %v2043, %v2042
    %v2047 = vpack.c.bf16 %v2044, %v2044
    %v2048 = vld [vmem:[%s31 + $0x8] sm:$0xf]
    %v2050 = vsel %vm244, %v2045, 0
    %v2053 = vsel %vm244, %v2046, 0
    %v2056 = vsel %vm244, %v2047, 0
    %v2059 = vsel %vm391, %v2048, 0
    %2061 = vmatpush.bf16.msra.mxu0 0
    %2062 = vmatpush.bf16.msra.mxu0 0
    %2063 = vmatpush.bf16.msra.mxu0 0
    %2064 = vmatpush.bf16.msra.mxu0 0
    %2065 = vmatpush.bf16.msra.mxu0 0
    %2066 = vmatpush.bf16.msra.mxu0 0
    %2067 = vmatpush.bf16.msra.mxu0 0
    %2068 = vmatpush.bf16.msra.mxu0 %v2059
    %2069 = vmatmul.bf16.gmra.mxu0 %v2050
    %v2070 = vpop.f32.mrf.mxu0
    %v2071 = vadd.f32 0.0, %v2070
    %v2072 = vpop.f32.mrf.mxu0
    %v2073 = vadd.f32 0.0, %v2072
    %2074 = vmatmul.bf16.gmra.mxu0 %v2053
    %v2075 = vpop.f32.mrf.mxu0
    %v2076 = vadd.f32 0.0, %v2075
    %v2077 = vpop.f32.mrf.mxu0
    %v2078 = vadd.f32 0.0, %v2077
    %2079 = vmatmul.bf16.gmra.mxu0 %v2056
    %v2080 = vpop.f32.mrf.mxu0
    %v2081 = vadd.f32 0.0, %v2080
    %v2082 = vpop.f32.mrf.mxu0
    %2083 = vdwg.mxu0
    %v2084 = vadd.f32 %v2027, %v2071
    %v2085 = vadd.f32 %v2029, %v2073
    %v2086 = vadd.f32 %v2032, %v2076
    %v2087 = vadd.f32 %v2034, %v2078
    %v2088 = vadd.f32 %v2037, %v2081
    %v2089 = vld [vmem:[%s33] sm:$0x1]
    %v2091 = vperm.slane %v2089, 0
    %v2093 = vadd.f32 %v2084, %v2091
    %v2094 = vadd.f32 %v2085, %v2091
    %v2095 = vadd.f32 %v2086, %v2091
    %v2096 = vadd.f32 %v2087, %v2091
    %v2097 = vadd.f32 %v2088, %v2091
    %v2098 = vmax.f32 %v2093, 0.0
    %v2099 = vmax.f32 %v2094, 0.0
    %v2100 = vmax.f32 %v2095, 0.0
    %v2101 = vmax.f32 %v2096, 0.0
    %v2102 = vmax.f32 %v2097, 0.0
    %2103 = vst.msk [vmem:[#allocation10 + $0x2] sm:$0xff] %vm292, %v2098
    %2104 = vst.msk [vmem:[#allocation10 + $0xa] sm:$0xff] %vm292, %v2099
    %vm2105 = vcmask 130050
    %2106 = vst.msk [vmem:[#allocation10 + $0x14] sm:$0xfc] %vm2105, %v2100
    %2107 = vst.msk [vmem:[#allocation10 + $0x1c] sm:$0xff] %vm292, %v2101
    %vm2108 = vcmask 123904
    %2109 = vst.msk [vmem:[#allocation10 + $0x24] sm:$0x3] %vm2108, %v2102
    %v2110 = vld [vmem:[#allocation10] ss:$2 sm:$0xff]
    %s2111 = scalar_lea.vmem [#allocation10], 16
    %v2112 = vld [vmem:[%s2111] ss:$2 sm:$0xff]
    %s2113 = scalar_lea.vmem [#allocation10], 32
    %v2114 = vld [vmem:[%s2113] ss:$2 sm:$0x3]
    %v2115 = vpack.c.bf16 %v2112, %v2110
    %v2116 = vpack.c.bf16 %v2114, %v2114
    %v2117 = vld [vmem:[%s35] sm:$0xf]
    %v2118 = vld [vmem:[%s35 + $0x4] sm:$0xf]
    %s2119 = scalar_lea.vmem [#allocation10], 2
    %v2120 = vld [vmem:[%s2119] ss:$2 sm:$0xff]
    %s2121 = scalar_lea.vmem [#allocation10], 18
    %v2122 = vld [vmem:[%s2121] ss:$2 sm:$0xff]
    %s2123 = scalar_lea.vmem [#allocation10], 34
    %v2124 = vld [vmem:[%s2123] ss:$2 sm:$0x3]
    %v2125 = vpack.c.bf16 %v2122, %v2120
    %v2126 = vpack.c.bf16 %v2124, %v2124
    %v2127 = vld [vmem:[%s35 + $0x8] sm:$0xf]
    %v2128 = vld [vmem:[%s35 + $0xc] sm:$0xf]
    %v2131 = vunpack.c.l.b16 %v2127
    %v2132 = vunpack.c.l.b16 %v2128
    %v2133 = vpack.c.b16 %v2132, %v2131
    %v2136 = vsel %vm292, %v2125, 0
    %v2139 = vsel %vm292, %v2126, 0
    %2141 = vmatpush.bf16.msra.mxu0 0
    %2142 = vmatpush.bf16.msra.mxu0 0
    %2143 = vmatpush.bf16.msra.mxu0 0
    %2144 = vmatpush.bf16.msra.mxu0 0
    %2145 = vmatpush.bf16.msra.mxu0 0
    %2146 = vmatpush.bf16.msra.mxu0 0
    %2147 = vmatpush.bf16.msra.mxu0 0
    %2148 = vmatpush.bf16.msra.mxu0 %v2133
    %2149 = vmatmul.bf16.gmra.mxu0 %v2136
    %v2150 = vpop.f32.mrf.mxu0
    %v2151 = vadd.f32 0.0, %v2150
    %v2152 = vpop.f32.mrf.mxu0
    %v2153 = vadd.f32 0.0, %v2152
    %2154 = vmatmul.bf16.gmra.mxu0 %v2139
    %v2155 = vpop.f32.mrf.mxu0
    %v2156 = vadd.f32 0.0, %v2155
    %v2157 = vpop.f32.mrf.mxu0
    %2158 = vdwg.mxu0
    %v2161 = vunpack.c.l.b16 %v2117
    %v2162 = vunpack.c.l.b16 %v2118
    %v2163 = vpack.c.b16 %v2162, %v2161
    %v2166 = vsel %vm292, %v2115, 0
    %v2169 = vsel %vm292, %v2116, 0
    %2171 = vmatpush.bf16.msra.mxu0 0
    %2172 = vmatpush.bf16.msra.mxu0 0
    %2173 = vmatpush.bf16.msra.mxu0 0
    %2174 = vmatpush.bf16.msra.mxu0 0
    %2175 = vmatpush.bf16.msra.mxu0 0
    %2176 = vmatpush.bf16.msra.mxu0 0
    %2177 = vmatpush.bf16.msra.mxu0 0
    %2178 = vmatpush.bf16.msra.mxu0 %v2163
    %2179 = vmatmul.bf16.gmra.mxu0 %v2166
    %v2180 = vpop.f32.mrf.mxu0
    %v2181 = vadd.f32 %v2151, %v2180
    %v2182 = vpop.f32.mrf.mxu0
    %v2183 = vadd.f32 %v2153, %v2182
    %2184 = vmatmul.bf16.gmra.mxu0 %v2169
    %v2185 = vpop.f32.mrf.mxu0
    %v2186 = vadd.f32 %v2156, %v2185
    %v2187 = vpop.f32.mrf.mxu0
    %2188 = vdwg.mxu0
    %s2189 = scalar_lea.vmem [#allocation10], 4
    %v2190 = vld [vmem:[%s2189] ss:$2 sm:$0xff]
    %s2191 = scalar_lea.vmem [#allocation10], 20
    %v2192 = vld [vmem:[%s2191] ss:$2 sm:$0xff]
    %s2193 = scalar_lea.vmem [#allocation10], 36
    %v2194 = vld [vmem:[%s2193] ss:$2 sm:$0x3]
    %v2195 = vpack.c.bf16 %v2192, %v2190
    %v2196 = vpack.c.bf16 %v2194, %v2194
    %v2197 = vld [vmem:[%s35 + $0x10] sm:$0xf]
    %v2198 = vld [vmem:[%s35 + $0x14] sm:$0xf]
    %v2201 = vunpack.c.l.b16 %v2197
    %v2202 = vunpack.c.l.b16 %v2198
    %v2203 = vpack.c.b16 %v2202, %v2201
    %v2206 = vsel %vm292, %v2195, 0
    %v2209 = vsel %vm292, %v2196, 0
    %2211 = vmatpush.bf16.msra.mxu0 0
    %2212 = vmatpush.bf16.msra.mxu0 0
    %2213 = vmatpush.bf16.msra.mxu0 0
    %2214 = vmatpush.bf16.msra.mxu0 0
    %2215 = vmatpush.bf16.msra.mxu0 0
    %2216 = vmatpush.bf16.msra.mxu0 0
    %2217 = vmatpush.bf16.msra.mxu0 0
    %2218 = vmatpush.bf16.msra.mxu0 %v2203
    %2219 = vmatmul.bf16.gmra.mxu0 %v2206
    %v2220 = vpop.f32.mrf.mxu0
    %v2221 = vadd.f32 0.0, %v2220
    %v2222 = vpop.f32.mrf.mxu0
    %v2223 = vadd.f32 0.0, %v2222
    %2224 = vmatmul.bf16.gmra.mxu0 %v2209
    %v2225 = vpop.f32.mrf.mxu0
    %v2226 = vadd.f32 0.0, %v2225
    %v2227 = vpop.f32.mrf.mxu0
    %2228 = vdwg.mxu0
    %v2229 = vadd.f32 %v2181, %v2221
    %v2230 = vadd.f32 %v2183, %v2223
    %v2231 = vadd.f32 %v2186, %v2226
    %v2232 = vld [vmem:[%s37] sm:$0x1]
    %v2234 = vperm.slane %v2232, 0
    %v2236 = vadd.f32 %v2229, %v2234
    %v2237 = vadd.f32 %v2230, %v2234
    %v2238 = vadd.f32 %v2231, %v2234
    %v2239 = vmax.f32 %v2236, 0.0
    %v2240 = vmax.f32 %v2237, 0.0
    %v2241 = vmax.f32 %v2238, 0.0
    %2242 = vst.msk [vmem:[#allocation11 + $0x4] sm:$0xff] %vm292, %v2239
    %2243 = vst.msk [vmem:[#allocation11 + $0x12] sm:$0xfc] %vm2105, %v2240
    %2244 = vst.msk [vmem:[#allocation11 + $0x1a] sm:$0x3] %vm2108, %v2241
    %v2245 = vld [vmem:[#allocation11] sm:$0xff]
    %v2246 = vld [vmem:[#allocation11 + $0x8] sm:$0xff]
    %v2247 = vld [vmem:[#allocation11 + $0x10] sm:$0xff]
    %v2248 = vpack.c.bf16 %v2246, %v2245
    %v2249 = vpack.c.bf16 %v2247, %v2247
    %v2250 = vld [vmem:[%s39] sm:$0xf]
    %v2251 = vld [vmem:[%s39 + $0x4] sm:$0xf]
    %v2252 = vld [vmem:[#allocation11 + $0x4] sm:$0xff]
    %v2253 = vld [vmem:[#allocation11 + $0xc] sm:$0xff]
    %v2254 = vld [vmem:[#allocation11 + $0x14] sm:$0xff]
    %v2255 = vpack.c.bf16 %v2253, %v2252
    %v2256 = vpack.c.bf16 %v2254, %v2254
    %v2257 = vld [vmem:[%s39 + $0x8] sm:$0xf]
    %v2258 = vld [vmem:[%s39 + $0xc] sm:$0xf]
    %v2261 = vunpack.c.l.b16 %v2257
    %v2262 = vunpack.c.l.b16 %v2258
    %v2263 = vpack.c.b16 %v2262, %v2261
    %v2266 = vsel %vm292, %v2255, 0
    %v2269 = vsel %vm292, %v2256, 0
    %2271 = vmatpush.bf16.msra.mxu0 0
    %2272 = vmatpush.bf16.msra.mxu0 0
    %2273 = vmatpush.bf16.msra.mxu0 0
    %2274 = vmatpush.bf16.msra.mxu0 0
    %2275 = vmatpush.bf16.msra.mxu0 0
    %2276 = vmatpush.bf16.msra.mxu0 0
    %2277 = vmatpush.bf16.msra.mxu0 0
    %2278 = vmatpush.bf16.msra.mxu0 %v2263
    %2279 = vmatmul.bf16.gmra.mxu0 %v2266
    %v2280 = vpop.f32.mrf.mxu0
    %v2281 = vadd.f32 0.0, %v2280
    %v2282 = vpop.f32.mrf.mxu0
    %2283 = vmatmul.bf16.gmra.mxu0 %v2269
    %v2284 = vpop.f32.mrf.mxu0
    %v2285 = vadd.f32 0.0, %v2284
    %v2286 = vpop.f32.mrf.mxu0
    %2287 = vdwg.mxu0
    %v2290 = vunpack.c.l.b16 %v2250
    %v2291 = vunpack.c.l.b16 %v2251
    %v2292 = vpack.c.b16 %v2291, %v2290
    %v2295 = vsel %vm292, %v2248, 0
    %v2298 = vsel %vm292, %v2249, 0
    %2300 = vmatpush.bf16.msra.mxu0 0
    %2301 = vmatpush.bf16.msra.mxu0 0
    %2302 = vmatpush.bf16.msra.mxu0 0
    %2303 = vmatpush.bf16.msra.mxu0 0
    %2304 = vmatpush.bf16.msra.mxu0 0
    %2305 = vmatpush.bf16.msra.mxu0 0
    %2306 = vmatpush.bf16.msra.mxu0 0
    %2307 = vmatpush.bf16.msra.mxu0 %v2292
    %2308 = vmatmul.bf16.gmra.mxu0 %v2295
    %v2309 = vpop.f32.mrf.mxu0
    %v2310 = vadd.f32 %v2281, %v2309
    %v2311 = vpop.f32.mrf.mxu0
    %2312 = vmatmul.bf16.gmra.mxu0 %v2298
    %v2313 = vpop.f32.mrf.mxu0
    %v2314 = vadd.f32 %v2285, %v2313
    %v2315 = vpop.f32.mrf.mxu0
    %2316 = vdwg.mxu0
    %v2317 = vld [vmem:[#allocation11 + $0x8] sm:$0xff]
    %v2318 = vld [vmem:[#allocation11 + $0x10] sm:$0xff]
    %v2319 = vld [vmem:[#allocation11 + $0x18] sm:$0xff]
    %v2320 = vpack.c.bf16 %v2318, %v2317
    %v2321 = vpack.c.bf16 %v2319, %v2319
    %v2322 = vld [vmem:[%s39 + $0x10] sm:$0xf]
    %v2323 = vld [vmem:[%s39 + $0x14] sm:$0xf]
    %v2326 = vunpack.c.l.b16 %v2322
    %v2327 = vunpack.c.l.b16 %v2323
    %v2328 = vpack.c.b16 %v2327, %v2326
    %v2331 = vsel %vm292, %v2320, 0
    %v2334 = vsel %vm292, %v2321, 0
    %2336 = vmatpush.bf16.msra.mxu0 0
    %2337 = vmatpush.bf16.msra.mxu0 0
    %2338 = vmatpush.bf16.msra.mxu0 0
    %2339 = vmatpush.bf16.msra.mxu0 0
    %2340 = vmatpush.bf16.msra.mxu0 0
    %2341 = vmatpush.bf16.msra.mxu0 0
    %2342 = vmatpush.bf16.msra.mxu0 0
    %2343 = vmatpush.bf16.msra.mxu0 %v2328
    %2344 = vmatmul.bf16.gmra.mxu0 %v2331
    %v2345 = vpop.f32.mrf.mxu0
    %v2346 = vadd.f32 0.0, %v2345
    %v2347 = vpop.f32.mrf.mxu0
    %2348 = vmatmul.bf16.gmra.mxu0 %v2334
    %v2349 = vpop.f32.mrf.mxu0
    %v2350 = vadd.f32 0.0, %v2349
    %v2351 = vpop.f32.mrf.mxu0
    %2352 = vdwg.mxu0
    %v2353 = vadd.f32 %v2310, %v2346
    %v2354 = vadd.f32 %v2314, %v2350
    %v2355 = vld [vmem:[%s41] sm:$0x1]
    %v2357 = vperm.slane %v2355, 0
    %v2359 = vadd.f32 %v2353, %v2357
    %v2360 = vadd.f32 %v2354, %v2357
    %s2361 = scalar_lea.vmem [#allocation9], 1
    %v2362 = vld [vmem:[%s2361] ss:$2 sm:$0xff]
    %s2363 = scalar_lea.vmem [#allocation9], 17
    %v2364 = vld [vmem:[%s2363] ss:$2 sm:$0xff]
    %s2365 = scalar_lea.vmem [#allocation9], 33
    %v2366 = vld [vmem:[%s2365] ss:$2 sm:$0x1]
    %v2367 = vpack.c.bf16 %v2364, %v2362
    %v2368 = vpack.c.bf16 %v2366, %v2366
    %v2369 = vld [vmem:[%s43] sm:$0xf]
    %v2370 = vld [vmem:[%s45] sm:$0x1]
    %v2372 = vperm.slane %v2370, 0
    %v2375 = vsel %vm244, %v2367, 0
    %v2378 = vsel %vm244, %v2368, 0
    %v2381 = vsel %vm391, %v2369, 0
    %2383 = vmatpush.bf16.msra.mxu0 0
    %2384 = vmatpush.bf16.msra.mxu0 0
    %2385 = vmatpush.bf16.msra.mxu0 0
    %2386 = vmatpush.bf16.msra.mxu0 0
    %2387 = vmatpush.bf16.msra.mxu0 0
    %2388 = vmatpush.bf16.msra.mxu0 0
    %2389 = vmatpush.bf16.msra.mxu0 0
    %2390 = vmatpush.bf16.msra.mxu0 %v2381
    %2391 = vmatmul.bf16.gmra.mxu0 %v2375
    %v2392 = vpop.f32.mrf.mxu0
    %v2393 = vadd.f32 %v2372, %v2392
    %v2394 = vpop.f32.mrf.mxu0
    %v2395 = vadd.f32 %v2372, %v2394
    %2396 = vmatmul.bf16.gmra.mxu0 %v2378
    %v2397 = vpop.f32.mrf.mxu0
    %v2398 = vadd.f32 %v2372, %v2397
    %v2399 = vpop.f32.mrf.mxu0
    %2400 = vdwg.mxu0
    %v2401 = vadd.f32 %v2359, %v2393
    %v2402 = vmax.f32 %v2401, 0.0
    %v2405 = vrot.slane %v2395, 1
    %v2406 = vrot.slane %v2398, 1
    %v2407 = vsel %vm1471, %v2405, %v2406
    %v2409 = vadd.f32 %v2360, %v2407
    %v2410 = vmax.f32 %v2409, 0.0
    %2411 = vst.msk [vmem:[#allocation12 + $0x1] sm:$0xff] %vm292, %v2402
    %2412 = vst.msk [vmem:[#allocation12 + $0xb] sm:$0xff] %vm292, %v2410
    %v2413 = vld [vmem:[#allocation12] sm:$0xff]
    %v2414 = vld [vmem:[#allocation12 + $0x8] sm:$0xff]
    %v2415 = vld [vmem:[#allocation12 + $0x10] sm:$0x3]
    %v2416 = vpack.c.bf16 %v2414, %v2413
    %v2417 = vpack.c.bf16 %v2415, %v2415
    %v2418 = vld [vmem:[%s47] sm:$0xf]
    %v2419 = vld [vmem:[%s47 + $0x4] sm:$0xf]
    %v2420 = vld [vmem:[#allocation12 + $0x1] sm:$0xff]
    %v2421 = vld [vmem:[#allocation12 + $0x9] sm:$0xff]
    %v2422 = vld [vmem:[#allocation12 + $0x11] sm:$0x3]
    %v2423 = vpack.c.bf16 %v2421, %v2420
    %v2424 = vpack.c.bf16 %v2422, %v2422
    %v2425 = vld [vmem:[%s47 + $0x8] sm:$0xf]
    %v2426 = vld [vmem:[%s47 + $0xc] sm:$0xf]
    %v2429 = vunpack.c.l.b16 %v2425
    %v2430 = vunpack.c.l.b16 %v2426
    %v2431 = vpack.c.b16 %v2430, %v2429
    %v2434 = vsel %vm292, %v2423, 0
    %v2437 = vsel %vm292, %v2424, 0
    %2439 = vmatpush.bf16.msra.mxu0 0
    %2440 = vmatpush.bf16.msra.mxu0 0
    %2441 = vmatpush.bf16.msra.mxu0 0
    %2442 = vmatpush.bf16.msra.mxu0 0
    %2443 = vmatpush.bf16.msra.mxu0 0
    %2444 = vmatpush.bf16.msra.mxu0 0
    %2445 = vmatpush.bf16.msra.mxu0 0
    %2446 = vmatpush.bf16.msra.mxu0 %v2431
    %2447 = vmatmul.bf16.gmra.mxu0 %v2434
    %v2448 = vpop.f32.mrf.mxu0
    %v2449 = vadd.f32 0.0, %v2448
    %v2450 = vpop.f32.mrf.mxu0
    %v2451 = vadd.f32 0.0, %v2450
    %2452 = vmatmul.bf16.gmra.mxu0 %v2437
    %v2453 = vpop.f32.mrf.mxu0
    %v2454 = vadd.f32 0.0, %v2453
    %v2455 = vpop.f32.mrf.mxu0
    %2456 = vdwg.mxu0
    %v2459 = vunpack.c.l.b16 %v2418
    %v2460 = vunpack.c.l.b16 %v2419
    %v2461 = vpack.c.b16 %v2460, %v2459
    %v2464 = vsel %vm292, %v2416, 0
    %v2467 = vsel %vm292, %v2417, 0
    %2469 = vmatpush.bf16.msra.mxu0 0
    %2470 = vmatpush.bf16.msra.mxu0 0
    %2471 = vmatpush.bf16.msra.mxu0 0
    %2472 = vmatpush.bf16.msra.mxu0 0
    %2473 = vmatpush.bf16.msra.mxu0 0
    %2474 = vmatpush.bf16.msra.mxu0 0
    %2475 = vmatpush.bf16.msra.mxu0 0
    %2476 = vmatpush.bf16.msra.mxu0 %v2461
    %2477 = vmatmul.bf16.gmra.mxu0 %v2464
    %v2478 = vpop.f32.mrf.mxu0
    %v2479 = vadd.f32 %v2449, %v2478
    %v2480 = vpop.f32.mrf.mxu0
    %v2481 = vadd.f32 %v2451, %v2480
    %2482 = vmatmul.bf16.gmra.mxu0 %v2467
    %v2483 = vpop.f32.mrf.mxu0
    %v2484 = vadd.f32 %v2454, %v2483
    %v2485 = vpop.f32.mrf.mxu0
    %2486 = vdwg.mxu0
    %v2487 = vld [vmem:[#allocation12 + $0x2] sm:$0xff]
    %v2488 = vld [vmem:[#allocation12 + $0xa] sm:$0xff]
    %v2489 = vld [vmem:[#allocation12 + $0x12] sm:$0x3]
    %v2490 = vpack.c.bf16 %v2488, %v2487
    %v2491 = vpack.c.bf16 %v2489, %v2489
    %v2492 = vld [vmem:[%s47 + $0x10] sm:$0xf]
    %v2493 = vld [vmem:[%s47 + $0x14] sm:$0xf]
    %v2496 = vunpack.c.l.b16 %v2492
    %v2497 = vunpack.c.l.b16 %v2493
    %v2498 = vpack.c.b16 %v2497, %v2496
    %v2501 = vsel %vm292, %v2490, 0
    %v2504 = vsel %vm292, %v2491, 0
    %2506 = vmatpush.bf16.msra.mxu0 0
    %2507 = vmatpush.bf16.msra.mxu0 0
    %2508 = vmatpush.bf16.msra.mxu0 0
    %2509 = vmatpush.bf16.msra.mxu0 0
    %2510 = vmatpush.bf16.msra.mxu0 0
    %2511 = vmatpush.bf16.msra.mxu0 0
    %2512 = vmatpush.bf16.msra.mxu0 0
    %2513 = vmatpush.bf16.msra.mxu0 %v2498
    %2514 = vmatmul.bf16.gmra.mxu0 %v2501
    %v2515 = vpop.f32.mrf.mxu0
    %v2516 = vadd.f32 0.0, %v2515
    %v2517 = vpop.f32.mrf.mxu0
    %v2518 = vadd.f32 0.0, %v2517
    %2519 = vmatmul.bf16.gmra.mxu0 %v2504
    %v2520 = vpop.f32.mrf.mxu0
    %v2521 = vadd.f32 0.0, %v2520
    %v2522 = vpop.f32.mrf.mxu0
    %2523 = vdwg.mxu0
    %v2524 = vadd.f32 %v2479, %v2516
    %v2525 = vadd.f32 %v2481, %v2518
    %v2526 = vadd.f32 %v2484, %v2521
    %v2527 = vld [vmem:[%s49] sm:$0x1]
    %v2529 = vperm.slane %v2527, 0
    %v2531 = vadd.f32 %v2524, %v2529
    %v2532 = vadd.f32 %v2525, %v2529
    %v2533 = vadd.f32 %v2526, %v2529
    %v2534 = vmax.f32 %v2531, 0.0
    %v2535 = vmax.f32 %v2532, 0.0
    %v2536 = vmax.f32 %v2533, 0.0
    %2537 = vst.msk [vmem:[#allocation13 + $0x2] sm:$0xff] %vm292, %v2534
    %2538 = vst.msk [vmem:[#allocation13 + $0xc] sm:$0xfc] %vm2105, %v2535
    %2539 = vst.msk [vmem:[#allocation13 + $0x14] sm:$0x3] %vm2108, %v2536
    %v2540 = vld [vmem:[#allocation13] sm:$0xff]
    %v2541 = vld [vmem:[#allocation13 + $0x8] sm:$0xff]
    %v2542 = vld [vmem:[#allocation13 + $0x10] sm:$0xf]
    %v2543 = vpack.c.bf16 %v2541, %v2540
    %v2544 = vpack.c.bf16 %v2542, %v2542
    %v2545 = vld [vmem:[%s51] sm:$0xf]
    %v2546 = vld [vmem:[%s51 + $0x4] sm:$0xf]
    %v2547 = vld [vmem:[#allocation13 + $0x2] sm:$0xff]
    %v2548 = vld [vmem:[#allocation13 + $0xa] sm:$0xff]
    %v2549 = vld [vmem:[#allocation13 + $0x12] sm:$0xf]
    %v2550 = vpack.c.bf16 %v2548, %v2547
    %v2551 = vpack.c.bf16 %v2549, %v2549
    %v2552 = vld [vmem:[%s51 + $0x8] sm:$0xf]
    %v2553 = vld [vmem:[%s51 + $0xc] sm:$0xf]
    %v2556 = vunpack.c.l.b16 %v2552
    %v2557 = vunpack.c.l.b16 %v2553
    %v2558 = vpack.c.b16 %v2557, %v2556
    %v2561 = vsel %vm292, %v2550, 0
    %v2564 = vsel %vm292, %v2551, 0
    %2566 = vmatpush.bf16.msra.mxu0 0
    %2567 = vmatpush.bf16.msra.mxu0 0
    %2568 = vmatpush.bf16.msra.mxu0 0
    %2569 = vmatpush.bf16.msra.mxu0 0
    %2570 = vmatpush.bf16.msra.mxu0 0
    %2571 = vmatpush.bf16.msra.mxu0 0
    %2572 = vmatpush.bf16.msra.mxu0 0
    %2573 = vmatpush.bf16.msra.mxu0 %v2558
    %2574 = vmatmul.bf16.gmra.mxu0 %v2561
    %v2575 = vpop.f32.mrf.mxu0
    %v2576 = vadd.f32 0.0, %v2575
    %v2577 = vpop.f32.mrf.mxu0
    %v2578 = vadd.f32 0.0, %v2577
    %2579 = vmatmul.bf16.gmra.mxu0 %v2564
    %v2580 = vpop.f32.mrf.mxu0
    %v2581 = vadd.f32 0.0, %v2580
    %v2582 = vpop.f32.mrf.mxu0
    %2583 = vdwg.mxu0
    %v2586 = vunpack.c.l.b16 %v2545
    %v2587 = vunpack.c.l.b16 %v2546
    %v2588 = vpack.c.b16 %v2587, %v2586
    %v2591 = vsel %vm292, %v2543, 0
    %v2594 = vsel %vm292, %v2544, 0
    %2596 = vmatpush.bf16.msra.mxu0 0
    %2597 = vmatpush.bf16.msra.mxu0 0
    %2598 = vmatpush.bf16.msra.mxu0 0
    %2599 = vmatpush.bf16.msra.mxu0 0
    %2600 = vmatpush.bf16.msra.mxu0 0
    %2601 = vmatpush.bf16.msra.mxu0 0
    %2602 = vmatpush.bf16.msra.mxu0 0
    %2603 = vmatpush.bf16.msra.mxu0 %v2588
    %2604 = vmatmul.bf16.gmra.mxu0 %v2591
    %v2605 = vpop.f32.mrf.mxu0
    %v2606 = vadd.f32 %v2576, %v2605
    %v2607 = vpop.f32.mrf.mxu0
    %v2608 = vadd.f32 %v2578, %v2607
    %2609 = vmatmul.bf16.gmra.mxu0 %v2594
    %v2610 = vpop.f32.mrf.mxu0
    %v2611 = vadd.f32 %v2581, %v2610
    %v2612 = vpop.f32.mrf.mxu0
    %2613 = vdwg.mxu0
    %v2614 = vld [vmem:[#allocation13 + $0x4] sm:$0xff]
    %v2615 = vld [vmem:[#allocation13 + $0xc] sm:$0xff]
    %v2616 = vld [vmem:[#allocation13 + $0x14] sm:$0xf]
    %v2617 = vpack.c.bf16 %v2615, %v2614
    %v2618 = vpack.c.bf16 %v2616, %v2616
    %v2619 = vld [vmem:[%s51 + $0x10] sm:$0xf]
    %v2620 = vld [vmem:[%s51 + $0x14] sm:$0xf]
    %v2623 = vunpack.c.l.b16 %v2619
    %v2624 = vunpack.c.l.b16 %v2620
    %v2625 = vpack.c.b16 %v2624, %v2623
    %v2628 = vsel %vm292, %v2617, 0
    %v2631 = vsel %vm292, %v2618, 0
    %2633 = vmatpush.bf16.msra.mxu0 0
    %2634 = vmatpush.bf16.msra.mxu0 0
    %2635 = vmatpush.bf16.msra.mxu0 0
    %2636 = vmatpush.bf16.msra.mxu0 0
    %2637 = vmatpush.bf16.msra.mxu0 0
    %2638 = vmatpush.bf16.msra.mxu0 0
    %2639 = vmatpush.bf16.msra.mxu0 0
    %2640 = vmatpush.bf16.msra.mxu0 %v2625
    %2641 = vmatmul.bf16.gmra.mxu0 %v2628
    %v2642 = vpop.f32.mrf.mxu0
    %v2643 = vadd.f32 0.0, %v2642
    %v2644 = vpop.f32.mrf.mxu0
    %v2645 = vadd.f32 0.0, %v2644
    %2646 = vmatmul.bf16.gmra.mxu0 %v2631
    %v2647 = vpop.f32.mrf.mxu0
    %v2648 = vadd.f32 0.0, %v2647
    %v2649 = vpop.f32.mrf.mxu0
    %2650 = vdwg.mxu0
    %v2651 = vadd.f32 %v2606, %v2643
    %v2652 = vadd.f32 %v2608, %v2645
    %v2653 = vadd.f32 %v2611, %v2648
    %v2654 = vld [vmem:[%s53] sm:$0x1]
    %v2656 = vperm.slane %v2654, 0
    %v2658 = vadd.f32 %v2651, %v2656
    %v2659 = vadd.f32 %v2652, %v2656
    %v2660 = vadd.f32 %v2653, %v2656
    %v2661 = vmax.f32 %v2658, 0.0
    %v2662 = vmax.f32 %v2659, 0.0
    %v2663 = vmax.f32 %v2660, 0.0
    %2664 = vst.msk [vmem:[#allocation14 + $0x4] sm:$0xff] %vm292, %v2661
    %vm2665 = vcmask 130052
    %2666 = vst.msk [vmem:[#allocation14 + $0x10] sm:$0xf0] %vm2665, %v2662
    %2667 = vst.msk [vmem:[#allocation14 + $0x18] sm:$0xf] %vm304, %v2663
    %v2668 = vld [vmem:[#allocation14] sm:$0xff]
    %v2669 = vld [vmem:[#allocation14 + $0x8] sm:$0xff]
    %v2670 = vld [vmem:[#allocation14 + $0x10] sm:$0xff]
    %v2671 = vpack.c.bf16 %v2669, %v2668
    %v2672 = vpack.c.bf16 %v2670, %v2670
    %v2673 = vld [vmem:[%s55] sm:$0xf]
    %v2674 = vld [vmem:[%s55 + $0x4] sm:$0xf]
    %v2675 = vld [vmem:[#allocation14 + $0x4] sm:$0xff]
    %v2676 = vld [vmem:[#allocation14 + $0xc] sm:$0xff]
    %v2677 = vld [vmem:[#allocation14 + $0x14] sm:$0xff]
    %v2678 = vpack.c.bf16 %v2676, %v2675
    %v2679 = vpack.c.bf16 %v2677, %v2677
    %v2680 = vld [vmem:[%s55 + $0x8] sm:$0xf]
    %v2681 = vld [vmem:[%s55 + $0xc] sm:$0xf]
    %v2684 = vunpack.c.l.b16 %v2680
    %v2685 = vunpack.c.l.b16 %v2681
    %v2686 = vpack.c.b16 %v2685, %v2684
    %v2689 = vsel %vm292, %v2678, 0
    %v2692 = vsel %vm292, %v2679, 0
    %2694 = vmatpush.bf16.msra.mxu0 0
    %2695 = vmatpush.bf16.msra.mxu0 0
    %2696 = vmatpush.bf16.msra.mxu0 0
    %2697 = vmatpush.bf16.msra.mxu0 0
    %2698 = vmatpush.bf16.msra.mxu0 0
    %2699 = vmatpush.bf16.msra.mxu0 0
    %2700 = vmatpush.bf16.msra.mxu0 0
    %2701 = vmatpush.bf16.msra.mxu0 %v2686
    %2702 = vmatmul.bf16.gmra.mxu0 %v2689
    %v2703 = vpop.f32.mrf.mxu0
    %v2704 = vadd.f32 0.0, %v2703
    %v2705 = vpop.f32.mrf.mxu0
    %2706 = vmatmul.bf16.gmra.mxu0 %v2692
    %v2707 = vpop.f32.mrf.mxu0
    %v2708 = vadd.f32 0.0, %v2707
    %v2709 = vpop.f32.mrf.mxu0
    %2710 = vdwg.mxu0
    %v2713 = vunpack.c.l.b16 %v2673
    %v2714 = vunpack.c.l.b16 %v2674
    %v2715 = vpack.c.b16 %v2714, %v2713
    %v2718 = vsel %vm292, %v2671, 0
    %v2721 = vsel %vm292, %v2672, 0
    %2723 = vmatpush.bf16.msra.mxu0 0
    %2724 = vmatpush.bf16.msra.mxu0 0
    %2725 = vmatpush.bf16.msra.mxu0 0
    %2726 = vmatpush.bf16.msra.mxu0 0
    %2727 = vmatpush.bf16.msra.mxu0 0
    %2728 = vmatpush.bf16.msra.mxu0 0
    %2729 = vmatpush.bf16.msra.mxu0 0
    %2730 = vmatpush.bf16.msra.mxu0 %v2715
    %2731 = vmatmul.bf16.gmra.mxu0 %v2718
    %v2732 = vpop.f32.mrf.mxu0
    %v2733 = vadd.f32 %v2704, %v2732
    %v2734 = vpop.f32.mrf.mxu0
    %2735 = vmatmul.bf16.gmra.mxu0 %v2721
    %v2736 = vpop.f32.mrf.mxu0
    %v2737 = vadd.f32 %v2708, %v2736
    %v2738 = vpop.f32.mrf.mxu0
    %2739 = vdwg.mxu0
    %v2740 = vld [vmem:[#allocation14 + $0x8] sm:$0xff]
    %v2741 = vld [vmem:[#allocation14 + $0x10] sm:$0xff]
    %v2742 = vld [vmem:[#allocation14 + $0x18] sm:$0xff]
    %v2743 = vpack.c.bf16 %v2741, %v2740
    %v2744 = vpack.c.bf16 %v2742, %v2742
    %v2745 = vld [vmem:[%s55 + $0x10] sm:$0xf]
    %v2746 = vld [vmem:[%s55 + $0x14] sm:$0xf]
    %v2749 = vunpack.c.l.b16 %v2745
    %v2750 = vunpack.c.l.b16 %v2746
    %v2751 = vpack.c.b16 %v2750, %v2749
    %v2754 = vsel %vm292, %v2743, 0
    %v2757 = vsel %vm292, %v2744, 0
    %2759 = vmatpush.bf16.msra.mxu0 0
    %2760 = vmatpush.bf16.msra.mxu0 0
    %2761 = vmatpush.bf16.msra.mxu0 0
    %2762 = vmatpush.bf16.msra.mxu0 0
    %2763 = vmatpush.bf16.msra.mxu0 0
    %2764 = vmatpush.bf16.msra.mxu0 0
    %2765 = vmatpush.bf16.msra.mxu0 0
    %2766 = vmatpush.bf16.msra.mxu0 %v2751
    %2767 = vmatmul.bf16.gmra.mxu0 %v2754
    %v2768 = vpop.f32.mrf.mxu0
    %v2769 = vadd.f32 0.0, %v2768
    %v2770 = vpop.f32.mrf.mxu0
    %2771 = vmatmul.bf16.gmra.mxu0 %v2757
    %v2772 = vpop.f32.mrf.mxu0
    %v2773 = vadd.f32 0.0, %v2772
    %v2774 = vpop.f32.mrf.mxu0
    %2775 = vdwg.mxu0
    %v2776 = vadd.f32 %v2733, %v2769
    %v2777 = vadd.f32 %v2737, %v2773
    %v2778 = vld [vmem:[%s57] sm:$0x1]
    %v2780 = vperm.slane %v2778, 0
    %v2782 = vadd.f32 %v2776, %v2780
    %v2783 = vadd.f32 %v2777, %v2780
    %v2784 = vadd.f32 %v2782, %v2402
    %v2785 = vmax.f32 %v2784, 0.0
    %v2786 = vadd.f32 %v2783, %v2410
    %v2787 = vmax.f32 %v2786, 0.0
    %2788 = vst.msk [vmem:[#allocation15 + $0x1] sm:$0xff] %vm292, %v2785
    %2789 = vst.msk [vmem:[#allocation15 + $0xb] sm:$0xff] %vm292, %v2787
    %v2790 = vld [vmem:[#allocation15] sm:$0xff]
    %v2791 = vld [vmem:[#allocation15 + $0x8] sm:$0xff]
    %v2792 = vld [vmem:[#allocation15 + $0x10] sm:$0x3]
    %v2793 = vpack.c.bf16 %v2791, %v2790
    %v2794 = vpack.c.bf16 %v2792, %v2792
    %v2795 = vld [vmem:[%s59] sm:$0xf]
    %v2796 = vld [vmem:[%s59 + $0x4] sm:$0xf]
    %v2797 = vld [vmem:[#allocation15 + $0x1] sm:$0xff]
    %v2798 = vld [vmem:[#allocation15 + $0x9] sm:$0xff]
    %v2799 = vld [vmem:[#allocation15 + $0x11] sm:$0x3]
    %v2800 = vpack.c.bf16 %v2798, %v2797
    %v2801 = vpack.c.bf16 %v2799, %v2799
    %v2802 = vld [vmem:[%s59 + $0x8] sm:$0xf]
    %v2803 = vld [vmem:[%s59 + $0xc] sm:$0xf]
    %v2806 = vunpack.c.l.b16 %v2802
    %v2807 = vunpack.c.l.b16 %v2803
    %v2808 = vpack.c.b16 %v2807, %v2806
    %v2811 = vsel %vm292, %v2800, 0
    %v2814 = vsel %vm292, %v2801, 0
    %2816 = vmatpush.bf16.msra.mxu0 0
    %2817 = vmatpush.bf16.msra.mxu0 0
    %2818 = vmatpush.bf16.msra.mxu0 0
    %2819 = vmatpush.bf16.msra.mxu0 0
    %2820 = vmatpush.bf16.msra.mxu0 0
    %2821 = vmatpush.bf16.msra.mxu0 0
    %2822 = vmatpush.bf16.msra.mxu0 0
    %2823 = vmatpush.bf16.msra.mxu0 %v2808
    %2824 = vmatmul.bf16.gmra.mxu0 %v2811
    %v2825 = vpop.f32.mrf.mxu0
    %v2826 = vadd.f32 0.0, %v2825
    %v2827 = vpop.f32.mrf.mxu0
    %v2828 = vadd.f32 0.0, %v2827
    %2829 = vmatmul.bf16.gmra.mxu0 %v2814
    %v2830 = vpop.f32.mrf.mxu0
    %v2831 = vadd.f32 0.0, %v2830
    %v2832 = vpop.f32.mrf.mxu0
    %2833 = vdwg.mxu0
    %v2836 = vunpack.c.l.b16 %v2795
    %v2837 = vunpack.c.l.b16 %v2796
    %v2838 = vpack.c.b16 %v2837, %v2836
    %v2841 = vsel %vm292, %v2793, 0
    %v2844 = vsel %vm292, %v2794, 0
    %2846 = vmatpush.bf16.msra.mxu0 0
    %2847 = vmatpush.bf16.msra.mxu0 0
    %2848 = vmatpush.bf16.msra.mxu0 0
    %2849 = vmatpush.bf16.msra.mxu0 0
    %2850 = vmatpush.bf16.msra.mxu0 0
    %2851 = vmatpush.bf16.msra.mxu0 0
    %2852 = vmatpush.bf16.msra.mxu0 0
    %2853 = vmatpush.bf16.msra.mxu0 %v2838
    %2854 = vmatmul.bf16.gmra.mxu0 %v2841
    %v2855 = vpop.f32.mrf.mxu0
    %v2856 = vadd.f32 %v2826, %v2855
    %v2857 = vpop.f32.mrf.mxu0
    %v2858 = vadd.f32 %v2828, %v2857
    %2859 = vmatmul.bf16.gmra.mxu0 %v2844
    %v2860 = vpop.f32.mrf.mxu0
    %v2861 = vadd.f32 %v2831, %v2860
    %v2862 = vpop.f32.mrf.mxu0
    %2863 = vdwg.mxu0
    %v2864 = vld [vmem:[#allocation15 + $0x2] sm:$0xff]
    %v2865 = vld [vmem:[#allocation15 + $0xa] sm:$0xff]
    %v2866 = vld [vmem:[#allocation15 + $0x12] sm:$0x3]
    %v2867 = vpack.c.bf16 %v2865, %v2864
    %v2868 = vpack.c.bf16 %v2866, %v2866
    %v2869 = vld [vmem:[%s59 + $0x10] sm:$0xf]
    %v2870 = vld [vmem:[%s59 + $0x14] sm:$0xf]
    %v2873 = vunpack.c.l.b16 %v2869
    %v2874 = vunpack.c.l.b16 %v2870
    %v2875 = vpack.c.b16 %v2874, %v2873
    %v2878 = vsel %vm292, %v2867, 0
    %v2881 = vsel %vm292, %v2868, 0
    %2883 = vmatpush.bf16.msra.mxu0 0
    %2884 = vmatpush.bf16.msra.mxu0 0
    %2885 = vmatpush.bf16.msra.mxu0 0
    %2886 = vmatpush.bf16.msra.mxu0 0
    %2887 = vmatpush.bf16.msra.mxu0 0
    %2888 = vmatpush.bf16.msra.mxu0 0
    %2889 = vmatpush.bf16.msra.mxu0 0
    %2890 = vmatpush.bf16.msra.mxu0 %v2875
    %2891 = vmatmul.bf16.gmra.mxu0 %v2878
    %v2892 = vpop.f32.mrf.mxu0
    %v2893 = vadd.f32 0.0, %v2892
    %v2894 = vpop.f32.mrf.mxu0
    %v2895 = vadd.f32 0.0, %v2894
    %2896 = vmatmul.bf16.gmra.mxu0 %v2881
    %v2897 = vpop.f32.mrf.mxu0
    %v2898 = vadd.f32 0.0, %v2897
    %v2899 = vpop.f32.mrf.mxu0
    %2900 = vdwg.mxu0
    %v2901 = vadd.f32 %v2856, %v2893
    %v2902 = vadd.f32 %v2858, %v2895
    %v2903 = vadd.f32 %v2861, %v2898
    %v2904 = vld [vmem:[%s61] sm:$0x1]
    %v2906 = vperm.slane %v2904, 0
    %v2908 = vadd.f32 %v2901, %v2906
    %v2909 = vadd.f32 %v2902, %v2906
    %v2910 = vadd.f32 %v2903, %v2906
    %v2911 = vmax.f32 %v2908, 0.0
    %v2912 = vmax.f32 %v2909, 0.0
    %v2913 = vmax.f32 %v2910, 0.0
    %2914 = vst.msk [vmem:[#allocation16 + $0x2] sm:$0xff] %vm316, %v2911
    %vm2915 = vcmask 261122
    %2916 = vst.msk [vmem:[#allocation16 + $0xc] sm:$0xfc] %vm2915, %v2912
    %vm2917 = vcmask 254976
    %2918 = vst.msk [vmem:[#allocation16 + $0x14] sm:$0x3] %vm2917, %v2913
    %v2919 = vld [vmem:[#allocation16] ss:$2 sm:$0xff]
    %s2920 = scalar_lea.vmem [#allocation16], 16
    %v2921 = vld [vmem:[%s2920] ss:$2 sm:$0x3]
    %v2922 = vpack.c.bf16 %v2921, %v2919
    %v2923 = vld [vmem:[%s63] sm:$0xf]
    %v2924 = vld [vmem:[%s63 + $0x4] sm:$0xf]
    %v2925 = vld [vmem:[%s63 + $0x8] sm:$0xf]
    %v2926 = vld [vmem:[%s63 + $0xc] sm:$0xf]
    %s2927 = scalar_lea.vmem [#allocation16], 2
    %v2928 = vld [vmem:[%s2927] ss:$2 sm:$0xff]
    %s2929 = scalar_lea.vmem [#allocation16], 18
    %v2930 = vld [vmem:[%s2929] ss:$2 sm:$0x3]
    %v2931 = vpack.c.bf16 %v2930, %v2928
    %v2932 = vld [vmem:[%s63 + $0x10] sm:$0xf]
    %v2933 = vld [vmem:[%s63 + $0x14] sm:$0xf]
    %v2934 = vld [vmem:[%s63 + $0x18] sm:$0xf]
    %v2935 = vld [vmem:[%s63 + $0x1c] sm:$0xf]
    %v2940 = vunpack.c.l.b16 %v2932
    %v2941 = vunpack.c.l.b16 %v2933
    %v2942 = vunpack.c.l.b16 %v2934
    %v2943 = vunpack.c.l.b16 %v2935
    %v2944 = vpack.c.b16 %v2941, %v2940
    %v2945 = vpack.c.b16 %v2943, %v2942
    %v2949 = vsel %vm316, %v2931, 0
    %2951 = vmatpush.bf16.msra.mxu0 0
    %2952 = vmatpush.bf16.msra.mxu0 0
    %2953 = vmatpush.bf16.msra.mxu0 0
    %2954 = vmatpush.bf16.msra.mxu0 0
    %2955 = vmatpush.bf16.msra.mxu0 0
    %2956 = vmatpush.bf16.msra.mxu0 0
    %2957 = vmatpush.bf16.msra.mxu0 %v2945
    %2958 = vmatpush.bf16.msra.mxu0 %v2944
    %2959 = vmatmul.bf16.gmra.mxu0 %v2949
    %v2960 = vpop.f32.mrf.mxu0
    %v2961 = vadd.f32 0.0, %v2960
    %v2962 = vpop.f32.mrf.mxu0
    %v2963 = vadd.f32 0.0, %v2962
    %2964 = vdwg.mxu0
    %v2969 = vunpack.c.l.b16 %v2923
    %v2970 = vunpack.c.l.b16 %v2924
    %v2971 = vunpack.c.l.b16 %v2925
    %v2972 = vunpack.c.l.b16 %v2926
    %v2973 = vpack.c.b16 %v2970, %v2969
    %v2974 = vpack.c.b16 %v2972, %v2971
    %v2978 = vsel %vm316, %v2922, 0
    %2980 = vmatpush.bf16.msra.mxu0 0
    %2981 = vmatpush.bf16.msra.mxu0 0
    %2982 = vmatpush.bf16.msra.mxu0 0
    %2983 = vmatpush.bf16.msra.mxu0 0
    %2984 = vmatpush.bf16.msra.mxu0 0
    %2985 = vmatpush.bf16.msra.mxu0 0
    %2986 = vmatpush.bf16.msra.mxu0 %v2974
    %2987 = vmatpush.bf16.msra.mxu0 %v2973
    %2988 = vmatmul.bf16.gmra.mxu0 %v2978
    %v2989 = vpop.f32.mrf.mxu0
    %v2990 = vadd.f32 %v2961, %v2989
    %v2991 = vpop.f32.mrf.mxu0
    %v2992 = vadd.f32 %v2963, %v2991
    %2993 = vdwg.mxu0
    %s2994 = scalar_lea.vmem [#allocation16], 4
    %v2995 = vld [vmem:[%s2994] ss:$2 sm:$0xff]
    %s2996 = scalar_lea.vmem [#allocation16], 20
    %v2997 = vld [vmem:[%s2996] ss:$2 sm:$0x3]
    %v2998 = vpack.c.bf16 %v2997, %v2995
    %v2999 = vld [vmem:[%s63 + $0x20] sm:$0xf]
    %v3000 = vld [vmem:[%s63 + $0x24] sm:$0xf]
    %v3001 = vld [vmem:[%s63 + $0x28] sm:$0xf]
    %v3002 = vld [vmem:[%s63 + $0x2c] sm:$0xf]
    %v3007 = vunpack.c.l.b16 %v2999
    %v3008 = vunpack.c.l.b16 %v3000
    %v3009 = vunpack.c.l.b16 %v3001
    %v3010 = vunpack.c.l.b16 %v3002
    %v3011 = vpack.c.b16 %v3008, %v3007
    %v3012 = vpack.c.b16 %v3010, %v3009
    %v3016 = vsel %vm316, %v2998, 0
    %3018 = vmatpush.bf16.msra.mxu0 0
    %3019 = vmatpush.bf16.msra.mxu0 0
    %3020 = vmatpush.bf16.msra.mxu0 0
    %3021 = vmatpush.bf16.msra.mxu0 0
    %3022 = vmatpush.bf16.msra.mxu0 0
    %3023 = vmatpush.bf16.msra.mxu0 0
    %3024 = vmatpush.bf16.msra.mxu0 %v3012
    %3025 = vmatpush.bf16.msra.mxu0 %v3011
    %3026 = vmatmul.bf16.gmra.mxu0 %v3016
    %v3027 = vpop.f32.mrf.mxu0
    %v3028 = vadd.f32 0.0, %v3027
    %v3029 = vpop.f32.mrf.mxu0
    %v3030 = vadd.f32 0.0, %v3029
    %3031 = vdwg.mxu0
    %v3032 = vadd.f32 %v2990, %v3028
    %v3033 = vadd.f32 %v2992, %v3030
    %v3034 = vld [vmem:[%s65] sm:$0x1]
    %v3036 = vperm.slane %v3034, 0
    %v3038 = vadd.f32 %v3032, %v3036
    %v3039 = vadd.f32 %v3033, %v3036
    %v3040 = vmax.f32 %v3038, 0.0
    %v3041 = vmax.f32 %v3039, 0.0
    %3042 = vst.msk [vmem:[#allocation17 + $0x4] sm:$0xf] %vm324, %v3040
    %vm3043 = vcmask 261126
    %3044 = vst.msk [vmem:[#allocation17 + $0xa] sm:$0xc0] %vm3043, %v3040
    %3045 = vst.msk [vmem:[#allocation17 + $0x12] sm:$0x3] %vm2917, %v3041
    %v3046 = vld [vmem:[#allocation17] sm:$0xff]
    %v3047 = vld [vmem:[#allocation17 + $0x8] sm:$0xff]
    %v3048 = vpack.c.bf16 %v3047, %v3046
    %v3049 = vld [vmem:[%s67] sm:$0xf]
    %v3050 = vld [vmem:[%s67 + $0x4] sm:$0xf]
    %v3051 = vld [vmem:[%s67 + $0x8] sm:$0xf]
    %v3052 = vld [vmem:[%s67 + $0xc] sm:$0xf]
    %v3053 = vld [vmem:[#allocation17 + $0x4] sm:$0xff]
    %v3054 = vld [vmem:[#allocation17 + $0xc] sm:$0xff]
    %v3055 = vpack.c.bf16 %v3054, %v3053
    %v3056 = vld [vmem:[%s67 + $0x10] sm:$0xf]
    %v3057 = vld [vmem:[%s67 + $0x14] sm:$0xf]
    %v3058 = vld [vmem:[%s67 + $0x18] sm:$0xf]
    %v3059 = vld [vmem:[%s67 + $0x1c] sm:$0xf]
    %v3064 = vunpack.c.l.b16 %v3056
    %v3065 = vunpack.c.l.b16 %v3057
    %v3066 = vunpack.c.l.b16 %v3058
    %v3067 = vunpack.c.l.b16 %v3059
    %v3068 = vpack.c.b16 %v3065, %v3064
    %v3069 = vpack.c.b16 %v3067, %v3066
    %v3073 = vsel %vm316, %v3055, 0
    %3075 = vmatpush.bf16.msra.mxu0 0
    %3076 = vmatpush.bf16.msra.mxu0 0
    %3077 = vmatpush.bf16.msra.mxu0 0
    %3078 = vmatpush.bf16.msra.mxu0 0
    %3079 = vmatpush.bf16.msra.mxu0 0
    %3080 = vmatpush.bf16.msra.mxu0 0
    %3081 = vmatpush.bf16.msra.mxu0 %v3069
    %3082 = vmatpush.bf16.msra.mxu0 %v3068
    %3083 = vmatmul.bf16.gmra.mxu0 %v3073
    %v3084 = vpop.f32.mrf.mxu0
    %v3085 = vadd.f32 0.0, %v3084
    %v3086 = vpop.f32.mrf.mxu0
    %v3087 = vadd.f32 0.0, %v3086
    %3088 = vdwg.mxu0
    %v3093 = vunpack.c.l.b16 %v3049
    %v3094 = vunpack.c.l.b16 %v3050
    %v3095 = vunpack.c.l.b16 %v3051
    %v3096 = vunpack.c.l.b16 %v3052
    %v3097 = vpack.c.b16 %v3094, %v3093
    %v3098 = vpack.c.b16 %v3096, %v3095
    %v3102 = vsel %vm316, %v3048, 0
    %3104 = vmatpush.bf16.msra.mxu0 0
    %3105 = vmatpush.bf16.msra.mxu0 0
    %3106 = vmatpush.bf16.msra.mxu0 0
    %3107 = vmatpush.bf16.msra.mxu0 0
    %3108 = vmatpush.bf16.msra.mxu0 0
    %3109 = vmatpush.bf16.msra.mxu0 0
    %3110 = vmatpush.bf16.msra.mxu0 %v3098
    %3111 = vmatpush.bf16.msra.mxu0 %v3097
    %3112 = vmatmul.bf16.gmra.mxu0 %v3102
    %v3113 = vpop.f32.mrf.mxu0
    %v3114 = vadd.f32 %v3085, %v3113
    %v3115 = vpop.f32.mrf.mxu0
    %v3116 = vadd.f32 %v3087, %v3115
    %3117 = vdwg.mxu0
    %v3118 = vld [vmem:[#allocation17 + $0x8] sm:$0xff]
    %v3119 = vld [vmem:[#allocation17 + $0x10] sm:$0xff]
    %v3120 = vpack.c.bf16 %v3119, %v3118
    %v3121 = vld [vmem:[%s67 + $0x20] sm:$0xf]
    %v3122 = vld [vmem:[%s67 + $0x24] sm:$0xf]
    %v3123 = vld [vmem:[%s67 + $0x28] sm:$0xf]
    %v3124 = vld [vmem:[%s67 + $0x2c] sm:$0xf]
    %v3129 = vunpack.c.l.b16 %v3121
    %v3130 = vunpack.c.l.b16 %v3122
    %v3131 = vunpack.c.l.b16 %v3123
    %v3132 = vunpack.c.l.b16 %v3124
    %v3133 = vpack.c.b16 %v3130, %v3129
    %v3134 = vpack.c.b16 %v3132, %v3131
    %v3138 = vsel %vm316, %v3120, 0
    %3140 = vmatpush.bf16.msra.mxu0 0
    %3141 = vmatpush.bf16.msra.mxu0 0
    %3142 = vmatpush.bf16.msra.mxu0 0
    %3143 = vmatpush.bf16.msra.mxu0 0
    %3144 = vmatpush.bf16.msra.mxu0 0
    %3145 = vmatpush.bf16.msra.mxu0 0
    %3146 = vmatpush.bf16.msra.mxu0 %v3134
    %3147 = vmatpush.bf16.msra.mxu0 %v3133
    %3148 = vmatmul.bf16.gmra.mxu0 %v3138
    %v3149 = vpop.f32.mrf.mxu0
    %v3150 = vadd.f32 0.0, %v3149
    %v3151 = vpop.f32.mrf.mxu0
    %v3152 = vadd.f32 0.0, %v3151
    %3153 = vdwg.mxu0
    %v3154 = vadd.f32 %v3114, %v3150
    %v3155 = vadd.f32 %v3116, %v3152
    %v3156 = vld [vmem:[%s69] sm:$0x1]
    %v3158 = vperm.slane %v3156, 0
    %v3160 = vadd.f32 %v3154, %v3158
    %v3161 = vadd.f32 %v3155, %v3158
    %s3162 = scalar_lea.vmem [#allocation15], 1
    %v3163 = vld [vmem:[%s3162] ss:$2 sm:$0xff]
    %s3164 = scalar_lea.vmem [#allocation15], 17
    %v3165 = vld [vmem:[%s3164] ss:$2 sm:$0x1]
    %v3166 = vpack.c.bf16 %v3165, %v3163
    %v3167 = vld [vmem:[%s71] sm:$0xf]
    %v3168 = vld [vmem:[%s71 + $0x4] sm:$0xf]
    %v3169 = vld [vmem:[%s73] sm:$0x1]
    %v3171 = vperm.slane %v3169, 0
    %v3175 = vunpack.c.l.b16 %v3167
    %v3176 = vunpack.c.l.b16 %v3168
    %v3177 = vpack.c.b16 %v3176, %v3175
    %v3180 = vsel %vm292, %v3166, 0
    %3182 = vmatpush.bf16.msra.mxu0 0
    %3183 = vmatpush.bf16.msra.mxu0 0
    %3184 = vmatpush.bf16.msra.mxu0 0
    %3185 = vmatpush.bf16.msra.mxu0 0
    %3186 = vmatpush.bf16.msra.mxu0 0
    %3187 = vmatpush.bf16.msra.mxu0 0
    %3188 = vmatpush.bf16.msra.mxu0 0
    %3189 = vmatpush.bf16.msra.mxu0 %v3177
    %3190 = vmatmul.bf16.gmra.mxu0 %v3180
    %v3191 = vpop.f32.mrf.mxu0
    %v3192 = vadd.f32 %v3171, %v3191
    %v3193 = vpop.f32.mrf.mxu0
    %v3194 = vadd.f32 %v3171, %v3193
    %3195 = vdwg.mxu0
    %v3196 = vadd.f32 %v3160, %v3192
    %v3197 = vmax.f32 %v3196, 0.0
    %v3200 = vrot.slane %v3192, 1
    %v3201 = vrot.slane %v3194, 1
    %v3202 = vsel %vm1471, %v3200, %v3201
    %v3204 = vadd.f32 %v3161, %v3202
    %v3205 = vmax.f32 %v3204, 0.0
    %3206 = vst.msk [vmem:[#allocation18 + $0x1] sm:$0xf] %vm324, %v3197
    %vm3207 = vcmask 261124
    %3208 = vst.msk [vmem:[#allocation18 + $0x3] sm:$0xf0] %vm3207, %v3205
    %v3209 = vld [vmem:[#allocation18] sm:$0xff]
    %v3210 = vld [vmem:[#allocation18 + $0x8] sm:$0x3]
    %v3211 = vpack.c.bf16 %v3210, %v3209
    %v3212 = vld [vmem:[%s75] sm:$0xf]
    %v3213 = vld [vmem:[%s75 + $0x4] sm:$0xf]
    %v3214 = vld [vmem:[%s75 + $0x8] sm:$0xf]
    %v3215 = vld [vmem:[%s75 + $0xc] sm:$0xf]
    %v3216 = vld [vmem:[#allocation18 + $0x1] sm:$0xff]
    %v3217 = vld [vmem:[#allocation18 + $0x9] sm:$0x3]
    %v3218 = vpack.c.bf16 %v3217, %v3216
    %v3219 = vld [vmem:[%s75 + $0x10] sm:$0xf]
    %v3220 = vld [vmem:[%s75 + $0x14] sm:$0xf]
    %v3221 = vld [vmem:[%s75 + $0x18] sm:$0xf]
    %v3222 = vld [vmem:[%s75 + $0x1c] sm:$0xf]
    %v3227 = vunpack.c.l.b16 %v3219
    %v3228 = vunpack.c.l.b16 %v3220
    %v3229 = vunpack.c.l.b16 %v3221
    %v3230 = vunpack.c.l.b16 %v3222
    %v3231 = vpack.c.b16 %v3228, %v3227
    %v3232 = vpack.c.b16 %v3230, %v3229
    %v3236 = vsel %vm316, %v3218, 0
    %3238 = vmatpush.bf16.msra.mxu0 0
    %3239 = vmatpush.bf16.msra.mxu0 0
    %3240 = vmatpush.bf16.msra.mxu0 0
    %3241 = vmatpush.bf16.msra.mxu0 0
    %3242 = vmatpush.bf16.msra.mxu0 0
    %3243 = vmatpush.bf16.msra.mxu0 0
    %3244 = vmatpush.bf16.msra.mxu0 %v3232
    %3245 = vmatpush.bf16.msra.mxu0 %v3231
    %3246 = vmatmul.bf16.gmra.mxu0 %v3236
    %v3247 = vpop.f32.mrf.mxu0
    %v3248 = vadd.f32 0.0, %v3247
    %v3249 = vpop.f32.mrf.mxu0
    %v3250 = vadd.f32 0.0, %v3249
    %3251 = vdwg.mxu0
    %v3256 = vunpack.c.l.b16 %v3212
    %v3257 = vunpack.c.l.b16 %v3213
    %v3258 = vunpack.c.l.b16 %v3214
    %v3259 = vunpack.c.l.b16 %v3215
    %v3260 = vpack.c.b16 %v3257, %v3256
    %v3261 = vpack.c.b16 %v3259, %v3258
    %v3265 = vsel %vm316, %v3211, 0
    %3267 = vmatpush.bf16.msra.mxu0 0
    %3268 = vmatpush.bf16.msra.mxu0 0
    %3269 = vmatpush.bf16.msra.mxu0 0
    %3270 = vmatpush.bf16.msra.mxu0 0
    %3271 = vmatpush.bf16.msra.mxu0 0
    %3272 = vmatpush.bf16.msra.mxu0 0
    %3273 = vmatpush.bf16.msra.mxu0 %v3261
    %3274 = vmatpush.bf16.msra.mxu0 %v3260
    %3275 = vmatmul.bf16.gmra.mxu0 %v3265
    %v3276 = vpop.f32.mrf.mxu0
    %v3277 = vadd.f32 %v3248, %v3276
    %v3278 = vpop.f32.mrf.mxu0
    %v3279 = vadd.f32 %v3250, %v3278
    %3280 = vdwg.mxu0
    %v3281 = vld [vmem:[#allocation18 + $0x2] sm:$0xff]
    %v3282 = vld [vmem:[#allocation18 + $0xa] sm:$0x3]
    %v3283 = vpack.c.bf16 %v3282, %v3281
    %v3284 = vld [vmem:[%s75 + $0x20] sm:$0xf]
    %v3285 = vld [vmem:[%s75 + $0x24] sm:$0xf]
    %v3286 = vld [vmem:[%s75 + $0x28] sm:$0xf]
    %v3287 = vld [vmem:[%s75 + $0x2c] sm:$0xf]
    %v3292 = vunpack.c.l.b16 %v3284
    %v3293 = vunpack.c.l.b16 %v3285
    %v3294 = vunpack.c.l.b16 %v3286
    %v3295 = vunpack.c.l.b16 %v3287
    %v3296 = vpack.c.b16 %v3293, %v3292
    %v3297 = vpack.c.b16 %v3295, %v3294
    %v3301 = vsel %vm316, %v3283, 0
    %3303 = vmatpush.bf16.msra.mxu0 0
    %3304 = vmatpush.bf16.msra.mxu0 0
    %3305 = vmatpush.bf16.msra.mxu0 0
    %3306 = vmatpush.bf16.msra.mxu0 0
    %3307 = vmatpush.bf16.msra.mxu0 0
    %3308 = vmatpush.bf16.msra.mxu0 0
    %3309 = vmatpush.bf16.msra.mxu0 %v3297
    %3310 = vmatpush.bf16.msra.mxu0 %v3296
    %3311 = vmatmul.bf16.gmra.mxu0 %v3301
    %v3312 = vpop.f32.mrf.mxu0
    %v3313 = vadd.f32 0.0, %v3312
    %v3314 = vpop.f32.mrf.mxu0
    %v3315 = vadd.f32 0.0, %v3314
    %3316 = vdwg.mxu0
    %v3317 = vadd.f32 %v3277, %v3313
    %v3318 = vadd.f32 %v3279, %v3315
    %v3319 = vld [vmem:[%s77] sm:$0x1]
    %v3321 = vperm.slane %v3319, 0
    %v3323 = vadd.f32 %v3317, %v3321
    %v3324 = vadd.f32 %v3318, %v3321
    %v3325 = vmax.f32 %v3323, 0.0
    %v3326 = vmax.f32 %v3324, 0.0
    %3327 = vst.msk [vmem:[#allocation19 + $0x2] sm:$0xf] %vm324, %v3325
    %3328 = vst.msk [vmem:[#allocation19 + $0x4] sm:$0xc0] %vm3043, %v3325
    %3329 = vst.msk [vmem:[#allocation19 + $0xc] sm:$0x3] %vm2917, %v3326
    %v3330 = vld [vmem:[#allocation19] sm:$0xff]
    %v3331 = vld [vmem:[#allocation19 + $0x8] sm:$0xf]
    %v3332 = vpack.c.bf16 %v3331, %v3330
    %v3333 = vld [vmem:[%s79] sm:$0xf]
    %v3334 = vld [vmem:[%s79 + $0x4] sm:$0xf]
    %v3335 = vld [vmem:[%s79 + $0x8] sm:$0xf]
    %v3336 = vld [vmem:[%s79 + $0xc] sm:$0xf]
    %v3337 = vld [vmem:[#allocation19 + $0x2] sm:$0xff]
    %v3338 = vld [vmem:[#allocation19 + $0xa] sm:$0xf]
    %v3339 = vpack.c.bf16 %v3338, %v3337
    %v3340 = vld [vmem:[%s79 + $0x10] sm:$0xf]
    %v3341 = vld [vmem:[%s79 + $0x14] sm:$0xf]
    %v3342 = vld [vmem:[%s79 + $0x18] sm:$0xf]
    %v3343 = vld [vmem:[%s79 + $0x1c] sm:$0xf]
    %v3348 = vunpack.c.l.b16 %v3340
    %v3349 = vunpack.c.l.b16 %v3341
    %v3350 = vunpack.c.l.b16 %v3342
    %v3351 = vunpack.c.l.b16 %v3343
    %v3352 = vpack.c.b16 %v3349, %v3348
    %v3353 = vpack.c.b16 %v3351, %v3350
    %v3357 = vsel %vm316, %v3339, 0
    %3359 = vmatpush.bf16.msra.mxu0 0
    %3360 = vmatpush.bf16.msra.mxu0 0
    %3361 = vmatpush.bf16.msra.mxu0 0
    %3362 = vmatpush.bf16.msra.mxu0 0
    %3363 = vmatpush.bf16.msra.mxu0 0
    %3364 = vmatpush.bf16.msra.mxu0 0
    %3365 = vmatpush.bf16.msra.mxu0 %v3353
    %3366 = vmatpush.bf16.msra.mxu0 %v3352
    %3367 = vmatmul.bf16.gmra.mxu0 %v3357
    %v3368 = vpop.f32.mrf.mxu0
    %v3369 = vadd.f32 0.0, %v3368
    %v3370 = vpop.f32.mrf.mxu0
    %v3371 = vadd.f32 0.0, %v3370
    %3372 = vdwg.mxu0
    %v3377 = vunpack.c.l.b16 %v3333
    %v3378 = vunpack.c.l.b16 %v3334
    %v3379 = vunpack.c.l.b16 %v3335
    %v3380 = vunpack.c.l.b16 %v3336
    %v3381 = vpack.c.b16 %v3378, %v3377
    %v3382 = vpack.c.b16 %v3380, %v3379
    %v3386 = vsel %vm316, %v3332, 0
    %3388 = vmatpush.bf16.msra.mxu0 0
    %3389 = vmatpush.bf16.msra.mxu0 0
    %3390 = vmatpush.bf16.msra.mxu0 0
    %3391 = vmatpush.bf16.msra.mxu0 0
    %3392 = vmatpush.bf16.msra.mxu0 0
    %3393 = vmatpush.bf16.msra.mxu0 0
    %3394 = vmatpush.bf16.msra.mxu0 %v3382
    %3395 = vmatpush.bf16.msra.mxu0 %v3381
    %3396 = vmatmul.bf16.gmra.mxu0 %v3386
    %v3397 = vpop.f32.mrf.mxu0
    %v3398 = vadd.f32 %v3369, %v3397
    %v3399 = vpop.f32.mrf.mxu0
    %v3400 = vadd.f32 %v3371, %v3399
    %3401 = vdwg.mxu0
    %v3402 = vld [vmem:[#allocation19 + $0x4] sm:$0xff]
    %v3403 = vld [vmem:[#allocation19 + $0xc] sm:$0xf]
    %v3404 = vpack.c.bf16 %v3403, %v3402
    %v3405 = vld [vmem:[%s79 + $0x20] sm:$0xf]
    %v3406 = vld [vmem:[%s79 + $0x24] sm:$0xf]
    %v3407 = vld [vmem:[%s79 + $0x28] sm:$0xf]
    %v3408 = vld [vmem:[%s79 + $0x2c] sm:$0xf]
    %v3413 = vunpack.c.l.b16 %v3405
    %v3414 = vunpack.c.l.b16 %v3406
    %v3415 = vunpack.c.l.b16 %v3407
    %v3416 = vunpack.c.l.b16 %v3408
    %v3417 = vpack.c.b16 %v3414, %v3413
    %v3418 = vpack.c.b16 %v3416, %v3415
    %v3422 = vsel %vm316, %v3404, 0
    %3424 = vmatpush.bf16.msra.mxu0 0
    %3425 = vmatpush.bf16.msra.mxu0 0
    %3426 = vmatpush.bf16.msra.mxu0 0
    %3427 = vmatpush.bf16.msra.mxu0 0
    %3428 = vmatpush.bf16.msra.mxu0 0
    %3429 = vmatpush.bf16.msra.mxu0 0
    %3430 = vmatpush.bf16.msra.mxu0 %v3418
    %3431 = vmatpush.bf16.msra.mxu0 %v3417
    %3432 = vmatmul.bf16.gmra.mxu0 %v3422
    %v3433 = vpop.f32.mrf.mxu0
    %v3434 = vadd.f32 0.0, %v3433
    %v3435 = vpop.f32.mrf.mxu0
    %v3436 = vadd.f32 0.0, %v3435
    %3437 = vdwg.mxu0
    %v3438 = vadd.f32 %v3398, %v3434
    %v3439 = vadd.f32 %v3400, %v3436
    %v3440 = vld [vmem:[%s81] sm:$0x1]
    %v3442 = vperm.slane %v3440, 0
    %v3444 = vadd.f32 %v3438, %v3442
    %v3445 = vadd.f32 %v3439, %v3442
    %v3446 = vmax.f32 %v3444, 0.0
    %v3447 = vmax.f32 %v3445, 0.0
    %3448 = vst.msk [vmem:[#allocation20 + $0x4] sm:$0xf] %vm324, %v3446
    %3449 = vst.msk [vmem:[#allocation20 + $0x10] sm:$0xf] %vm324, %v3447
    %v3450 = vld [vmem:[#allocation20] sm:$0xff]
    %v3451 = vld [vmem:[#allocation20 + $0x8] sm:$0xff]
    %v3452 = vpack.c.bf16 %v3451, %v3450
    %v3453 = vld [vmem:[%s83] sm:$0xf]
    %v3454 = vld [vmem:[%s83 + $0x4] sm:$0xf]
    %v3455 = vld [vmem:[%s83 + $0x8] sm:$0xf]
    %v3456 = vld [vmem:[%s83 + $0xc] sm:$0xf]
    %v3457 = vld [vmem:[#allocation20 + $0x4] sm:$0xff]
    %v3458 = vld [vmem:[#allocation20 + $0xc] sm:$0xff]
    %v3459 = vpack.c.bf16 %v3458, %v3457
    %v3460 = vld [vmem:[%s83 + $0x10] sm:$0xf]
    %v3461 = vld [vmem:[%s83 + $0x14] sm:$0xf]
    %v3462 = vld [vmem:[%s83 + $0x18] sm:$0xf]
    %v3463 = vld [vmem:[%s83 + $0x1c] sm:$0xf]
    %v3468 = vunpack.c.l.b16 %v3460
    %v3469 = vunpack.c.l.b16 %v3461
    %v3470 = vunpack.c.l.b16 %v3462
    %v3471 = vunpack.c.l.b16 %v3463
    %v3472 = vpack.c.b16 %v3469, %v3468
    %v3473 = vpack.c.b16 %v3471, %v3470
    %v3477 = vsel %vm316, %v3459, 0
    %3479 = vmatpush.bf16.msra.mxu0 0
    %3480 = vmatpush.bf16.msra.mxu0 0
    %3481 = vmatpush.bf16.msra.mxu0 0
    %3482 = vmatpush.bf16.msra.mxu0 0
    %3483 = vmatpush.bf16.msra.mxu0 0
    %3484 = vmatpush.bf16.msra.mxu0 0
    %3485 = vmatpush.bf16.msra.mxu0 %v3473
    %3486 = vmatpush.bf16.msra.mxu0 %v3472
    %3487 = vmatmul.bf16.gmra.mxu0 %v3477
    %v3488 = vpop.f32.mrf.mxu0
    %v3489 = vadd.f32 0.0, %v3488
    %v3490 = vpop.f32.mrf.mxu0
    %v3491 = vadd.f32 0.0, %v3490
    %3492 = vdwg.mxu0
    %v3497 = vunpack.c.l.b16 %v3453
    %v3498 = vunpack.c.l.b16 %v3454
    %v3499 = vunpack.c.l.b16 %v3455
    %v3500 = vunpack.c.l.b16 %v3456
    %v3501 = vpack.c.b16 %v3498, %v3497
    %v3502 = vpack.c.b16 %v3500, %v3499
    %v3506 = vsel %vm316, %v3452, 0
    %3508 = vmatpush.bf16.msra.mxu0 0
    %3509 = vmatpush.bf16.msra.mxu0 0
    %3510 = vmatpush.bf16.msra.mxu0 0
    %3511 = vmatpush.bf16.msra.mxu0 0
    %3512 = vmatpush.bf16.msra.mxu0 0
    %3513 = vmatpush.bf16.msra.mxu0 0
    %3514 = vmatpush.bf16.msra.mxu0 %v3502
    %3515 = vmatpush.bf16.msra.mxu0 %v3501
    %3516 = vmatmul.bf16.gmra.mxu0 %v3506
    %v3517 = vpop.f32.mrf.mxu0
    %v3518 = vadd.f32 %v3489, %v3517
    %v3519 = vpop.f32.mrf.mxu0
    %v3520 = vadd.f32 %v3491, %v3519
    %3521 = vdwg.mxu0
    %v3522 = vld [vmem:[#allocation20 + $0x8] sm:$0xff]
    %v3523 = vld [vmem:[#allocation20 + $0x10] sm:$0xff]
    %v3524 = vpack.c.bf16 %v3523, %v3522
    %v3525 = vld [vmem:[%s83 + $0x20] sm:$0xf]
    %v3526 = vld [vmem:[%s83 + $0x24] sm:$0xf]
    %v3527 = vld [vmem:[%s83 + $0x28] sm:$0xf]
    %v3528 = vld [vmem:[%s83 + $0x2c] sm:$0xf]
    %v3533 = vunpack.c.l.b16 %v3525
    %v3534 = vunpack.c.l.b16 %v3526
    %v3535 = vunpack.c.l.b16 %v3527
    %v3536 = vunpack.c.l.b16 %v3528
    %v3537 = vpack.c.b16 %v3534, %v3533
    %v3538 = vpack.c.b16 %v3536, %v3535
    %v3542 = vsel %vm316, %v3524, 0
    %3544 = vmatpush.bf16.msra.mxu0 0
    %3545 = vmatpush.bf16.msra.mxu0 0
    %3546 = vmatpush.bf16.msra.mxu0 0
    %3547 = vmatpush.bf16.msra.mxu0 0
    %3548 = vmatpush.bf16.msra.mxu0 0
    %3549 = vmatpush.bf16.msra.mxu0 0
    %3550 = vmatpush.bf16.msra.mxu0 %v3538
    %3551 = vmatpush.bf16.msra.mxu0 %v3537
    %3552 = vmatmul.bf16.gmra.mxu0 %v3542
    %v3553 = vpop.f32.mrf.mxu0
    %v3554 = vadd.f32 0.0, %v3553
    %v3555 = vpop.f32.mrf.mxu0
    %v3556 = vadd.f32 0.0, %v3555
    %3557 = vdwg.mxu0
    %v3558 = vadd.f32 %v3518, %v3554
    %v3559 = vadd.f32 %v3520, %v3556
    %v3560 = vld [vmem:[%s85] sm:$0x1]
    %v3562 = vperm.slane %v3560, 0
    %v3564 = vadd.f32 %v3558, %v3562
    %v3565 = vadd.f32 %v3559, %v3562
    %v3566 = vadd.f32 %v3564, %v3197
    %v3567 = vmax.f32 %v3566, 0.0
    %v3568 = vadd.f32 %v3565, %v3205
    %v3569 = vmax.f32 %v3568, 0.0
    %3570 = vst.msk [vmem:[#allocation21 + $0x1] sm:$0xf] %vm324, %v3567
    %3571 = vst.msk [vmem:[#allocation21 + $0x3] sm:$0xf0] %vm3207, %v3569
    %v3572 = vld [vmem:[#allocation21] sm:$0xff]
    %v3573 = vld [vmem:[#allocation21 + $0x8] sm:$0x3]
    %v3574 = vpack.c.bf16 %v3573, %v3572
    %v3575 = vld [vmem:[%s87] sm:$0xf]
    %v3576 = vld [vmem:[%s87 + $0x4] sm:$0xf]
    %v3577 = vld [vmem:[%s87 + $0x8] sm:$0xf]
    %v3578 = vld [vmem:[%s87 + $0xc] sm:$0xf]
    %v3579 = vld [vmem:[#allocation21 + $0x1] sm:$0xff]
    %v3580 = vld [vmem:[#allocation21 + $0x9] sm:$0x3]
    %v3581 = vpack.c.bf16 %v3580, %v3579
    %v3582 = vld [vmem:[%s87 + $0x10] sm:$0xf]
    %v3583 = vld [vmem:[%s87 + $0x14] sm:$0xf]
    %v3584 = vld [vmem:[%s87 + $0x18] sm:$0xf]
    %v3585 = vld [vmem:[%s87 + $0x1c] sm:$0xf]
    %v3590 = vunpack.c.l.b16 %v3582
    %v3591 = vunpack.c.l.b16 %v3583
    %v3592 = vunpack.c.l.b16 %v3584
    %v3593 = vunpack.c.l.b16 %v3585
    %v3594 = vpack.c.b16 %v3591, %v3590
    %v3595 = vpack.c.b16 %v3593, %v3592
    %v3599 = vsel %vm316, %v3581, 0
    %3601 = vmatpush.bf16.msra.mxu0 0
    %3602 = vmatpush.bf16.msra.mxu0 0
    %3603 = vmatpush.bf16.msra.mxu0 0
    %3604 = vmatpush.bf16.msra.mxu0 0
    %3605 = vmatpush.bf16.msra.mxu0 0
    %3606 = vmatpush.bf16.msra.mxu0 0
    %3607 = vmatpush.bf16.msra.mxu0 %v3595
    %3608 = vmatpush.bf16.msra.mxu0 %v3594
    %3609 = vmatmul.bf16.gmra.mxu0 %v3599
    %v3610 = vpop.f32.mrf.mxu0
    %v3611 = vadd.f32 0.0, %v3610
    %v3612 = vpop.f32.mrf.mxu0
    %v3613 = vadd.f32 0.0, %v3612
    %3614 = vdwg.mxu0
    %v3619 = vunpack.c.l.b16 %v3575
    %v3620 = vunpack.c.l.b16 %v3576
    %v3621 = vunpack.c.l.b16 %v3577
    %v3622 = vunpack.c.l.b16 %v3578
    %v3623 = vpack.c.b16 %v3620, %v3619
    %v3624 = vpack.c.b16 %v3622, %v3621
    %v3628 = vsel %vm316, %v3574, 0
    %3630 = vmatpush.bf16.msra.mxu0 0
    %3631 = vmatpush.bf16.msra.mxu0 0
    %3632 = vmatpush.bf16.msra.mxu0 0
    %3633 = vmatpush.bf16.msra.mxu0 0
    %3634 = vmatpush.bf16.msra.mxu0 0
    %3635 = vmatpush.bf16.msra.mxu0 0
    %3636 = vmatpush.bf16.msra.mxu0 %v3624
    %3637 = vmatpush.bf16.msra.mxu0 %v3623
    %3638 = vmatmul.bf16.gmra.mxu0 %v3628
    %v3639 = vpop.f32.mrf.mxu0
    %v3640 = vadd.f32 %v3611, %v3639
    %v3641 = vpop.f32.mrf.mxu0
    %v3642 = vadd.f32 %v3613, %v3641
    %3643 = vdwg.mxu0
    %v3644 = vld [vmem:[#allocation21 + $0x2] sm:$0xff]
    %v3645 = vld [vmem:[#allocation21 + $0xa] sm:$0x3]
    %v3646 = vpack.c.bf16 %v3645, %v3644
    %v3647 = vld [vmem:[%s87 + $0x20] sm:$0xf]
    %v3648 = vld [vmem:[%s87 + $0x24] sm:$0xf]
    %v3649 = vld [vmem:[%s87 + $0x28] sm:$0xf]
    %v3650 = vld [vmem:[%s87 + $0x2c] sm:$0xf]
    %v3655 = vunpack.c.l.b16 %v3647
    %v3656 = vunpack.c.l.b16 %v3648
    %v3657 = vunpack.c.l.b16 %v3649
    %v3658 = vunpack.c.l.b16 %v3650
    %v3659 = vpack.c.b16 %v3656, %v3655
    %v3660 = vpack.c.b16 %v3658, %v3657
    %v3664 = vsel %vm316, %v3646, 0
    %3666 = vmatpush.bf16.msra.mxu0 0
    %3667 = vmatpush.bf16.msra.mxu0 0
    %3668 = vmatpush.bf16.msra.mxu0 0
    %3669 = vmatpush.bf16.msra.mxu0 0
    %3670 = vmatpush.bf16.msra.mxu0 0
    %3671 = vmatpush.bf16.msra.mxu0 0
    %3672 = vmatpush.bf16.msra.mxu0 %v3660
    %3673 = vmatpush.bf16.msra.mxu0 %v3659
    %3674 = vmatmul.bf16.gmra.mxu0 %v3664
    %v3675 = vpop.f32.mrf.mxu0
    %v3676 = vadd.f32 0.0, %v3675
    %v3677 = vpop.f32.mrf.mxu0
    %v3678 = vadd.f32 0.0, %v3677
    %3679 = vdwg.mxu0
    %v3680 = vadd.f32 %v3640, %v3676
    %v3681 = vadd.f32 %v3642, %v3678
    %v3682 = vld [vmem:[%s89] sm:$0x1]
    %v3684 = vperm.slane %v3682, 0
    %v3686 = vadd.f32 %v3680, %v3684
    %v3687 = vadd.f32 %v3681, %v3684
    %v3688 = vmax.f32 %v3686, 0.0
    %v3689 = vmax.f32 %v3687, 0.0
    %3690 = vst.msk [vmem:[#allocation22 + $0x2] sm:$0xf] %vm338, %v3688
    %vm3691 = vcmask 523270
    %3692 = vst.msk [vmem:[#allocation22 + $0x4] sm:$0xc0] %vm3691, %v3688
    %vm3693 = vcmask 517120
    %3694 = vst.msk [vmem:[#allocation22 + $0xc] sm:$0x3] %vm3693, %v3689
    %v3695 = vld [vmem:[#allocation22] ss:$2 sm:$0x3f]
    %v3696 = vpack.c.bf16 %v3695, %v3695
    %v3697 = vld [vmem:[%s91] sm:$0xf]
    %v3698 = vld [vmem:[%s91 + $0x4] sm:$0xf]
    %v3699 = vld [vmem:[%s91 + $0x8] sm:$0xf]
    %v3700 = vld [vmem:[%s91 + $0xc] sm:$0xf]
    %v3701 = vld [vmem:[%s91 + $0x10] sm:$0xf]
    %v3702 = vld [vmem:[%s91 + $0x14] sm:$0xf]
    %v3703 = vld [vmem:[%s91 + $0x18] sm:$0xf]
    %v3704 = vld [vmem:[%s91 + $0x1c] sm:$0xf]
    %s3705 = scalar_lea.vmem [#allocation22], 2
    %v3706 = vld [vmem:[%s3705] ss:$2 sm:$0x3f]
    %v3707 = vpack.c.bf16 %v3706, %v3706
    %v3708 = vld [vmem:[%s91 + $0x20] sm:$0xf]
    %v3709 = vld [vmem:[%s91 + $0x24] sm:$0xf]
    %v3710 = vld [vmem:[%s91 + $0x28] sm:$0xf]
    %v3711 = vld [vmem:[%s91 + $0x2c] sm:$0xf]
    %v3712 = vld [vmem:[%s91 + $0x30] sm:$0xf]
    %v3713 = vld [vmem:[%s91 + $0x34] sm:$0xf]
    %v3714 = vld [vmem:[%s91 + $0x38] sm:$0xf]
    %v3715 = vld [vmem:[%s91 + $0x3c] sm:$0xf]
    %v3724 = vunpack.c.l.b16 %v3708
    %v3725 = vunpack.c.l.b16 %v3709
    %v3726 = vunpack.c.l.b16 %v3710
    %v3727 = vunpack.c.l.b16 %v3711
    %v3728 = vunpack.c.l.b16 %v3712
    %v3729 = vunpack.c.l.b16 %v3713
    %v3730 = vunpack.c.l.b16 %v3714
    %v3731 = vunpack.c.l.b16 %v3715
    %v3732 = vpack.c.b16 %v3725, %v3724
    %v3733 = vpack.c.b16 %v3727, %v3726
    %v3734 = vpack.c.b16 %v3729, %v3728
    %v3735 = vpack.c.b16 %v3731, %v3730
    %v3741 = vsel %vm333, %v3707, 0
    %3743 = vmatpush.bf16.msra.mxu0 0
    %3744 = vmatpush.bf16.msra.mxu0 0
    %3745 = vmatpush.bf16.msra.mxu0 0
    %3746 = vmatpush.bf16.msra.mxu0 0
    %3747 = vmatpush.bf16.msra.mxu0 %v3735
    %3748 = vmatpush.bf16.msra.mxu0 %v3734
    %3749 = vmatpush.bf16.msra.mxu0 %v3733
    %3750 = vmatpush.bf16.msra.mxu0 %v3732
    %3751 = vmatmul.bf16.gmra.mxu0 %v3741
    %v3752 = vpop.f32.mrf.mxu0
    %v3753 = vadd.f32 0.0, %v3752
    %v3754 = vpop.f32.mrf.mxu0
    %3755 = vdwg.mxu0
    %v3764 = vunpack.c.l.b16 %v3697
    %v3765 = vunpack.c.l.b16 %v3698
    %v3766 = vunpack.c.l.b16 %v3699
    %v3767 = vunpack.c.l.b16 %v3700
    %v3768 = vunpack.c.l.b16 %v3701
    %v3769 = vunpack.c.l.b16 %v3702
    %v3770 = vunpack.c.l.b16 %v3703
    %v3771 = vunpack.c.l.b16 %v3704
    %v3772 = vpack.c.b16 %v3765, %v3764
    %v3773 = vpack.c.b16 %v3767, %v3766
    %v3774 = vpack.c.b16 %v3769, %v3768
    %v3775 = vpack.c.b16 %v3771, %v3770
    %v3781 = vsel %vm333, %v3696, 0
    %3783 = vmatpush.bf16.msra.mxu0 0
    %3784 = vmatpush.bf16.msra.mxu0 0
    %3785 = vmatpush.bf16.msra.mxu0 0
    %3786 = vmatpush.bf16.msra.mxu0 0
    %3787 = vmatpush.bf16.msra.mxu0 %v3775
    %3788 = vmatpush.bf16.msra.mxu0 %v3774
    %3789 = vmatpush.bf16.msra.mxu0 %v3773
    %3790 = vmatpush.bf16.msra.mxu0 %v3772
    %3791 = vmatmul.bf16.gmra.mxu0 %v3781
    %v3792 = vpop.f32.mrf.mxu0
    %v3793 = vadd.f32 %v3753, %v3792
    %v3794 = vpop.f32.mrf.mxu0
    %3795 = vdwg.mxu0
    %s3796 = scalar_lea.vmem [#allocation22], 4
    %v3797 = vld [vmem:[%s3796] ss:$2 sm:$0x3f]
    %v3798 = vpack.c.bf16 %v3797, %v3797
    %v3799 = vld [vmem:[%s91 + $0x40] sm:$0xf]
    %v3800 = vld [vmem:[%s91 + $0x44] sm:$0xf]
    %v3801 = vld [vmem:[%s91 + $0x48] sm:$0xf]
    %v3802 = vld [vmem:[%s91 + $0x4c] sm:$0xf]
    %v3803 = vld [vmem:[%s91 + $0x50] sm:$0xf]
    %v3804 = vld [vmem:[%s91 + $0x54] sm:$0xf]
    %v3805 = vld [vmem:[%s91 + $0x58] sm:$0xf]
    %v3806 = vld [vmem:[%s91 + $0x5c] sm:$0xf]
    %v3815 = vunpack.c.l.b16 %v3799
    %v3816 = vunpack.c.l.b16 %v3800
    %v3817 = vunpack.c.l.b16 %v3801
    %v3818 = vunpack.c.l.b16 %v3802
    %v3819 = vunpack.c.l.b16 %v3803
    %v3820 = vunpack.c.l.b16 %v3804
    %v3821 = vunpack.c.l.b16 %v3805
    %v3822 = vunpack.c.l.b16 %v3806
    %v3823 = vpack.c.b16 %v3816, %v3815
    %v3824 = vpack.c.b16 %v3818, %v3817
    %v3825 = vpack.c.b16 %v3820, %v3819
    %v3826 = vpack.c.b16 %v3822, %v3821
    %v3832 = vsel %vm333, %v3798, 0
    %3834 = vmatpush.bf16.msra.mxu0 0
    %3835 = vmatpush.bf16.msra.mxu0 0
    %3836 = vmatpush.bf16.msra.mxu0 0
    %3837 = vmatpush.bf16.msra.mxu0 0
    %3838 = vmatpush.bf16.msra.mxu0 %v3826
    %3839 = vmatpush.bf16.msra.mxu0 %v3825
    %3840 = vmatpush.bf16.msra.mxu0 %v3824
    %3841 = vmatpush.bf16.msra.mxu0 %v3823
    %3842 = vmatmul.bf16.gmra.mxu0 %v3832
    %v3843 = vpop.f32.mrf.mxu0
    %v3844 = vadd.f32 0.0, %v3843
    %v3845 = vpop.f32.mrf.mxu0
    %3846 = vdwg.mxu0
    %v3847 = vadd.f32 %v3793, %v3844
    %v3848 = vld [vmem:[%s93] sm:$0x1]
    %v3850 = vperm.slane %v3848, 0
    %v3852 = vadd.f32 %v3847, %v3850
    %v3853 = vmax.f32 %v3852, 0.0
    %3854 = vst.msk [vmem:[#allocation23 + $0x4] sm:$0x3] %vm3693, %v3853
    %vm3855 = vcmask 521220
    %3856 = vst.msk [vmem:[#allocation23 + $0xa] sm:$0x30] %vm3855, %v3853
    %v3857 = vld [vmem:[#allocation23] sm:$0xff]
    %v3858 = vld [vmem:[#allocation23 + $0x8] sm:$0xf]
    %v3859 = vpack.c.bf16 %v3858, %v3857
    %v3860 = vld [vmem:[%s95] sm:$0xf]
    %v3861 = vld [vmem:[%s95 + $0x4] sm:$0xf]
    %v3862 = vld [vmem:[%s95 + $0x8] sm:$0xf]
    %v3863 = vld [vmem:[%s95 + $0xc] sm:$0xf]
    %v3864 = vld [vmem:[%s95 + $0x10] sm:$0xf]
    %v3865 = vld [vmem:[%s95 + $0x14] sm:$0xf]
    %v3866 = vld [vmem:[%s95 + $0x18] sm:$0xf]
    %v3867 = vld [vmem:[%s95 + $0x1c] sm:$0xf]
    %v3868 = vld [vmem:[#allocation23 + $0x4] sm:$0xff]
    %v3869 = vld [vmem:[#allocation23 + $0xc] sm:$0xf]
    %v3870 = vpack.c.bf16 %v3869, %v3868
    %v3871 = vld [vmem:[%s95 + $0x20] sm:$0xf]
    %v3872 = vld [vmem:[%s95 + $0x24] sm:$0xf]
    %v3873 = vld [vmem:[%s95 + $0x28] sm:$0xf]
    %v3874 = vld [vmem:[%s95 + $0x2c] sm:$0xf]
    %v3875 = vld [vmem:[%s95 + $0x30] sm:$0xf]
    %v3876 = vld [vmem:[%s95 + $0x34] sm:$0xf]
    %v3877 = vld [vmem:[%s95 + $0x38] sm:$0xf]
    %v3878 = vld [vmem:[%s95 + $0x3c] sm:$0xf]
    %v3887 = vunpack.c.l.b16 %v3871
    %v3888 = vunpack.c.l.b16 %v3872
    %v3889 = vunpack.c.l.b16 %v3873
    %v3890 = vunpack.c.l.b16 %v3874
    %v3891 = vunpack.c.l.b16 %v3875
    %v3892 = vunpack.c.l.b16 %v3876
    %v3893 = vunpack.c.l.b16 %v3877
    %v3894 = vunpack.c.l.b16 %v3878
    %v3895 = vpack.c.b16 %v3888, %v3887
    %v3896 = vpack.c.b16 %v3890, %v3889
    %v3897 = vpack.c.b16 %v3892, %v3891
    %v3898 = vpack.c.b16 %v3894, %v3893
    %v3904 = vsel %vm333, %v3870, 0
    %3906 = vmatpush.bf16.msra.mxu0 0
    %3907 = vmatpush.bf16.msra.mxu0 0
    %3908 = vmatpush.bf16.msra.mxu0 0
    %3909 = vmatpush.bf16.msra.mxu0 0
    %3910 = vmatpush.bf16.msra.mxu0 %v3898
    %3911 = vmatpush.bf16.msra.mxu0 %v3897
    %3912 = vmatpush.bf16.msra.mxu0 %v3896
    %3913 = vmatpush.bf16.msra.mxu0 %v3895
    %3914 = vmatmul.bf16.gmra.mxu0 %v3904
    %v3915 = vpop.f32.mrf.mxu0
    %v3916 = vadd.f32 0.0, %v3915
    %v3917 = vpop.f32.mrf.mxu0
    %v3918 = vadd.f32 0.0, %v3917
    %3919 = vdwg.mxu0
    %v3928 = vunpack.c.l.b16 %v3860
    %v3929 = vunpack.c.l.b16 %v3861
    %v3930 = vunpack.c.l.b16 %v3862
    %v3931 = vunpack.c.l.b16 %v3863
    %v3932 = vunpack.c.l.b16 %v3864
    %v3933 = vunpack.c.l.b16 %v3865
    %v3934 = vunpack.c.l.b16 %v3866
    %v3935 = vunpack.c.l.b16 %v3867
    %v3936 = vpack.c.b16 %v3929, %v3928
    %v3937 = vpack.c.b16 %v3931, %v3930
    %v3938 = vpack.c.b16 %v3933, %v3932
    %v3939 = vpack.c.b16 %v3935, %v3934
    %v3945 = vsel %vm333, %v3859, 0
    %3947 = vmatpush.bf16.msra.mxu0 0
    %3948 = vmatpush.bf16.msra.mxu0 0
    %3949 = vmatpush.bf16.msra.mxu0 0
    %3950 = vmatpush.bf16.msra.mxu0 0
    %3951 = vmatpush.bf16.msra.mxu0 %v3939
    %3952 = vmatpush.bf16.msra.mxu0 %v3938
    %3953 = vmatpush.bf16.msra.mxu0 %v3937
    %3954 = vmatpush.bf16.msra.mxu0 %v3936
    %3955 = vmatmul.bf16.gmra.mxu0 %v3945
    %v3956 = vpop.f32.mrf.mxu0
    %v3957 = vadd.f32 %v3916, %v3956
    %v3958 = vpop.f32.mrf.mxu0
    %v3959 = vadd.f32 %v3918, %v3958
    %3960 = vdwg.mxu0
    %v3961 = vld [vmem:[#allocation23 + $0x8] sm:$0xff]
    %v3962 = vld [vmem:[#allocation23 + $0x10] sm:$0xf]
    %v3963 = vpack.c.bf16 %v3962, %v3961
    %v3964 = vld [vmem:[%s95 + $0x40] sm:$0xf]
    %v3965 = vld [vmem:[%s95 + $0x44] sm:$0xf]
    %v3966 = vld [vmem:[%s95 + $0x48] sm:$0xf]
    %v3967 = vld [vmem:[%s95 + $0x4c] sm:$0xf]
    %v3968 = vld [vmem:[%s95 + $0x50] sm:$0xf]
    %v3969 = vld [vmem:[%s95 + $0x54] sm:$0xf]
    %v3970 = vld [vmem:[%s95 + $0x58] sm:$0xf]
    %v3971 = vld [vmem:[%s95 + $0x5c] sm:$0xf]
    %v3980 = vunpack.c.l.b16 %v3964
    %v3981 = vunpack.c.l.b16 %v3965
    %v3982 = vunpack.c.l.b16 %v3966
    %v3983 = vunpack.c.l.b16 %v3967
    %v3984 = vunpack.c.l.b16 %v3968
    %v3985 = vunpack.c.l.b16 %v3969
    %v3986 = vunpack.c.l.b16 %v3970
    %v3987 = vunpack.c.l.b16 %v3971
    %v3988 = vpack.c.b16 %v3981, %v3980
    %v3989 = vpack.c.b16 %v3983, %v3982
    %v3990 = vpack.c.b16 %v3985, %v3984
    %v3991 = vpack.c.b16 %v3987, %v3986
    %v3997 = vsel %vm333, %v3963, 0
    %3999 = vmatpush.bf16.msra.mxu0 0
    %4000 = vmatpush.bf16.msra.mxu0 0
    %4001 = vmatpush.bf16.msra.mxu0 0
    %4002 = vmatpush.bf16.msra.mxu0 0
    %4003 = vmatpush.bf16.msra.mxu0 %v3991
    %4004 = vmatpush.bf16.msra.mxu0 %v3990
    %4005 = vmatpush.bf16.msra.mxu0 %v3989
    %4006 = vmatpush.bf16.msra.mxu0 %v3988
    %4007 = vmatmul.bf16.gmra.mxu0 %v3997
    %v4008 = vpop.f32.mrf.mxu0
    %v4009 = vadd.f32 0.0, %v4008
    %v4010 = vpop.f32.mrf.mxu0
    %v4011 = vadd.f32 0.0, %v4010
    %4012 = vdwg.mxu0
    %v4013 = vadd.f32 %v3957, %v4009
    %v4014 = vadd.f32 %v3959, %v4011
    %v4015 = vld [vmem:[%s97] sm:$0x1]
    %v4017 = vperm.slane %v4015, 0
    %v4019 = vadd.f32 %v4013, %v4017
    %v4020 = vadd.f32 %v4014, %v4017
    %s4021 = scalar_lea.vmem [#allocation21], 1
    %v4022 = vld [vmem:[%s4021] ss:$2 sm:$0x1f]
    %v4023 = vpack.c.bf16 %v4022, %v4022
    %v4024 = vld [vmem:[%s99] sm:$0xf]
    %v4025 = vld [vmem:[%s99 + $0x4] sm:$0xf]
    %v4026 = vld [vmem:[%s99 + $0x8] sm:$0xf]
    %v4027 = vld [vmem:[%s99 + $0xc] sm:$0xf]
    %v4028 = vld [vmem:[%s101] sm:$0x1]
    %v4030 = vperm.slane %v4028, 0
    %v4036 = vunpack.c.l.b16 %v4024
    %v4037 = vunpack.c.l.b16 %v4025
    %v4038 = vunpack.c.l.b16 %v4026
    %v4039 = vunpack.c.l.b16 %v4027
    %v4040 = vpack.c.b16 %v4037, %v4036
    %v4041 = vpack.c.b16 %v4039, %v4038
    %v4045 = vsel %vm316, %v4023, 0
    %4047 = vmatpush.bf16.msra.mxu0 0
    %4048 = vmatpush.bf16.msra.mxu0 0
    %4049 = vmatpush.bf16.msra.mxu0 0
    %4050 = vmatpush.bf16.msra.mxu0 0
    %4051 = vmatpush.bf16.msra.mxu0 0
    %4052 = vmatpush.bf16.msra.mxu0 0
    %4053 = vmatpush.bf16.msra.mxu0 %v4041
    %4054 = vmatpush.bf16.msra.mxu0 %v4040
    %4055 = vmatmul.bf16.gmra.mxu0 %v4045
    %v4056 = vpop.f32.mrf.mxu0
    %v4057 = vadd.f32 %v4030, %v4056
    %v4058 = vpop.f32.mrf.mxu0
    %4059 = vdwg.mxu0
    %v4060 = vadd.f32 %v4019, %v4057
    %v4061 = vmax.f32 %v4060, 0.0
    %v4063 = vrot.slane %v4057, 1
    %v4065 = vadd.f32 %v4020, %v4063
    %v4066 = vmax.f32 %v4065, 0.0
    %4067 = vst.msk [vmem:[#allocation24 + $0x1] sm:$0x3] %vm3693, %v4061
    %vm4068 = vcmask 519170
    %4069 = vst.msk [vmem:[#allocation24 + $0x3] sm:$0xc] %vm4068, %v4066
    %v4070 = vld [vmem:[#allocation24] sm:$0x3f]
    %v4071 = vpack.c.bf16 %v4070, %v4070
    %v4072 = vld [vmem:[%s103] sm:$0xf]
    %v4073 = vld [vmem:[%s103 + $0x4] sm:$0xf]
    %v4074 = vld [vmem:[%s103 + $0x8] sm:$0xf]
    %v4075 = vld [vmem:[%s103 + $0xc] sm:$0xf]
    %v4076 = vld [vmem:[%s103 + $0x10] sm:$0xf]
    %v4077 = vld [vmem:[%s103 + $0x14] sm:$0xf]
    %v4078 = vld [vmem:[%s103 + $0x18] sm:$0xf]
    %v4079 = vld [vmem:[%s103 + $0x1c] sm:$0xf]
    %v4080 = vld [vmem:[#allocation24 + $0x1] sm:$0x3f]
    %v4081 = vpack.c.bf16 %v4080, %v4080
    %v4082 = vld [vmem:[%s103 + $0x20] sm:$0xf]
    %v4083 = vld [vmem:[%s103 + $0x24] sm:$0xf]
    %v4084 = vld [vmem:[%s103 + $0x28] sm:$0xf]
    %v4085 = vld [vmem:[%s103 + $0x2c] sm:$0xf]
    %v4086 = vld [vmem:[%s103 + $0x30] sm:$0xf]
    %v4087 = vld [vmem:[%s103 + $0x34] sm:$0xf]
    %v4088 = vld [vmem:[%s103 + $0x38] sm:$0xf]
    %v4089 = vld [vmem:[%s103 + $0x3c] sm:$0xf]
    %v4098 = vunpack.c.l.b16 %v4082
    %v4099 = vunpack.c.l.b16 %v4083
    %v4100 = vunpack.c.l.b16 %v4084
    %v4101 = vunpack.c.l.b16 %v4085
    %v4102 = vunpack.c.l.b16 %v4086
    %v4103 = vunpack.c.l.b16 %v4087
    %v4104 = vunpack.c.l.b16 %v4088
    %v4105 = vunpack.c.l.b16 %v4089
    %v4106 = vpack.c.b16 %v4099, %v4098
    %v4107 = vpack.c.b16 %v4101, %v4100
    %v4108 = vpack.c.b16 %v4103, %v4102
    %v4109 = vpack.c.b16 %v4105, %v4104
    %v4115 = vsel %vm333, %v4081, 0
    %4117 = vmatpush.bf16.msra.mxu0 0
    %4118 = vmatpush.bf16.msra.mxu0 0
    %4119 = vmatpush.bf16.msra.mxu0 0
    %4120 = vmatpush.bf16.msra.mxu0 0
    %4121 = vmatpush.bf16.msra.mxu0 %v4109
    %4122 = vmatpush.bf16.msra.mxu0 %v4108
    %4123 = vmatpush.bf16.msra.mxu0 %v4107
    %4124 = vmatpush.bf16.msra.mxu0 %v4106
    %4125 = vmatmul.bf16.gmra.mxu0 %v4115
    %v4126 = vpop.f32.mrf.mxu0
    %v4127 = vadd.f32 0.0, %v4126
    %v4128 = vpop.f32.mrf.mxu0
    %4129 = vdwg.mxu0
    %v4138 = vunpack.c.l.b16 %v4072
    %v4139 = vunpack.c.l.b16 %v4073
    %v4140 = vunpack.c.l.b16 %v4074
    %v4141 = vunpack.c.l.b16 %v4075
    %v4142 = vunpack.c.l.b16 %v4076
    %v4143 = vunpack.c.l.b16 %v4077
    %v4144 = vunpack.c.l.b16 %v4078
    %v4145 = vunpack.c.l.b16 %v4079
    %v4146 = vpack.c.b16 %v4139, %v4138
    %v4147 = vpack.c.b16 %v4141, %v4140
    %v4148 = vpack.c.b16 %v4143, %v4142
    %v4149 = vpack.c.b16 %v4145, %v4144
    %v4155 = vsel %vm333, %v4071, 0
    %4157 = vmatpush.bf16.msra.mxu0 0
    %4158 = vmatpush.bf16.msra.mxu0 0
    %4159 = vmatpush.bf16.msra.mxu0 0
    %4160 = vmatpush.bf16.msra.mxu0 0
    %4161 = vmatpush.bf16.msra.mxu0 %v4149
    %4162 = vmatpush.bf16.msra.mxu0 %v4148
    %4163 = vmatpush.bf16.msra.mxu0 %v4147
    %4164 = vmatpush.bf16.msra.mxu0 %v4146
    %4165 = vmatmul.bf16.gmra.mxu0 %v4155
    %v4166 = vpop.f32.mrf.mxu0
    %v4167 = vadd.f32 %v4127, %v4166
    %v4168 = vpop.f32.mrf.mxu0
    %4169 = vdwg.mxu0
    %v4170 = vld [vmem:[#allocation24 + $0x2] sm:$0x3f]
    %v4171 = vpack.c.bf16 %v4170, %v4170
    %v4172 = vld [vmem:[%s103 + $0x40] sm:$0xf]
    %v4173 = vld [vmem:[%s103 + $0x44] sm:$0xf]
    %v4174 = vld [vmem:[%s103 + $0x48] sm:$0xf]
    %v4175 = vld [vmem:[%s103 + $0x4c] sm:$0xf]
    %v4176 = vld [vmem:[%s103 + $0x50] sm:$0xf]
    %v4177 = vld [vmem:[%s103 + $0x54] sm:$0xf]
    %v4178 = vld [vmem:[%s103 + $0x58] sm:$0xf]
    %v4179 = vld [vmem:[%s103 + $0x5c] sm:$0xf]
    %v4188 = vunpack.c.l.b16 %v4172
    %v4189 = vunpack.c.l.b16 %v4173
    %v4190 = vunpack.c.l.b16 %v4174
    %v4191 = vunpack.c.l.b16 %v4175
    %v4192 = vunpack.c.l.b16 %v4176
    %v4193 = vunpack.c.l.b16 %v4177
    %v4194 = vunpack.c.l.b16 %v4178
    %v4195 = vunpack.c.l.b16 %v4179
    %v4196 = vpack.c.b16 %v4189, %v4188
    %v4197 = vpack.c.b16 %v4191, %v4190
    %v4198 = vpack.c.b16 %v4193, %v4192
    %v4199 = vpack.c.b16 %v4195, %v4194
    %v4205 = vsel %vm333, %v4171, 0
    %4207 = vmatpush.bf16.msra.mxu0 0
    %4208 = vmatpush.bf16.msra.mxu0 0
    %4209 = vmatpush.bf16.msra.mxu0 0
    %4210 = vmatpush.bf16.msra.mxu0 0
    %4211 = vmatpush.bf16.msra.mxu0 %v4199
    %4212 = vmatpush.bf16.msra.mxu0 %v4198
    %4213 = vmatpush.bf16.msra.mxu0 %v4197
    %4214 = vmatpush.bf16.msra.mxu0 %v4196
    %4215 = vmatmul.bf16.gmra.mxu0 %v4205
    %v4216 = vpop.f32.mrf.mxu0
    %v4217 = vadd.f32 0.0, %v4216
    %v4218 = vpop.f32.mrf.mxu0
    %4219 = vdwg.mxu0
    %v4220 = vadd.f32 %v4167, %v4217
    %v4221 = vld [vmem:[%s105] sm:$0x1]
    %v4223 = vperm.slane %v4221, 0
    %v4225 = vadd.f32 %v4220, %v4223
    %v4226 = vmax.f32 %v4225, 0.0
    %4227 = vst.msk [vmem:[#allocation25 + $0x2] sm:$0x3] %vm3693, %v4226
    %4228 = vst.msk [vmem:[#allocation25 + $0x4] sm:$0x30] %vm3855, %v4226
    %v4229 = vld [vmem:[#allocation25] sm:$0xff]
    %v4230 = vpack.c.bf16 %v4229, %v4229
    %v4231 = vld [vmem:[%s107] sm:$0xf]
    %v4232 = vld [vmem:[%s107 + $0x4] sm:$0xf]
    %v4233 = vld [vmem:[%s107 + $0x8] sm:$0xf]
    %v4234 = vld [vmem:[%s107 + $0xc] sm:$0xf]
    %v4235 = vld [vmem:[%s107 + $0x10] sm:$0xf]
    %v4236 = vld [vmem:[%s107 + $0x14] sm:$0xf]
    %v4237 = vld [vmem:[%s107 + $0x18] sm:$0xf]
    %v4238 = vld [vmem:[%s107 + $0x1c] sm:$0xf]
    %v4239 = vld [vmem:[#allocation25 + $0x2] sm:$0xff]
    %v4240 = vpack.c.bf16 %v4239, %v4239
    %v4241 = vld [vmem:[%s107 + $0x20] sm:$0xf]
    %v4242 = vld [vmem:[%s107 + $0x24] sm:$0xf]
    %v4243 = vld [vmem:[%s107 + $0x28] sm:$0xf]
    %v4244 = vld [vmem:[%s107 + $0x2c] sm:$0xf]
    %v4245 = vld [vmem:[%s107 + $0x30] sm:$0xf]
    %v4246 = vld [vmem:[%s107 + $0x34] sm:$0xf]
    %v4247 = vld [vmem:[%s107 + $0x38] sm:$0xf]
    %v4248 = vld [vmem:[%s107 + $0x3c] sm:$0xf]
    %v4257 = vunpack.c.l.b16 %v4241
    %v4258 = vunpack.c.l.b16 %v4242
    %v4259 = vunpack.c.l.b16 %v4243
    %v4260 = vunpack.c.l.b16 %v4244
    %v4261 = vunpack.c.l.b16 %v4245
    %v4262 = vunpack.c.l.b16 %v4246
    %v4263 = vunpack.c.l.b16 %v4247
    %v4264 = vunpack.c.l.b16 %v4248
    %v4265 = vpack.c.b16 %v4258, %v4257
    %v4266 = vpack.c.b16 %v4260, %v4259
    %v4267 = vpack.c.b16 %v4262, %v4261
    %v4268 = vpack.c.b16 %v4264, %v4263
    %v4274 = vsel %vm333, %v4240, 0
    %4276 = vmatpush.bf16.msra.mxu0 0
    %4277 = vmatpush.bf16.msra.mxu0 0
    %4278 = vmatpush.bf16.msra.mxu0 0
    %4279 = vmatpush.bf16.msra.mxu0 0
    %4280 = vmatpush.bf16.msra.mxu0 %v4268
    %4281 = vmatpush.bf16.msra.mxu0 %v4267
    %4282 = vmatpush.bf16.msra.mxu0 %v4266
    %4283 = vmatpush.bf16.msra.mxu0 %v4265
    %4284 = vmatmul.bf16.gmra.mxu0 %v4274
    %v4285 = vpop.f32.mrf.mxu0
    %v4286 = vadd.f32 0.0, %v4285
    %v4287 = vpop.f32.mrf.mxu0
    %4288 = vdwg.mxu0
    %v4297 = vunpack.c.l.b16 %v4231
    %v4298 = vunpack.c.l.b16 %v4232
    %v4299 = vunpack.c.l.b16 %v4233
    %v4300 = vunpack.c.l.b16 %v4234
    %v4301 = vunpack.c.l.b16 %v4235
    %v4302 = vunpack.c.l.b16 %v4236
    %v4303 = vunpack.c.l.b16 %v4237
    %v4304 = vunpack.c.l.b16 %v4238
    %v4305 = vpack.c.b16 %v4298, %v4297
    %v4306 = vpack.c.b16 %v4300, %v4299
    %v4307 = vpack.c.b16 %v4302, %v4301
    %v4308 = vpack.c.b16 %v4304, %v4303
    %v4314 = vsel %vm333, %v4230, 0
    %4316 = vmatpush.bf16.msra.mxu0 0
    %4317 = vmatpush.bf16.msra.mxu0 0
    %4318 = vmatpush.bf16.msra.mxu0 0
    %4319 = vmatpush.bf16.msra.mxu0 0
    %4320 = vmatpush.bf16.msra.mxu0 %v4308
    %4321 = vmatpush.bf16.msra.mxu0 %v4307
    %4322 = vmatpush.bf16.msra.mxu0 %v4306
    %4323 = vmatpush.bf16.msra.mxu0 %v4305
    %4324 = vmatmul.bf16.gmra.mxu0 %v4314
    %v4325 = vpop.f32.mrf.mxu0
    %v4326 = vadd.f32 %v4286, %v4325
    %v4327 = vpop.f32.mrf.mxu0
    %4328 = vdwg.mxu0
    %v4329 = vld [vmem:[#allocation25 + $0x4] sm:$0xff]
    %v4330 = vpack.c.bf16 %v4329, %v4329
    %v4331 = vld [vmem:[%s107 + $0x40] sm:$0xf]
    %v4332 = vld [vmem:[%s107 + $0x44] sm:$0xf]
    %v4333 = vld [vmem:[%s107 + $0x48] sm:$0xf]
    %v4334 = vld [vmem:[%s107 + $0x4c] sm:$0xf]
    %v4335 = vld [vmem:[%s107 + $0x50] sm:$0xf]
    %v4336 = vld [vmem:[%s107 + $0x54] sm:$0xf]
    %v4337 = vld [vmem:[%s107 + $0x58] sm:$0xf]
    %v4338 = vld [vmem:[%s107 + $0x5c] sm:$0xf]
    %v4347 = vunpack.c.l.b16 %v4331
    %v4348 = vunpack.c.l.b16 %v4332
    %v4349 = vunpack.c.l.b16 %v4333
    %v4350 = vunpack.c.l.b16 %v4334
    %v4351 = vunpack.c.l.b16 %v4335
    %v4352 = vunpack.c.l.b16 %v4336
    %v4353 = vunpack.c.l.b16 %v4337
    %v4354 = vunpack.c.l.b16 %v4338
    %v4355 = vpack.c.b16 %v4348, %v4347
    %v4356 = vpack.c.b16 %v4350, %v4349
    %v4357 = vpack.c.b16 %v4352, %v4351
    %v4358 = vpack.c.b16 %v4354, %v4353
    %v4364 = vsel %vm333, %v4330, 0
    %4366 = vmatpush.bf16.msra.mxu0 0
    %4367 = vmatpush.bf16.msra.mxu0 0
    %4368 = vmatpush.bf16.msra.mxu0 0
    %4369 = vmatpush.bf16.msra.mxu0 0
    %4370 = vmatpush.bf16.msra.mxu0 %v4358
    %4371 = vmatpush.bf16.msra.mxu0 %v4357
    %4372 = vmatpush.bf16.msra.mxu0 %v4356
    %4373 = vmatpush.bf16.msra.mxu0 %v4355
    %4374 = vmatmul.bf16.gmra.mxu0 %v4364
    %v4375 = vpop.f32.mrf.mxu0
    %v4376 = vadd.f32 0.0, %v4375
    %v4377 = vpop.f32.mrf.mxu0
    %4378 = vdwg.mxu0
    %v4379 = vadd.f32 %v4326, %v4376
    %v4380 = vld [vmem:[%s109] sm:$0x1]
    %v4382 = vperm.slane %v4380, 0
    %v4384 = vadd.f32 %v4379, %v4382
    %v4385 = vmax.f32 %v4384, 0.0
    %4386 = vst.msk [vmem:[#allocation26 + $0x4] sm:$0x3] %vm3693, %v4385
    %4387 = vst.msk [vmem:[#allocation26 + $0x8] sm:$0xc0] %vm3691, %v4385
    %v4388 = vld [vmem:[#allocation26] sm:$0xff]
    %v4389 = vld [vmem:[#allocation26 + $0x8] sm:$0xf]
    %v4390 = vpack.c.bf16 %v4389, %v4388
    %v4391 = vld [vmem:[%s111] sm:$0xf]
    %v4392 = vld [vmem:[%s111 + $0x4] sm:$0xf]
    %v4393 = vld [vmem:[%s111 + $0x8] sm:$0xf]
    %v4394 = vld [vmem:[%s111 + $0xc] sm:$0xf]
    %v4395 = vld [vmem:[%s111 + $0x10] sm:$0xf]
    %v4396 = vld [vmem:[%s111 + $0x14] sm:$0xf]
    %v4397 = vld [vmem:[%s111 + $0x18] sm:$0xf]
    %v4398 = vld [vmem:[%s111 + $0x1c] sm:$0xf]
    %v4399 = vld [vmem:[#allocation26 + $0x4] sm:$0xff]
    %v4400 = vld [vmem:[#allocation26 + $0xc] sm:$0xf]
    %v4401 = vpack.c.bf16 %v4400, %v4399
    %v4402 = vld [vmem:[%s111 + $0x20] sm:$0xf]
    %v4403 = vld [vmem:[%s111 + $0x24] sm:$0xf]
    %v4404 = vld [vmem:[%s111 + $0x28] sm:$0xf]
    %v4405 = vld [vmem:[%s111 + $0x2c] sm:$0xf]
    %v4406 = vld [vmem:[%s111 + $0x30] sm:$0xf]
    %v4407 = vld [vmem:[%s111 + $0x34] sm:$0xf]
    %v4408 = vld [vmem:[%s111 + $0x38] sm:$0xf]
    %v4409 = vld [vmem:[%s111 + $0x3c] sm:$0xf]
    %v4418 = vunpack.c.l.b16 %v4402
    %v4419 = vunpack.c.l.b16 %v4403
    %v4420 = vunpack.c.l.b16 %v4404
    %v4421 = vunpack.c.l.b16 %v4405
    %v4422 = vunpack.c.l.b16 %v4406
    %v4423 = vunpack.c.l.b16 %v4407
    %v4424 = vunpack.c.l.b16 %v4408
    %v4425 = vunpack.c.l.b16 %v4409
    %v4426 = vpack.c.b16 %v4419, %v4418
    %v4427 = vpack.c.b16 %v4421, %v4420
    %v4428 = vpack.c.b16 %v4423, %v4422
    %v4429 = vpack.c.b16 %v4425, %v4424
    %v4435 = vsel %vm333, %v4401, 0
    %4437 = vmatpush.bf16.msra.mxu0 0
    %4438 = vmatpush.bf16.msra.mxu0 0
    %4439 = vmatpush.bf16.msra.mxu0 0
    %4440 = vmatpush.bf16.msra.mxu0 0
    %4441 = vmatpush.bf16.msra.mxu0 %v4429
    %4442 = vmatpush.bf16.msra.mxu0 %v4428
    %4443 = vmatpush.bf16.msra.mxu0 %v4427
    %4444 = vmatpush.bf16.msra.mxu0 %v4426
    %4445 = vmatmul.bf16.gmra.mxu0 %v4435
    %v4446 = vpop.f32.mrf.mxu0
    %v4447 = vadd.f32 0.0, %v4446
    %v4448 = vpop.f32.mrf.mxu0
    %v4449 = vadd.f32 0.0, %v4448
    %4450 = vdwg.mxu0
    %v4459 = vunpack.c.l.b16 %v4391
    %v4460 = vunpack.c.l.b16 %v4392
    %v4461 = vunpack.c.l.b16 %v4393
    %v4462 = vunpack.c.l.b16 %v4394
    %v4463 = vunpack.c.l.b16 %v4395
    %v4464 = vunpack.c.l.b16 %v4396
    %v4465 = vunpack.c.l.b16 %v4397
    %v4466 = vunpack.c.l.b16 %v4398
    %v4467 = vpack.c.b16 %v4460, %v4459
    %v4468 = vpack.c.b16 %v4462, %v4461
    %v4469 = vpack.c.b16 %v4464, %v4463
    %v4470 = vpack.c.b16 %v4466, %v4465
    %v4476 = vsel %vm333, %v4390, 0
    %4478 = vmatpush.bf16.msra.mxu0 0
    %4479 = vmatpush.bf16.msra.mxu0 0
    %4480 = vmatpush.bf16.msra.mxu0 0
    %4481 = vmatpush.bf16.msra.mxu0 0
    %4482 = vmatpush.bf16.msra.mxu0 %v4470
    %4483 = vmatpush.bf16.msra.mxu0 %v4469
    %4484 = vmatpush.bf16.msra.mxu0 %v4468
    %4485 = vmatpush.bf16.msra.mxu0 %v4467
    %4486 = vmatmul.bf16.gmra.mxu0 %v4476
    %v4487 = vpop.f32.mrf.mxu0
    %v4488 = vadd.f32 %v4447, %v4487
    %v4489 = vpop.f32.mrf.mxu0
    %v4490 = vadd.f32 %v4449, %v4489
    %4491 = vdwg.mxu0
    %v4492 = vld [vmem:[#allocation26 + $0x8] sm:$0xff]
    %v4493 = vld [vmem:[#allocation26 + $0x10] sm:$0xf]
    %v4494 = vpack.c.bf16 %v4493, %v4492
    %v4495 = vld [vmem:[%s111 + $0x40] sm:$0xf]
    %v4496 = vld [vmem:[%s111 + $0x44] sm:$0xf]
    %v4497 = vld [vmem:[%s111 + $0x48] sm:$0xf]
    %v4498 = vld [vmem:[%s111 + $0x4c] sm:$0xf]
    %v4499 = vld [vmem:[%s111 + $0x50] sm:$0xf]
    %v4500 = vld [vmem:[%s111 + $0x54] sm:$0xf]
    %v4501 = vld [vmem:[%s111 + $0x58] sm:$0xf]
    %v4502 = vld [vmem:[%s111 + $0x5c] sm:$0xf]
    %v4511 = vunpack.c.l.b16 %v4495
    %v4512 = vunpack.c.l.b16 %v4496
    %v4513 = vunpack.c.l.b16 %v4497
    %v4514 = vunpack.c.l.b16 %v4498
    %v4515 = vunpack.c.l.b16 %v4499
    %v4516 = vunpack.c.l.b16 %v4500
    %v4517 = vunpack.c.l.b16 %v4501
    %v4518 = vunpack.c.l.b16 %v4502
    %v4519 = vpack.c.b16 %v4512, %v4511
    %v4520 = vpack.c.b16 %v4514, %v4513
    %v4521 = vpack.c.b16 %v4516, %v4515
    %v4522 = vpack.c.b16 %v4518, %v4517
    %v4528 = vsel %vm333, %v4494, 0
    %4530 = vmatpush.bf16.msra.mxu0 0
    %4531 = vmatpush.bf16.msra.mxu0 0
    %4532 = vmatpush.bf16.msra.mxu0 0
    %4533 = vmatpush.bf16.msra.mxu0 0
    %4534 = vmatpush.bf16.msra.mxu0 %v4522
    %4535 = vmatpush.bf16.msra.mxu0 %v4521
    %4536 = vmatpush.bf16.msra.mxu0 %v4520
    %4537 = vmatpush.bf16.msra.mxu0 %v4519
    %4538 = vmatmul.bf16.gmra.mxu0 %v4528
    %v4539 = vpop.f32.mrf.mxu0
    %v4540 = vadd.f32 0.0, %v4539
    %v4541 = vpop.f32.mrf.mxu0
    %v4542 = vadd.f32 0.0, %v4541
    %4543 = vdwg.mxu0
    %v4544 = vadd.f32 %v4488, %v4540
    %v4545 = vadd.f32 %v4490, %v4542
    %v4546 = vld [vmem:[%s113] sm:$0x1]
    %v4548 = vperm.slane %v4546, 0
    %v4550 = vadd.f32 %v4544, %v4548
    %v4551 = vadd.f32 %v4545, %v4548
    %v4552 = vadd.f32 %v4550, %v4061
    %v4553 = vmax.f32 %v4552, 0.0
    %v4554 = vadd.f32 %v4551, %v4066
    %v4555 = vmax.f32 %v4554, 0.0
    %v4556 = vsel %vm3693, %v4553, 0.0
    %v4557 = vrot.slane %v4556, 4
    %v4558 = vadd.f32 %v4556, %v4557
    %v4559 = vrot.slane %v4558, 2
    %v4560 = vadd.f32 %v4558, %v4559
    %v4561 = vrot.slane %v4560, 1
    %v4562 = vadd.f32 %v4560, %v4561
    %v4563 = vrcp.pop 2.0
    %v4564 = vmul.f32 2.0, %v4563
    %v4565 = vsub.f32 1.0, %v4564
    %v4566 = vmul.f32 %v4563, %v4565
    %v4567 = vadd.f32 %v4563, %v4566
    %vm4568 = vweird.f32 %v4563
    %v4569 = vsel %vm4568, %v4563, %v4567
    %v4570 = vmul.f32 %v4562, %v4569
    %vm4571 = vcmask 516096
    %4572 = vst.msk [vmem:[#allocation27] sm:$0x1] %vm4571, %v4570
    %v4574 = vrot.slane %v4555, 2
    %v4576 = vsel %vm3693, %v4574, 0.0
    %v4577 = vrot.slane %v4576, 4
    %v4578 = vadd.f32 %v4576, %v4577
    %v4579 = vrot.slane %v4578, 2
    %v4580 = vadd.f32 %v4578, %v4579
    %v4581 = vrot.slane %v4580, 1
    %v4582 = vadd.f32 %v4580, %v4581
    %v4583 = vmul.f32 %v4582, %v4569
    %4584 = vst.msk [vmem:[#allocation27 + $0x1] sm:$0x1] %vm4571, %v4583
    %v4585 = vld [vmem:[#allocation27] sm:$0x3]
    %v4586 = vld [vmem:[%s115] sm:$0xff]
    %v4587 = vld [vmem:[%s115 + $0x8] sm:$0xff]
    %v4588 = vld [vmem:[%s115 + $0x10] sm:$0xff]
    %v4589 = vld [vmem:[%s115 + $0x18] sm:$0xff]
    %v4590 = vld [vmem:[%s115 + $0x20] sm:$0xff]
    %v4591 = vld [vmem:[%s115 + $0x28] sm:$0xff]
    %v4592 = vld [vmem:[%s115 + $0x30] sm:$0xff]
    %v4593 = vld [vmem:[%s115 + $0x38] sm:$0xff]
    %v4594 = vld [vmem:[%s117] sm:$0x1]
    %v4596 = vperm.slane %v4594, 0
    %v4599 = vsel %vm333, %v4585, 0
    %4601 = vmatpush.msra.mxu0 0.0
    %4602 = vmatpush.msra.mxu0 0.0
    %4603 = vmatpush.msra.mxu0 0.0
    %4604 = vmatpush.msra.mxu0 0.0
    %4605 = vmatpush.msra.mxu0 0.0
    %4606 = vmatpush.msra.mxu0 0.0
    %4607 = vmatpush.msra.mxu0 0.0
    %4608 = vmatpush.msra.mxu0 0.0
    %4609 = vmatpush.msra.mxu0 %v4593
    %4610 = vmatpush.msra.mxu0 %v4592
    %4611 = vmatpush.msra.mxu0 %v4591
    %4612 = vmatpush.msra.mxu0 %v4590
    %4613 = vmatpush.msra.mxu0 %v4589
    %4614 = vmatpush.msra.mxu0 %v4588
    %4615 = vmatpush.msra.mxu0 %v4587
    %4616 = vmatpush.msra.mxu0 %v4586
    %4617 = vmatmul.f32.gmra.mxu0 %v4599
    %v4618 = vpop.f32.mrf.mxu0
    %v4619 = vadd.f32 %v4596, %v4618
    %4620 = vdwg.mxu0
    %vm4621 = vcmask 33792
    %4622 = vst.msk [vmem:[#allocation28] sm:$0x3] %vm4621, %v4619
    // Predicated region
    $region238: #{tpu_custom_call.1} parent=1 // pred_check
      _
    $region239: #{tpu_custom_call.1} parent=1 // pred_check_branch
      %4624 = sbr.rel (0) target = $region241
    $region240: #{tpu_custom_call.1} parent=1 // pred_region
      %4626 = vsyncadd [#allocation29], 0
      %s4628 = sshll.u32 [#allocation28], 4
      %s4629 = int_to_ptr.vmem [resolvable:$true] %s4628
      %s4630 = sshll.u32 %s119, 4
      %s4631 = int_to_ptr.hbm [resolvable:$true] %s4630
      %4633 = dma.vmem_to_hbm [thread:$0]  %s4629, 32, %s4631, [#allocation29]
    $region241: #{tpu_custom_call.1} parent=1 // pred_fallthru
      _
    // Predicated region
    $region242: #{tpu_custom_call.1} parent=1 // pred_check
      _
    $region243: #{tpu_custom_call.1} parent=1 // pred_check_branch
      %4635 = sbr.rel (0) target = $region245
    $region244: #{tpu_custom_call.1} parent=1 // pred_region
      %4637 = dma.done [#allocation29], 32
    $region245: #{tpu_custom_call.1} parent=1 // pred_fallthru
      _
    %4638 = vsyncpa [#allocation29], 1

</llo_original>
